<compile_context>
chip_gen: v6e
topology: v6e:2x2x1
jax: 0.10.0
libtpu: 0.0.40
codegen_flags: <defaults>
</compile_context>

<pallas_src>
import numpy as np

import jax
import jax.numpy as jnp
from jax import lax
from jax.experimental import pallas as pl
from jax.experimental.pallas import tpu as pltpu

EPS = 1e-10
BLOCKSIZE = 8
NFREQ = BLOCKSIZE // 2 + 1            # 5 rfft frequencies
NCOEF = BLOCKSIZE * NFREQ             # 40 rfft2 coefficients per 8x8 block
NPIX = BLOCKSIZE * BLOCKSIZE          # 64 pixels per block

# ---- non-trainable WatsonDistanceFft parameters (module defaults) ----
ALPHA = 0.1
BETA = 1.0                                                       # baked in (==1)
W_PARAM = float(1.0 / (1.0 + np.exp(-np.log(0.2 / 0.8))))        # sigmoid(w_tild) == 0.2
W_PHASE_VAL = float(np.exp(-2.0))
T_PARAM = np.ones((BLOCKSIZE, NFREQ), np.float32)                # exp(t_tild), t_tild = 0
W_PHASE = np.full((BLOCKSIZE, NFREQ), W_PHASE_VAL, np.float32)
W_PHASE[0, 0] = 0.0
W_PHASE[0, NFREQ - 1] = 0.0
W_PHASE[NFREQ - 1, NFREQ - 1] = 0.0
W_PHASE[NFREQ - 1, 0] = 0.0
# Flattened (p*NFREQ + f) rows whose phase weight is zero: (0,0),(0,4),(4,0),(4,4).
_ZERO_ROWS = (0, NFREQ - 1, (NFREQ - 1) * NFREQ, (NFREQ - 1) * NFREQ + NFREQ - 1)

# Abramowitz & Stegun 4.4.46 arccos polynomial, |error| <= 2e-8 on [0, 1].
_ACOS_COEFFS = (1.5707963050, -0.2145988016, 0.0889789874, -0.0501743046,
                0.0308918810, -0.0170881256, 0.0066700901, -0.0012624911)


def _dft_matrices():
    """Real/imag (40, 64) matrices of the flattened blockwise rfft2 (incl. 1/64)."""
    p = np.arange(BLOCKSIZE).reshape(-1, 1, 1, 1)
    f = np.arange(NFREQ).reshape(1, -1, 1, 1)
    m = np.arange(BLOCKSIZE).reshape(1, 1, -1, 1)
    n = np.arange(BLOCKSIZE).reshape(1, 1, 1, -1)
    ang = 2.0 * np.pi * (p * m + f * n) / BLOCKSIZE
    f_re = (np.cos(ang) / (BLOCKSIZE ** 2)).reshape(NCOEF, NPIX).astype(np.float32)
    f_im = (-np.sin(ang) / (BLOCKSIZE ** 2)).reshape(NCOEF, NPIX).astype(np.float32)
    return f_re, f_im


def _to_blocks(x):
    """(N, 1, H, W) -> (N, 64, K); row = kh*8+kw, block index = bh*Wb+bw (unfold order)."""
    N, _, H, W = x.shape
    hb, wb = H // BLOCKSIZE, W // BLOCKSIZE
    xb = x[:, 0].reshape(N, hb, BLOCKSIZE, wb, BLOCKSIZE)
    xb = xb.transpose(0, 2, 4, 1, 3)                 # (N, 8, 8, hb, wb)
    return xb.reshape(N, NPIX, hb * wb).astype(jnp.float32)


def _pick_k_tile(K):
    """Pick a lane-tile for the block axis (bounds per-step VMEM on big images)."""
    if K <= 2048:
        return K
    for cand in (2048, 1024, 512, 256, 128):
        if K % cand == 0:
            return cand
    return K        # TODO(synk): lane masking for K not divisible by 128-multiples


def _watson_kernel(log_avg_ref, f_ref, tgt_ref, inp_ref, out_ref):
    """One (batch, K-tile) step of the Watson-FFT distance."""
    one_minus = 1.0 - EPS * 1e3                       # (1 - 1e-7)

    @pl.when(pl.program_id(1) == 0)
    def _():
        out_ref[...] = jnp.zeros_like(out_ref)

    x0 = tgt_ref[...]                                 # target blocks, (64, TK)
    x1 = inp_ref[...]                                 # input blocks,  (64, TK)
    fmat = f_ref[...]                                 # stacked [re; im], (80, 64)

    # Blockwise rfft2 as two MXU matmuls (lane axis = block index).
    c0 = jnp.dot(fmat, x0, preferred_element_type=jnp.float32)    # (80, TK)
    c1 = jnp.dot(fmat, x1, preferred_element_type=jnp.float32)
    c0r, c0i = c0[:NCOEF, :], c0[NCOEF:, :]           # 8-aligned row slices
    c1r, c1i = c1[:NCOEF, :], c1[NCOEF:, :]

    c0re = c0r + EPS
    c1re = c1r + EPS
    c0_amp = jnp.sqrt(c0re * c0re + (c0i + EPS) * (c0i + EPS))
    c1_amp = jnp.sqrt(c1re * c1re + (c1i + EPS) * (c1i + EPS))

    # Luminance-adapted thresholds (T == 1): t_l is a broadcast (1, TK) row.
    dc_amp = c0_amp[0:1, :]                           # (p, f) == (0, 0) row, (1, TK)
    log_t_l = ALPHA * (jnp.log(dc_amp + EPS) - log_avg_ref[0, 0])   # (1, TK)
    t_l = jnp.exp(log_t_l)                            # (1, TK)

    # Contrast masking: exact sigmoid form of the 2-way softmax mix.
    b = jnp.exp(W_PARAM * jnp.log(c0_amp + EPS) + (1.0 - W_PARAM) * log_t_l)  # (40, TK)
    d = b - t_l
    s = t_l + d * (0.5 * (1.0 + jnp.tanh(0.5 * d)))

    # Watson amplitude distance (BETA == 1 -> plain |.|/s, per-batch ^(1/beta) is a no-op).
    wd_el = jnp.abs(c0_amp - c1_amp) * pl.reciprocal(s, approx=True) + 2.0 * EPS

    # Phase distance: cos(phase0 - phase1) algebraically, polynomial acos.
    r0sq = c0re * c0re + c0i * c0i
    r1sq = c1re * c1re + c1i * c1i
    num = c0re * c1re + c0i * c1i
    cosd = num * lax.rsqrt(jnp.maximum(r0sq * r1sq, 1e-30))
    z = cosd * one_minus
    za = jnp.abs(z)
    poly = jnp.full_like(za, _ACOS_COEFFS[-1])
    for c in _ACOS_COEFFS[-2::-1]:
        poly = poly * za + c
    acos_pos = jnp.sqrt(jnp.maximum(1.0 - za, 0.0)) * poly
    ph = jnp.where(z < 0.0, np.pi - acos_pos, acos_pos)

    rows = lax.broadcasted_iota(jnp.int32, ph.shape, 0)
    corner = ((rows == _ZERO_ROWS[0]) | (rows == _ZERO_ROWS[1]) |
              (rows == _ZERO_ROWS[2]) | (rows == _ZERO_ROWS[3]))
    pd_el = jnp.where(corner, 0.0, W_PHASE_VAL) * ph

    # Single fused reduction of amplitude + phase contributions.
    total = wd_el + pd_el                                          # (40, TK)
    partial = jnp.sum(total, axis=0, keepdims=True)                # (1, TK)
    out_ref[...] += jnp.sum(partial, axis=1, keepdims=True)        # (1, 1) per batch


@jax.jit
def watson_distance_fft(inp, tgt):
    """Pallas implementation of WatsonDistanceFft(reduction='sum').forward(inp, tgt)."""
    N, C, H, W = inp.shape
    assert tgt.shape == inp.shape
    assert C == 1, "FFT is only implemented for a single channel"
    assert H >= BLOCKSIZE and W >= BLOCKSIZE
    assert H % BLOCKSIZE == 0 and W % BLOCKSIZE == 0
    K = (H // BLOCKSIZE) * (W // BLOCKSIZE)

    inp_b = _to_blocks(inp)          # (N, 64, K) lane-dense block layout
    tgt_b = _to_blocks(tgt)

    # avg_lum (scalar) from the target DC amplitudes, computed in the wrapper so
    # XLA can fuse it with the relayout -- no extra Pallas pass / HBM re-read.
    dc = jnp.mean(tgt_b, axis=1)                                  # (N, K) block means
    dc_amp = jnp.sqrt((dc + EPS) * (dc + EPS) + EPS * EPS)
    log_avg = jnp.log(jnp.mean(dc_amp) + EPS).reshape(1, 1).astype(jnp.float32)

    f_re_np, f_im_np = _dft_matrices()
    f_mat = jnp.asarray(np.concatenate([f_re_np, f_im_np], axis=0))   # (80, 64)

    TK = _pick_k_tile(K)
    KT = K // TK

    # Derive a VMEM budget from the actual tile sizes (double-buffered inputs +
    # F + ~20 live (40, TK) f32 temporaries), clamped to TPU-safe bounds.
    tile_bytes = (2 * 2 * NPIX * TK * 4          # 2 inputs x 2 buffers
                  + 2 * 2 * NCOEF * NPIX * 4     # stacked DFT matrix x 2 buffers
                  + 20 * NCOEF * TK * 4)         # live f32 temporaries
    vmem_limit = int(min(max(2 * tile_bytes, 32 * 1024 * 1024), 64 * 1024 * 1024))

    cparams = pltpu.CompilerParams(
        dimension_semantics=("parallel", "arbitrary"),   # batch || (v7x 2 TCs), K-tiles serial
        vmem_limit_bytes=vmem_limit,
    )

    out = pl.pallas_call(
        _watson_kernel,
        out_shape=jax.ShapeDtypeStruct((N, 1, 1), jnp.float32),
        grid=(N, KT),
        in_specs=[
            pl.BlockSpec((1, 1), lambda i, k: (0, 0)),                 # log(avg_lum + EPS)
            pl.BlockSpec((2 * NCOEF, NPIX), lambda i, k: (0, 0)),      # stacked DFT [re; im]
            pl.BlockSpec((None, NPIX, TK), lambda i, k: (i, 0, k)),    # target blocks
            pl.BlockSpec((None, NPIX, TK), lambda i, k: (i, 0, k)),    # input blocks
        ],
        out_specs=pl.BlockSpec((None, 1, 1), lambda i, k: (i, 0, 0)),  # per-batch partial
        compiler_params=cparams,
    )(log_avg, f_mat, tgt_b, inp_b)

    return jnp.sum(out)              # reduction='sum' over the batch


def _reference(inp, tgt):
    """Pure-JAX reference reproducing the PyTorch forward (via jnp.fft.rfft2)."""
    N, _, H, W = inp.shape
    hb, wb = H // BLOCKSIZE, W // BLOCKSIZE
    K = hb * wb

    def blocks(x):
        x = x[:, 0].reshape(N, hb, BLOCKSIZE, wb, BLOCKSIZE).transpose(0, 1, 3, 2, 4)
        return x.reshape(N, K, BLOCKSIZE, BLOCKSIZE).astype(jnp.float32)

    c0 = jnp.fft.rfft2(blocks(tgt)) / (BLOCKSIZE ** 2)    # (N, K, 8, 5) complex64
    c1 = jnp.fft.rfft2(blocks(inp)) / (BLOCKSIZE ** 2)

    c0_amp = jnp.sqrt((c0.real + EPS) ** 2 + (c0.imag + EPS) ** 2)
    c1_amp = jnp.sqrt((c1.real + EPS) ** 2 + (c1.imag + EPS) ** 2)
    avg_lum = jnp.mean(c0_amp[:, :, 0, 0])

    t = jnp.asarray(T_PARAM)
    t_l = t[None, None] * (((c0_amp[:, :, 0, 0] + EPS) /
                            (avg_lum + EPS)) ** ALPHA)[:, :, None, None]
    b = (c0_amp + EPS) ** W_PARAM * t_l ** (1.0 - W_PARAM)
    sf = jax.nn.softmax(jnp.stack([t_l, b], axis=-1), axis=-1)
    s = t_l * sf[..., 0] + b * sf[..., 1]

    wd = (jnp.abs((c0_amp - c1_amp) / s) + EPS) ** BETA + EPS
    wd = jnp.sum(wd, axis=(1, 2, 3)) ** (1.0 / BETA)

    ph0 = jnp.arctan2(c0.imag, c0.real + EPS)
    ph1 = jnp.arctan2(c1.imag, c1.real + EPS)
    pd = jnp.arccos(jnp.cos(ph0 - ph1) * (1.0 - EPS * 1e3)) * jnp.asarray(W_PHASE)[None, None]
    pd = jnp.sum(pd, axis=(1, 2, 3))
    return jnp.sum(wd + pd)


if __name__ == "__main__":
    key = jax.random.PRNGKey(0)
    k1, k2 = jax.random.split(key)
    # N=2, C=1 (module asserts C==1), H=64, W=128 -> 128 blocks of 8x8 per image
    # (exactly one full 128-wide lane vector per sublane row: lane-dense).
    shape = (2, 1, 64, 128)
    inp = jax.random.normal(k1, shape, dtype=jnp.float32)
    tgt = jax.random.normal(k2, shape, dtype=jnp.float32)

    loss = watson_distance_fft(inp, tgt)
    jax.block_until_ready(loss)

    ref = _reference(inp, tgt)
    assert loss.shape == ()
    assert bool(jnp.isfinite(loss)), loss
    assert jnp.allclose(loss, ref, rtol=2e-3, atol=1e-2), (loss, ref)

    print("KERNEL_OK")
</pallas_src>

<mosaic_0001>
module attributes {stable_mosaic.version = 11 : i64} {
  func.func @_watson_kernel(%arg0: i32, %arg1: i32, %arg2: memref<1x1xf32, #tpu.memory_space<vmem>>, %arg3: memref<80x64xf32, #tpu.memory_space<vmem>>, %arg4: memref<1x64x128xf32, #tpu.memory_space<vmem>>, %arg5: memref<1x64x128xf32, #tpu.memory_space<vmem>>, %arg6: memref<1x1x1xf32, #tpu.memory_space<vmem>>) attributes {dimension_semantics = [#tpu.dimension_semantics<parallel>, #tpu.dimension_semantics<arbitrary>], iteration_bounds = array<i64: 2, 1>, scalar_prefetch = 0 : i64, scratch_operands = 0 : i64, tpu.core_type = #tpu.core_type<tc>, window_params = [{pipeline_mode = #tpu.pipeline_mode<synchronous>, transform_indices = @transform_0, window_bounds = array<i64: 1, 1>}, {pipeline_mode = #tpu.pipeline_mode<synchronous>, transform_indices = @transform_1, window_bounds = array<i64: 80, 64>}, {transform_indices = @transform_2, window_bounds = array<i64: 1, 64, 128>}, {transform_indices = @transform_3, window_bounds = array<i64: 1, 64, 128>}, {transform_indices = @transform_4, window_bounds = array<i64: 1, 1, 1>}]} {
    %c0_i32 = arith.constant 0 : i32
    %0 = arith.cmpi eq, %arg1, %c0_i32 : i32
    %1 = arith.extui %0 : i1 to i32
    %c0_i32_0 = arith.constant 0 : i32
    %2 = arith.cmpi ne, %1, %c0_i32_0 : i32
    scf.if %2 {
      %cst_51 = arith.constant 0.000000e+00 : f32
      %150 = vector.broadcast %cst_51 : f32 to vector<1x1xf32>
      %c0_52 = arith.constant 0 : index
      %c0_53 = arith.constant 0 : index
      %c0_54 = arith.constant 0 : index
      %151 = vector.load %arg6[%c0_52, %c0_53, %c0_54] : memref<1x1x1xf32, #tpu.memory_space<vmem>>, vector<1x1x1xf32>
      %152 = vector.shape_cast %151 : vector<1x1x1xf32> to vector<1x1xf32>
      %153 = vector.shape_cast %150 : vector<1x1xf32> to vector<1x1x1xf32>
      tpu.vector_store %arg6[%c0_52, %c0_53, %c0_54], %153 {strides = array<i32>} : memref<1x1x1xf32, #tpu.memory_space<vmem>>, vector<1x1x1xf32>,
    } else {
    }
    %c0 = arith.constant 0 : index
    %c0_1 = arith.constant 0 : index
    %c0_2 = arith.constant 0 : index
    %3 = vector.load %arg4[%c0, %c0_1, %c0_2] : memref<1x64x128xf32, #tpu.memory_space<vmem>>, vector<1x64x128xf32>
    %4 = vector.shape_cast %3 : vector<1x64x128xf32> to vector<64x128xf32>
    %c0_3 = arith.constant 0 : index
    %c0_4 = arith.constant 0 : index
    %c0_5 = arith.constant 0 : index
    %5 = vector.load %arg5[%c0_3, %c0_4, %c0_5] : memref<1x64x128xf32, #tpu.memory_space<vmem>>, vector<1x64x128xf32>
    %6 = vector.shape_cast %5 : vector<1x64x128xf32> to vector<64x128xf32>
    %c0_6 = arith.constant 0 : index
    %c0_7 = arith.constant 0 : index
    %7 = vector.load %arg3[%c0_6, %c0_7] : memref<80x64xf32, #tpu.memory_space<vmem>>, vector<80x64xf32>
    %cst = arith.constant dense<0.000000e+00> : vector<80x128xf32>
    %8 = tpu.matmul %7, %4, %cst {dimension_numbers = #tpu.dot_dimension_numbers<[1], [0], [0], [1], [0, 0, 1, 1], [], []>} : vector<80x64xf32>, vector<64x128xf32>, vector<80x128xf32> -> vector<80x128xf32>
    %cst_8 = arith.constant dense<0.000000e+00> : vector<80x128xf32>
    %9 = tpu.matmul %7, %6, %cst_8 {dimension_numbers = #tpu.dot_dimension_numbers<[1], [0], [0], [1], [0, 0, 1, 1], [], []>} : vector<80x64xf32>, vector<64x128xf32>, vector<80x128xf32> -> vector<80x128xf32>
    %10 = vector.extract_strided_slice %8 {offsets = [0, 0], sizes = [40, 128], strides = [1, 1]} : vector<80x128xf32> to vector<40x128xf32>
    %11 = vector.extract_strided_slice %8 {offsets = [40, 0], sizes = [40, 128], strides = [1, 1]} : vector<80x128xf32> to vector<40x128xf32>
    %12 = vector.extract_strided_slice %9 {offsets = [0, 0], sizes = [40, 128], strides = [1, 1]} : vector<80x128xf32> to vector<40x128xf32>
    %13 = vector.extract_strided_slice %9 {offsets = [40, 0], sizes = [40, 128], strides = [1, 1]} : vector<80x128xf32> to vector<40x128xf32>
    %cst_9 = arith.constant 1.000000e-10 : f32
    %14 = vector.broadcast %cst_9 : f32 to vector<40x128xf32>
    %15 = arith.addf %10, %14 : vector<40x128xf32>
    %cst_10 = arith.constant 1.000000e-10 : f32
    %16 = vector.broadcast %cst_10 : f32 to vector<40x128xf32>
    %17 = arith.addf %12, %16 : vector<40x128xf32>
    %18 = arith.mulf %15, %15 : vector<40x128xf32>
    %cst_11 = arith.constant 1.000000e-10 : f32
    %19 = vector.broadcast %cst_11 : f32 to vector<40x128xf32>
    %20 = arith.addf %11, %19 : vector<40x128xf32>
    %cst_12 = arith.constant 1.000000e-10 : f32
    %21 = vector.broadcast %cst_12 : f32 to vector<40x128xf32>
    %22 = arith.addf %11, %21 : vector<40x128xf32>
    %23 = arith.mulf %20, %22 : vector<40x128xf32>
    %24 = arith.addf %18, %23 : vector<40x128xf32>
    %25 = math.sqrt %24 : vector<40x128xf32>
    %26 = arith.mulf %17, %17 : vector<40x128xf32>
    %cst_13 = arith.constant 1.000000e-10 : f32
    %27 = vector.broadcast %cst_13 : f32 to vector<40x128xf32>
    %28 = arith.addf %13, %27 : vector<40x128xf32>
    %cst_14 = arith.constant 1.000000e-10 : f32
    %29 = vector.broadcast %cst_14 : f32 to vector<40x128xf32>
    %30 = arith.addf %13, %29 : vector<40x128xf32>
    %31 = arith.mulf %28, %30 : vector<40x128xf32>
    %32 = arith.addf %26, %31 : vector<40x128xf32>
    %33 = math.sqrt %32 : vector<40x128xf32>
    %34 = vector.extract_strided_slice %25 {offsets = [0, 0], sizes = [1, 128], strides = [1, 1]} : vector<40x128xf32> to vector<1x128xf32>
    %cst_15 = arith.constant 1.000000e-10 : f32
    %35 = vector.broadcast %cst_15 : f32 to vector<1x128xf32>
    %36 = arith.addf %34, %35 : vector<1x128xf32>
    %37 = math.log %36 : vector<1x128xf32>
    %c0_16 = arith.constant 0 : index
    %c0_17 = arith.constant 0 : index
    %38 = vector.load %arg2[%c0_16, %c0_17] : memref<1x1xf32, #tpu.memory_space<vmem>>, vector<1x1xf32>
    %39 = vector.extract %38[0, 0] : f32 from vector<1x1xf32>
    %40 = vector.broadcast %39 : f32 to vector<1x128xf32>
    %41 = arith.subf %37, %40 : vector<1x128xf32>
    %cst_18 = arith.constant 1.000000e-01 : f32
    %42 = vector.broadcast %cst_18 : f32 to vector<1x128xf32>
    %43 = arith.mulf %42, %41 : vector<1x128xf32>
    %44 = math.exp %43 : vector<1x128xf32>
    %cst_19 = arith.constant 1.000000e-10 : f32
    %45 = vector.broadcast %cst_19 : f32 to vector<40x128xf32>
    %46 = arith.addf %25, %45 : vector<40x128xf32>
    %47 = math.log %46 : vector<40x128xf32>
    %cst_20 = arith.constant 2.000000e-01 : f32
    %48 = vector.broadcast %cst_20 : f32 to vector<40x128xf32>
    %49 = arith.mulf %48, %47 : vector<40x128xf32>
    %cst_21 = arith.constant 8.000000e-01 : f32
    %50 = vector.broadcast %cst_21 : f32 to vector<1x128xf32>
    %51 = arith.mulf %50, %43 : vector<1x128xf32>
    %52 = vector.broadcast %51 : vector<1x128xf32> to vector<40x128xf32>
    %53 = arith.addf %49, %52 : vector<40x128xf32>
    %54 = math.exp %53 : vector<40x128xf32>
    %55 = vector.broadcast %44 : vector<1x128xf32> to vector<40x128xf32>
    %56 = arith.subf %54, %55 : vector<40x128xf32>
    %cst_22 = arith.constant 5.000000e-01 : f32
    %57 = vector.broadcast %cst_22 : f32 to vector<40x128xf32>
    %58 = arith.mulf %57, %56 : vector<40x128xf32>
    %59 = math.tanh %58 : vector<40x128xf32>
    %cst_23 = arith.constant 1.000000e+00 : f32
    %60 = vector.broadcast %cst_23 : f32 to vector<40x128xf32>
    %61 = arith.addf %60, %59 : vector<40x128xf32>
    %cst_24 = arith.constant 5.000000e-01 : f32
    %62 = vector.broadcast %cst_24 : f32 to vector<40x128xf32>
    %63 = arith.mulf %62, %61 : vector<40x128xf32>
    %64 = arith.mulf %56, %63 : vector<40x128xf32>
    %65 = vector.broadcast %44 : vector<1x128xf32> to vector<40x128xf32>
    %66 = arith.addf %65, %64 : vector<40x128xf32>
    %67 = arith.subf %25, %33 : vector<40x128xf32>
    %68 = math.absf %67 : vector<40x128xf32>
    %69 = tpu.reciprocal %66 {approx = true} : vector<40x128xf32> -> vector<40x128xf32>
    %70 = arith.mulf %68, %69 : vector<40x128xf32>
    %cst_25 = arith.constant 2.000000e-10 : f32
    %71 = vector.broadcast %cst_25 : f32 to vector<40x128xf32>
    %72 = arith.addf %70, %71 : vector<40x128xf32>
    %73 = arith.mulf %15, %15 : vector<40x128xf32>
    %74 = arith.mulf %11, %11 : vector<40x128xf32>
    %75 = arith.addf %73, %74 : vector<40x128xf32>
    %76 = arith.mulf %17, %17 : vector<40x128xf32>
    %77 = arith.mulf %13, %13 : vector<40x128xf32>
    %78 = arith.addf %76, %77 : vector<40x128xf32>
    %79 = arith.mulf %15, %17 : vector<40x128xf32>
    %80 = arith.mulf %11, %13 : vector<40x128xf32>
    %81 = arith.addf %79, %80 : vector<40x128xf32>
    %82 = arith.mulf %75, %78 : vector<40x128xf32>
    %cst_26 = arith.constant 1.000000e-30 : f32
    %83 = vector.broadcast %cst_26 : f32 to vector<40x128xf32>
    %84 = arith.maximumf %82, %83 : vector<40x128xf32>
    %85 = math.rsqrt %84 : vector<40x128xf32>
    %86 = arith.mulf %81, %85 : vector<40x128xf32>
    %cst_27 = arith.constant 0.99999988 : f32
    %87 = vector.broadcast %cst_27 : f32 to vector<40x128xf32>
    %88 = arith.mulf %86, %87 : vector<40x128xf32>
    %89 = math.absf %88 : vector<40x128xf32>
    %cst_28 = arith.constant -0.0012624911 : f32
    %90 = vector.broadcast %cst_28 : f32 to vector<40x128xf32>
    %91 = arith.mulf %90, %89 : vector<40x128xf32>
    %cst_29 = arith.constant 6.670090e-03 : f32
    %92 = vector.broadcast %cst_29 : f32 to vector<40x128xf32>
    %93 = arith.addf %91, %92 : vector<40x128xf32>
    %94 = arith.mulf %93, %89 : vector<40x128xf32>
    %cst_30 = arith.constant -0.0170881264 : f32
    %95 = vector.broadcast %cst_30 : f32 to vector<40x128xf32>
    %96 = arith.addf %94, %95 : vector<40x128xf32>
    %97 = arith.mulf %96, %89 : vector<40x128xf32>
    %cst_31 = arith.constant 0.0308918804 : f32
    %98 = vector.broadcast %cst_31 : f32 to vector<40x128xf32>
    %99 = arith.addf %97, %98 : vector<40x128xf32>
    %100 = arith.mulf %99, %89 : vector<40x128xf32>
    %cst_32 = arith.constant -0.0501743034 : f32
    %101 = vector.broadcast %cst_32 : f32 to vector<40x128xf32>
    %102 = arith.addf %100, %101 : vector<40x128xf32>
    %103 = arith.mulf %102, %89 : vector<40x128xf32>
    %cst_33 = arith.constant 0.0889789909 : f32
    %104 = vector.broadcast %cst_33 : f32 to vector<40x128xf32>
    %105 = arith.addf %103, %104 : vector<40x128xf32>
    %106 = arith.mulf %105, %89 : vector<40x128xf32>
    %cst_34 = arith.constant -0.214598805 : f32
    %107 = vector.broadcast %cst_34 : f32 to vector<40x128xf32>
    %108 = arith.addf %106, %107 : vector<40x128xf32>
    %109 = arith.mulf %108, %89 : vector<40x128xf32>
    %cst_35 = arith.constant 1.57079625 : f32
    %110 = vector.broadcast %cst_35 : f32 to vector<40x128xf32>
    %111 = arith.addf %109, %110 : vector<40x128xf32>
    %cst_36 = arith.constant 1.000000e+00 : f32
    %112 = vector.broadcast %cst_36 : f32 to vector<40x128xf32>
    %113 = arith.subf %112, %89 : vector<40x128xf32>
    %cst_37 = arith.constant 0.000000e+00 : f32
    %114 = vector.broadcast %cst_37 : f32 to vector<40x128xf32>
    %115 = arith.maximumf %113, %114 : vector<40x128xf32>
    %116 = math.sqrt %115 : vector<40x128xf32>
    %117 = arith.mulf %116, %111 : vector<40x128xf32>
    %cst_38 = arith.constant 0.000000e+00 : f32
    %118 = vector.broadcast %cst_38 : f32 to vector<40x128xf32>
    %119 = arith.cmpf olt, %88, %118 : vector<40x128xf32>
    %cst_39 = arith.constant 3.14159274 : f32
    %120 = vector.broadcast %cst_39 : f32 to vector<40x128xf32>
    %121 = arith.subf %120, %117 : vector<40x128xf32>
    %122 = arith.select %119, %121, %117 : vector<40x128xi1>, vector<40x128xf32>
    %123 = tpu.iota {dimensions = array<i32: 0>} : vector<40x128xi32>
    %c0_i32_40 = arith.constant 0 : i32
    %124 = vector.broadcast %c0_i32_40 : i32 to vector<40x128xi32>
    %125 = arith.cmpi eq, %123, %124 : vector<40x128xi32>
    %c4_i32 = arith.constant 4 : i32
    %126 = vector.broadcast %c4_i32 : i32 to vector<40x128xi32>
    %127 = arith.cmpi eq, %123, %126 : vector<40x128xi32>
    %128 = arith.ori %125, %127 : vector<40x128xi1>
    %c20_i32 = arith.constant 20 : i32
    %129 = vector.broadcast %c20_i32 : i32 to vector<40x128xi32>
    %130 = arith.cmpi eq, %123, %129 : vector<40x128xi32>
    %131 = arith.ori %128, %130 : vector<40x128xi1>
    %c24_i32 = arith.constant 24 : i32
    %132 = vector.broadcast %c24_i32 : i32 to vector<40x128xi32>
    %133 = arith.cmpi eq, %123, %132 : vector<40x128xi32>
    %134 = arith.ori %131, %133 : vector<40x128xi1>
    %cst_41 = arith.constant 0.000000e+00 : f32
    %cst_42 = arith.constant 0.135335281 : f32
    %135 = vector.broadcast %cst_41 : f32 to vector<40x128xf32>
    %136 = vector.broadcast %cst_42 : f32 to vector<40x128xf32>
    %137 = arith.select %134, %135, %136 : vector<40x128xi1>, vector<40x128xf32>
    %138 = arith.mulf %137, %122 : vector<40x128xf32>
    %139 = arith.addf %72, %138 : vector<40x128xf32>
    %cst_43 = arith.constant dense<0.000000e+00> : vector<128xf32>
    %140 = vector.multi_reduction <add>, %139, %cst_43 [0] : vector<40x128xf32> to vector<128xf32>
    %141 = vector.shape_cast %140 : vector<128xf32> to vector<1x128xf32>
    %c0_44 = arith.constant 0 : index
    %c0_45 = arith.constant 0 : index
    %c0_46 = arith.constant 0 : index
    %142 = vector.load %arg6[%c0_44, %c0_45, %c0_46] : memref<1x1x1xf32, #tpu.memory_space<vmem>>, vector<1x1x1xf32>
    %143 = vector.shape_cast %142 : vector<1x1x1xf32> to vector<1x1xf32>
    %cst_47 = arith.constant dense<0.000000e+00> : vector<1xf32>
    %144 = vector.multi_reduction <add>, %141, %cst_47 [1] : vector<1x128xf32> to vector<1xf32>
    %145 = vector.shape_cast %144 : vector<1xf32> to vector<1x1xf32>
    %146 = arith.addf %143, %145 : vector<1x1xf32>
    %c0_48 = arith.constant 0 : index
    %c0_49 = arith.constant 0 : index
    %c0_50 = arith.constant 0 : index
    %147 = vector.load %arg6[%c0_48, %c0_49, %c0_50] : memref<1x1x1xf32, #tpu.memory_space<vmem>>, vector<1x1x1xf32>
    %148 = vector.shape_cast %147 : vector<1x1x1xf32> to vector<1x1xf32>
    %149 = vector.shape_cast %146 : vector<1x1xf32> to vector<1x1x1xf32>
    tpu.vector_store %arg6[%c0_48, %c0_49, %c0_50], %149 {strides = array<i32>} : memref<1x1x1xf32, #tpu.memory_space<vmem>>, vector<1x1x1xf32>,
    return
  }
  func.func @transform_0(%arg0: i32, %arg1: i32) -> (i32, i32) {
    %c0_i32 = arith.constant 0 : i32
    %c0_i32_0 = arith.constant 0 : i32
    %c0_i32_1 = arith.constant 0 : i32
    return %c0_i32, %c0_i32_0 : i32, i32
  }
  func.func @transform_1(%arg0: i32, %arg1: i32) -> (i32, i32) {
    %c0_i32 = arith.constant 0 : i32
    %c0_i32_0 = arith.constant 0 : i32
    %c0_i32_1 = arith.constant 0 : i32
    return %c0_i32, %c0_i32_0 : i32, i32
  }
  func.func @transform_2(%arg0: i32, %arg1: i32) -> (i32, i32, i32) {
    %c0_i32 = arith.constant 0 : i32
    %c0_i32_0 = arith.constant 0 : i32
    return %arg0, %c0_i32, %arg1 : i32, i32, i32
  }
  func.func @transform_3(%arg0: i32, %arg1: i32) -> (i32, i32, i32) {
    %c0_i32 = arith.constant 0 : i32
    %c0_i32_0 = arith.constant 0 : i32
    return %arg0, %c0_i32, %arg1 : i32, i32, i32
  }
  func.func @transform_4(%arg0: i32, %arg1: i32) -> (i32, i32, i32) {
    %c0_i32 = arith.constant 0 : i32
    %c0_i32_0 = arith.constant 0 : i32
    %c0_i32_1 = arith.constant 0 : i32
    return %arg0, %c0_i32, %c0_i32_0 : i32, i32, i32
  }
}

</mosaic_0001>

<llo_original>
// kernel: squeeze.3
$region0: #{squeeze.3}
  %s0 = inlined_call_operand.hbm [shape: f32[2,1,64,128], index: 0, kind: input, shape index: {}]
  %s1 = inlined_call_operand.vmem [shape: f32[2,8,8,16,8], index: 1, kind: output, shape index: {}]
  $region1: #{squeeze.3} parent=0
    #allocation0 [shape = 'u8[65536]{0}', space=vmem, size = 0x10000, scoped, tag = 'operand span for operand 0']
    #allocation1 [shape = 's32[1]{0}', space=sflag, size = 0x4, scoped, tag = 'scoped memory for squeeze.3']
    %2 = vsyncpa [#allocation1], 0
    %s4 = ssub.s32 2048, 2048
    %5 = vsyncadd [#allocation1], %s4
    %s7 = sshll.u32 [#allocation0], 4
    %s8 = int_to_ptr.vmem [resolvable:$true] %s7
    %10 = dma.hbm_to_vmem [thread:$0]  %s0, 2048, %s8, [#allocation1]
    %11 = dma.done [#allocation1], 2048
    %v12 = vld [vmem:[#allocation0] sm:$0xff]
    %vm13 = vcmask 64512
    %14 = vst.msk [vmem:[%s1] ss:$16 sm:$0x3] %vm13, %v12
    %15 = vst.msk [vmem:[%s1] ss:$16 sm:$0xc] %vm13, %v12
    %16 = vst.msk [vmem:[%s1] ss:$16 sm:$0x30] %vm13, %v12
    %17 = vst.msk [vmem:[%s1] ss:$16 sm:$0xc0] %vm13, %v12
    %s18 = scalar_lea.vmem [#allocation0], 8
    %v19 = vld [vmem:[%s18] sm:$0xff]
    %vm20 = vcmask 64512
    %s21 = scalar_lea.vmem %s1, 128
    %22 = vst.msk [vmem:[%s21] ss:$16 sm:$0x3] %vm20, %v19
    %s23 = scalar_lea.vmem %s1, 128
    %24 = vst.msk [vmem:[%s23] ss:$16 sm:$0xc] %vm20, %v19
    %s25 = scalar_lea.vmem %s1, 128
    %26 = vst.msk [vmem:[%s25] ss:$16 sm:$0x30] %vm20, %v19
    %s27 = scalar_lea.vmem %s1, 128
    %28 = vst.msk [vmem:[%s27] ss:$16 sm:$0xc0] %vm20, %v19
    %s29 = scalar_lea.vmem [#allocation0], 16
    %v30 = vld [vmem:[%s29] sm:$0xff]
    %vm31 = vcmask 64512
    %s32 = scalar_lea.vmem %s1, 256
    %33 = vst.msk [vmem:[%s32] ss:$16 sm:$0x3] %vm31, %v30
    %s34 = scalar_lea.vmem %s1, 256
    %35 = vst.msk [vmem:[%s34] ss:$16 sm:$0xc] %vm31, %v30
    %s36 = scalar_lea.vmem %s1, 256
    %37 = vst.msk [vmem:[%s36] ss:$16 sm:$0x30] %vm31, %v30
    %s38 = scalar_lea.vmem %s1, 256
    %39 = vst.msk [vmem:[%s38] ss:$16 sm:$0xc0] %vm31, %v30
    %s40 = scalar_lea.vmem [#allocation0], 24
    %v41 = vld [vmem:[%s40] sm:$0xff]
    %vm42 = vcmask 64512
    %s43 = scalar_lea.vmem %s1, 384
    %44 = vst.msk [vmem:[%s43] ss:$16 sm:$0x3] %vm42, %v41
    %s45 = scalar_lea.vmem %s1, 384
    %46 = vst.msk [vmem:[%s45] ss:$16 sm:$0xc] %vm42, %v41
    %s47 = scalar_lea.vmem %s1, 384
    %48 = vst.msk [vmem:[%s47] ss:$16 sm:$0x30] %vm42, %v41
    %s49 = scalar_lea.vmem %s1, 384
    %50 = vst.msk [vmem:[%s49] ss:$16 sm:$0xc0] %vm42, %v41
    %s51 = scalar_lea.vmem [#allocation0], 32
    %v52 = vld [vmem:[%s51] sm:$0xff]
    %vm53 = vcmask 64512
    %s54 = scalar_lea.vmem %s1, 512
    %55 = vst.msk [vmem:[%s54] ss:$16 sm:$0x3] %vm53, %v52
    %s56 = scalar_lea.vmem %s1, 512
    %57 = vst.msk [vmem:[%s56] ss:$16 sm:$0xc] %vm53, %v52
    %s58 = scalar_lea.vmem %s1, 512
    %59 = vst.msk [vmem:[%s58] ss:$16 sm:$0x30] %vm53, %v52
    %s60 = scalar_lea.vmem %s1, 512
    %61 = vst.msk [vmem:[%s60] ss:$16 sm:$0xc0] %vm53, %v52
    %s62 = scalar_lea.vmem [#allocation0], 40
    %v63 = vld [vmem:[%s62] sm:$0xff]
    %vm64 = vcmask 64512
    %s65 = scalar_lea.vmem %s1, 640
    %66 = vst.msk [vmem:[%s65] ss:$16 sm:$0x3] %vm64, %v63
    %s67 = scalar_lea.vmem %s1, 640
    %68 = vst.msk [vmem:[%s67] ss:$16 sm:$0xc] %vm64, %v63
    %s69 = scalar_lea.vmem %s1, 640
    %70 = vst.msk [vmem:[%s69] ss:$16 sm:$0x30] %vm64, %v63
    %s71 = scalar_lea.vmem %s1, 640
    %72 = vst.msk [vmem:[%s71] ss:$16 sm:$0xc0] %vm64, %v63
    %s73 = scalar_lea.vmem [#allocation0], 48
    %v74 = vld [vmem:[%s73] sm:$0xff]
    %vm75 = vcmask 64512
    %s76 = scalar_lea.vmem %s1, 768
    %77 = vst.msk [vmem:[%s76] ss:$16 sm:$0x3] %vm75, %v74
    %s78 = scalar_lea.vmem %s1, 768
    %79 = vst.msk [vmem:[%s78] ss:$16 sm:$0xc] %vm75, %v74
    %s80 = scalar_lea.vmem %s1, 768
    %81 = vst.msk [vmem:[%s80] ss:$16 sm:$0x30] %vm75, %v74
    %s82 = scalar_lea.vmem %s1, 768
    %83 = vst.msk [vmem:[%s82] ss:$16 sm:$0xc0] %vm75, %v74
    %s84 = scalar_lea.vmem [#allocation0], 56
    %v85 = vld [vmem:[%s84] sm:$0xff]
    %vm86 = vcmask 64512
    %s87 = scalar_lea.vmem %s1, 896
    %88 = vst.msk [vmem:[%s87] ss:$16 sm:$0x3] %vm86, %v85
    %s89 = scalar_lea.vmem %s1, 896
    %90 = vst.msk [vmem:[%s89] ss:$16 sm:$0xc] %vm86, %v85
    %s91 = scalar_lea.vmem %s1, 896
    %92 = vst.msk [vmem:[%s91] ss:$16 sm:$0x30] %vm86, %v85
    %s93 = scalar_lea.vmem %s1, 896
    %94 = vst.msk [vmem:[%s93] ss:$16 sm:$0xc0] %vm86, %v85
    %s95 = scalar_lea.vmem [#allocation0], 64
    %v96 = vld [vmem:[%s95] sm:$0xff]
    %vm97 = vcmask 64512
    %s98 = scalar_lea.vmem %s1, 1024
    %99 = vst.msk [vmem:[%s98] ss:$16 sm:$0x3] %vm97, %v96
    %s100 = scalar_lea.vmem %s1, 1024
    %101 = vst.msk [vmem:[%s100] ss:$16 sm:$0xc] %vm97, %v96
    %s102 = scalar_lea.vmem %s1, 1024
    %103 = vst.msk [vmem:[%s102] ss:$16 sm:$0x30] %vm97, %v96
    %s104 = scalar_lea.vmem %s1, 1024
    %105 = vst.msk [vmem:[%s104] ss:$16 sm:$0xc0] %vm97, %v96
    %s106 = scalar_lea.vmem [#allocation0], 72
    %v107 = vld [vmem:[%s106] sm:$0xff]
    %vm108 = vcmask 64512
    %s109 = scalar_lea.vmem %s1, 1152
    %110 = vst.msk [vmem:[%s109] ss:$16 sm:$0x3] %vm108, %v107
    %s111 = scalar_lea.vmem %s1, 1152
    %112 = vst.msk [vmem:[%s111] ss:$16 sm:$0xc] %vm108, %v107
    %s113 = scalar_lea.vmem %s1, 1152
    %114 = vst.msk [vmem:[%s113] ss:$16 sm:$0x30] %vm108, %v107
    %s115 = scalar_lea.vmem %s1, 1152
    %116 = vst.msk [vmem:[%s115] ss:$16 sm:$0xc0] %vm108, %v107
    %s117 = scalar_lea.vmem [#allocation0], 80
    %v118 = vld [vmem:[%s117] sm:$0xff]
    %vm119 = vcmask 64512
    %s120 = scalar_lea.vmem %s1, 1280
    %121 = vst.msk [vmem:[%s120] ss:$16 sm:$0x3] %vm119, %v118
    %s122 = scalar_lea.vmem %s1, 1280
    %123 = vst.msk [vmem:[%s122] ss:$16 sm:$0xc] %vm119, %v118
    %s124 = scalar_lea.vmem %s1, 1280
    %125 = vst.msk [vmem:[%s124] ss:$16 sm:$0x30] %vm119, %v118
    %s126 = scalar_lea.vmem %s1, 1280
    %127 = vst.msk [vmem:[%s126] ss:$16 sm:$0xc0] %vm119, %v118
    %s128 = scalar_lea.vmem [#allocation0], 88
    %v129 = vld [vmem:[%s128] sm:$0xff]
    %vm130 = vcmask 64512
    %s131 = scalar_lea.vmem %s1, 1408
    %132 = vst.msk [vmem:[%s131] ss:$16 sm:$0x3] %vm130, %v129
    %s133 = scalar_lea.vmem %s1, 1408
    %134 = vst.msk [vmem:[%s133] ss:$16 sm:$0xc] %vm130, %v129
    %s135 = scalar_lea.vmem %s1, 1408
    %136 = vst.msk [vmem:[%s135] ss:$16 sm:$0x30] %vm130, %v129
    %s137 = scalar_lea.vmem %s1, 1408
    %138 = vst.msk [vmem:[%s137] ss:$16 sm:$0xc0] %vm130, %v129
    %s139 = scalar_lea.vmem [#allocation0], 96
    %v140 = vld [vmem:[%s139] sm:$0xff]
    %vm141 = vcmask 64512
    %s142 = scalar_lea.vmem %s1, 1536
    %143 = vst.msk [vmem:[%s142] ss:$16 sm:$0x3] %vm141, %v140
    %s144 = scalar_lea.vmem %s1, 1536
    %145 = vst.msk [vmem:[%s144] ss:$16 sm:$0xc] %vm141, %v140
    %s146 = scalar_lea.vmem %s1, 1536
    %147 = vst.msk [vmem:[%s146] ss:$16 sm:$0x30] %vm141, %v140
    %s148 = scalar_lea.vmem %s1, 1536
    %149 = vst.msk [vmem:[%s148] ss:$16 sm:$0xc0] %vm141, %v140
    %s150 = scalar_lea.vmem [#allocation0], 104
    %v151 = vld [vmem:[%s150] sm:$0xff]
    %vm152 = vcmask 64512
    %s153 = scalar_lea.vmem %s1, 1664
    %154 = vst.msk [vmem:[%s153] ss:$16 sm:$0x3] %vm152, %v151
    %s155 = scalar_lea.vmem %s1, 1664
    %156 = vst.msk [vmem:[%s155] ss:$16 sm:$0xc] %vm152, %v151
    %s157 = scalar_lea.vmem %s1, 1664
    %158 = vst.msk [vmem:[%s157] ss:$16 sm:$0x30] %vm152, %v151
    %s159 = scalar_lea.vmem %s1, 1664
    %160 = vst.msk [vmem:[%s159] ss:$16 sm:$0xc0] %vm152, %v151
    %s161 = scalar_lea.vmem [#allocation0], 112
    %v162 = vld [vmem:[%s161] sm:$0xff]
    %vm163 = vcmask 64512
    %s164 = scalar_lea.vmem %s1, 1792
    %165 = vst.msk [vmem:[%s164] ss:$16 sm:$0x3] %vm163, %v162
    %s166 = scalar_lea.vmem %s1, 1792
    %167 = vst.msk [vmem:[%s166] ss:$16 sm:$0xc] %vm163, %v162
    %s168 = scalar_lea.vmem %s1, 1792
    %169 = vst.msk [vmem:[%s168] ss:$16 sm:$0x30] %vm163, %v162
    %s170 = scalar_lea.vmem %s1, 1792
    %171 = vst.msk [vmem:[%s170] ss:$16 sm:$0xc0] %vm163, %v162
    %s172 = scalar_lea.vmem [#allocation0], 120
    %v173 = vld [vmem:[%s172] sm:$0xff]
    %vm174 = vcmask 64512
    %s175 = scalar_lea.vmem %s1, 1920
    %176 = vst.msk [vmem:[%s175] ss:$16 sm:$0x3] %vm174, %v173
    %s177 = scalar_lea.vmem %s1, 1920
    %178 = vst.msk [vmem:[%s177] ss:$16 sm:$0xc] %vm174, %v173
    %s179 = scalar_lea.vmem %s1, 1920
    %180 = vst.msk [vmem:[%s179] ss:$16 sm:$0x30] %vm174, %v173
    %s181 = scalar_lea.vmem %s1, 1920
    %182 = vst.msk [vmem:[%s181] ss:$16 sm:$0xc0] %vm174, %v173
    %v183 = vld [vmem:[#allocation0] sm:$0xff]
    %184 = vrot.lane.b32.xlu0 %v183, 120
    %v185 = vpop.permute.xlu0 %184
    %vm186 = vcmask 64512
    %s187 = scalar_lea.vmem %s1, 1
    %188 = vst.msk [vmem:[%s187] ss:$16 sm:$0x3] %vm186, %v185
    %s189 = scalar_lea.vmem %s1, 1
    %190 = vst.msk [vmem:[%s189] ss:$16 sm:$0xc] %vm186, %v185
    %s191 = scalar_lea.vmem %s1, 1
    %192 = vst.msk [vmem:[%s191] ss:$16 sm:$0x30] %vm186, %v185
    %s193 = scalar_lea.vmem %s1, 1
    %194 = vst.msk [vmem:[%s193] ss:$16 sm:$0xc0] %vm186, %v185
    %s195 = scalar_lea.vmem [#allocation0], 8
    %v196 = vld [vmem:[%s195] sm:$0xff]
    %197 = vrot.lane.b32.xlu0 %v196, 120
    %v198 = vpop.permute.xlu0 %197
    %vm199 = vcmask 64512
    %s200 = scalar_lea.vmem %s1, 129
    %201 = vst.msk [vmem:[%s200] ss:$16 sm:$0x3] %vm199, %v198
    %s202 = scalar_lea.vmem %s1, 129
    %203 = vst.msk [vmem:[%s202] ss:$16 sm:$0xc] %vm199, %v198
    %s204 = scalar_lea.vmem %s1, 129
    %205 = vst.msk [vmem:[%s204] ss:$16 sm:$0x30] %vm199, %v198
    %s206 = scalar_lea.vmem %s1, 129
    %207 = vst.msk [vmem:[%s206] ss:$16 sm:$0xc0] %vm199, %v198
    %s208 = scalar_lea.vmem [#allocation0], 16
    %v209 = vld [vmem:[%s208] sm:$0xff]
    %210 = vrot.lane.b32.xlu0 %v209, 120
    %v211 = vpop.permute.xlu0 %210
    %vm212 = vcmask 64512
    %s213 = scalar_lea.vmem %s1, 257
    %214 = vst.msk [vmem:[%s213] ss:$16 sm:$0x3] %vm212, %v211
    %s215 = scalar_lea.vmem %s1, 257
    %216 = vst.msk [vmem:[%s215] ss:$16 sm:$0xc] %vm212, %v211
    %s217 = scalar_lea.vmem %s1, 257
    %218 = vst.msk [vmem:[%s217] ss:$16 sm:$0x30] %vm212, %v211
    %s219 = scalar_lea.vmem %s1, 257
    %220 = vst.msk [vmem:[%s219] ss:$16 sm:$0xc0] %vm212, %v211
    %s221 = scalar_lea.vmem [#allocation0], 24
    %v222 = vld [vmem:[%s221] sm:$0xff]
    %223 = vrot.lane.b32.xlu0 %v222, 120
    %v224 = vpop.permute.xlu0 %223
    %vm225 = vcmask 64512
    %s226 = scalar_lea.vmem %s1, 385
    %227 = vst.msk [vmem:[%s226] ss:$16 sm:$0x3] %vm225, %v224
    %s228 = scalar_lea.vmem %s1, 385
    %229 = vst.msk [vmem:[%s228] ss:$16 sm:$0xc] %vm225, %v224
    %s230 = scalar_lea.vmem %s1, 385
    %231 = vst.msk [vmem:[%s230] ss:$16 sm:$0x30] %vm225, %v224
    %s232 = scalar_lea.vmem %s1, 385
    %233 = vst.msk [vmem:[%s232] ss:$16 sm:$0xc0] %vm225, %v224
    %s234 = scalar_lea.vmem [#allocation0], 32
    %v235 = vld [vmem:[%s234] sm:$0xff]
    %236 = vrot.lane.b32.xlu0 %v235, 120
    %v237 = vpop.permute.xlu0 %236
    %vm238 = vcmask 64512
    %s239 = scalar_lea.vmem %s1, 513
    %240 = vst.msk [vmem:[%s239] ss:$16 sm:$0x3] %vm238, %v237
    %s241 = scalar_lea.vmem %s1, 513
    %242 = vst.msk [vmem:[%s241] ss:$16 sm:$0xc] %vm238, %v237
    %s243 = scalar_lea.vmem %s1, 513
    %244 = vst.msk [vmem:[%s243] ss:$16 sm:$0x30] %vm238, %v237
    %s245 = scalar_lea.vmem %s1, 513
    %246 = vst.msk [vmem:[%s245] ss:$16 sm:$0xc0] %vm238, %v237
    %s247 = scalar_lea.vmem [#allocation0], 40
    %v248 = vld [vmem:[%s247] sm:$0xff]
    %249 = vrot.lane.b32.xlu0 %v248, 120
    %v250 = vpop.permute.xlu0 %249
    %vm251 = vcmask 64512
    %s252 = scalar_lea.vmem %s1, 641
    %253 = vst.msk [vmem:[%s252] ss:$16 sm:$0x3] %vm251, %v250
    %s254 = scalar_lea.vmem %s1, 641
    %255 = vst.msk [vmem:[%s254] ss:$16 sm:$0xc] %vm251, %v250
    %s256 = scalar_lea.vmem %s1, 641
    %257 = vst.msk [vmem:[%s256] ss:$16 sm:$0x30] %vm251, %v250
    %s258 = scalar_lea.vmem %s1, 641
    %259 = vst.msk [vmem:[%s258] ss:$16 sm:$0xc0] %vm251, %v250
    %s260 = scalar_lea.vmem [#allocation0], 48
    %v261 = vld [vmem:[%s260] sm:$0xff]
    %262 = vrot.lane.b32.xlu0 %v261, 120
    %v263 = vpop.permute.xlu0 %262
    %vm264 = vcmask 64512
    %s265 = scalar_lea.vmem %s1, 769
    %266 = vst.msk [vmem:[%s265] ss:$16 sm:$0x3] %vm264, %v263
    %s267 = scalar_lea.vmem %s1, 769
    %268 = vst.msk [vmem:[%s267] ss:$16 sm:$0xc] %vm264, %v263
    %s269 = scalar_lea.vmem %s1, 769
    %270 = vst.msk [vmem:[%s269] ss:$16 sm:$0x30] %vm264, %v263
    %s271 = scalar_lea.vmem %s1, 769
    %272 = vst.msk [vmem:[%s271] ss:$16 sm:$0xc0] %vm264, %v263
    %s273 = scalar_lea.vmem [#allocation0], 56
    %v274 = vld [vmem:[%s273] sm:$0xff]
    %275 = vrot.lane.b32.xlu0 %v274, 120
    %v276 = vpop.permute.xlu0 %275
    %vm277 = vcmask 64512
    %s278 = scalar_lea.vmem %s1, 897
    %279 = vst.msk [vmem:[%s278] ss:$16 sm:$0x3] %vm277, %v276
    %s280 = scalar_lea.vmem %s1, 897
    %281 = vst.msk [vmem:[%s280] ss:$16 sm:$0xc] %vm277, %v276
    %s282 = scalar_lea.vmem %s1, 897
    %283 = vst.msk [vmem:[%s282] ss:$16 sm:$0x30] %vm277, %v276
    %s284 = scalar_lea.vmem %s1, 897
    %285 = vst.msk [vmem:[%s284] ss:$16 sm:$0xc0] %vm277, %v276
    %s286 = scalar_lea.vmem [#allocation0], 64
    %v287 = vld [vmem:[%s286] sm:$0xff]
    %288 = vrot.lane.b32.xlu0 %v287, 120
    %v289 = vpop.permute.xlu0 %288
    %vm290 = vcmask 64512
    %s291 = scalar_lea.vmem %s1, 1025
    %292 = vst.msk [vmem:[%s291] ss:$16 sm:$0x3] %vm290, %v289
    %s293 = scalar_lea.vmem %s1, 1025
    %294 = vst.msk [vmem:[%s293] ss:$16 sm:$0xc] %vm290, %v289
    %s295 = scalar_lea.vmem %s1, 1025
    %296 = vst.msk [vmem:[%s295] ss:$16 sm:$0x30] %vm290, %v289
    %s297 = scalar_lea.vmem %s1, 1025
    %298 = vst.msk [vmem:[%s297] ss:$16 sm:$0xc0] %vm290, %v289
    %s299 = scalar_lea.vmem [#allocation0], 72
    %v300 = vld [vmem:[%s299] sm:$0xff]
    %301 = vrot.lane.b32.xlu0 %v300, 120
    %v302 = vpop.permute.xlu0 %301
    %vm303 = vcmask 64512
    %s304 = scalar_lea.vmem %s1, 1153
    %305 = vst.msk [vmem:[%s304] ss:$16 sm:$0x3] %vm303, %v302
    %s306 = scalar_lea.vmem %s1, 1153
    %307 = vst.msk [vmem:[%s306] ss:$16 sm:$0xc] %vm303, %v302
    %s308 = scalar_lea.vmem %s1, 1153
    %309 = vst.msk [vmem:[%s308] ss:$16 sm:$0x30] %vm303, %v302
    %s310 = scalar_lea.vmem %s1, 1153
    %311 = vst.msk [vmem:[%s310] ss:$16 sm:$0xc0] %vm303, %v302
    %s312 = scalar_lea.vmem [#allocation0], 80
    %v313 = vld [vmem:[%s312] sm:$0xff]
    %314 = vrot.lane.b32.xlu0 %v313, 120
    %v315 = vpop.permute.xlu0 %314
    %vm316 = vcmask 64512
    %s317 = scalar_lea.vmem %s1, 1281
    %318 = vst.msk [vmem:[%s317] ss:$16 sm:$0x3] %vm316, %v315
    %s319 = scalar_lea.vmem %s1, 1281
    %320 = vst.msk [vmem:[%s319] ss:$16 sm:$0xc] %vm316, %v315
    %s321 = scalar_lea.vmem %s1, 1281
    %322 = vst.msk [vmem:[%s321] ss:$16 sm:$0x30] %vm316, %v315
    %s323 = scalar_lea.vmem %s1, 1281
    %324 = vst.msk [vmem:[%s323] ss:$16 sm:$0xc0] %vm316, %v315
    %s325 = scalar_lea.vmem [#allocation0], 88
    %v326 = vld [vmem:[%s325] sm:$0xff]
    %327 = vrot.lane.b32.xlu0 %v326, 120
    %v328 = vpop.permute.xlu0 %327
    %vm329 = vcmask 64512
    %s330 = scalar_lea.vmem %s1, 1409
    %331 = vst.msk [vmem:[%s330] ss:$16 sm:$0x3] %vm329, %v328
    %s332 = scalar_lea.vmem %s1, 1409
    %333 = vst.msk [vmem:[%s332] ss:$16 sm:$0xc] %vm329, %v328
    %s334 = scalar_lea.vmem %s1, 1409
    %335 = vst.msk [vmem:[%s334] ss:$16 sm:$0x30] %vm329, %v328
    %s336 = scalar_lea.vmem %s1, 1409
    %337 = vst.msk [vmem:[%s336] ss:$16 sm:$0xc0] %vm329, %v328
    %s338 = scalar_lea.vmem [#allocation0], 96
    %v339 = vld [vmem:[%s338] sm:$0xff]
    %340 = vrot.lane.b32.xlu0 %v339, 120
    %v341 = vpop.permute.xlu0 %340
    %vm342 = vcmask 64512
    %s343 = scalar_lea.vmem %s1, 1537
    %344 = vst.msk [vmem:[%s343] ss:$16 sm:$0x3] %vm342, %v341
    %s345 = scalar_lea.vmem %s1, 1537
    %346 = vst.msk [vmem:[%s345] ss:$16 sm:$0xc] %vm342, %v341
    %s347 = scalar_lea.vmem %s1, 1537
    %348 = vst.msk [vmem:[%s347] ss:$16 sm:$0x30] %vm342, %v341
    %s349 = scalar_lea.vmem %s1, 1537
    %350 = vst.msk [vmem:[%s349] ss:$16 sm:$0xc0] %vm342, %v341
    %s351 = scalar_lea.vmem [#allocation0], 104
    %v352 = vld [vmem:[%s351] sm:$0xff]
    %353 = vrot.lane.b32.xlu0 %v352, 120
    %v354 = vpop.permute.xlu0 %353
    %vm355 = vcmask 64512
    %s356 = scalar_lea.vmem %s1, 1665
    %357 = vst.msk [vmem:[%s356] ss:$16 sm:$0x3] %vm355, %v354
    %s358 = scalar_lea.vmem %s1, 1665
    %359 = vst.msk [vmem:[%s358] ss:$16 sm:$0xc] %vm355, %v354
    %s360 = scalar_lea.vmem %s1, 1665
    %361 = vst.msk [vmem:[%s360] ss:$16 sm:$0x30] %vm355, %v354
    %s362 = scalar_lea.vmem %s1, 1665
    %363 = vst.msk [vmem:[%s362] ss:$16 sm:$0xc0] %vm355, %v354
    %s364 = scalar_lea.vmem [#allocation0], 112
    %v365 = vld [vmem:[%s364] sm:$0xff]
    %366 = vrot.lane.b32.xlu0 %v365, 120
    %v367 = vpop.permute.xlu0 %366
    %vm368 = vcmask 64512
    %s369 = scalar_lea.vmem %s1, 1793
    %370 = vst.msk [vmem:[%s369] ss:$16 sm:$0x3] %vm368, %v367
    %s371 = scalar_lea.vmem %s1, 1793
    %372 = vst.msk [vmem:[%s371] ss:$16 sm:$0xc] %vm368, %v367
    %s373 = scalar_lea.vmem %s1, 1793
    %374 = vst.msk [vmem:[%s373] ss:$16 sm:$0x30] %vm368, %v367
    %s375 = scalar_lea.vmem %s1, 1793
    %376 = vst.msk [vmem:[%s375] ss:$16 sm:$0xc0] %vm368, %v367
    %s377 = scalar_lea.vmem [#allocation0], 120
    %v378 = vld [vmem:[%s377] sm:$0xff]
    %379 = vrot.lane.b32.xlu0 %v378, 120
    %v380 = vpop.permute.xlu0 %379
    %vm381 = vcmask 64512
    %s382 = scalar_lea.vmem %s1, 1921
    %383 = vst.msk [vmem:[%s382] ss:$16 sm:$0x3] %vm381, %v380
    %s384 = scalar_lea.vmem %s1, 1921
    %385 = vst.msk [vmem:[%s384] ss:$16 sm:$0xc] %vm381, %v380
    %s386 = scalar_lea.vmem %s1, 1921
    %387 = vst.msk [vmem:[%s386] ss:$16 sm:$0x30] %vm381, %v380
    %s388 = scalar_lea.vmem %s1, 1921
    %389 = vst.msk [vmem:[%s388] ss:$16 sm:$0xc0] %vm381, %v380
    %v390 = vld [vmem:[#allocation0] sm:$0xff]
    %391 = vrot.lane.b32.xlu0 %v390, 112
    %v392 = vpop.permute.xlu0 %391
    %vm393 = vcmask 64512
    %s394 = scalar_lea.vmem %s1, 2
    %395 = vst.msk [vmem:[%s394] ss:$16 sm:$0x3] %vm393, %v392
    %s396 = scalar_lea.vmem %s1, 2
    %397 = vst.msk [vmem:[%s396] ss:$16 sm:$0xc] %vm393, %v392
    %s398 = scalar_lea.vmem %s1, 2
    %399 = vst.msk [vmem:[%s398] ss:$16 sm:$0x30] %vm393, %v392
    %s400 = scalar_lea.vmem %s1, 2
    %401 = vst.msk [vmem:[%s400] ss:$16 sm:$0xc0] %vm393, %v392
    %s402 = scalar_lea.vmem [#allocation0], 8
    %v403 = vld [vmem:[%s402] sm:$0xff]
    %404 = vrot.lane.b32.xlu0 %v403, 112
    %v405 = vpop.permute.xlu0 %404
    %vm406 = vcmask 64512
    %s407 = scalar_lea.vmem %s1, 130
    %408 = vst.msk [vmem:[%s407] ss:$16 sm:$0x3] %vm406, %v405
    %s409 = scalar_lea.vmem %s1, 130
    %410 = vst.msk [vmem:[%s409] ss:$16 sm:$0xc] %vm406, %v405
    %s411 = scalar_lea.vmem %s1, 130
    %412 = vst.msk [vmem:[%s411] ss:$16 sm:$0x30] %vm406, %v405
    %s413 = scalar_lea.vmem %s1, 130
    %414 = vst.msk [vmem:[%s413] ss:$16 sm:$0xc0] %vm406, %v405
    %s415 = scalar_lea.vmem [#allocation0], 16
    %v416 = vld [vmem:[%s415] sm:$0xff]
    %417 = vrot.lane.b32.xlu0 %v416, 112
    %v418 = vpop.permute.xlu0 %417
    %vm419 = vcmask 64512
    %s420 = scalar_lea.vmem %s1, 258
    %421 = vst.msk [vmem:[%s420] ss:$16 sm:$0x3] %vm419, %v418
    %s422 = scalar_lea.vmem %s1, 258
    %423 = vst.msk [vmem:[%s422] ss:$16 sm:$0xc] %vm419, %v418
    %s424 = scalar_lea.vmem %s1, 258
    %425 = vst.msk [vmem:[%s424] ss:$16 sm:$0x30] %vm419, %v418
    %s426 = scalar_lea.vmem %s1, 258
    %427 = vst.msk [vmem:[%s426] ss:$16 sm:$0xc0] %vm419, %v418
    %s428 = scalar_lea.vmem [#allocation0], 24
    %v429 = vld [vmem:[%s428] sm:$0xff]
    %430 = vrot.lane.b32.xlu0 %v429, 112
    %v431 = vpop.permute.xlu0 %430
    %vm432 = vcmask 64512
    %s433 = scalar_lea.vmem %s1, 386
    %434 = vst.msk [vmem:[%s433] ss:$16 sm:$0x3] %vm432, %v431
    %s435 = scalar_lea.vmem %s1, 386
    %436 = vst.msk [vmem:[%s435] ss:$16 sm:$0xc] %vm432, %v431
    %s437 = scalar_lea.vmem %s1, 386
    %438 = vst.msk [vmem:[%s437] ss:$16 sm:$0x30] %vm432, %v431
    %s439 = scalar_lea.vmem %s1, 386
    %440 = vst.msk [vmem:[%s439] ss:$16 sm:$0xc0] %vm432, %v431
    %s441 = scalar_lea.vmem [#allocation0], 32
    %v442 = vld [vmem:[%s441] sm:$0xff]
    %443 = vrot.lane.b32.xlu0 %v442, 112
    %v444 = vpop.permute.xlu0 %443
    %vm445 = vcmask 64512
    %s446 = scalar_lea.vmem %s1, 514
    %447 = vst.msk [vmem:[%s446] ss:$16 sm:$0x3] %vm445, %v444
    %s448 = scalar_lea.vmem %s1, 514
    %449 = vst.msk [vmem:[%s448] ss:$16 sm:$0xc] %vm445, %v444
    %s450 = scalar_lea.vmem %s1, 514
    %451 = vst.msk [vmem:[%s450] ss:$16 sm:$0x30] %vm445, %v444
    %s452 = scalar_lea.vmem %s1, 514
    %453 = vst.msk [vmem:[%s452] ss:$16 sm:$0xc0] %vm445, %v444
    %s454 = scalar_lea.vmem [#allocation0], 40
    %v455 = vld [vmem:[%s454] sm:$0xff]
    %456 = vrot.lane.b32.xlu0 %v455, 112
    %v457 = vpop.permute.xlu0 %456
    %vm458 = vcmask 64512
    %s459 = scalar_lea.vmem %s1, 642
    %460 = vst.msk [vmem:[%s459] ss:$16 sm:$0x3] %vm458, %v457
    %s461 = scalar_lea.vmem %s1, 642
    %462 = vst.msk [vmem:[%s461] ss:$16 sm:$0xc] %vm458, %v457
    %s463 = scalar_lea.vmem %s1, 642
    %464 = vst.msk [vmem:[%s463] ss:$16 sm:$0x30] %vm458, %v457
    %s465 = scalar_lea.vmem %s1, 642
    %466 = vst.msk [vmem:[%s465] ss:$16 sm:$0xc0] %vm458, %v457
    %s467 = scalar_lea.vmem [#allocation0], 48
    %v468 = vld [vmem:[%s467] sm:$0xff]
    %469 = vrot.lane.b32.xlu0 %v468, 112
    %v470 = vpop.permute.xlu0 %469
    %vm471 = vcmask 64512
    %s472 = scalar_lea.vmem %s1, 770
    %473 = vst.msk [vmem:[%s472] ss:$16 sm:$0x3] %vm471, %v470
    %s474 = scalar_lea.vmem %s1, 770
    %475 = vst.msk [vmem:[%s474] ss:$16 sm:$0xc] %vm471, %v470
    %s476 = scalar_lea.vmem %s1, 770
    %477 = vst.msk [vmem:[%s476] ss:$16 sm:$0x30] %vm471, %v470
    %s478 = scalar_lea.vmem %s1, 770
    %479 = vst.msk [vmem:[%s478] ss:$16 sm:$0xc0] %vm471, %v470
    %s480 = scalar_lea.vmem [#allocation0], 56
    %v481 = vld [vmem:[%s480] sm:$0xff]
    %482 = vrot.lane.b32.xlu0 %v481, 112
    %v483 = vpop.permute.xlu0 %482
    %vm484 = vcmask 64512
    %s485 = scalar_lea.vmem %s1, 898
    %486 = vst.msk [vmem:[%s485] ss:$16 sm:$0x3] %vm484, %v483
    %s487 = scalar_lea.vmem %s1, 898
    %488 = vst.msk [vmem:[%s487] ss:$16 sm:$0xc] %vm484, %v483
    %s489 = scalar_lea.vmem %s1, 898
    %490 = vst.msk [vmem:[%s489] ss:$16 sm:$0x30] %vm484, %v483
    %s491 = scalar_lea.vmem %s1, 898
    %492 = vst.msk [vmem:[%s491] ss:$16 sm:$0xc0] %vm484, %v483
    %s493 = scalar_lea.vmem [#allocation0], 64
    %v494 = vld [vmem:[%s493] sm:$0xff]
    %495 = vrot.lane.b32.xlu0 %v494, 112
    %v496 = vpop.permute.xlu0 %495
    %vm497 = vcmask 64512
    %s498 = scalar_lea.vmem %s1, 1026
    %499 = vst.msk [vmem:[%s498] ss:$16 sm:$0x3] %vm497, %v496
    %s500 = scalar_lea.vmem %s1, 1026
    %501 = vst.msk [vmem:[%s500] ss:$16 sm:$0xc] %vm497, %v496
    %s502 = scalar_lea.vmem %s1, 1026
    %503 = vst.msk [vmem:[%s502] ss:$16 sm:$0x30] %vm497, %v496
    %s504 = scalar_lea.vmem %s1, 1026
    %505 = vst.msk [vmem:[%s504] ss:$16 sm:$0xc0] %vm497, %v496
    %s506 = scalar_lea.vmem [#allocation0], 72
    %v507 = vld [vmem:[%s506] sm:$0xff]
    %508 = vrot.lane.b32.xlu0 %v507, 112
    %v509 = vpop.permute.xlu0 %508
    %vm510 = vcmask 64512
    %s511 = scalar_lea.vmem %s1, 1154
    %512 = vst.msk [vmem:[%s511] ss:$16 sm:$0x3] %vm510, %v509
    %s513 = scalar_lea.vmem %s1, 1154
    %514 = vst.msk [vmem:[%s513] ss:$16 sm:$0xc] %vm510, %v509
    %s515 = scalar_lea.vmem %s1, 1154
    %516 = vst.msk [vmem:[%s515] ss:$16 sm:$0x30] %vm510, %v509
    %s517 = scalar_lea.vmem %s1, 1154
    %518 = vst.msk [vmem:[%s517] ss:$16 sm:$0xc0] %vm510, %v509
    %s519 = scalar_lea.vmem [#allocation0], 80
    %v520 = vld [vmem:[%s519] sm:$0xff]
    %521 = vrot.lane.b32.xlu0 %v520, 112
    %v522 = vpop.permute.xlu0 %521
    %vm523 = vcmask 64512
    %s524 = scalar_lea.vmem %s1, 1282
    %525 = vst.msk [vmem:[%s524] ss:$16 sm:$0x3] %vm523, %v522
    %s526 = scalar_lea.vmem %s1, 1282
    %527 = vst.msk [vmem:[%s526] ss:$16 sm:$0xc] %vm523, %v522
    %s528 = scalar_lea.vmem %s1, 1282
    %529 = vst.msk [vmem:[%s528] ss:$16 sm:$0x30] %vm523, %v522
    %s530 = scalar_lea.vmem %s1, 1282
    %531 = vst.msk [vmem:[%s530] ss:$16 sm:$0xc0] %vm523, %v522
    %s532 = scalar_lea.vmem [#allocation0], 88
    %v533 = vld [vmem:[%s532] sm:$0xff]
    %534 = vrot.lane.b32.xlu0 %v533, 112
    %v535 = vpop.permute.xlu0 %534
    %vm536 = vcmask 64512
    %s537 = scalar_lea.vmem %s1, 1410
    %538 = vst.msk [vmem:[%s537] ss:$16 sm:$0x3] %vm536, %v535
    %s539 = scalar_lea.vmem %s1, 1410
    %540 = vst.msk [vmem:[%s539] ss:$16 sm:$0xc] %vm536, %v535
    %s541 = scalar_lea.vmem %s1, 1410
    %542 = vst.msk [vmem:[%s541] ss:$16 sm:$0x30] %vm536, %v535
    %s543 = scalar_lea.vmem %s1, 1410
    %544 = vst.msk [vmem:[%s543] ss:$16 sm:$0xc0] %vm536, %v535
    %s545 = scalar_lea.vmem [#allocation0], 96
    %v546 = vld [vmem:[%s545] sm:$0xff]
    %547 = vrot.lane.b32.xlu0 %v546, 112
    %v548 = vpop.permute.xlu0 %547
    %vm549 = vcmask 64512
    %s550 = scalar_lea.vmem %s1, 1538
    %551 = vst.msk [vmem:[%s550] ss:$16 sm:$0x3] %vm549, %v548
    %s552 = scalar_lea.vmem %s1, 1538
    %553 = vst.msk [vmem:[%s552] ss:$16 sm:$0xc] %vm549, %v548
    %s554 = scalar_lea.vmem %s1, 1538
    %555 = vst.msk [vmem:[%s554] ss:$16 sm:$0x30] %vm549, %v548
    %s556 = scalar_lea.vmem %s1, 1538
    %557 = vst.msk [vmem:[%s556] ss:$16 sm:$0xc0] %vm549, %v548
    %s558 = scalar_lea.vmem [#allocation0], 104
    %v559 = vld [vmem:[%s558] sm:$0xff]
    %560 = vrot.lane.b32.xlu0 %v559, 112
    %v561 = vpop.permute.xlu0 %560
    %vm562 = vcmask 64512
    %s563 = scalar_lea.vmem %s1, 1666
    %564 = vst.msk [vmem:[%s563] ss:$16 sm:$0x3] %vm562, %v561
    %s565 = scalar_lea.vmem %s1, 1666
    %566 = vst.msk [vmem:[%s565] ss:$16 sm:$0xc] %vm562, %v561
    %s567 = scalar_lea.vmem %s1, 1666
    %568 = vst.msk [vmem:[%s567] ss:$16 sm:$0x30] %vm562, %v561
    %s569 = scalar_lea.vmem %s1, 1666
    %570 = vst.msk [vmem:[%s569] ss:$16 sm:$0xc0] %vm562, %v561
    %s571 = scalar_lea.vmem [#allocation0], 112
    %v572 = vld [vmem:[%s571] sm:$0xff]
    %573 = vrot.lane.b32.xlu0 %v572, 112
    %v574 = vpop.permute.xlu0 %573
    %vm575 = vcmask 64512
    %s576 = scalar_lea.vmem %s1, 1794
    %577 = vst.msk [vmem:[%s576] ss:$16 sm:$0x3] %vm575, %v574
    %s578 = scalar_lea.vmem %s1, 1794
    %579 = vst.msk [vmem:[%s578] ss:$16 sm:$0xc] %vm575, %v574
    %s580 = scalar_lea.vmem %s1, 1794
    %581 = vst.msk [vmem:[%s580] ss:$16 sm:$0x30] %vm575, %v574
    %s582 = scalar_lea.vmem %s1, 1794
    %583 = vst.msk [vmem:[%s582] ss:$16 sm:$0xc0] %vm575, %v574
    %s584 = scalar_lea.vmem [#allocation0], 120
    %v585 = vld [vmem:[%s584] sm:$0xff]
    %586 = vrot.lane.b32.xlu0 %v585, 112
    %v587 = vpop.permute.xlu0 %586
    %vm588 = vcmask 64512
    %s589 = scalar_lea.vmem %s1, 1922
    %590 = vst.msk [vmem:[%s589] ss:$16 sm:$0x3] %vm588, %v587
    %s591 = scalar_lea.vmem %s1, 1922
    %592 = vst.msk [vmem:[%s591] ss:$16 sm:$0xc] %vm588, %v587
    %s593 = scalar_lea.vmem %s1, 1922
    %594 = vst.msk [vmem:[%s593] ss:$16 sm:$0x30] %vm588, %v587
    %s595 = scalar_lea.vmem %s1, 1922
    %596 = vst.msk [vmem:[%s595] ss:$16 sm:$0xc0] %vm588, %v587
    %v597 = vld [vmem:[#allocation0] sm:$0xff]
    %598 = vrot.lane.b32.xlu0 %v597, 104
    %v599 = vpop.permute.xlu0 %598
    %vm600 = vcmask 64512
    %s601 = scalar_lea.vmem %s1, 3
    %602 = vst.msk [vmem:[%s601] ss:$16 sm:$0x3] %vm600, %v599
    %s603 = scalar_lea.vmem %s1, 3
    %604 = vst.msk [vmem:[%s603] ss:$16 sm:$0xc] %vm600, %v599
    %s605 = scalar_lea.vmem %s1, 3
    %606 = vst.msk [vmem:[%s605] ss:$16 sm:$0x30] %vm600, %v599
    %s607 = scalar_lea.vmem %s1, 3
    %608 = vst.msk [vmem:[%s607] ss:$16 sm:$0xc0] %vm600, %v599
    %s609 = scalar_lea.vmem [#allocation0], 8
    %v610 = vld [vmem:[%s609] sm:$0xff]
    %611 = vrot.lane.b32.xlu0 %v610, 104
    %v612 = vpop.permute.xlu0 %611
    %vm613 = vcmask 64512
    %s614 = scalar_lea.vmem %s1, 131
    %615 = vst.msk [vmem:[%s614] ss:$16 sm:$0x3] %vm613, %v612
    %s616 = scalar_lea.vmem %s1, 131
    %617 = vst.msk [vmem:[%s616] ss:$16 sm:$0xc] %vm613, %v612
    %s618 = scalar_lea.vmem %s1, 131
    %619 = vst.msk [vmem:[%s618] ss:$16 sm:$0x30] %vm613, %v612
    %s620 = scalar_lea.vmem %s1, 131
    %621 = vst.msk [vmem:[%s620] ss:$16 sm:$0xc0] %vm613, %v612
    %s622 = scalar_lea.vmem [#allocation0], 16
    %v623 = vld [vmem:[%s622] sm:$0xff]
    %624 = vrot.lane.b32.xlu0 %v623, 104
    %v625 = vpop.permute.xlu0 %624
    %vm626 = vcmask 64512
    %s627 = scalar_lea.vmem %s1, 259
    %628 = vst.msk [vmem:[%s627] ss:$16 sm:$0x3] %vm626, %v625
    %s629 = scalar_lea.vmem %s1, 259
    %630 = vst.msk [vmem:[%s629] ss:$16 sm:$0xc] %vm626, %v625
    %s631 = scalar_lea.vmem %s1, 259
    %632 = vst.msk [vmem:[%s631] ss:$16 sm:$0x30] %vm626, %v625
    %s633 = scalar_lea.vmem %s1, 259
    %634 = vst.msk [vmem:[%s633] ss:$16 sm:$0xc0] %vm626, %v625
    %s635 = scalar_lea.vmem [#allocation0], 24
    %v636 = vld [vmem:[%s635] sm:$0xff]
    %637 = vrot.lane.b32.xlu0 %v636, 104
    %v638 = vpop.permute.xlu0 %637
    %vm639 = vcmask 64512
    %s640 = scalar_lea.vmem %s1, 387
    %641 = vst.msk [vmem:[%s640] ss:$16 sm:$0x3] %vm639, %v638
    %s642 = scalar_lea.vmem %s1, 387
    %643 = vst.msk [vmem:[%s642] ss:$16 sm:$0xc] %vm639, %v638
    %s644 = scalar_lea.vmem %s1, 387
    %645 = vst.msk [vmem:[%s644] ss:$16 sm:$0x30] %vm639, %v638
    %s646 = scalar_lea.vmem %s1, 387
    %647 = vst.msk [vmem:[%s646] ss:$16 sm:$0xc0] %vm639, %v638
    %s648 = scalar_lea.vmem [#allocation0], 32
    %v649 = vld [vmem:[%s648] sm:$0xff]
    %650 = vrot.lane.b32.xlu0 %v649, 104
    %v651 = vpop.permute.xlu0 %650
    %vm652 = vcmask 64512
    %s653 = scalar_lea.vmem %s1, 515
    %654 = vst.msk [vmem:[%s653] ss:$16 sm:$0x3] %vm652, %v651
    %s655 = scalar_lea.vmem %s1, 515
    %656 = vst.msk [vmem:[%s655] ss:$16 sm:$0xc] %vm652, %v651
    %s657 = scalar_lea.vmem %s1, 515
    %658 = vst.msk [vmem:[%s657] ss:$16 sm:$0x30] %vm652, %v651
    %s659 = scalar_lea.vmem %s1, 515
    %660 = vst.msk [vmem:[%s659] ss:$16 sm:$0xc0] %vm652, %v651
    %s661 = scalar_lea.vmem [#allocation0], 40
    %v662 = vld [vmem:[%s661] sm:$0xff]
    %663 = vrot.lane.b32.xlu0 %v662, 104
    %v664 = vpop.permute.xlu0 %663
    %vm665 = vcmask 64512
    %s666 = scalar_lea.vmem %s1, 643
    %667 = vst.msk [vmem:[%s666] ss:$16 sm:$0x3] %vm665, %v664
    %s668 = scalar_lea.vmem %s1, 643
    %669 = vst.msk [vmem:[%s668] ss:$16 sm:$0xc] %vm665, %v664
    %s670 = scalar_lea.vmem %s1, 643
    %671 = vst.msk [vmem:[%s670] ss:$16 sm:$0x30] %vm665, %v664
    %s672 = scalar_lea.vmem %s1, 643
    %673 = vst.msk [vmem:[%s672] ss:$16 sm:$0xc0] %vm665, %v664
    %s674 = scalar_lea.vmem [#allocation0], 48
    %v675 = vld [vmem:[%s674] sm:$0xff]
    %676 = vrot.lane.b32.xlu0 %v675, 104
    %v677 = vpop.permute.xlu0 %676
    %vm678 = vcmask 64512
    %s679 = scalar_lea.vmem %s1, 771
    %680 = vst.msk [vmem:[%s679] ss:$16 sm:$0x3] %vm678, %v677
    %s681 = scalar_lea.vmem %s1, 771
    %682 = vst.msk [vmem:[%s681] ss:$16 sm:$0xc] %vm678, %v677
    %s683 = scalar_lea.vmem %s1, 771
    %684 = vst.msk [vmem:[%s683] ss:$16 sm:$0x30] %vm678, %v677
    %s685 = scalar_lea.vmem %s1, 771
    %686 = vst.msk [vmem:[%s685] ss:$16 sm:$0xc0] %vm678, %v677
    %s687 = scalar_lea.vmem [#allocation0], 56
    %v688 = vld [vmem:[%s687] sm:$0xff]
    %689 = vrot.lane.b32.xlu0 %v688, 104
    %v690 = vpop.permute.xlu0 %689
    %vm691 = vcmask 64512
    %s692 = scalar_lea.vmem %s1, 899
    %693 = vst.msk [vmem:[%s692] ss:$16 sm:$0x3] %vm691, %v690
    %s694 = scalar_lea.vmem %s1, 899
    %695 = vst.msk [vmem:[%s694] ss:$16 sm:$0xc] %vm691, %v690
    %s696 = scalar_lea.vmem %s1, 899
    %697 = vst.msk [vmem:[%s696] ss:$16 sm:$0x30] %vm691, %v690
    %s698 = scalar_lea.vmem %s1, 899
    %699 = vst.msk [vmem:[%s698] ss:$16 sm:$0xc0] %vm691, %v690
    %s700 = scalar_lea.vmem [#allocation0], 64
    %v701 = vld [vmem:[%s700] sm:$0xff]
    %702 = vrot.lane.b32.xlu0 %v701, 104
    %v703 = vpop.permute.xlu0 %702
    %vm704 = vcmask 64512
    %s705 = scalar_lea.vmem %s1, 1027
    %706 = vst.msk [vmem:[%s705] ss:$16 sm:$0x3] %vm704, %v703
    %s707 = scalar_lea.vmem %s1, 1027
    %708 = vst.msk [vmem:[%s707] ss:$16 sm:$0xc] %vm704, %v703
    %s709 = scalar_lea.vmem %s1, 1027
    %710 = vst.msk [vmem:[%s709] ss:$16 sm:$0x30] %vm704, %v703
    %s711 = scalar_lea.vmem %s1, 1027
    %712 = vst.msk [vmem:[%s711] ss:$16 sm:$0xc0] %vm704, %v703
    %s713 = scalar_lea.vmem [#allocation0], 72
    %v714 = vld [vmem:[%s713] sm:$0xff]
    %715 = vrot.lane.b32.xlu0 %v714, 104
    %v716 = vpop.permute.xlu0 %715
    %vm717 = vcmask 64512
    %s718 = scalar_lea.vmem %s1, 1155
    %719 = vst.msk [vmem:[%s718] ss:$16 sm:$0x3] %vm717, %v716
    %s720 = scalar_lea.vmem %s1, 1155
    %721 = vst.msk [vmem:[%s720] ss:$16 sm:$0xc] %vm717, %v716
    %s722 = scalar_lea.vmem %s1, 1155
    %723 = vst.msk [vmem:[%s722] ss:$16 sm:$0x30] %vm717, %v716
    %s724 = scalar_lea.vmem %s1, 1155
    %725 = vst.msk [vmem:[%s724] ss:$16 sm:$0xc0] %vm717, %v716
    %s726 = scalar_lea.vmem [#allocation0], 80
    %v727 = vld [vmem:[%s726] sm:$0xff]
    %728 = vrot.lane.b32.xlu0 %v727, 104
    %v729 = vpop.permute.xlu0 %728
    %vm730 = vcmask 64512
    %s731 = scalar_lea.vmem %s1, 1283
    %732 = vst.msk [vmem:[%s731] ss:$16 sm:$0x3] %vm730, %v729
    %s733 = scalar_lea.vmem %s1, 1283
    %734 = vst.msk [vmem:[%s733] ss:$16 sm:$0xc] %vm730, %v729
    %s735 = scalar_lea.vmem %s1, 1283
    %736 = vst.msk [vmem:[%s735] ss:$16 sm:$0x30] %vm730, %v729
    %s737 = scalar_lea.vmem %s1, 1283
    %738 = vst.msk [vmem:[%s737] ss:$16 sm:$0xc0] %vm730, %v729
    %s739 = scalar_lea.vmem [#allocation0], 88
    %v740 = vld [vmem:[%s739] sm:$0xff]
    %741 = vrot.lane.b32.xlu0 %v740, 104
    %v742 = vpop.permute.xlu0 %741
    %vm743 = vcmask 64512
    %s744 = scalar_lea.vmem %s1, 1411
    %745 = vst.msk [vmem:[%s744] ss:$16 sm:$0x3] %vm743, %v742
    %s746 = scalar_lea.vmem %s1, 1411
    %747 = vst.msk [vmem:[%s746] ss:$16 sm:$0xc] %vm743, %v742
    %s748 = scalar_lea.vmem %s1, 1411
    %749 = vst.msk [vmem:[%s748] ss:$16 sm:$0x30] %vm743, %v742
    %s750 = scalar_lea.vmem %s1, 1411
    %751 = vst.msk [vmem:[%s750] ss:$16 sm:$0xc0] %vm743, %v742
    %s752 = scalar_lea.vmem [#allocation0], 96
    %v753 = vld [vmem:[%s752] sm:$0xff]
    %754 = vrot.lane.b32.xlu0 %v753, 104
    %v755 = vpop.permute.xlu0 %754
    %vm756 = vcmask 64512
    %s757 = scalar_lea.vmem %s1, 1539
    %758 = vst.msk [vmem:[%s757] ss:$16 sm:$0x3] %vm756, %v755
    %s759 = scalar_lea.vmem %s1, 1539
    %760 = vst.msk [vmem:[%s759] ss:$16 sm:$0xc] %vm756, %v755
    %s761 = scalar_lea.vmem %s1, 1539
    %762 = vst.msk [vmem:[%s761] ss:$16 sm:$0x30] %vm756, %v755
    %s763 = scalar_lea.vmem %s1, 1539
    %764 = vst.msk [vmem:[%s763] ss:$16 sm:$0xc0] %vm756, %v755
    %s765 = scalar_lea.vmem [#allocation0], 104
    %v766 = vld [vmem:[%s765] sm:$0xff]
    %767 = vrot.lane.b32.xlu0 %v766, 104
    %v768 = vpop.permute.xlu0 %767
    %vm769 = vcmask 64512
    %s770 = scalar_lea.vmem %s1, 1667
    %771 = vst.msk [vmem:[%s770] ss:$16 sm:$0x3] %vm769, %v768
    %s772 = scalar_lea.vmem %s1, 1667
    %773 = vst.msk [vmem:[%s772] ss:$16 sm:$0xc] %vm769, %v768
    %s774 = scalar_lea.vmem %s1, 1667
    %775 = vst.msk [vmem:[%s774] ss:$16 sm:$0x30] %vm769, %v768
    %s776 = scalar_lea.vmem %s1, 1667
    %777 = vst.msk [vmem:[%s776] ss:$16 sm:$0xc0] %vm769, %v768
    %s778 = scalar_lea.vmem [#allocation0], 112
    %v779 = vld [vmem:[%s778] sm:$0xff]
    %780 = vrot.lane.b32.xlu0 %v779, 104
    %v781 = vpop.permute.xlu0 %780
    %vm782 = vcmask 64512
    %s783 = scalar_lea.vmem %s1, 1795
    %784 = vst.msk [vmem:[%s783] ss:$16 sm:$0x3] %vm782, %v781
    %s785 = scalar_lea.vmem %s1, 1795
    %786 = vst.msk [vmem:[%s785] ss:$16 sm:$0xc] %vm782, %v781
    %s787 = scalar_lea.vmem %s1, 1795
    %788 = vst.msk [vmem:[%s787] ss:$16 sm:$0x30] %vm782, %v781
    %s789 = scalar_lea.vmem %s1, 1795
    %790 = vst.msk [vmem:[%s789] ss:$16 sm:$0xc0] %vm782, %v781
    %s791 = scalar_lea.vmem [#allocation0], 120
    %v792 = vld [vmem:[%s791] sm:$0xff]
    %793 = vrot.lane.b32.xlu0 %v792, 104
    %v794 = vpop.permute.xlu0 %793
    %vm795 = vcmask 64512
    %s796 = scalar_lea.vmem %s1, 1923
    %797 = vst.msk [vmem:[%s796] ss:$16 sm:$0x3] %vm795, %v794
    %s798 = scalar_lea.vmem %s1, 1923
    %799 = vst.msk [vmem:[%s798] ss:$16 sm:$0xc] %vm795, %v794
    %s800 = scalar_lea.vmem %s1, 1923
    %801 = vst.msk [vmem:[%s800] ss:$16 sm:$0x30] %vm795, %v794
    %s802 = scalar_lea.vmem %s1, 1923
    %803 = vst.msk [vmem:[%s802] ss:$16 sm:$0xc0] %vm795, %v794
    %v804 = vld [vmem:[#allocation0] sm:$0xff]
    %805 = vrot.lane.b32.xlu0 %v804, 96
    %v806 = vpop.permute.xlu0 %805
    %vm807 = vcmask 64512
    %s808 = scalar_lea.vmem %s1, 4
    %809 = vst.msk [vmem:[%s808] ss:$16 sm:$0x3] %vm807, %v806
    %s810 = scalar_lea.vmem %s1, 4
    %811 = vst.msk [vmem:[%s810] ss:$16 sm:$0xc] %vm807, %v806
    %s812 = scalar_lea.vmem %s1, 4
    %813 = vst.msk [vmem:[%s812] ss:$16 sm:$0x30] %vm807, %v806
    %s814 = scalar_lea.vmem %s1, 4
    %815 = vst.msk [vmem:[%s814] ss:$16 sm:$0xc0] %vm807, %v806
    %s816 = scalar_lea.vmem [#allocation0], 8
    %v817 = vld [vmem:[%s816] sm:$0xff]
    %818 = vrot.lane.b32.xlu0 %v817, 96
    %v819 = vpop.permute.xlu0 %818
    %vm820 = vcmask 64512
    %s821 = scalar_lea.vmem %s1, 132
    %822 = vst.msk [vmem:[%s821] ss:$16 sm:$0x3] %vm820, %v819
    %s823 = scalar_lea.vmem %s1, 132
    %824 = vst.msk [vmem:[%s823] ss:$16 sm:$0xc] %vm820, %v819
    %s825 = scalar_lea.vmem %s1, 132
    %826 = vst.msk [vmem:[%s825] ss:$16 sm:$0x30] %vm820, %v819
    %s827 = scalar_lea.vmem %s1, 132
    %828 = vst.msk [vmem:[%s827] ss:$16 sm:$0xc0] %vm820, %v819
    %s829 = scalar_lea.vmem [#allocation0], 16
    %v830 = vld [vmem:[%s829] sm:$0xff]
    %831 = vrot.lane.b32.xlu0 %v830, 96
    %v832 = vpop.permute.xlu0 %831
    %vm833 = vcmask 64512
    %s834 = scalar_lea.vmem %s1, 260
    %835 = vst.msk [vmem:[%s834] ss:$16 sm:$0x3] %vm833, %v832
    %s836 = scalar_lea.vmem %s1, 260
    %837 = vst.msk [vmem:[%s836] ss:$16 sm:$0xc] %vm833, %v832
    %s838 = scalar_lea.vmem %s1, 260
    %839 = vst.msk [vmem:[%s838] ss:$16 sm:$0x30] %vm833, %v832
    %s840 = scalar_lea.vmem %s1, 260
    %841 = vst.msk [vmem:[%s840] ss:$16 sm:$0xc0] %vm833, %v832
    %s842 = scalar_lea.vmem [#allocation0], 24
    %v843 = vld [vmem:[%s842] sm:$0xff]
    %844 = vrot.lane.b32.xlu0 %v843, 96
    %v845 = vpop.permute.xlu0 %844
    %vm846 = vcmask 64512
    %s847 = scalar_lea.vmem %s1, 388
    %848 = vst.msk [vmem:[%s847] ss:$16 sm:$0x3] %vm846, %v845
    %s849 = scalar_lea.vmem %s1, 388
    %850 = vst.msk [vmem:[%s849] ss:$16 sm:$0xc] %vm846, %v845
    %s851 = scalar_lea.vmem %s1, 388
    %852 = vst.msk [vmem:[%s851] ss:$16 sm:$0x30] %vm846, %v845
    %s853 = scalar_lea.vmem %s1, 388
    %854 = vst.msk [vmem:[%s853] ss:$16 sm:$0xc0] %vm846, %v845
    %s855 = scalar_lea.vmem [#allocation0], 32
    %v856 = vld [vmem:[%s855] sm:$0xff]
    %857 = vrot.lane.b32.xlu0 %v856, 96
    %v858 = vpop.permute.xlu0 %857
    %vm859 = vcmask 64512
    %s860 = scalar_lea.vmem %s1, 516
    %861 = vst.msk [vmem:[%s860] ss:$16 sm:$0x3] %vm859, %v858
    %s862 = scalar_lea.vmem %s1, 516
    %863 = vst.msk [vmem:[%s862] ss:$16 sm:$0xc] %vm859, %v858
    %s864 = scalar_lea.vmem %s1, 516
    %865 = vst.msk [vmem:[%s864] ss:$16 sm:$0x30] %vm859, %v858
    %s866 = scalar_lea.vmem %s1, 516
    %867 = vst.msk [vmem:[%s866] ss:$16 sm:$0xc0] %vm859, %v858
    %s868 = scalar_lea.vmem [#allocation0], 40
    %v869 = vld [vmem:[%s868] sm:$0xff]
    %870 = vrot.lane.b32.xlu0 %v869, 96
    %v871 = vpop.permute.xlu0 %870
    %vm872 = vcmask 64512
    %s873 = scalar_lea.vmem %s1, 644
    %874 = vst.msk [vmem:[%s873] ss:$16 sm:$0x3] %vm872, %v871
    %s875 = scalar_lea.vmem %s1, 644
    %876 = vst.msk [vmem:[%s875] ss:$16 sm:$0xc] %vm872, %v871
    %s877 = scalar_lea.vmem %s1, 644
    %878 = vst.msk [vmem:[%s877] ss:$16 sm:$0x30] %vm872, %v871
    %s879 = scalar_lea.vmem %s1, 644
    %880 = vst.msk [vmem:[%s879] ss:$16 sm:$0xc0] %vm872, %v871
    %s881 = scalar_lea.vmem [#allocation0], 48
    %v882 = vld [vmem:[%s881] sm:$0xff]
    %883 = vrot.lane.b32.xlu0 %v882, 96
    %v884 = vpop.permute.xlu0 %883
    %vm885 = vcmask 64512
    %s886 = scalar_lea.vmem %s1, 772
    %887 = vst.msk [vmem:[%s886] ss:$16 sm:$0x3] %vm885, %v884
    %s888 = scalar_lea.vmem %s1, 772
    %889 = vst.msk [vmem:[%s888] ss:$16 sm:$0xc] %vm885, %v884
    %s890 = scalar_lea.vmem %s1, 772
    %891 = vst.msk [vmem:[%s890] ss:$16 sm:$0x30] %vm885, %v884
    %s892 = scalar_lea.vmem %s1, 772
    %893 = vst.msk [vmem:[%s892] ss:$16 sm:$0xc0] %vm885, %v884
    %s894 = scalar_lea.vmem [#allocation0], 56
    %v895 = vld [vmem:[%s894] sm:$0xff]
    %896 = vrot.lane.b32.xlu0 %v895, 96
    %v897 = vpop.permute.xlu0 %896
    %vm898 = vcmask 64512
    %s899 = scalar_lea.vmem %s1, 900
    %900 = vst.msk [vmem:[%s899] ss:$16 sm:$0x3] %vm898, %v897
    %s901 = scalar_lea.vmem %s1, 900
    %902 = vst.msk [vmem:[%s901] ss:$16 sm:$0xc] %vm898, %v897
    %s903 = scalar_lea.vmem %s1, 900
    %904 = vst.msk [vmem:[%s903] ss:$16 sm:$0x30] %vm898, %v897
    %s905 = scalar_lea.vmem %s1, 900
    %906 = vst.msk [vmem:[%s905] ss:$16 sm:$0xc0] %vm898, %v897
    %s907 = scalar_lea.vmem [#allocation0], 64
    %v908 = vld [vmem:[%s907] sm:$0xff]
    %909 = vrot.lane.b32.xlu0 %v908, 96
    %v910 = vpop.permute.xlu0 %909
    %vm911 = vcmask 64512
    %s912 = scalar_lea.vmem %s1, 1028
    %913 = vst.msk [vmem:[%s912] ss:$16 sm:$0x3] %vm911, %v910
    %s914 = scalar_lea.vmem %s1, 1028
    %915 = vst.msk [vmem:[%s914] ss:$16 sm:$0xc] %vm911, %v910
    %s916 = scalar_lea.vmem %s1, 1028
    %917 = vst.msk [vmem:[%s916] ss:$16 sm:$0x30] %vm911, %v910
    %s918 = scalar_lea.vmem %s1, 1028
    %919 = vst.msk [vmem:[%s918] ss:$16 sm:$0xc0] %vm911, %v910
    %s920 = scalar_lea.vmem [#allocation0], 72
    %v921 = vld [vmem:[%s920] sm:$0xff]
    %922 = vrot.lane.b32.xlu0 %v921, 96
    %v923 = vpop.permute.xlu0 %922
    %vm924 = vcmask 64512
    %s925 = scalar_lea.vmem %s1, 1156
    %926 = vst.msk [vmem:[%s925] ss:$16 sm:$0x3] %vm924, %v923
    %s927 = scalar_lea.vmem %s1, 1156
    %928 = vst.msk [vmem:[%s927] ss:$16 sm:$0xc] %vm924, %v923
    %s929 = scalar_lea.vmem %s1, 1156
    %930 = vst.msk [vmem:[%s929] ss:$16 sm:$0x30] %vm924, %v923
    %s931 = scalar_lea.vmem %s1, 1156
    %932 = vst.msk [vmem:[%s931] ss:$16 sm:$0xc0] %vm924, %v923
    %s933 = scalar_lea.vmem [#allocation0], 80
    %v934 = vld [vmem:[%s933] sm:$0xff]
    %935 = vrot.lane.b32.xlu0 %v934, 96
    %v936 = vpop.permute.xlu0 %935
    %vm937 = vcmask 64512
    %s938 = scalar_lea.vmem %s1, 1284
    %939 = vst.msk [vmem:[%s938] ss:$16 sm:$0x3] %vm937, %v936
    %s940 = scalar_lea.vmem %s1, 1284
    %941 = vst.msk [vmem:[%s940] ss:$16 sm:$0xc] %vm937, %v936
    %s942 = scalar_lea.vmem %s1, 1284
    %943 = vst.msk [vmem:[%s942] ss:$16 sm:$0x30] %vm937, %v936
    %s944 = scalar_lea.vmem %s1, 1284
    %945 = vst.msk [vmem:[%s944] ss:$16 sm:$0xc0] %vm937, %v936
    %s946 = scalar_lea.vmem [#allocation0], 88
    %v947 = vld [vmem:[%s946] sm:$0xff]
    %948 = vrot.lane.b32.xlu0 %v947, 96
    %v949 = vpop.permute.xlu0 %948
    %vm950 = vcmask 64512
    %s951 = scalar_lea.vmem %s1, 1412
    %952 = vst.msk [vmem:[%s951] ss:$16 sm:$0x3] %vm950, %v949
    %s953 = scalar_lea.vmem %s1, 1412
    %954 = vst.msk [vmem:[%s953] ss:$16 sm:$0xc] %vm950, %v949
    %s955 = scalar_lea.vmem %s1, 1412
    %956 = vst.msk [vmem:[%s955] ss:$16 sm:$0x30] %vm950, %v949
    %s957 = scalar_lea.vmem %s1, 1412
    %958 = vst.msk [vmem:[%s957] ss:$16 sm:$0xc0] %vm950, %v949
    %s959 = scalar_lea.vmem [#allocation0], 96
    %v960 = vld [vmem:[%s959] sm:$0xff]
    %961 = vrot.lane.b32.xlu0 %v960, 96
    %v962 = vpop.permute.xlu0 %961
    %vm963 = vcmask 64512
    %s964 = scalar_lea.vmem %s1, 1540
    %965 = vst.msk [vmem:[%s964] ss:$16 sm:$0x3] %vm963, %v962
    %s966 = scalar_lea.vmem %s1, 1540
    %967 = vst.msk [vmem:[%s966] ss:$16 sm:$0xc] %vm963, %v962
    %s968 = scalar_lea.vmem %s1, 1540
    %969 = vst.msk [vmem:[%s968] ss:$16 sm:$0x30] %vm963, %v962
    %s970 = scalar_lea.vmem %s1, 1540
    %971 = vst.msk [vmem:[%s970] ss:$16 sm:$0xc0] %vm963, %v962
    %s972 = scalar_lea.vmem [#allocation0], 104
    %v973 = vld [vmem:[%s972] sm:$0xff]
    %974 = vrot.lane.b32.xlu0 %v973, 96
    %v975 = vpop.permute.xlu0 %974
    %vm976 = vcmask 64512
    %s977 = scalar_lea.vmem %s1, 1668
    %978 = vst.msk [vmem:[%s977] ss:$16 sm:$0x3] %vm976, %v975
    %s979 = scalar_lea.vmem %s1, 1668
    %980 = vst.msk [vmem:[%s979] ss:$16 sm:$0xc] %vm976, %v975
    %s981 = scalar_lea.vmem %s1, 1668
    %982 = vst.msk [vmem:[%s981] ss:$16 sm:$0x30] %vm976, %v975
    %s983 = scalar_lea.vmem %s1, 1668
    %984 = vst.msk [vmem:[%s983] ss:$16 sm:$0xc0] %vm976, %v975
    %s985 = scalar_lea.vmem [#allocation0], 112
    %v986 = vld [vmem:[%s985] sm:$0xff]
    %987 = vrot.lane.b32.xlu0 %v986, 96
    %v988 = vpop.permute.xlu0 %987
    %vm989 = vcmask 64512
    %s990 = scalar_lea.vmem %s1, 1796
    %991 = vst.msk [vmem:[%s990] ss:$16 sm:$0x3] %vm989, %v988
    %s992 = scalar_lea.vmem %s1, 1796
    %993 = vst.msk [vmem:[%s992] ss:$16 sm:$0xc] %vm989, %v988
    %s994 = scalar_lea.vmem %s1, 1796
    %995 = vst.msk [vmem:[%s994] ss:$16 sm:$0x30] %vm989, %v988
    %s996 = scalar_lea.vmem %s1, 1796
    %997 = vst.msk [vmem:[%s996] ss:$16 sm:$0xc0] %vm989, %v988
    %s998 = scalar_lea.vmem [#allocation0], 120
    %v999 = vld [vmem:[%s998] sm:$0xff]
    %1000 = vrot.lane.b32.xlu0 %v999, 96
    %v1001 = vpop.permute.xlu0 %1000
    %vm1002 = vcmask 64512
    %s1003 = scalar_lea.vmem %s1, 1924
    %1004 = vst.msk [vmem:[%s1003] ss:$16 sm:$0x3] %vm1002, %v1001
    %s1005 = scalar_lea.vmem %s1, 1924
    %1006 = vst.msk [vmem:[%s1005] ss:$16 sm:$0xc] %vm1002, %v1001
    %s1007 = scalar_lea.vmem %s1, 1924
    %1008 = vst.msk [vmem:[%s1007] ss:$16 sm:$0x30] %vm1002, %v1001
    %s1009 = scalar_lea.vmem %s1, 1924
    %1010 = vst.msk [vmem:[%s1009] ss:$16 sm:$0xc0] %vm1002, %v1001
    %v1011 = vld [vmem:[#allocation0] sm:$0xff]
    %1012 = vrot.lane.b32.xlu0 %v1011, 88
    %v1013 = vpop.permute.xlu0 %1012
    %vm1014 = vcmask 64512
    %s1015 = scalar_lea.vmem %s1, 5
    %1016 = vst.msk [vmem:[%s1015] ss:$16 sm:$0x3] %vm1014, %v1013
    %s1017 = scalar_lea.vmem %s1, 5
    %1018 = vst.msk [vmem:[%s1017] ss:$16 sm:$0xc] %vm1014, %v1013
    %s1019 = scalar_lea.vmem %s1, 5
    %1020 = vst.msk [vmem:[%s1019] ss:$16 sm:$0x30] %vm1014, %v1013
    %s1021 = scalar_lea.vmem %s1, 5
    %1022 = vst.msk [vmem:[%s1021] ss:$16 sm:$0xc0] %vm1014, %v1013
    %s1023 = scalar_lea.vmem [#allocation0], 8
    %v1024 = vld [vmem:[%s1023] sm:$0xff]
    %1025 = vrot.lane.b32.xlu0 %v1024, 88
    %v1026 = vpop.permute.xlu0 %1025
    %vm1027 = vcmask 64512
    %s1028 = scalar_lea.vmem %s1, 133
    %1029 = vst.msk [vmem:[%s1028] ss:$16 sm:$0x3] %vm1027, %v1026
    %s1030 = scalar_lea.vmem %s1, 133
    %1031 = vst.msk [vmem:[%s1030] ss:$16 sm:$0xc] %vm1027, %v1026
    %s1032 = scalar_lea.vmem %s1, 133
    %1033 = vst.msk [vmem:[%s1032] ss:$16 sm:$0x30] %vm1027, %v1026
    %s1034 = scalar_lea.vmem %s1, 133
    %1035 = vst.msk [vmem:[%s1034] ss:$16 sm:$0xc0] %vm1027, %v1026
    %s1036 = scalar_lea.vmem [#allocation0], 16
    %v1037 = vld [vmem:[%s1036] sm:$0xff]
    %1038 = vrot.lane.b32.xlu0 %v1037, 88
    %v1039 = vpop.permute.xlu0 %1038
    %vm1040 = vcmask 64512
    %s1041 = scalar_lea.vmem %s1, 261
    %1042 = vst.msk [vmem:[%s1041] ss:$16 sm:$0x3] %vm1040, %v1039
    %s1043 = scalar_lea.vmem %s1, 261
    %1044 = vst.msk [vmem:[%s1043] ss:$16 sm:$0xc] %vm1040, %v1039
    %s1045 = scalar_lea.vmem %s1, 261
    %1046 = vst.msk [vmem:[%s1045] ss:$16 sm:$0x30] %vm1040, %v1039
    %s1047 = scalar_lea.vmem %s1, 261
    %1048 = vst.msk [vmem:[%s1047] ss:$16 sm:$0xc0] %vm1040, %v1039
    %s1049 = scalar_lea.vmem [#allocation0], 24
    %v1050 = vld [vmem:[%s1049] sm:$0xff]
    %1051 = vrot.lane.b32.xlu0 %v1050, 88
    %v1052 = vpop.permute.xlu0 %1051
    %vm1053 = vcmask 64512
    %s1054 = scalar_lea.vmem %s1, 389
    %1055 = vst.msk [vmem:[%s1054] ss:$16 sm:$0x3] %vm1053, %v1052
    %s1056 = scalar_lea.vmem %s1, 389
    %1057 = vst.msk [vmem:[%s1056] ss:$16 sm:$0xc] %vm1053, %v1052
    %s1058 = scalar_lea.vmem %s1, 389
    %1059 = vst.msk [vmem:[%s1058] ss:$16 sm:$0x30] %vm1053, %v1052
    %s1060 = scalar_lea.vmem %s1, 389
    %1061 = vst.msk [vmem:[%s1060] ss:$16 sm:$0xc0] %vm1053, %v1052
    %s1062 = scalar_lea.vmem [#allocation0], 32
    %v1063 = vld [vmem:[%s1062] sm:$0xff]
    %1064 = vrot.lane.b32.xlu0 %v1063, 88
    %v1065 = vpop.permute.xlu0 %1064
    %vm1066 = vcmask 64512
    %s1067 = scalar_lea.vmem %s1, 517
    %1068 = vst.msk [vmem:[%s1067] ss:$16 sm:$0x3] %vm1066, %v1065
    %s1069 = scalar_lea.vmem %s1, 517
    %1070 = vst.msk [vmem:[%s1069] ss:$16 sm:$0xc] %vm1066, %v1065
    %s1071 = scalar_lea.vmem %s1, 517
    %1072 = vst.msk [vmem:[%s1071] ss:$16 sm:$0x30] %vm1066, %v1065
    %s1073 = scalar_lea.vmem %s1, 517
    %1074 = vst.msk [vmem:[%s1073] ss:$16 sm:$0xc0] %vm1066, %v1065
    %s1075 = scalar_lea.vmem [#allocation0], 40
    %v1076 = vld [vmem:[%s1075] sm:$0xff]
    %1077 = vrot.lane.b32.xlu0 %v1076, 88
    %v1078 = vpop.permute.xlu0 %1077
    %vm1079 = vcmask 64512
    %s1080 = scalar_lea.vmem %s1, 645
    %1081 = vst.msk [vmem:[%s1080] ss:$16 sm:$0x3] %vm1079, %v1078
    %s1082 = scalar_lea.vmem %s1, 645
    %1083 = vst.msk [vmem:[%s1082] ss:$16 sm:$0xc] %vm1079, %v1078
    %s1084 = scalar_lea.vmem %s1, 645
    %1085 = vst.msk [vmem:[%s1084] ss:$16 sm:$0x30] %vm1079, %v1078
    %s1086 = scalar_lea.vmem %s1, 645
    %1087 = vst.msk [vmem:[%s1086] ss:$16 sm:$0xc0] %vm1079, %v1078
    %s1088 = scalar_lea.vmem [#allocation0], 48
    %v1089 = vld [vmem:[%s1088] sm:$0xff]
    %1090 = vrot.lane.b32.xlu0 %v1089, 88
    %v1091 = vpop.permute.xlu0 %1090
    %vm1092 = vcmask 64512
    %s1093 = scalar_lea.vmem %s1, 773
    %1094 = vst.msk [vmem:[%s1093] ss:$16 sm:$0x3] %vm1092, %v1091
    %s1095 = scalar_lea.vmem %s1, 773
    %1096 = vst.msk [vmem:[%s1095] ss:$16 sm:$0xc] %vm1092, %v1091
    %s1097 = scalar_lea.vmem %s1, 773
    %1098 = vst.msk [vmem:[%s1097] ss:$16 sm:$0x30] %vm1092, %v1091
    %s1099 = scalar_lea.vmem %s1, 773
    %1100 = vst.msk [vmem:[%s1099] ss:$16 sm:$0xc0] %vm1092, %v1091
    %s1101 = scalar_lea.vmem [#allocation0], 56
    %v1102 = vld [vmem:[%s1101] sm:$0xff]
    %1103 = vrot.lane.b32.xlu0 %v1102, 88
    %v1104 = vpop.permute.xlu0 %1103
    %vm1105 = vcmask 64512
    %s1106 = scalar_lea.vmem %s1, 901
    %1107 = vst.msk [vmem:[%s1106] ss:$16 sm:$0x3] %vm1105, %v1104
    %s1108 = scalar_lea.vmem %s1, 901
    %1109 = vst.msk [vmem:[%s1108] ss:$16 sm:$0xc] %vm1105, %v1104
    %s1110 = scalar_lea.vmem %s1, 901
    %1111 = vst.msk [vmem:[%s1110] ss:$16 sm:$0x30] %vm1105, %v1104
    %s1112 = scalar_lea.vmem %s1, 901
    %1113 = vst.msk [vmem:[%s1112] ss:$16 sm:$0xc0] %vm1105, %v1104
    %s1114 = scalar_lea.vmem [#allocation0], 64
    %v1115 = vld [vmem:[%s1114] sm:$0xff]
    %1116 = vrot.lane.b32.xlu0 %v1115, 88
    %v1117 = vpop.permute.xlu0 %1116
    %vm1118 = vcmask 64512
    %s1119 = scalar_lea.vmem %s1, 1029
    %1120 = vst.msk [vmem:[%s1119] ss:$16 sm:$0x3] %vm1118, %v1117
    %s1121 = scalar_lea.vmem %s1, 1029
    %1122 = vst.msk [vmem:[%s1121] ss:$16 sm:$0xc] %vm1118, %v1117
    %s1123 = scalar_lea.vmem %s1, 1029
    %1124 = vst.msk [vmem:[%s1123] ss:$16 sm:$0x30] %vm1118, %v1117
    %s1125 = scalar_lea.vmem %s1, 1029
    %1126 = vst.msk [vmem:[%s1125] ss:$16 sm:$0xc0] %vm1118, %v1117
    %s1127 = scalar_lea.vmem [#allocation0], 72
    %v1128 = vld [vmem:[%s1127] sm:$0xff]
    %1129 = vrot.lane.b32.xlu0 %v1128, 88
    %v1130 = vpop.permute.xlu0 %1129
    %vm1131 = vcmask 64512
    %s1132 = scalar_lea.vmem %s1, 1157
    %1133 = vst.msk [vmem:[%s1132] ss:$16 sm:$0x3] %vm1131, %v1130
    %s1134 = scalar_lea.vmem %s1, 1157
    %1135 = vst.msk [vmem:[%s1134] ss:$16 sm:$0xc] %vm1131, %v1130
    %s1136 = scalar_lea.vmem %s1, 1157
    %1137 = vst.msk [vmem:[%s1136] ss:$16 sm:$0x30] %vm1131, %v1130
    %s1138 = scalar_lea.vmem %s1, 1157
    %1139 = vst.msk [vmem:[%s1138] ss:$16 sm:$0xc0] %vm1131, %v1130
    %s1140 = scalar_lea.vmem [#allocation0], 80
    %v1141 = vld [vmem:[%s1140] sm:$0xff]
    %1142 = vrot.lane.b32.xlu0 %v1141, 88
    %v1143 = vpop.permute.xlu0 %1142
    %vm1144 = vcmask 64512
    %s1145 = scalar_lea.vmem %s1, 1285
    %1146 = vst.msk [vmem:[%s1145] ss:$16 sm:$0x3] %vm1144, %v1143
    %s1147 = scalar_lea.vmem %s1, 1285
    %1148 = vst.msk [vmem:[%s1147] ss:$16 sm:$0xc] %vm1144, %v1143
    %s1149 = scalar_lea.vmem %s1, 1285
    %1150 = vst.msk [vmem:[%s1149] ss:$16 sm:$0x30] %vm1144, %v1143
    %s1151 = scalar_lea.vmem %s1, 1285
    %1152 = vst.msk [vmem:[%s1151] ss:$16 sm:$0xc0] %vm1144, %v1143
    %s1153 = scalar_lea.vmem [#allocation0], 88
    %v1154 = vld [vmem:[%s1153] sm:$0xff]
    %1155 = vrot.lane.b32.xlu0 %v1154, 88
    %v1156 = vpop.permute.xlu0 %1155
    %vm1157 = vcmask 64512
    %s1158 = scalar_lea.vmem %s1, 1413
    %1159 = vst.msk [vmem:[%s1158] ss:$16 sm:$0x3] %vm1157, %v1156
    %s1160 = scalar_lea.vmem %s1, 1413
    %1161 = vst.msk [vmem:[%s1160] ss:$16 sm:$0xc] %vm1157, %v1156
    %s1162 = scalar_lea.vmem %s1, 1413
    %1163 = vst.msk [vmem:[%s1162] ss:$16 sm:$0x30] %vm1157, %v1156
    %s1164 = scalar_lea.vmem %s1, 1413
    %1165 = vst.msk [vmem:[%s1164] ss:$16 sm:$0xc0] %vm1157, %v1156
    %s1166 = scalar_lea.vmem [#allocation0], 96
    %v1167 = vld [vmem:[%s1166] sm:$0xff]
    %1168 = vrot.lane.b32.xlu0 %v1167, 88
    %v1169 = vpop.permute.xlu0 %1168
    %vm1170 = vcmask 64512
    %s1171 = scalar_lea.vmem %s1, 1541
    %1172 = vst.msk [vmem:[%s1171] ss:$16 sm:$0x3] %vm1170, %v1169
    %s1173 = scalar_lea.vmem %s1, 1541
    %1174 = vst.msk [vmem:[%s1173] ss:$16 sm:$0xc] %vm1170, %v1169
    %s1175 = scalar_lea.vmem %s1, 1541
    %1176 = vst.msk [vmem:[%s1175] ss:$16 sm:$0x30] %vm1170, %v1169
    %s1177 = scalar_lea.vmem %s1, 1541
    %1178 = vst.msk [vmem:[%s1177] ss:$16 sm:$0xc0] %vm1170, %v1169
    %s1179 = scalar_lea.vmem [#allocation0], 104
    %v1180 = vld [vmem:[%s1179] sm:$0xff]
    %1181 = vrot.lane.b32.xlu0 %v1180, 88
    %v1182 = vpop.permute.xlu0 %1181
    %vm1183 = vcmask 64512
    %s1184 = scalar_lea.vmem %s1, 1669
    %1185 = vst.msk [vmem:[%s1184] ss:$16 sm:$0x3] %vm1183, %v1182
    %s1186 = scalar_lea.vmem %s1, 1669
    %1187 = vst.msk [vmem:[%s1186] ss:$16 sm:$0xc] %vm1183, %v1182
    %s1188 = scalar_lea.vmem %s1, 1669
    %1189 = vst.msk [vmem:[%s1188] ss:$16 sm:$0x30] %vm1183, %v1182
    %s1190 = scalar_lea.vmem %s1, 1669
    %1191 = vst.msk [vmem:[%s1190] ss:$16 sm:$0xc0] %vm1183, %v1182
    %s1192 = scalar_lea.vmem [#allocation0], 112
    %v1193 = vld [vmem:[%s1192] sm:$0xff]
    %1194 = vrot.lane.b32.xlu0 %v1193, 88
    %v1195 = vpop.permute.xlu0 %1194
    %vm1196 = vcmask 64512
    %s1197 = scalar_lea.vmem %s1, 1797
    %1198 = vst.msk [vmem:[%s1197] ss:$16 sm:$0x3] %vm1196, %v1195
    %s1199 = scalar_lea.vmem %s1, 1797
    %1200 = vst.msk [vmem:[%s1199] ss:$16 sm:$0xc] %vm1196, %v1195
    %s1201 = scalar_lea.vmem %s1, 1797
    %1202 = vst.msk [vmem:[%s1201] ss:$16 sm:$0x30] %vm1196, %v1195
    %s1203 = scalar_lea.vmem %s1, 1797
    %1204 = vst.msk [vmem:[%s1203] ss:$16 sm:$0xc0] %vm1196, %v1195
    %s1205 = scalar_lea.vmem [#allocation0], 120
    %v1206 = vld [vmem:[%s1205] sm:$0xff]
    %1207 = vrot.lane.b32.xlu0 %v1206, 88
    %v1208 = vpop.permute.xlu0 %1207
    %vm1209 = vcmask 64512
    %s1210 = scalar_lea.vmem %s1, 1925
    %1211 = vst.msk [vmem:[%s1210] ss:$16 sm:$0x3] %vm1209, %v1208
    %s1212 = scalar_lea.vmem %s1, 1925
    %1213 = vst.msk [vmem:[%s1212] ss:$16 sm:$0xc] %vm1209, %v1208
    %s1214 = scalar_lea.vmem %s1, 1925
    %1215 = vst.msk [vmem:[%s1214] ss:$16 sm:$0x30] %vm1209, %v1208
    %s1216 = scalar_lea.vmem %s1, 1925
    %1217 = vst.msk [vmem:[%s1216] ss:$16 sm:$0xc0] %vm1209, %v1208
    %v1218 = vld [vmem:[#allocation0] sm:$0xff]
    %1219 = vrot.lane.b32.xlu0 %v1218, 80
    %v1220 = vpop.permute.xlu0 %1219
    %vm1221 = vcmask 64512
    %s1222 = scalar_lea.vmem %s1, 6
    %1223 = vst.msk [vmem:[%s1222] ss:$16 sm:$0x3] %vm1221, %v1220
    %s1224 = scalar_lea.vmem %s1, 6
    %1225 = vst.msk [vmem:[%s1224] ss:$16 sm:$0xc] %vm1221, %v1220
    %s1226 = scalar_lea.vmem %s1, 6
    %1227 = vst.msk [vmem:[%s1226] ss:$16 sm:$0x30] %vm1221, %v1220
    %s1228 = scalar_lea.vmem %s1, 6
    %1229 = vst.msk [vmem:[%s1228] ss:$16 sm:$0xc0] %vm1221, %v1220
    %s1230 = scalar_lea.vmem [#allocation0], 8
    %v1231 = vld [vmem:[%s1230] sm:$0xff]
    %1232 = vrot.lane.b32.xlu0 %v1231, 80
    %v1233 = vpop.permute.xlu0 %1232
    %vm1234 = vcmask 64512
    %s1235 = scalar_lea.vmem %s1, 134
    %1236 = vst.msk [vmem:[%s1235] ss:$16 sm:$0x3] %vm1234, %v1233
    %s1237 = scalar_lea.vmem %s1, 134
    %1238 = vst.msk [vmem:[%s1237] ss:$16 sm:$0xc] %vm1234, %v1233
    %s1239 = scalar_lea.vmem %s1, 134
    %1240 = vst.msk [vmem:[%s1239] ss:$16 sm:$0x30] %vm1234, %v1233
    %s1241 = scalar_lea.vmem %s1, 134
    %1242 = vst.msk [vmem:[%s1241] ss:$16 sm:$0xc0] %vm1234, %v1233
    %s1243 = scalar_lea.vmem [#allocation0], 16
    %v1244 = vld [vmem:[%s1243] sm:$0xff]
    %1245 = vrot.lane.b32.xlu0 %v1244, 80
    %v1246 = vpop.permute.xlu0 %1245
    %vm1247 = vcmask 64512
    %s1248 = scalar_lea.vmem %s1, 262
    %1249 = vst.msk [vmem:[%s1248] ss:$16 sm:$0x3] %vm1247, %v1246
    %s1250 = scalar_lea.vmem %s1, 262
    %1251 = vst.msk [vmem:[%s1250] ss:$16 sm:$0xc] %vm1247, %v1246
    %s1252 = scalar_lea.vmem %s1, 262
    %1253 = vst.msk [vmem:[%s1252] ss:$16 sm:$0x30] %vm1247, %v1246
    %s1254 = scalar_lea.vmem %s1, 262
    %1255 = vst.msk [vmem:[%s1254] ss:$16 sm:$0xc0] %vm1247, %v1246
    %s1256 = scalar_lea.vmem [#allocation0], 24
    %v1257 = vld [vmem:[%s1256] sm:$0xff]
    %1258 = vrot.lane.b32.xlu0 %v1257, 80
    %v1259 = vpop.permute.xlu0 %1258
    %vm1260 = vcmask 64512
    %s1261 = scalar_lea.vmem %s1, 390
    %1262 = vst.msk [vmem:[%s1261] ss:$16 sm:$0x3] %vm1260, %v1259
    %s1263 = scalar_lea.vmem %s1, 390
    %1264 = vst.msk [vmem:[%s1263] ss:$16 sm:$0xc] %vm1260, %v1259
    %s1265 = scalar_lea.vmem %s1, 390
    %1266 = vst.msk [vmem:[%s1265] ss:$16 sm:$0x30] %vm1260, %v1259
    %s1267 = scalar_lea.vmem %s1, 390
    %1268 = vst.msk [vmem:[%s1267] ss:$16 sm:$0xc0] %vm1260, %v1259
    %s1269 = scalar_lea.vmem [#allocation0], 32
    %v1270 = vld [vmem:[%s1269] sm:$0xff]
    %1271 = vrot.lane.b32.xlu0 %v1270, 80
    %v1272 = vpop.permute.xlu0 %1271
    %vm1273 = vcmask 64512
    %s1274 = scalar_lea.vmem %s1, 518
    %1275 = vst.msk [vmem:[%s1274] ss:$16 sm:$0x3] %vm1273, %v1272
    %s1276 = scalar_lea.vmem %s1, 518
    %1277 = vst.msk [vmem:[%s1276] ss:$16 sm:$0xc] %vm1273, %v1272
    %s1278 = scalar_lea.vmem %s1, 518
    %1279 = vst.msk [vmem:[%s1278] ss:$16 sm:$0x30] %vm1273, %v1272
    %s1280 = scalar_lea.vmem %s1, 518
    %1281 = vst.msk [vmem:[%s1280] ss:$16 sm:$0xc0] %vm1273, %v1272
    %s1282 = scalar_lea.vmem [#allocation0], 40
    %v1283 = vld [vmem:[%s1282] sm:$0xff]
    %1284 = vrot.lane.b32.xlu0 %v1283, 80
    %v1285 = vpop.permute.xlu0 %1284
    %vm1286 = vcmask 64512
    %s1287 = scalar_lea.vmem %s1, 646
    %1288 = vst.msk [vmem:[%s1287] ss:$16 sm:$0x3] %vm1286, %v1285
    %s1289 = scalar_lea.vmem %s1, 646
    %1290 = vst.msk [vmem:[%s1289] ss:$16 sm:$0xc] %vm1286, %v1285
    %s1291 = scalar_lea.vmem %s1, 646
    %1292 = vst.msk [vmem:[%s1291] ss:$16 sm:$0x30] %vm1286, %v1285
    %s1293 = scalar_lea.vmem %s1, 646
    %1294 = vst.msk [vmem:[%s1293] ss:$16 sm:$0xc0] %vm1286, %v1285
    %s1295 = scalar_lea.vmem [#allocation0], 48
    %v1296 = vld [vmem:[%s1295] sm:$0xff]
    %1297 = vrot.lane.b32.xlu0 %v1296, 80
    %v1298 = vpop.permute.xlu0 %1297
    %vm1299 = vcmask 64512
    %s1300 = scalar_lea.vmem %s1, 774
    %1301 = vst.msk [vmem:[%s1300] ss:$16 sm:$0x3] %vm1299, %v1298
    %s1302 = scalar_lea.vmem %s1, 774
    %1303 = vst.msk [vmem:[%s1302] ss:$16 sm:$0xc] %vm1299, %v1298
    %s1304 = scalar_lea.vmem %s1, 774
    %1305 = vst.msk [vmem:[%s1304] ss:$16 sm:$0x30] %vm1299, %v1298
    %s1306 = scalar_lea.vmem %s1, 774
    %1307 = vst.msk [vmem:[%s1306] ss:$16 sm:$0xc0] %vm1299, %v1298
    %s1308 = scalar_lea.vmem [#allocation0], 56
    %v1309 = vld [vmem:[%s1308] sm:$0xff]
    %1310 = vrot.lane.b32.xlu0 %v1309, 80
    %v1311 = vpop.permute.xlu0 %1310
    %vm1312 = vcmask 64512
    %s1313 = scalar_lea.vmem %s1, 902
    %1314 = vst.msk [vmem:[%s1313] ss:$16 sm:$0x3] %vm1312, %v1311
    %s1315 = scalar_lea.vmem %s1, 902
    %1316 = vst.msk [vmem:[%s1315] ss:$16 sm:$0xc] %vm1312, %v1311
    %s1317 = scalar_lea.vmem %s1, 902
    %1318 = vst.msk [vmem:[%s1317] ss:$16 sm:$0x30] %vm1312, %v1311
    %s1319 = scalar_lea.vmem %s1, 902
    %1320 = vst.msk [vmem:[%s1319] ss:$16 sm:$0xc0] %vm1312, %v1311
    %s1321 = scalar_lea.vmem [#allocation0], 64
    %v1322 = vld [vmem:[%s1321] sm:$0xff]
    %1323 = vrot.lane.b32.xlu0 %v1322, 80
    %v1324 = vpop.permute.xlu0 %1323
    %vm1325 = vcmask 64512
    %s1326 = scalar_lea.vmem %s1, 1030
    %1327 = vst.msk [vmem:[%s1326] ss:$16 sm:$0x3] %vm1325, %v1324
    %s1328 = scalar_lea.vmem %s1, 1030
    %1329 = vst.msk [vmem:[%s1328] ss:$16 sm:$0xc] %vm1325, %v1324
    %s1330 = scalar_lea.vmem %s1, 1030
    %1331 = vst.msk [vmem:[%s1330] ss:$16 sm:$0x30] %vm1325, %v1324
    %s1332 = scalar_lea.vmem %s1, 1030
    %1333 = vst.msk [vmem:[%s1332] ss:$16 sm:$0xc0] %vm1325, %v1324
    %s1334 = scalar_lea.vmem [#allocation0], 72
    %v1335 = vld [vmem:[%s1334] sm:$0xff]
    %1336 = vrot.lane.b32.xlu0 %v1335, 80
    %v1337 = vpop.permute.xlu0 %1336
    %vm1338 = vcmask 64512
    %s1339 = scalar_lea.vmem %s1, 1158
    %1340 = vst.msk [vmem:[%s1339] ss:$16 sm:$0x3] %vm1338, %v1337
    %s1341 = scalar_lea.vmem %s1, 1158
    %1342 = vst.msk [vmem:[%s1341] ss:$16 sm:$0xc] %vm1338, %v1337
    %s1343 = scalar_lea.vmem %s1, 1158
    %1344 = vst.msk [vmem:[%s1343] ss:$16 sm:$0x30] %vm1338, %v1337
    %s1345 = scalar_lea.vmem %s1, 1158
    %1346 = vst.msk [vmem:[%s1345] ss:$16 sm:$0xc0] %vm1338, %v1337
    %s1347 = scalar_lea.vmem [#allocation0], 80
    %v1348 = vld [vmem:[%s1347] sm:$0xff]
    %1349 = vrot.lane.b32.xlu0 %v1348, 80
    %v1350 = vpop.permute.xlu0 %1349
    %vm1351 = vcmask 64512
    %s1352 = scalar_lea.vmem %s1, 1286
    %1353 = vst.msk [vmem:[%s1352] ss:$16 sm:$0x3] %vm1351, %v1350
    %s1354 = scalar_lea.vmem %s1, 1286
    %1355 = vst.msk [vmem:[%s1354] ss:$16 sm:$0xc] %vm1351, %v1350
    %s1356 = scalar_lea.vmem %s1, 1286
    %1357 = vst.msk [vmem:[%s1356] ss:$16 sm:$0x30] %vm1351, %v1350
    %s1358 = scalar_lea.vmem %s1, 1286
    %1359 = vst.msk [vmem:[%s1358] ss:$16 sm:$0xc0] %vm1351, %v1350
    %s1360 = scalar_lea.vmem [#allocation0], 88
    %v1361 = vld [vmem:[%s1360] sm:$0xff]
    %1362 = vrot.lane.b32.xlu0 %v1361, 80
    %v1363 = vpop.permute.xlu0 %1362
    %vm1364 = vcmask 64512
    %s1365 = scalar_lea.vmem %s1, 1414
    %1366 = vst.msk [vmem:[%s1365] ss:$16 sm:$0x3] %vm1364, %v1363
    %s1367 = scalar_lea.vmem %s1, 1414
    %1368 = vst.msk [vmem:[%s1367] ss:$16 sm:$0xc] %vm1364, %v1363
    %s1369 = scalar_lea.vmem %s1, 1414
    %1370 = vst.msk [vmem:[%s1369] ss:$16 sm:$0x30] %vm1364, %v1363
    %s1371 = scalar_lea.vmem %s1, 1414
    %1372 = vst.msk [vmem:[%s1371] ss:$16 sm:$0xc0] %vm1364, %v1363
    %s1373 = scalar_lea.vmem [#allocation0], 96
    %v1374 = vld [vmem:[%s1373] sm:$0xff]
    %1375 = vrot.lane.b32.xlu0 %v1374, 80
    %v1376 = vpop.permute.xlu0 %1375
    %vm1377 = vcmask 64512
    %s1378 = scalar_lea.vmem %s1, 1542
    %1379 = vst.msk [vmem:[%s1378] ss:$16 sm:$0x3] %vm1377, %v1376
    %s1380 = scalar_lea.vmem %s1, 1542
    %1381 = vst.msk [vmem:[%s1380] ss:$16 sm:$0xc] %vm1377, %v1376
    %s1382 = scalar_lea.vmem %s1, 1542
    %1383 = vst.msk [vmem:[%s1382] ss:$16 sm:$0x30] %vm1377, %v1376
    %s1384 = scalar_lea.vmem %s1, 1542
    %1385 = vst.msk [vmem:[%s1384] ss:$16 sm:$0xc0] %vm1377, %v1376
    %s1386 = scalar_lea.vmem [#allocation0], 104
    %v1387 = vld [vmem:[%s1386] sm:$0xff]
    %1388 = vrot.lane.b32.xlu0 %v1387, 80
    %v1389 = vpop.permute.xlu0 %1388
    %vm1390 = vcmask 64512
    %s1391 = scalar_lea.vmem %s1, 1670
    %1392 = vst.msk [vmem:[%s1391] ss:$16 sm:$0x3] %vm1390, %v1389
    %s1393 = scalar_lea.vmem %s1, 1670
    %1394 = vst.msk [vmem:[%s1393] ss:$16 sm:$0xc] %vm1390, %v1389
    %s1395 = scalar_lea.vmem %s1, 1670
    %1396 = vst.msk [vmem:[%s1395] ss:$16 sm:$0x30] %vm1390, %v1389
    %s1397 = scalar_lea.vmem %s1, 1670
    %1398 = vst.msk [vmem:[%s1397] ss:$16 sm:$0xc0] %vm1390, %v1389
    %s1399 = scalar_lea.vmem [#allocation0], 112
    %v1400 = vld [vmem:[%s1399] sm:$0xff]
    %1401 = vrot.lane.b32.xlu0 %v1400, 80
    %v1402 = vpop.permute.xlu0 %1401
    %vm1403 = vcmask 64512
    %s1404 = scalar_lea.vmem %s1, 1798
    %1405 = vst.msk [vmem:[%s1404] ss:$16 sm:$0x3] %vm1403, %v1402
    %s1406 = scalar_lea.vmem %s1, 1798
    %1407 = vst.msk [vmem:[%s1406] ss:$16 sm:$0xc] %vm1403, %v1402
    %s1408 = scalar_lea.vmem %s1, 1798
    %1409 = vst.msk [vmem:[%s1408] ss:$16 sm:$0x30] %vm1403, %v1402
    %s1410 = scalar_lea.vmem %s1, 1798
    %1411 = vst.msk [vmem:[%s1410] ss:$16 sm:$0xc0] %vm1403, %v1402
    %s1412 = scalar_lea.vmem [#allocation0], 120
    %v1413 = vld [vmem:[%s1412] sm:$0xff]
    %1414 = vrot.lane.b32.xlu0 %v1413, 80
    %v1415 = vpop.permute.xlu0 %1414
    %vm1416 = vcmask 64512
    %s1417 = scalar_lea.vmem %s1, 1926
    %1418 = vst.msk [vmem:[%s1417] ss:$16 sm:$0x3] %vm1416, %v1415
    %s1419 = scalar_lea.vmem %s1, 1926
    %1420 = vst.msk [vmem:[%s1419] ss:$16 sm:$0xc] %vm1416, %v1415
    %s1421 = scalar_lea.vmem %s1, 1926
    %1422 = vst.msk [vmem:[%s1421] ss:$16 sm:$0x30] %vm1416, %v1415
    %s1423 = scalar_lea.vmem %s1, 1926
    %1424 = vst.msk [vmem:[%s1423] ss:$16 sm:$0xc0] %vm1416, %v1415
    %v1425 = vld [vmem:[#allocation0] sm:$0xff]
    %1426 = vrot.lane.b32.xlu0 %v1425, 72
    %v1427 = vpop.permute.xlu0 %1426
    %vm1428 = vcmask 64512
    %s1429 = scalar_lea.vmem %s1, 7
    %1430 = vst.msk [vmem:[%s1429] ss:$16 sm:$0x3] %vm1428, %v1427
    %s1431 = scalar_lea.vmem %s1, 7
    %1432 = vst.msk [vmem:[%s1431] ss:$16 sm:$0xc] %vm1428, %v1427
    %s1433 = scalar_lea.vmem %s1, 7
    %1434 = vst.msk [vmem:[%s1433] ss:$16 sm:$0x30] %vm1428, %v1427
    %s1435 = scalar_lea.vmem %s1, 7
    %1436 = vst.msk [vmem:[%s1435] ss:$16 sm:$0xc0] %vm1428, %v1427
    %s1437 = scalar_lea.vmem [#allocation0], 8
    %v1438 = vld [vmem:[%s1437] sm:$0xff]
    %1439 = vrot.lane.b32.xlu0 %v1438, 72
    %v1440 = vpop.permute.xlu0 %1439
    %vm1441 = vcmask 64512
    %s1442 = scalar_lea.vmem %s1, 135
    %1443 = vst.msk [vmem:[%s1442] ss:$16 sm:$0x3] %vm1441, %v1440
    %s1444 = scalar_lea.vmem %s1, 135
    %1445 = vst.msk [vmem:[%s1444] ss:$16 sm:$0xc] %vm1441, %v1440
    %s1446 = scalar_lea.vmem %s1, 135
    %1447 = vst.msk [vmem:[%s1446] ss:$16 sm:$0x30] %vm1441, %v1440
    %s1448 = scalar_lea.vmem %s1, 135
    %1449 = vst.msk [vmem:[%s1448] ss:$16 sm:$0xc0] %vm1441, %v1440
    %s1450 = scalar_lea.vmem [#allocation0], 16
    %v1451 = vld [vmem:[%s1450] sm:$0xff]
    %1452 = vrot.lane.b32.xlu0 %v1451, 72
    %v1453 = vpop.permute.xlu0 %1452
    %vm1454 = vcmask 64512
    %s1455 = scalar_lea.vmem %s1, 263
    %1456 = vst.msk [vmem:[%s1455] ss:$16 sm:$0x3] %vm1454, %v1453
    %s1457 = scalar_lea.vmem %s1, 263
    %1458 = vst.msk [vmem:[%s1457] ss:$16 sm:$0xc] %vm1454, %v1453
    %s1459 = scalar_lea.vmem %s1, 263
    %1460 = vst.msk [vmem:[%s1459] ss:$16 sm:$0x30] %vm1454, %v1453
    %s1461 = scalar_lea.vmem %s1, 263
    %1462 = vst.msk [vmem:[%s1461] ss:$16 sm:$0xc0] %vm1454, %v1453
    %s1463 = scalar_lea.vmem [#allocation0], 24
    %v1464 = vld [vmem:[%s1463] sm:$0xff]
    %1465 = vrot.lane.b32.xlu0 %v1464, 72
    %v1466 = vpop.permute.xlu0 %1465
    %vm1467 = vcmask 64512
    %s1468 = scalar_lea.vmem %s1, 391
    %1469 = vst.msk [vmem:[%s1468] ss:$16 sm:$0x3] %vm1467, %v1466
    %s1470 = scalar_lea.vmem %s1, 391
    %1471 = vst.msk [vmem:[%s1470] ss:$16 sm:$0xc] %vm1467, %v1466
    %s1472 = scalar_lea.vmem %s1, 391
    %1473 = vst.msk [vmem:[%s1472] ss:$16 sm:$0x30] %vm1467, %v1466
    %s1474 = scalar_lea.vmem %s1, 391
    %1475 = vst.msk [vmem:[%s1474] ss:$16 sm:$0xc0] %vm1467, %v1466
    %s1476 = scalar_lea.vmem [#allocation0], 32
    %v1477 = vld [vmem:[%s1476] sm:$0xff]
    %1478 = vrot.lane.b32.xlu0 %v1477, 72
    %v1479 = vpop.permute.xlu0 %1478
    %vm1480 = vcmask 64512
    %s1481 = scalar_lea.vmem %s1, 519
    %1482 = vst.msk [vmem:[%s1481] ss:$16 sm:$0x3] %vm1480, %v1479
    %s1483 = scalar_lea.vmem %s1, 519
    %1484 = vst.msk [vmem:[%s1483] ss:$16 sm:$0xc] %vm1480, %v1479
    %s1485 = scalar_lea.vmem %s1, 519
    %1486 = vst.msk [vmem:[%s1485] ss:$16 sm:$0x30] %vm1480, %v1479
    %s1487 = scalar_lea.vmem %s1, 519
    %1488 = vst.msk [vmem:[%s1487] ss:$16 sm:$0xc0] %vm1480, %v1479
    %s1489 = scalar_lea.vmem [#allocation0], 40
    %v1490 = vld [vmem:[%s1489] sm:$0xff]
    %1491 = vrot.lane.b32.xlu0 %v1490, 72
    %v1492 = vpop.permute.xlu0 %1491
    %vm1493 = vcmask 64512
    %s1494 = scalar_lea.vmem %s1, 647
    %1495 = vst.msk [vmem:[%s1494] ss:$16 sm:$0x3] %vm1493, %v1492
    %s1496 = scalar_lea.vmem %s1, 647
    %1497 = vst.msk [vmem:[%s1496] ss:$16 sm:$0xc] %vm1493, %v1492
    %s1498 = scalar_lea.vmem %s1, 647
    %1499 = vst.msk [vmem:[%s1498] ss:$16 sm:$0x30] %vm1493, %v1492
    %s1500 = scalar_lea.vmem %s1, 647
    %1501 = vst.msk [vmem:[%s1500] ss:$16 sm:$0xc0] %vm1493, %v1492
    %s1502 = scalar_lea.vmem [#allocation0], 48
    %v1503 = vld [vmem:[%s1502] sm:$0xff]
    %1504 = vrot.lane.b32.xlu0 %v1503, 72
    %v1505 = vpop.permute.xlu0 %1504
    %vm1506 = vcmask 64512
    %s1507 = scalar_lea.vmem %s1, 775
    %1508 = vst.msk [vmem:[%s1507] ss:$16 sm:$0x3] %vm1506, %v1505
    %s1509 = scalar_lea.vmem %s1, 775
    %1510 = vst.msk [vmem:[%s1509] ss:$16 sm:$0xc] %vm1506, %v1505
    %s1511 = scalar_lea.vmem %s1, 775
    %1512 = vst.msk [vmem:[%s1511] ss:$16 sm:$0x30] %vm1506, %v1505
    %s1513 = scalar_lea.vmem %s1, 775
    %1514 = vst.msk [vmem:[%s1513] ss:$16 sm:$0xc0] %vm1506, %v1505
    %s1515 = scalar_lea.vmem [#allocation0], 56
    %v1516 = vld [vmem:[%s1515] sm:$0xff]
    %1517 = vrot.lane.b32.xlu0 %v1516, 72
    %v1518 = vpop.permute.xlu0 %1517
    %vm1519 = vcmask 64512
    %s1520 = scalar_lea.vmem %s1, 903
    %1521 = vst.msk [vmem:[%s1520] ss:$16 sm:$0x3] %vm1519, %v1518
    %s1522 = scalar_lea.vmem %s1, 903
    %1523 = vst.msk [vmem:[%s1522] ss:$16 sm:$0xc] %vm1519, %v1518
    %s1524 = scalar_lea.vmem %s1, 903
    %1525 = vst.msk [vmem:[%s1524] ss:$16 sm:$0x30] %vm1519, %v1518
    %s1526 = scalar_lea.vmem %s1, 903
    %1527 = vst.msk [vmem:[%s1526] ss:$16 sm:$0xc0] %vm1519, %v1518
    %s1528 = scalar_lea.vmem [#allocation0], 64
    %v1529 = vld [vmem:[%s1528] sm:$0xff]
    %1530 = vrot.lane.b32.xlu0 %v1529, 72
    %v1531 = vpop.permute.xlu0 %1530
    %vm1532 = vcmask 64512
    %s1533 = scalar_lea.vmem %s1, 1031
    %1534 = vst.msk [vmem:[%s1533] ss:$16 sm:$0x3] %vm1532, %v1531
    %s1535 = scalar_lea.vmem %s1, 1031
    %1536 = vst.msk [vmem:[%s1535] ss:$16 sm:$0xc] %vm1532, %v1531
    %s1537 = scalar_lea.vmem %s1, 1031
    %1538 = vst.msk [vmem:[%s1537] ss:$16 sm:$0x30] %vm1532, %v1531
    %s1539 = scalar_lea.vmem %s1, 1031
    %1540 = vst.msk [vmem:[%s1539] ss:$16 sm:$0xc0] %vm1532, %v1531
    %s1541 = scalar_lea.vmem [#allocation0], 72
    %v1542 = vld [vmem:[%s1541] sm:$0xff]
    %1543 = vrot.lane.b32.xlu0 %v1542, 72
    %v1544 = vpop.permute.xlu0 %1543
    %vm1545 = vcmask 64512
    %s1546 = scalar_lea.vmem %s1, 1159
    %1547 = vst.msk [vmem:[%s1546] ss:$16 sm:$0x3] %vm1545, %v1544
    %s1548 = scalar_lea.vmem %s1, 1159
    %1549 = vst.msk [vmem:[%s1548] ss:$16 sm:$0xc] %vm1545, %v1544
    %s1550 = scalar_lea.vmem %s1, 1159
    %1551 = vst.msk [vmem:[%s1550] ss:$16 sm:$0x30] %vm1545, %v1544
    %s1552 = scalar_lea.vmem %s1, 1159
    %1553 = vst.msk [vmem:[%s1552] ss:$16 sm:$0xc0] %vm1545, %v1544
    %s1554 = scalar_lea.vmem [#allocation0], 80
    %v1555 = vld [vmem:[%s1554] sm:$0xff]
    %1556 = vrot.lane.b32.xlu0 %v1555, 72
    %v1557 = vpop.permute.xlu0 %1556
    %vm1558 = vcmask 64512
    %s1559 = scalar_lea.vmem %s1, 1287
    %1560 = vst.msk [vmem:[%s1559] ss:$16 sm:$0x3] %vm1558, %v1557
    %s1561 = scalar_lea.vmem %s1, 1287
    %1562 = vst.msk [vmem:[%s1561] ss:$16 sm:$0xc] %vm1558, %v1557
    %s1563 = scalar_lea.vmem %s1, 1287
    %1564 = vst.msk [vmem:[%s1563] ss:$16 sm:$0x30] %vm1558, %v1557
    %s1565 = scalar_lea.vmem %s1, 1287
    %1566 = vst.msk [vmem:[%s1565] ss:$16 sm:$0xc0] %vm1558, %v1557
    %s1567 = scalar_lea.vmem [#allocation0], 88
    %v1568 = vld [vmem:[%s1567] sm:$0xff]
    %1569 = vrot.lane.b32.xlu0 %v1568, 72
    %v1570 = vpop.permute.xlu0 %1569
    %vm1571 = vcmask 64512
    %s1572 = scalar_lea.vmem %s1, 1415
    %1573 = vst.msk [vmem:[%s1572] ss:$16 sm:$0x3] %vm1571, %v1570
    %s1574 = scalar_lea.vmem %s1, 1415
    %1575 = vst.msk [vmem:[%s1574] ss:$16 sm:$0xc] %vm1571, %v1570
    %s1576 = scalar_lea.vmem %s1, 1415
    %1577 = vst.msk [vmem:[%s1576] ss:$16 sm:$0x30] %vm1571, %v1570
    %s1578 = scalar_lea.vmem %s1, 1415
    %1579 = vst.msk [vmem:[%s1578] ss:$16 sm:$0xc0] %vm1571, %v1570
    %s1580 = scalar_lea.vmem [#allocation0], 96
    %v1581 = vld [vmem:[%s1580] sm:$0xff]
    %1582 = vrot.lane.b32.xlu0 %v1581, 72
    %v1583 = vpop.permute.xlu0 %1582
    %vm1584 = vcmask 64512
    %s1585 = scalar_lea.vmem %s1, 1543
    %1586 = vst.msk [vmem:[%s1585] ss:$16 sm:$0x3] %vm1584, %v1583
    %s1587 = scalar_lea.vmem %s1, 1543
    %1588 = vst.msk [vmem:[%s1587] ss:$16 sm:$0xc] %vm1584, %v1583
    %s1589 = scalar_lea.vmem %s1, 1543
    %1590 = vst.msk [vmem:[%s1589] ss:$16 sm:$0x30] %vm1584, %v1583
    %s1591 = scalar_lea.vmem %s1, 1543
    %1592 = vst.msk [vmem:[%s1591] ss:$16 sm:$0xc0] %vm1584, %v1583
    %s1593 = scalar_lea.vmem [#allocation0], 104
    %v1594 = vld [vmem:[%s1593] sm:$0xff]
    %1595 = vrot.lane.b32.xlu0 %v1594, 72
    %v1596 = vpop.permute.xlu0 %1595
    %vm1597 = vcmask 64512
    %s1598 = scalar_lea.vmem %s1, 1671
    %1599 = vst.msk [vmem:[%s1598] ss:$16 sm:$0x3] %vm1597, %v1596
    %s1600 = scalar_lea.vmem %s1, 1671
    %1601 = vst.msk [vmem:[%s1600] ss:$16 sm:$0xc] %vm1597, %v1596
    %s1602 = scalar_lea.vmem %s1, 1671
    %1603 = vst.msk [vmem:[%s1602] ss:$16 sm:$0x30] %vm1597, %v1596
    %s1604 = scalar_lea.vmem %s1, 1671
    %1605 = vst.msk [vmem:[%s1604] ss:$16 sm:$0xc0] %vm1597, %v1596
    %s1606 = scalar_lea.vmem [#allocation0], 112
    %v1607 = vld [vmem:[%s1606] sm:$0xff]
    %1608 = vrot.lane.b32.xlu0 %v1607, 72
    %v1609 = vpop.permute.xlu0 %1608
    %vm1610 = vcmask 64512
    %s1611 = scalar_lea.vmem %s1, 1799
    %1612 = vst.msk [vmem:[%s1611] ss:$16 sm:$0x3] %vm1610, %v1609
    %s1613 = scalar_lea.vmem %s1, 1799
    %1614 = vst.msk [vmem:[%s1613] ss:$16 sm:$0xc] %vm1610, %v1609
    %s1615 = scalar_lea.vmem %s1, 1799
    %1616 = vst.msk [vmem:[%s1615] ss:$16 sm:$0x30] %vm1610, %v1609
    %s1617 = scalar_lea.vmem %s1, 1799
    %1618 = vst.msk [vmem:[%s1617] ss:$16 sm:$0xc0] %vm1610, %v1609
    %s1619 = scalar_lea.vmem [#allocation0], 120
    %v1620 = vld [vmem:[%s1619] sm:$0xff]
    %1621 = vrot.lane.b32.xlu0 %v1620, 72
    %v1622 = vpop.permute.xlu0 %1621
    %vm1623 = vcmask 64512
    %s1624 = scalar_lea.vmem %s1, 1927
    %1625 = vst.msk [vmem:[%s1624] ss:$16 sm:$0x3] %vm1623, %v1622
    %s1626 = scalar_lea.vmem %s1, 1927
    %1627 = vst.msk [vmem:[%s1626] ss:$16 sm:$0xc] %vm1623, %v1622
    %s1628 = scalar_lea.vmem %s1, 1927
    %1629 = vst.msk [vmem:[%s1628] ss:$16 sm:$0x30] %vm1623, %v1622
    %s1630 = scalar_lea.vmem %s1, 1927
    %1631 = vst.msk [vmem:[%s1630] ss:$16 sm:$0xc0] %vm1623, %v1622
    %v1632 = vld [vmem:[#allocation0] sm:$0xff]
    %1633 = vrot.lane.b32.xlu0 %v1632, 64
    %v1634 = vpop.permute.xlu0 %1633
    %vm1635 = vcmask 64512
    %s1636 = scalar_lea.vmem %s1, 8
    %1637 = vst.msk [vmem:[%s1636] ss:$16 sm:$0x3] %vm1635, %v1634
    %s1638 = scalar_lea.vmem %s1, 8
    %1639 = vst.msk [vmem:[%s1638] ss:$16 sm:$0xc] %vm1635, %v1634
    %s1640 = scalar_lea.vmem %s1, 8
    %1641 = vst.msk [vmem:[%s1640] ss:$16 sm:$0x30] %vm1635, %v1634
    %s1642 = scalar_lea.vmem %s1, 8
    %1643 = vst.msk [vmem:[%s1642] ss:$16 sm:$0xc0] %vm1635, %v1634
    %s1644 = scalar_lea.vmem [#allocation0], 8
    %v1645 = vld [vmem:[%s1644] sm:$0xff]
    %1646 = vrot.lane.b32.xlu0 %v1645, 64
    %v1647 = vpop.permute.xlu0 %1646
    %vm1648 = vcmask 64512
    %s1649 = scalar_lea.vmem %s1, 136
    %1650 = vst.msk [vmem:[%s1649] ss:$16 sm:$0x3] %vm1648, %v1647
    %s1651 = scalar_lea.vmem %s1, 136
    %1652 = vst.msk [vmem:[%s1651] ss:$16 sm:$0xc] %vm1648, %v1647
    %s1653 = scalar_lea.vmem %s1, 136
    %1654 = vst.msk [vmem:[%s1653] ss:$16 sm:$0x30] %vm1648, %v1647
    %s1655 = scalar_lea.vmem %s1, 136
    %1656 = vst.msk [vmem:[%s1655] ss:$16 sm:$0xc0] %vm1648, %v1647
    %s1657 = scalar_lea.vmem [#allocation0], 16
    %v1658 = vld [vmem:[%s1657] sm:$0xff]
    %1659 = vrot.lane.b32.xlu0 %v1658, 64
    %v1660 = vpop.permute.xlu0 %1659
    %vm1661 = vcmask 64512
    %s1662 = scalar_lea.vmem %s1, 264
    %1663 = vst.msk [vmem:[%s1662] ss:$16 sm:$0x3] %vm1661, %v1660
    %s1664 = scalar_lea.vmem %s1, 264
    %1665 = vst.msk [vmem:[%s1664] ss:$16 sm:$0xc] %vm1661, %v1660
    %s1666 = scalar_lea.vmem %s1, 264
    %1667 = vst.msk [vmem:[%s1666] ss:$16 sm:$0x30] %vm1661, %v1660
    %s1668 = scalar_lea.vmem %s1, 264
    %1669 = vst.msk [vmem:[%s1668] ss:$16 sm:$0xc0] %vm1661, %v1660
    %s1670 = scalar_lea.vmem [#allocation0], 24
    %v1671 = vld [vmem:[%s1670] sm:$0xff]
    %1672 = vrot.lane.b32.xlu0 %v1671, 64
    %v1673 = vpop.permute.xlu0 %1672
    %vm1674 = vcmask 64512
    %s1675 = scalar_lea.vmem %s1, 392
    %1676 = vst.msk [vmem:[%s1675] ss:$16 sm:$0x3] %vm1674, %v1673
    %s1677 = scalar_lea.vmem %s1, 392
    %1678 = vst.msk [vmem:[%s1677] ss:$16 sm:$0xc] %vm1674, %v1673
    %s1679 = scalar_lea.vmem %s1, 392
    %1680 = vst.msk [vmem:[%s1679] ss:$16 sm:$0x30] %vm1674, %v1673
    %s1681 = scalar_lea.vmem %s1, 392
    %1682 = vst.msk [vmem:[%s1681] ss:$16 sm:$0xc0] %vm1674, %v1673
    %s1683 = scalar_lea.vmem [#allocation0], 32
    %v1684 = vld [vmem:[%s1683] sm:$0xff]
    %1685 = vrot.lane.b32.xlu0 %v1684, 64
    %v1686 = vpop.permute.xlu0 %1685
    %vm1687 = vcmask 64512
    %s1688 = scalar_lea.vmem %s1, 520
    %1689 = vst.msk [vmem:[%s1688] ss:$16 sm:$0x3] %vm1687, %v1686
    %s1690 = scalar_lea.vmem %s1, 520
    %1691 = vst.msk [vmem:[%s1690] ss:$16 sm:$0xc] %vm1687, %v1686
    %s1692 = scalar_lea.vmem %s1, 520
    %1693 = vst.msk [vmem:[%s1692] ss:$16 sm:$0x30] %vm1687, %v1686
    %s1694 = scalar_lea.vmem %s1, 520
    %1695 = vst.msk [vmem:[%s1694] ss:$16 sm:$0xc0] %vm1687, %v1686
    %s1696 = scalar_lea.vmem [#allocation0], 40
    %v1697 = vld [vmem:[%s1696] sm:$0xff]
    %1698 = vrot.lane.b32.xlu0 %v1697, 64
    %v1699 = vpop.permute.xlu0 %1698
    %vm1700 = vcmask 64512
    %s1701 = scalar_lea.vmem %s1, 648
    %1702 = vst.msk [vmem:[%s1701] ss:$16 sm:$0x3] %vm1700, %v1699
    %s1703 = scalar_lea.vmem %s1, 648
    %1704 = vst.msk [vmem:[%s1703] ss:$16 sm:$0xc] %vm1700, %v1699
    %s1705 = scalar_lea.vmem %s1, 648
    %1706 = vst.msk [vmem:[%s1705] ss:$16 sm:$0x30] %vm1700, %v1699
    %s1707 = scalar_lea.vmem %s1, 648
    %1708 = vst.msk [vmem:[%s1707] ss:$16 sm:$0xc0] %vm1700, %v1699
    %s1709 = scalar_lea.vmem [#allocation0], 48
    %v1710 = vld [vmem:[%s1709] sm:$0xff]
    %1711 = vrot.lane.b32.xlu0 %v1710, 64
    %v1712 = vpop.permute.xlu0 %1711
    %vm1713 = vcmask 64512
    %s1714 = scalar_lea.vmem %s1, 776
    %1715 = vst.msk [vmem:[%s1714] ss:$16 sm:$0x3] %vm1713, %v1712
    %s1716 = scalar_lea.vmem %s1, 776
    %1717 = vst.msk [vmem:[%s1716] ss:$16 sm:$0xc] %vm1713, %v1712
    %s1718 = scalar_lea.vmem %s1, 776
    %1719 = vst.msk [vmem:[%s1718] ss:$16 sm:$0x30] %vm1713, %v1712
    %s1720 = scalar_lea.vmem %s1, 776
    %1721 = vst.msk [vmem:[%s1720] ss:$16 sm:$0xc0] %vm1713, %v1712
    %s1722 = scalar_lea.vmem [#allocation0], 56
    %v1723 = vld [vmem:[%s1722] sm:$0xff]
    %1724 = vrot.lane.b32.xlu0 %v1723, 64
    %v1725 = vpop.permute.xlu0 %1724
    %vm1726 = vcmask 64512
    %s1727 = scalar_lea.vmem %s1, 904
    %1728 = vst.msk [vmem:[%s1727] ss:$16 sm:$0x3] %vm1726, %v1725
    %s1729 = scalar_lea.vmem %s1, 904
    %1730 = vst.msk [vmem:[%s1729] ss:$16 sm:$0xc] %vm1726, %v1725
    %s1731 = scalar_lea.vmem %s1, 904
    %1732 = vst.msk [vmem:[%s1731] ss:$16 sm:$0x30] %vm1726, %v1725
    %s1733 = scalar_lea.vmem %s1, 904
    %1734 = vst.msk [vmem:[%s1733] ss:$16 sm:$0xc0] %vm1726, %v1725
    %s1735 = scalar_lea.vmem [#allocation0], 64
    %v1736 = vld [vmem:[%s1735] sm:$0xff]
    %1737 = vrot.lane.b32.xlu0 %v1736, 64
    %v1738 = vpop.permute.xlu0 %1737
    %vm1739 = vcmask 64512
    %s1740 = scalar_lea.vmem %s1, 1032
    %1741 = vst.msk [vmem:[%s1740] ss:$16 sm:$0x3] %vm1739, %v1738
    %s1742 = scalar_lea.vmem %s1, 1032
    %1743 = vst.msk [vmem:[%s1742] ss:$16 sm:$0xc] %vm1739, %v1738
    %s1744 = scalar_lea.vmem %s1, 1032
    %1745 = vst.msk [vmem:[%s1744] ss:$16 sm:$0x30] %vm1739, %v1738
    %s1746 = scalar_lea.vmem %s1, 1032
    %1747 = vst.msk [vmem:[%s1746] ss:$16 sm:$0xc0] %vm1739, %v1738
    %s1748 = scalar_lea.vmem [#allocation0], 72
    %v1749 = vld [vmem:[%s1748] sm:$0xff]
    %1750 = vrot.lane.b32.xlu0 %v1749, 64
    %v1751 = vpop.permute.xlu0 %1750
    %vm1752 = vcmask 64512
    %s1753 = scalar_lea.vmem %s1, 1160
    %1754 = vst.msk [vmem:[%s1753] ss:$16 sm:$0x3] %vm1752, %v1751
    %s1755 = scalar_lea.vmem %s1, 1160
    %1756 = vst.msk [vmem:[%s1755] ss:$16 sm:$0xc] %vm1752, %v1751
    %s1757 = scalar_lea.vmem %s1, 1160
    %1758 = vst.msk [vmem:[%s1757] ss:$16 sm:$0x30] %vm1752, %v1751
    %s1759 = scalar_lea.vmem %s1, 1160
    %1760 = vst.msk [vmem:[%s1759] ss:$16 sm:$0xc0] %vm1752, %v1751
    %s1761 = scalar_lea.vmem [#allocation0], 80
    %v1762 = vld [vmem:[%s1761] sm:$0xff]
    %1763 = vrot.lane.b32.xlu0 %v1762, 64
    %v1764 = vpop.permute.xlu0 %1763
    %vm1765 = vcmask 64512
    %s1766 = scalar_lea.vmem %s1, 1288
    %1767 = vst.msk [vmem:[%s1766] ss:$16 sm:$0x3] %vm1765, %v1764
    %s1768 = scalar_lea.vmem %s1, 1288
    %1769 = vst.msk [vmem:[%s1768] ss:$16 sm:$0xc] %vm1765, %v1764
    %s1770 = scalar_lea.vmem %s1, 1288
    %1771 = vst.msk [vmem:[%s1770] ss:$16 sm:$0x30] %vm1765, %v1764
    %s1772 = scalar_lea.vmem %s1, 1288
    %1773 = vst.msk [vmem:[%s1772] ss:$16 sm:$0xc0] %vm1765, %v1764
    %s1774 = scalar_lea.vmem [#allocation0], 88
    %v1775 = vld [vmem:[%s1774] sm:$0xff]
    %1776 = vrot.lane.b32.xlu0 %v1775, 64
    %v1777 = vpop.permute.xlu0 %1776
    %vm1778 = vcmask 64512
    %s1779 = scalar_lea.vmem %s1, 1416
    %1780 = vst.msk [vmem:[%s1779] ss:$16 sm:$0x3] %vm1778, %v1777
    %s1781 = scalar_lea.vmem %s1, 1416
    %1782 = vst.msk [vmem:[%s1781] ss:$16 sm:$0xc] %vm1778, %v1777
    %s1783 = scalar_lea.vmem %s1, 1416
    %1784 = vst.msk [vmem:[%s1783] ss:$16 sm:$0x30] %vm1778, %v1777
    %s1785 = scalar_lea.vmem %s1, 1416
    %1786 = vst.msk [vmem:[%s1785] ss:$16 sm:$0xc0] %vm1778, %v1777
    %s1787 = scalar_lea.vmem [#allocation0], 96
    %v1788 = vld [vmem:[%s1787] sm:$0xff]
    %1789 = vrot.lane.b32.xlu0 %v1788, 64
    %v1790 = vpop.permute.xlu0 %1789
    %vm1791 = vcmask 64512
    %s1792 = scalar_lea.vmem %s1, 1544
    %1793 = vst.msk [vmem:[%s1792] ss:$16 sm:$0x3] %vm1791, %v1790
    %s1794 = scalar_lea.vmem %s1, 1544
    %1795 = vst.msk [vmem:[%s1794] ss:$16 sm:$0xc] %vm1791, %v1790
    %s1796 = scalar_lea.vmem %s1, 1544
    %1797 = vst.msk [vmem:[%s1796] ss:$16 sm:$0x30] %vm1791, %v1790
    %s1798 = scalar_lea.vmem %s1, 1544
    %1799 = vst.msk [vmem:[%s1798] ss:$16 sm:$0xc0] %vm1791, %v1790
    %s1800 = scalar_lea.vmem [#allocation0], 104
    %v1801 = vld [vmem:[%s1800] sm:$0xff]
    %1802 = vrot.lane.b32.xlu0 %v1801, 64
    %v1803 = vpop.permute.xlu0 %1802
    %vm1804 = vcmask 64512
    %s1805 = scalar_lea.vmem %s1, 1672
    %1806 = vst.msk [vmem:[%s1805] ss:$16 sm:$0x3] %vm1804, %v1803
    %s1807 = scalar_lea.vmem %s1, 1672
    %1808 = vst.msk [vmem:[%s1807] ss:$16 sm:$0xc] %vm1804, %v1803
    %s1809 = scalar_lea.vmem %s1, 1672
    %1810 = vst.msk [vmem:[%s1809] ss:$16 sm:$0x30] %vm1804, %v1803
    %s1811 = scalar_lea.vmem %s1, 1672
    %1812 = vst.msk [vmem:[%s1811] ss:$16 sm:$0xc0] %vm1804, %v1803
    %s1813 = scalar_lea.vmem [#allocation0], 112
    %v1814 = vld [vmem:[%s1813] sm:$0xff]
    %1815 = vrot.lane.b32.xlu0 %v1814, 64
    %v1816 = vpop.permute.xlu0 %1815
    %vm1817 = vcmask 64512
    %s1818 = scalar_lea.vmem %s1, 1800
    %1819 = vst.msk [vmem:[%s1818] ss:$16 sm:$0x3] %vm1817, %v1816
    %s1820 = scalar_lea.vmem %s1, 1800
    %1821 = vst.msk [vmem:[%s1820] ss:$16 sm:$0xc] %vm1817, %v1816
    %s1822 = scalar_lea.vmem %s1, 1800
    %1823 = vst.msk [vmem:[%s1822] ss:$16 sm:$0x30] %vm1817, %v1816
    %s1824 = scalar_lea.vmem %s1, 1800
    %1825 = vst.msk [vmem:[%s1824] ss:$16 sm:$0xc0] %vm1817, %v1816
    %s1826 = scalar_lea.vmem [#allocation0], 120
    %v1827 = vld [vmem:[%s1826] sm:$0xff]
    %1828 = vrot.lane.b32.xlu0 %v1827, 64
    %v1829 = vpop.permute.xlu0 %1828
    %vm1830 = vcmask 64512
    %s1831 = scalar_lea.vmem %s1, 1928
    %1832 = vst.msk [vmem:[%s1831] ss:$16 sm:$0x3] %vm1830, %v1829
    %s1833 = scalar_lea.vmem %s1, 1928
    %1834 = vst.msk [vmem:[%s1833] ss:$16 sm:$0xc] %vm1830, %v1829
    %s1835 = scalar_lea.vmem %s1, 1928
    %1836 = vst.msk [vmem:[%s1835] ss:$16 sm:$0x30] %vm1830, %v1829
    %s1837 = scalar_lea.vmem %s1, 1928
    %1838 = vst.msk [vmem:[%s1837] ss:$16 sm:$0xc0] %vm1830, %v1829
    %v1839 = vld [vmem:[#allocation0] sm:$0xff]
    %1840 = vrot.lane.b32.xlu0 %v1839, 56
    %v1841 = vpop.permute.xlu0 %1840
    %vm1842 = vcmask 64512
    %s1843 = scalar_lea.vmem %s1, 9
    %1844 = vst.msk [vmem:[%s1843] ss:$16 sm:$0x3] %vm1842, %v1841
    %s1845 = scalar_lea.vmem %s1, 9
    %1846 = vst.msk [vmem:[%s1845] ss:$16 sm:$0xc] %vm1842, %v1841
    %s1847 = scalar_lea.vmem %s1, 9
    %1848 = vst.msk [vmem:[%s1847] ss:$16 sm:$0x30] %vm1842, %v1841
    %s1849 = scalar_lea.vmem %s1, 9
    %1850 = vst.msk [vmem:[%s1849] ss:$16 sm:$0xc0] %vm1842, %v1841
    %s1851 = scalar_lea.vmem [#allocation0], 8
    %v1852 = vld [vmem:[%s1851] sm:$0xff]
    %1853 = vrot.lane.b32.xlu0 %v1852, 56
    %v1854 = vpop.permute.xlu0 %1853
    %vm1855 = vcmask 64512
    %s1856 = scalar_lea.vmem %s1, 137
    %1857 = vst.msk [vmem:[%s1856] ss:$16 sm:$0x3] %vm1855, %v1854
    %s1858 = scalar_lea.vmem %s1, 137
    %1859 = vst.msk [vmem:[%s1858] ss:$16 sm:$0xc] %vm1855, %v1854
    %s1860 = scalar_lea.vmem %s1, 137
    %1861 = vst.msk [vmem:[%s1860] ss:$16 sm:$0x30] %vm1855, %v1854
    %s1862 = scalar_lea.vmem %s1, 137
    %1863 = vst.msk [vmem:[%s1862] ss:$16 sm:$0xc0] %vm1855, %v1854
    %s1864 = scalar_lea.vmem [#allocation0], 16
    %v1865 = vld [vmem:[%s1864] sm:$0xff]
    %1866 = vrot.lane.b32.xlu0 %v1865, 56
    %v1867 = vpop.permute.xlu0 %1866
    %vm1868 = vcmask 64512
    %s1869 = scalar_lea.vmem %s1, 265
    %1870 = vst.msk [vmem:[%s1869] ss:$16 sm:$0x3] %vm1868, %v1867
    %s1871 = scalar_lea.vmem %s1, 265
    %1872 = vst.msk [vmem:[%s1871] ss:$16 sm:$0xc] %vm1868, %v1867
    %s1873 = scalar_lea.vmem %s1, 265
    %1874 = vst.msk [vmem:[%s1873] ss:$16 sm:$0x30] %vm1868, %v1867
    %s1875 = scalar_lea.vmem %s1, 265
    %1876 = vst.msk [vmem:[%s1875] ss:$16 sm:$0xc0] %vm1868, %v1867
    %s1877 = scalar_lea.vmem [#allocation0], 24
    %v1878 = vld [vmem:[%s1877] sm:$0xff]
    %1879 = vrot.lane.b32.xlu0 %v1878, 56
    %v1880 = vpop.permute.xlu0 %1879
    %vm1881 = vcmask 64512
    %s1882 = scalar_lea.vmem %s1, 393
    %1883 = vst.msk [vmem:[%s1882] ss:$16 sm:$0x3] %vm1881, %v1880
    %s1884 = scalar_lea.vmem %s1, 393
    %1885 = vst.msk [vmem:[%s1884] ss:$16 sm:$0xc] %vm1881, %v1880
    %s1886 = scalar_lea.vmem %s1, 393
    %1887 = vst.msk [vmem:[%s1886] ss:$16 sm:$0x30] %vm1881, %v1880
    %s1888 = scalar_lea.vmem %s1, 393
    %1889 = vst.msk [vmem:[%s1888] ss:$16 sm:$0xc0] %vm1881, %v1880
    %s1890 = scalar_lea.vmem [#allocation0], 32
    %v1891 = vld [vmem:[%s1890] sm:$0xff]
    %1892 = vrot.lane.b32.xlu0 %v1891, 56
    %v1893 = vpop.permute.xlu0 %1892
    %vm1894 = vcmask 64512
    %s1895 = scalar_lea.vmem %s1, 521
    %1896 = vst.msk [vmem:[%s1895] ss:$16 sm:$0x3] %vm1894, %v1893
    %s1897 = scalar_lea.vmem %s1, 521
    %1898 = vst.msk [vmem:[%s1897] ss:$16 sm:$0xc] %vm1894, %v1893
    %s1899 = scalar_lea.vmem %s1, 521
    %1900 = vst.msk [vmem:[%s1899] ss:$16 sm:$0x30] %vm1894, %v1893
    %s1901 = scalar_lea.vmem %s1, 521
    %1902 = vst.msk [vmem:[%s1901] ss:$16 sm:$0xc0] %vm1894, %v1893
    %s1903 = scalar_lea.vmem [#allocation0], 40
    %v1904 = vld [vmem:[%s1903] sm:$0xff]
    %1905 = vrot.lane.b32.xlu0 %v1904, 56
    %v1906 = vpop.permute.xlu0 %1905
    %vm1907 = vcmask 64512
    %s1908 = scalar_lea.vmem %s1, 649
    %1909 = vst.msk [vmem:[%s1908] ss:$16 sm:$0x3] %vm1907, %v1906
    %s1910 = scalar_lea.vmem %s1, 649
    %1911 = vst.msk [vmem:[%s1910] ss:$16 sm:$0xc] %vm1907, %v1906
    %s1912 = scalar_lea.vmem %s1, 649
    %1913 = vst.msk [vmem:[%s1912] ss:$16 sm:$0x30] %vm1907, %v1906
    %s1914 = scalar_lea.vmem %s1, 649
    %1915 = vst.msk [vmem:[%s1914] ss:$16 sm:$0xc0] %vm1907, %v1906
    %s1916 = scalar_lea.vmem [#allocation0], 48
    %v1917 = vld [vmem:[%s1916] sm:$0xff]
    %1918 = vrot.lane.b32.xlu0 %v1917, 56
    %v1919 = vpop.permute.xlu0 %1918
    %vm1920 = vcmask 64512
    %s1921 = scalar_lea.vmem %s1, 777
    %1922 = vst.msk [vmem:[%s1921] ss:$16 sm:$0x3] %vm1920, %v1919
    %s1923 = scalar_lea.vmem %s1, 777
    %1924 = vst.msk [vmem:[%s1923] ss:$16 sm:$0xc] %vm1920, %v1919
    %s1925 = scalar_lea.vmem %s1, 777
    %1926 = vst.msk [vmem:[%s1925] ss:$16 sm:$0x30] %vm1920, %v1919
    %s1927 = scalar_lea.vmem %s1, 777
    %1928 = vst.msk [vmem:[%s1927] ss:$16 sm:$0xc0] %vm1920, %v1919
    %s1929 = scalar_lea.vmem [#allocation0], 56
    %v1930 = vld [vmem:[%s1929] sm:$0xff]
    %1931 = vrot.lane.b32.xlu0 %v1930, 56
    %v1932 = vpop.permute.xlu0 %1931
    %vm1933 = vcmask 64512
    %s1934 = scalar_lea.vmem %s1, 905
    %1935 = vst.msk [vmem:[%s1934] ss:$16 sm:$0x3] %vm1933, %v1932
    %s1936 = scalar_lea.vmem %s1, 905
    %1937 = vst.msk [vmem:[%s1936] ss:$16 sm:$0xc] %vm1933, %v1932
    %s1938 = scalar_lea.vmem %s1, 905
    %1939 = vst.msk [vmem:[%s1938] ss:$16 sm:$0x30] %vm1933, %v1932
    %s1940 = scalar_lea.vmem %s1, 905
    %1941 = vst.msk [vmem:[%s1940] ss:$16 sm:$0xc0] %vm1933, %v1932
    %s1942 = scalar_lea.vmem [#allocation0], 64
    %v1943 = vld [vmem:[%s1942] sm:$0xff]
    %1944 = vrot.lane.b32.xlu0 %v1943, 56
    %v1945 = vpop.permute.xlu0 %1944
    %vm1946 = vcmask 64512
    %s1947 = scalar_lea.vmem %s1, 1033
    %1948 = vst.msk [vmem:[%s1947] ss:$16 sm:$0x3] %vm1946, %v1945
    %s1949 = scalar_lea.vmem %s1, 1033
    %1950 = vst.msk [vmem:[%s1949] ss:$16 sm:$0xc] %vm1946, %v1945
    %s1951 = scalar_lea.vmem %s1, 1033
    %1952 = vst.msk [vmem:[%s1951] ss:$16 sm:$0x30] %vm1946, %v1945
    %s1953 = scalar_lea.vmem %s1, 1033
    %1954 = vst.msk [vmem:[%s1953] ss:$16 sm:$0xc0] %vm1946, %v1945
    %s1955 = scalar_lea.vmem [#allocation0], 72
    %v1956 = vld [vmem:[%s1955] sm:$0xff]
    %1957 = vrot.lane.b32.xlu0 %v1956, 56
    %v1958 = vpop.permute.xlu0 %1957
    %vm1959 = vcmask 64512
    %s1960 = scalar_lea.vmem %s1, 1161
    %1961 = vst.msk [vmem:[%s1960] ss:$16 sm:$0x3] %vm1959, %v1958
    %s1962 = scalar_lea.vmem %s1, 1161
    %1963 = vst.msk [vmem:[%s1962] ss:$16 sm:$0xc] %vm1959, %v1958
    %s1964 = scalar_lea.vmem %s1, 1161
    %1965 = vst.msk [vmem:[%s1964] ss:$16 sm:$0x30] %vm1959, %v1958
    %s1966 = scalar_lea.vmem %s1, 1161
    %1967 = vst.msk [vmem:[%s1966] ss:$16 sm:$0xc0] %vm1959, %v1958
    %s1968 = scalar_lea.vmem [#allocation0], 80
    %v1969 = vld [vmem:[%s1968] sm:$0xff]
    %1970 = vrot.lane.b32.xlu0 %v1969, 56
    %v1971 = vpop.permute.xlu0 %1970
    %vm1972 = vcmask 64512
    %s1973 = scalar_lea.vmem %s1, 1289
    %1974 = vst.msk [vmem:[%s1973] ss:$16 sm:$0x3] %vm1972, %v1971
    %s1975 = scalar_lea.vmem %s1, 1289
    %1976 = vst.msk [vmem:[%s1975] ss:$16 sm:$0xc] %vm1972, %v1971
    %s1977 = scalar_lea.vmem %s1, 1289
    %1978 = vst.msk [vmem:[%s1977] ss:$16 sm:$0x30] %vm1972, %v1971
    %s1979 = scalar_lea.vmem %s1, 1289
    %1980 = vst.msk [vmem:[%s1979] ss:$16 sm:$0xc0] %vm1972, %v1971
    %s1981 = scalar_lea.vmem [#allocation0], 88
    %v1982 = vld [vmem:[%s1981] sm:$0xff]
    %1983 = vrot.lane.b32.xlu0 %v1982, 56
    %v1984 = vpop.permute.xlu0 %1983
    %vm1985 = vcmask 64512
    %s1986 = scalar_lea.vmem %s1, 1417
    %1987 = vst.msk [vmem:[%s1986] ss:$16 sm:$0x3] %vm1985, %v1984
    %s1988 = scalar_lea.vmem %s1, 1417
    %1989 = vst.msk [vmem:[%s1988] ss:$16 sm:$0xc] %vm1985, %v1984
    %s1990 = scalar_lea.vmem %s1, 1417
    %1991 = vst.msk [vmem:[%s1990] ss:$16 sm:$0x30] %vm1985, %v1984
    %s1992 = scalar_lea.vmem %s1, 1417
    %1993 = vst.msk [vmem:[%s1992] ss:$16 sm:$0xc0] %vm1985, %v1984
    %s1994 = scalar_lea.vmem [#allocation0], 96
    %v1995 = vld [vmem:[%s1994] sm:$0xff]
    %1996 = vrot.lane.b32.xlu0 %v1995, 56
    %v1997 = vpop.permute.xlu0 %1996
    %vm1998 = vcmask 64512
    %s1999 = scalar_lea.vmem %s1, 1545
    %2000 = vst.msk [vmem:[%s1999] ss:$16 sm:$0x3] %vm1998, %v1997
    %s2001 = scalar_lea.vmem %s1, 1545
    %2002 = vst.msk [vmem:[%s2001] ss:$16 sm:$0xc] %vm1998, %v1997
    %s2003 = scalar_lea.vmem %s1, 1545
    %2004 = vst.msk [vmem:[%s2003] ss:$16 sm:$0x30] %vm1998, %v1997
    %s2005 = scalar_lea.vmem %s1, 1545
    %2006 = vst.msk [vmem:[%s2005] ss:$16 sm:$0xc0] %vm1998, %v1997
    %s2007 = scalar_lea.vmem [#allocation0], 104
    %v2008 = vld [vmem:[%s2007] sm:$0xff]
    %2009 = vrot.lane.b32.xlu0 %v2008, 56
    %v2010 = vpop.permute.xlu0 %2009
    %vm2011 = vcmask 64512
    %s2012 = scalar_lea.vmem %s1, 1673
    %2013 = vst.msk [vmem:[%s2012] ss:$16 sm:$0x3] %vm2011, %v2010
    %s2014 = scalar_lea.vmem %s1, 1673
    %2015 = vst.msk [vmem:[%s2014] ss:$16 sm:$0xc] %vm2011, %v2010
    %s2016 = scalar_lea.vmem %s1, 1673
    %2017 = vst.msk [vmem:[%s2016] ss:$16 sm:$0x30] %vm2011, %v2010
    %s2018 = scalar_lea.vmem %s1, 1673
    %2019 = vst.msk [vmem:[%s2018] ss:$16 sm:$0xc0] %vm2011, %v2010
    %s2020 = scalar_lea.vmem [#allocation0], 112
    %v2021 = vld [vmem:[%s2020] sm:$0xff]
    %2022 = vrot.lane.b32.xlu0 %v2021, 56
    %v2023 = vpop.permute.xlu0 %2022
    %vm2024 = vcmask 64512
    %s2025 = scalar_lea.vmem %s1, 1801
    %2026 = vst.msk [vmem:[%s2025] ss:$16 sm:$0x3] %vm2024, %v2023
    %s2027 = scalar_lea.vmem %s1, 1801
    %2028 = vst.msk [vmem:[%s2027] ss:$16 sm:$0xc] %vm2024, %v2023
    %s2029 = scalar_lea.vmem %s1, 1801
    %2030 = vst.msk [vmem:[%s2029] ss:$16 sm:$0x30] %vm2024, %v2023
    %s2031 = scalar_lea.vmem %s1, 1801
    %2032 = vst.msk [vmem:[%s2031] ss:$16 sm:$0xc0] %vm2024, %v2023
    %s2033 = scalar_lea.vmem [#allocation0], 120
    %v2034 = vld [vmem:[%s2033] sm:$0xff]
    %2035 = vrot.lane.b32.xlu0 %v2034, 56
    %v2036 = vpop.permute.xlu0 %2035
    %vm2037 = vcmask 64512
    %s2038 = scalar_lea.vmem %s1, 1929
    %2039 = vst.msk [vmem:[%s2038] ss:$16 sm:$0x3] %vm2037, %v2036
    %s2040 = scalar_lea.vmem %s1, 1929
    %2041 = vst.msk [vmem:[%s2040] ss:$16 sm:$0xc] %vm2037, %v2036
    %s2042 = scalar_lea.vmem %s1, 1929
    %2043 = vst.msk [vmem:[%s2042] ss:$16 sm:$0x30] %vm2037, %v2036
    %s2044 = scalar_lea.vmem %s1, 1929
    %2045 = vst.msk [vmem:[%s2044] ss:$16 sm:$0xc0] %vm2037, %v2036
    %v2046 = vld [vmem:[#allocation0] sm:$0xff]
    %2047 = vrot.lane.b32.xlu0 %v2046, 48
    %v2048 = vpop.permute.xlu0 %2047
    %vm2049 = vcmask 64512
    %s2050 = scalar_lea.vmem %s1, 10
    %2051 = vst.msk [vmem:[%s2050] ss:$16 sm:$0x3] %vm2049, %v2048
    %s2052 = scalar_lea.vmem %s1, 10
    %2053 = vst.msk [vmem:[%s2052] ss:$16 sm:$0xc] %vm2049, %v2048
    %s2054 = scalar_lea.vmem %s1, 10
    %2055 = vst.msk [vmem:[%s2054] ss:$16 sm:$0x30] %vm2049, %v2048
    %s2056 = scalar_lea.vmem %s1, 10
    %2057 = vst.msk [vmem:[%s2056] ss:$16 sm:$0xc0] %vm2049, %v2048
    %s2058 = scalar_lea.vmem [#allocation0], 8
    %v2059 = vld [vmem:[%s2058] sm:$0xff]
    %2060 = vrot.lane.b32.xlu0 %v2059, 48
    %v2061 = vpop.permute.xlu0 %2060
    %vm2062 = vcmask 64512
    %s2063 = scalar_lea.vmem %s1, 138
    %2064 = vst.msk [vmem:[%s2063] ss:$16 sm:$0x3] %vm2062, %v2061
    %s2065 = scalar_lea.vmem %s1, 138
    %2066 = vst.msk [vmem:[%s2065] ss:$16 sm:$0xc] %vm2062, %v2061
    %s2067 = scalar_lea.vmem %s1, 138
    %2068 = vst.msk [vmem:[%s2067] ss:$16 sm:$0x30] %vm2062, %v2061
    %s2069 = scalar_lea.vmem %s1, 138
    %2070 = vst.msk [vmem:[%s2069] ss:$16 sm:$0xc0] %vm2062, %v2061
    %s2071 = scalar_lea.vmem [#allocation0], 16
    %v2072 = vld [vmem:[%s2071] sm:$0xff]
    %2073 = vrot.lane.b32.xlu0 %v2072, 48
    %v2074 = vpop.permute.xlu0 %2073
    %vm2075 = vcmask 64512
    %s2076 = scalar_lea.vmem %s1, 266
    %2077 = vst.msk [vmem:[%s2076] ss:$16 sm:$0x3] %vm2075, %v2074
    %s2078 = scalar_lea.vmem %s1, 266
    %2079 = vst.msk [vmem:[%s2078] ss:$16 sm:$0xc] %vm2075, %v2074
    %s2080 = scalar_lea.vmem %s1, 266
    %2081 = vst.msk [vmem:[%s2080] ss:$16 sm:$0x30] %vm2075, %v2074
    %s2082 = scalar_lea.vmem %s1, 266
    %2083 = vst.msk [vmem:[%s2082] ss:$16 sm:$0xc0] %vm2075, %v2074
    %s2084 = scalar_lea.vmem [#allocation0], 24
    %v2085 = vld [vmem:[%s2084] sm:$0xff]
    %2086 = vrot.lane.b32.xlu0 %v2085, 48
    %v2087 = vpop.permute.xlu0 %2086
    %vm2088 = vcmask 64512
    %s2089 = scalar_lea.vmem %s1, 394
    %2090 = vst.msk [vmem:[%s2089] ss:$16 sm:$0x3] %vm2088, %v2087
    %s2091 = scalar_lea.vmem %s1, 394
    %2092 = vst.msk [vmem:[%s2091] ss:$16 sm:$0xc] %vm2088, %v2087
    %s2093 = scalar_lea.vmem %s1, 394
    %2094 = vst.msk [vmem:[%s2093] ss:$16 sm:$0x30] %vm2088, %v2087
    %s2095 = scalar_lea.vmem %s1, 394
    %2096 = vst.msk [vmem:[%s2095] ss:$16 sm:$0xc0] %vm2088, %v2087
    %s2097 = scalar_lea.vmem [#allocation0], 32
    %v2098 = vld [vmem:[%s2097] sm:$0xff]
    %2099 = vrot.lane.b32.xlu0 %v2098, 48
    %v2100 = vpop.permute.xlu0 %2099
    %vm2101 = vcmask 64512
    %s2102 = scalar_lea.vmem %s1, 522
    %2103 = vst.msk [vmem:[%s2102] ss:$16 sm:$0x3] %vm2101, %v2100
    %s2104 = scalar_lea.vmem %s1, 522
    %2105 = vst.msk [vmem:[%s2104] ss:$16 sm:$0xc] %vm2101, %v2100
    %s2106 = scalar_lea.vmem %s1, 522
    %2107 = vst.msk [vmem:[%s2106] ss:$16 sm:$0x30] %vm2101, %v2100
    %s2108 = scalar_lea.vmem %s1, 522
    %2109 = vst.msk [vmem:[%s2108] ss:$16 sm:$0xc0] %vm2101, %v2100
    %s2110 = scalar_lea.vmem [#allocation0], 40
    %v2111 = vld [vmem:[%s2110] sm:$0xff]
    %2112 = vrot.lane.b32.xlu0 %v2111, 48
    %v2113 = vpop.permute.xlu0 %2112
    %vm2114 = vcmask 64512
    %s2115 = scalar_lea.vmem %s1, 650
    %2116 = vst.msk [vmem:[%s2115] ss:$16 sm:$0x3] %vm2114, %v2113
    %s2117 = scalar_lea.vmem %s1, 650
    %2118 = vst.msk [vmem:[%s2117] ss:$16 sm:$0xc] %vm2114, %v2113
    %s2119 = scalar_lea.vmem %s1, 650
    %2120 = vst.msk [vmem:[%s2119] ss:$16 sm:$0x30] %vm2114, %v2113
    %s2121 = scalar_lea.vmem %s1, 650
    %2122 = vst.msk [vmem:[%s2121] ss:$16 sm:$0xc0] %vm2114, %v2113
    %s2123 = scalar_lea.vmem [#allocation0], 48
    %v2124 = vld [vmem:[%s2123] sm:$0xff]
    %2125 = vrot.lane.b32.xlu0 %v2124, 48
    %v2126 = vpop.permute.xlu0 %2125
    %vm2127 = vcmask 64512
    %s2128 = scalar_lea.vmem %s1, 778
    %2129 = vst.msk [vmem:[%s2128] ss:$16 sm:$0x3] %vm2127, %v2126
    %s2130 = scalar_lea.vmem %s1, 778
    %2131 = vst.msk [vmem:[%s2130] ss:$16 sm:$0xc] %vm2127, %v2126
    %s2132 = scalar_lea.vmem %s1, 778
    %2133 = vst.msk [vmem:[%s2132] ss:$16 sm:$0x30] %vm2127, %v2126
    %s2134 = scalar_lea.vmem %s1, 778
    %2135 = vst.msk [vmem:[%s2134] ss:$16 sm:$0xc0] %vm2127, %v2126
    %s2136 = scalar_lea.vmem [#allocation0], 56
    %v2137 = vld [vmem:[%s2136] sm:$0xff]
    %2138 = vrot.lane.b32.xlu0 %v2137, 48
    %v2139 = vpop.permute.xlu0 %2138
    %vm2140 = vcmask 64512
    %s2141 = scalar_lea.vmem %s1, 906
    %2142 = vst.msk [vmem:[%s2141] ss:$16 sm:$0x3] %vm2140, %v2139
    %s2143 = scalar_lea.vmem %s1, 906
    %2144 = vst.msk [vmem:[%s2143] ss:$16 sm:$0xc] %vm2140, %v2139
    %s2145 = scalar_lea.vmem %s1, 906
    %2146 = vst.msk [vmem:[%s2145] ss:$16 sm:$0x30] %vm2140, %v2139
    %s2147 = scalar_lea.vmem %s1, 906
    %2148 = vst.msk [vmem:[%s2147] ss:$16 sm:$0xc0] %vm2140, %v2139
    %s2149 = scalar_lea.vmem [#allocation0], 64
    %v2150 = vld [vmem:[%s2149] sm:$0xff]
    %2151 = vrot.lane.b32.xlu0 %v2150, 48
    %v2152 = vpop.permute.xlu0 %2151
    %vm2153 = vcmask 64512
    %s2154 = scalar_lea.vmem %s1, 1034
    %2155 = vst.msk [vmem:[%s2154] ss:$16 sm:$0x3] %vm2153, %v2152
    %s2156 = scalar_lea.vmem %s1, 1034
    %2157 = vst.msk [vmem:[%s2156] ss:$16 sm:$0xc] %vm2153, %v2152
    %s2158 = scalar_lea.vmem %s1, 1034
    %2159 = vst.msk [vmem:[%s2158] ss:$16 sm:$0x30] %vm2153, %v2152
    %s2160 = scalar_lea.vmem %s1, 1034
    %2161 = vst.msk [vmem:[%s2160] ss:$16 sm:$0xc0] %vm2153, %v2152
    %s2162 = scalar_lea.vmem [#allocation0], 72
    %v2163 = vld [vmem:[%s2162] sm:$0xff]
    %2164 = vrot.lane.b32.xlu0 %v2163, 48
    %v2165 = vpop.permute.xlu0 %2164
    %vm2166 = vcmask 64512
    %s2167 = scalar_lea.vmem %s1, 1162
    %2168 = vst.msk [vmem:[%s2167] ss:$16 sm:$0x3] %vm2166, %v2165
    %s2169 = scalar_lea.vmem %s1, 1162
    %2170 = vst.msk [vmem:[%s2169] ss:$16 sm:$0xc] %vm2166, %v2165
    %s2171 = scalar_lea.vmem %s1, 1162
    %2172 = vst.msk [vmem:[%s2171] ss:$16 sm:$0x30] %vm2166, %v2165
    %s2173 = scalar_lea.vmem %s1, 1162
    %2174 = vst.msk [vmem:[%s2173] ss:$16 sm:$0xc0] %vm2166, %v2165
    %s2175 = scalar_lea.vmem [#allocation0], 80
    %v2176 = vld [vmem:[%s2175] sm:$0xff]
    %2177 = vrot.lane.b32.xlu0 %v2176, 48
    %v2178 = vpop.permute.xlu0 %2177
    %vm2179 = vcmask 64512
    %s2180 = scalar_lea.vmem %s1, 1290
    %2181 = vst.msk [vmem:[%s2180] ss:$16 sm:$0x3] %vm2179, %v2178
    %s2182 = scalar_lea.vmem %s1, 1290
    %2183 = vst.msk [vmem:[%s2182] ss:$16 sm:$0xc] %vm2179, %v2178
    %s2184 = scalar_lea.vmem %s1, 1290
    %2185 = vst.msk [vmem:[%s2184] ss:$16 sm:$0x30] %vm2179, %v2178
    %s2186 = scalar_lea.vmem %s1, 1290
    %2187 = vst.msk [vmem:[%s2186] ss:$16 sm:$0xc0] %vm2179, %v2178
    %s2188 = scalar_lea.vmem [#allocation0], 88
    %v2189 = vld [vmem:[%s2188] sm:$0xff]
    %2190 = vrot.lane.b32.xlu0 %v2189, 48
    %v2191 = vpop.permute.xlu0 %2190
    %vm2192 = vcmask 64512
    %s2193 = scalar_lea.vmem %s1, 1418
    %2194 = vst.msk [vmem:[%s2193] ss:$16 sm:$0x3] %vm2192, %v2191
    %s2195 = scalar_lea.vmem %s1, 1418
    %2196 = vst.msk [vmem:[%s2195] ss:$16 sm:$0xc] %vm2192, %v2191
    %s2197 = scalar_lea.vmem %s1, 1418
    %2198 = vst.msk [vmem:[%s2197] ss:$16 sm:$0x30] %vm2192, %v2191
    %s2199 = scalar_lea.vmem %s1, 1418
    %2200 = vst.msk [vmem:[%s2199] ss:$16 sm:$0xc0] %vm2192, %v2191
    %s2201 = scalar_lea.vmem [#allocation0], 96
    %v2202 = vld [vmem:[%s2201] sm:$0xff]
    %2203 = vrot.lane.b32.xlu0 %v2202, 48
    %v2204 = vpop.permute.xlu0 %2203
    %vm2205 = vcmask 64512
    %s2206 = scalar_lea.vmem %s1, 1546
    %2207 = vst.msk [vmem:[%s2206] ss:$16 sm:$0x3] %vm2205, %v2204
    %s2208 = scalar_lea.vmem %s1, 1546
    %2209 = vst.msk [vmem:[%s2208] ss:$16 sm:$0xc] %vm2205, %v2204
    %s2210 = scalar_lea.vmem %s1, 1546
    %2211 = vst.msk [vmem:[%s2210] ss:$16 sm:$0x30] %vm2205, %v2204
    %s2212 = scalar_lea.vmem %s1, 1546
    %2213 = vst.msk [vmem:[%s2212] ss:$16 sm:$0xc0] %vm2205, %v2204
    %s2214 = scalar_lea.vmem [#allocation0], 104
    %v2215 = vld [vmem:[%s2214] sm:$0xff]
    %2216 = vrot.lane.b32.xlu0 %v2215, 48
    %v2217 = vpop.permute.xlu0 %2216
    %vm2218 = vcmask 64512
    %s2219 = scalar_lea.vmem %s1, 1674
    %2220 = vst.msk [vmem:[%s2219] ss:$16 sm:$0x3] %vm2218, %v2217
    %s2221 = scalar_lea.vmem %s1, 1674
    %2222 = vst.msk [vmem:[%s2221] ss:$16 sm:$0xc] %vm2218, %v2217
    %s2223 = scalar_lea.vmem %s1, 1674
    %2224 = vst.msk [vmem:[%s2223] ss:$16 sm:$0x30] %vm2218, %v2217
    %s2225 = scalar_lea.vmem %s1, 1674
    %2226 = vst.msk [vmem:[%s2225] ss:$16 sm:$0xc0] %vm2218, %v2217
    %s2227 = scalar_lea.vmem [#allocation0], 112
    %v2228 = vld [vmem:[%s2227] sm:$0xff]
    %2229 = vrot.lane.b32.xlu0 %v2228, 48
    %v2230 = vpop.permute.xlu0 %2229
    %vm2231 = vcmask 64512
    %s2232 = scalar_lea.vmem %s1, 1802
    %2233 = vst.msk [vmem:[%s2232] ss:$16 sm:$0x3] %vm2231, %v2230
    %s2234 = scalar_lea.vmem %s1, 1802
    %2235 = vst.msk [vmem:[%s2234] ss:$16 sm:$0xc] %vm2231, %v2230
    %s2236 = scalar_lea.vmem %s1, 1802
    %2237 = vst.msk [vmem:[%s2236] ss:$16 sm:$0x30] %vm2231, %v2230
    %s2238 = scalar_lea.vmem %s1, 1802
    %2239 = vst.msk [vmem:[%s2238] ss:$16 sm:$0xc0] %vm2231, %v2230
    %s2240 = scalar_lea.vmem [#allocation0], 120
    %v2241 = vld [vmem:[%s2240] sm:$0xff]
    %2242 = vrot.lane.b32.xlu0 %v2241, 48
    %v2243 = vpop.permute.xlu0 %2242
    %vm2244 = vcmask 64512
    %s2245 = scalar_lea.vmem %s1, 1930
    %2246 = vst.msk [vmem:[%s2245] ss:$16 sm:$0x3] %vm2244, %v2243
    %s2247 = scalar_lea.vmem %s1, 1930
    %2248 = vst.msk [vmem:[%s2247] ss:$16 sm:$0xc] %vm2244, %v2243
    %s2249 = scalar_lea.vmem %s1, 1930
    %2250 = vst.msk [vmem:[%s2249] ss:$16 sm:$0x30] %vm2244, %v2243
    %s2251 = scalar_lea.vmem %s1, 1930
    %2252 = vst.msk [vmem:[%s2251] ss:$16 sm:$0xc0] %vm2244, %v2243
    %v2253 = vld [vmem:[#allocation0] sm:$0xff]
    %2254 = vrot.lane.b32.xlu0 %v2253, 40
    %v2255 = vpop.permute.xlu0 %2254
    %vm2256 = vcmask 64512
    %s2257 = scalar_lea.vmem %s1, 11
    %2258 = vst.msk [vmem:[%s2257] ss:$16 sm:$0x3] %vm2256, %v2255
    %s2259 = scalar_lea.vmem %s1, 11
    %2260 = vst.msk [vmem:[%s2259] ss:$16 sm:$0xc] %vm2256, %v2255
    %s2261 = scalar_lea.vmem %s1, 11
    %2262 = vst.msk [vmem:[%s2261] ss:$16 sm:$0x30] %vm2256, %v2255
    %s2263 = scalar_lea.vmem %s1, 11
    %2264 = vst.msk [vmem:[%s2263] ss:$16 sm:$0xc0] %vm2256, %v2255
    %s2265 = scalar_lea.vmem [#allocation0], 8
    %v2266 = vld [vmem:[%s2265] sm:$0xff]
    %2267 = vrot.lane.b32.xlu0 %v2266, 40
    %v2268 = vpop.permute.xlu0 %2267
    %vm2269 = vcmask 64512
    %s2270 = scalar_lea.vmem %s1, 139
    %2271 = vst.msk [vmem:[%s2270] ss:$16 sm:$0x3] %vm2269, %v2268
    %s2272 = scalar_lea.vmem %s1, 139
    %2273 = vst.msk [vmem:[%s2272] ss:$16 sm:$0xc] %vm2269, %v2268
    %s2274 = scalar_lea.vmem %s1, 139
    %2275 = vst.msk [vmem:[%s2274] ss:$16 sm:$0x30] %vm2269, %v2268
    %s2276 = scalar_lea.vmem %s1, 139
    %2277 = vst.msk [vmem:[%s2276] ss:$16 sm:$0xc0] %vm2269, %v2268
    %s2278 = scalar_lea.vmem [#allocation0], 16
    %v2279 = vld [vmem:[%s2278] sm:$0xff]
    %2280 = vrot.lane.b32.xlu0 %v2279, 40
    %v2281 = vpop.permute.xlu0 %2280
    %vm2282 = vcmask 64512
    %s2283 = scalar_lea.vmem %s1, 267
    %2284 = vst.msk [vmem:[%s2283] ss:$16 sm:$0x3] %vm2282, %v2281
    %s2285 = scalar_lea.vmem %s1, 267
    %2286 = vst.msk [vmem:[%s2285] ss:$16 sm:$0xc] %vm2282, %v2281
    %s2287 = scalar_lea.vmem %s1, 267
    %2288 = vst.msk [vmem:[%s2287] ss:$16 sm:$0x30] %vm2282, %v2281
    %s2289 = scalar_lea.vmem %s1, 267
    %2290 = vst.msk [vmem:[%s2289] ss:$16 sm:$0xc0] %vm2282, %v2281
    %s2291 = scalar_lea.vmem [#allocation0], 24
    %v2292 = vld [vmem:[%s2291] sm:$0xff]
    %2293 = vrot.lane.b32.xlu0 %v2292, 40
    %v2294 = vpop.permute.xlu0 %2293
    %vm2295 = vcmask 64512
    %s2296 = scalar_lea.vmem %s1, 395
    %2297 = vst.msk [vmem:[%s2296] ss:$16 sm:$0x3] %vm2295, %v2294
    %s2298 = scalar_lea.vmem %s1, 395
    %2299 = vst.msk [vmem:[%s2298] ss:$16 sm:$0xc] %vm2295, %v2294
    %s2300 = scalar_lea.vmem %s1, 395
    %2301 = vst.msk [vmem:[%s2300] ss:$16 sm:$0x30] %vm2295, %v2294
    %s2302 = scalar_lea.vmem %s1, 395
    %2303 = vst.msk [vmem:[%s2302] ss:$16 sm:$0xc0] %vm2295, %v2294
    %s2304 = scalar_lea.vmem [#allocation0], 32
    %v2305 = vld [vmem:[%s2304] sm:$0xff]
    %2306 = vrot.lane.b32.xlu0 %v2305, 40
    %v2307 = vpop.permute.xlu0 %2306
    %vm2308 = vcmask 64512
    %s2309 = scalar_lea.vmem %s1, 523
    %2310 = vst.msk [vmem:[%s2309] ss:$16 sm:$0x3] %vm2308, %v2307
    %s2311 = scalar_lea.vmem %s1, 523
    %2312 = vst.msk [vmem:[%s2311] ss:$16 sm:$0xc] %vm2308, %v2307
    %s2313 = scalar_lea.vmem %s1, 523
    %2314 = vst.msk [vmem:[%s2313] ss:$16 sm:$0x30] %vm2308, %v2307
    %s2315 = scalar_lea.vmem %s1, 523
    %2316 = vst.msk [vmem:[%s2315] ss:$16 sm:$0xc0] %vm2308, %v2307
    %s2317 = scalar_lea.vmem [#allocation0], 40
    %v2318 = vld [vmem:[%s2317] sm:$0xff]
    %2319 = vrot.lane.b32.xlu0 %v2318, 40
    %v2320 = vpop.permute.xlu0 %2319
    %vm2321 = vcmask 64512
    %s2322 = scalar_lea.vmem %s1, 651
    %2323 = vst.msk [vmem:[%s2322] ss:$16 sm:$0x3] %vm2321, %v2320
    %s2324 = scalar_lea.vmem %s1, 651
    %2325 = vst.msk [vmem:[%s2324] ss:$16 sm:$0xc] %vm2321, %v2320
    %s2326 = scalar_lea.vmem %s1, 651
    %2327 = vst.msk [vmem:[%s2326] ss:$16 sm:$0x30] %vm2321, %v2320
    %s2328 = scalar_lea.vmem %s1, 651
    %2329 = vst.msk [vmem:[%s2328] ss:$16 sm:$0xc0] %vm2321, %v2320
    %s2330 = scalar_lea.vmem [#allocation0], 48
    %v2331 = vld [vmem:[%s2330] sm:$0xff]
    %2332 = vrot.lane.b32.xlu0 %v2331, 40
    %v2333 = vpop.permute.xlu0 %2332
    %vm2334 = vcmask 64512
    %s2335 = scalar_lea.vmem %s1, 779
    %2336 = vst.msk [vmem:[%s2335] ss:$16 sm:$0x3] %vm2334, %v2333
    %s2337 = scalar_lea.vmem %s1, 779
    %2338 = vst.msk [vmem:[%s2337] ss:$16 sm:$0xc] %vm2334, %v2333
    %s2339 = scalar_lea.vmem %s1, 779
    %2340 = vst.msk [vmem:[%s2339] ss:$16 sm:$0x30] %vm2334, %v2333
    %s2341 = scalar_lea.vmem %s1, 779
    %2342 = vst.msk [vmem:[%s2341] ss:$16 sm:$0xc0] %vm2334, %v2333
    %s2343 = scalar_lea.vmem [#allocation0], 56
    %v2344 = vld [vmem:[%s2343] sm:$0xff]
    %2345 = vrot.lane.b32.xlu0 %v2344, 40
    %v2346 = vpop.permute.xlu0 %2345
    %vm2347 = vcmask 64512
    %s2348 = scalar_lea.vmem %s1, 907
    %2349 = vst.msk [vmem:[%s2348] ss:$16 sm:$0x3] %vm2347, %v2346
    %s2350 = scalar_lea.vmem %s1, 907
    %2351 = vst.msk [vmem:[%s2350] ss:$16 sm:$0xc] %vm2347, %v2346
    %s2352 = scalar_lea.vmem %s1, 907
    %2353 = vst.msk [vmem:[%s2352] ss:$16 sm:$0x30] %vm2347, %v2346
    %s2354 = scalar_lea.vmem %s1, 907
    %2355 = vst.msk [vmem:[%s2354] ss:$16 sm:$0xc0] %vm2347, %v2346
    %s2356 = scalar_lea.vmem [#allocation0], 64
    %v2357 = vld [vmem:[%s2356] sm:$0xff]
    %2358 = vrot.lane.b32.xlu0 %v2357, 40
    %v2359 = vpop.permute.xlu0 %2358
    %vm2360 = vcmask 64512
    %s2361 = scalar_lea.vmem %s1, 1035
    %2362 = vst.msk [vmem:[%s2361] ss:$16 sm:$0x3] %vm2360, %v2359
    %s2363 = scalar_lea.vmem %s1, 1035
    %2364 = vst.msk [vmem:[%s2363] ss:$16 sm:$0xc] %vm2360, %v2359
    %s2365 = scalar_lea.vmem %s1, 1035
    %2366 = vst.msk [vmem:[%s2365] ss:$16 sm:$0x30] %vm2360, %v2359
    %s2367 = scalar_lea.vmem %s1, 1035
    %2368 = vst.msk [vmem:[%s2367] ss:$16 sm:$0xc0] %vm2360, %v2359
    %s2369 = scalar_lea.vmem [#allocation0], 72
    %v2370 = vld [vmem:[%s2369] sm:$0xff]
    %2371 = vrot.lane.b32.xlu0 %v2370, 40
    %v2372 = vpop.permute.xlu0 %2371
    %vm2373 = vcmask 64512
    %s2374 = scalar_lea.vmem %s1, 1163
    %2375 = vst.msk [vmem:[%s2374] ss:$16 sm:$0x3] %vm2373, %v2372
    %s2376 = scalar_lea.vmem %s1, 1163
    %2377 = vst.msk [vmem:[%s2376] ss:$16 sm:$0xc] %vm2373, %v2372
    %s2378 = scalar_lea.vmem %s1, 1163
    %2379 = vst.msk [vmem:[%s2378] ss:$16 sm:$0x30] %vm2373, %v2372
    %s2380 = scalar_lea.vmem %s1, 1163
    %2381 = vst.msk [vmem:[%s2380] ss:$16 sm:$0xc0] %vm2373, %v2372
    %s2382 = scalar_lea.vmem [#allocation0], 80
    %v2383 = vld [vmem:[%s2382] sm:$0xff]
    %2384 = vrot.lane.b32.xlu0 %v2383, 40
    %v2385 = vpop.permute.xlu0 %2384
    %vm2386 = vcmask 64512
    %s2387 = scalar_lea.vmem %s1, 1291
    %2388 = vst.msk [vmem:[%s2387] ss:$16 sm:$0x3] %vm2386, %v2385
    %s2389 = scalar_lea.vmem %s1, 1291
    %2390 = vst.msk [vmem:[%s2389] ss:$16 sm:$0xc] %vm2386, %v2385
    %s2391 = scalar_lea.vmem %s1, 1291
    %2392 = vst.msk [vmem:[%s2391] ss:$16 sm:$0x30] %vm2386, %v2385
    %s2393 = scalar_lea.vmem %s1, 1291
    %2394 = vst.msk [vmem:[%s2393] ss:$16 sm:$0xc0] %vm2386, %v2385
    %s2395 = scalar_lea.vmem [#allocation0], 88
    %v2396 = vld [vmem:[%s2395] sm:$0xff]
    %2397 = vrot.lane.b32.xlu0 %v2396, 40
    %v2398 = vpop.permute.xlu0 %2397
    %vm2399 = vcmask 64512
    %s2400 = scalar_lea.vmem %s1, 1419
    %2401 = vst.msk [vmem:[%s2400] ss:$16 sm:$0x3] %vm2399, %v2398
    %s2402 = scalar_lea.vmem %s1, 1419
    %2403 = vst.msk [vmem:[%s2402] ss:$16 sm:$0xc] %vm2399, %v2398
    %s2404 = scalar_lea.vmem %s1, 1419
    %2405 = vst.msk [vmem:[%s2404] ss:$16 sm:$0x30] %vm2399, %v2398
    %s2406 = scalar_lea.vmem %s1, 1419
    %2407 = vst.msk [vmem:[%s2406] ss:$16 sm:$0xc0] %vm2399, %v2398
    %s2408 = scalar_lea.vmem [#allocation0], 96
    %v2409 = vld [vmem:[%s2408] sm:$0xff]
    %2410 = vrot.lane.b32.xlu0 %v2409, 40
    %v2411 = vpop.permute.xlu0 %2410
    %vm2412 = vcmask 64512
    %s2413 = scalar_lea.vmem %s1, 1547
    %2414 = vst.msk [vmem:[%s2413] ss:$16 sm:$0x3] %vm2412, %v2411
    %s2415 = scalar_lea.vmem %s1, 1547
    %2416 = vst.msk [vmem:[%s2415] ss:$16 sm:$0xc] %vm2412, %v2411
    %s2417 = scalar_lea.vmem %s1, 1547
    %2418 = vst.msk [vmem:[%s2417] ss:$16 sm:$0x30] %vm2412, %v2411
    %s2419 = scalar_lea.vmem %s1, 1547
    %2420 = vst.msk [vmem:[%s2419] ss:$16 sm:$0xc0] %vm2412, %v2411
    %s2421 = scalar_lea.vmem [#allocation0], 104
    %v2422 = vld [vmem:[%s2421] sm:$0xff]
    %2423 = vrot.lane.b32.xlu0 %v2422, 40
    %v2424 = vpop.permute.xlu0 %2423
    %vm2425 = vcmask 64512
    %s2426 = scalar_lea.vmem %s1, 1675
    %2427 = vst.msk [vmem:[%s2426] ss:$16 sm:$0x3] %vm2425, %v2424
    %s2428 = scalar_lea.vmem %s1, 1675
    %2429 = vst.msk [vmem:[%s2428] ss:$16 sm:$0xc] %vm2425, %v2424
    %s2430 = scalar_lea.vmem %s1, 1675
    %2431 = vst.msk [vmem:[%s2430] ss:$16 sm:$0x30] %vm2425, %v2424
    %s2432 = scalar_lea.vmem %s1, 1675
    %2433 = vst.msk [vmem:[%s2432] ss:$16 sm:$0xc0] %vm2425, %v2424
    %s2434 = scalar_lea.vmem [#allocation0], 112
    %v2435 = vld [vmem:[%s2434] sm:$0xff]
    %2436 = vrot.lane.b32.xlu0 %v2435, 40
    %v2437 = vpop.permute.xlu0 %2436
    %vm2438 = vcmask 64512
    %s2439 = scalar_lea.vmem %s1, 1803
    %2440 = vst.msk [vmem:[%s2439] ss:$16 sm:$0x3] %vm2438, %v2437
    %s2441 = scalar_lea.vmem %s1, 1803
    %2442 = vst.msk [vmem:[%s2441] ss:$16 sm:$0xc] %vm2438, %v2437
    %s2443 = scalar_lea.vmem %s1, 1803
    %2444 = vst.msk [vmem:[%s2443] ss:$16 sm:$0x30] %vm2438, %v2437
    %s2445 = scalar_lea.vmem %s1, 1803
    %2446 = vst.msk [vmem:[%s2445] ss:$16 sm:$0xc0] %vm2438, %v2437
    %s2447 = scalar_lea.vmem [#allocation0], 120
    %v2448 = vld [vmem:[%s2447] sm:$0xff]
    %2449 = vrot.lane.b32.xlu0 %v2448, 40
    %v2450 = vpop.permute.xlu0 %2449
    %vm2451 = vcmask 64512
    %s2452 = scalar_lea.vmem %s1, 1931
    %2453 = vst.msk [vmem:[%s2452] ss:$16 sm:$0x3] %vm2451, %v2450
    %s2454 = scalar_lea.vmem %s1, 1931
    %2455 = vst.msk [vmem:[%s2454] ss:$16 sm:$0xc] %vm2451, %v2450
    %s2456 = scalar_lea.vmem %s1, 1931
    %2457 = vst.msk [vmem:[%s2456] ss:$16 sm:$0x30] %vm2451, %v2450
    %s2458 = scalar_lea.vmem %s1, 1931
    %2459 = vst.msk [vmem:[%s2458] ss:$16 sm:$0xc0] %vm2451, %v2450
    %v2460 = vld [vmem:[#allocation0] sm:$0xff]
    %2461 = vrot.lane.b32.xlu0 %v2460, 32
    %v2462 = vpop.permute.xlu0 %2461
    %vm2463 = vcmask 64512
    %s2464 = scalar_lea.vmem %s1, 12
    %2465 = vst.msk [vmem:[%s2464] ss:$16 sm:$0x3] %vm2463, %v2462
    %s2466 = scalar_lea.vmem %s1, 12
    %2467 = vst.msk [vmem:[%s2466] ss:$16 sm:$0xc] %vm2463, %v2462
    %s2468 = scalar_lea.vmem %s1, 12
    %2469 = vst.msk [vmem:[%s2468] ss:$16 sm:$0x30] %vm2463, %v2462
    %s2470 = scalar_lea.vmem %s1, 12
    %2471 = vst.msk [vmem:[%s2470] ss:$16 sm:$0xc0] %vm2463, %v2462
    %s2472 = scalar_lea.vmem [#allocation0], 8
    %v2473 = vld [vmem:[%s2472] sm:$0xff]
    %2474 = vrot.lane.b32.xlu0 %v2473, 32
    %v2475 = vpop.permute.xlu0 %2474
    %vm2476 = vcmask 64512
    %s2477 = scalar_lea.vmem %s1, 140
    %2478 = vst.msk [vmem:[%s2477] ss:$16 sm:$0x3] %vm2476, %v2475
    %s2479 = scalar_lea.vmem %s1, 140
    %2480 = vst.msk [vmem:[%s2479] ss:$16 sm:$0xc] %vm2476, %v2475
    %s2481 = scalar_lea.vmem %s1, 140
    %2482 = vst.msk [vmem:[%s2481] ss:$16 sm:$0x30] %vm2476, %v2475
    %s2483 = scalar_lea.vmem %s1, 140
    %2484 = vst.msk [vmem:[%s2483] ss:$16 sm:$0xc0] %vm2476, %v2475
    %s2485 = scalar_lea.vmem [#allocation0], 16
    %v2486 = vld [vmem:[%s2485] sm:$0xff]
    %2487 = vrot.lane.b32.xlu0 %v2486, 32
    %v2488 = vpop.permute.xlu0 %2487
    %vm2489 = vcmask 64512
    %s2490 = scalar_lea.vmem %s1, 268
    %2491 = vst.msk [vmem:[%s2490] ss:$16 sm:$0x3] %vm2489, %v2488
    %s2492 = scalar_lea.vmem %s1, 268
    %2493 = vst.msk [vmem:[%s2492] ss:$16 sm:$0xc] %vm2489, %v2488
    %s2494 = scalar_lea.vmem %s1, 268
    %2495 = vst.msk [vmem:[%s2494] ss:$16 sm:$0x30] %vm2489, %v2488
    %s2496 = scalar_lea.vmem %s1, 268
    %2497 = vst.msk [vmem:[%s2496] ss:$16 sm:$0xc0] %vm2489, %v2488
    %s2498 = scalar_lea.vmem [#allocation0], 24
    %v2499 = vld [vmem:[%s2498] sm:$0xff]
    %2500 = vrot.lane.b32.xlu0 %v2499, 32
    %v2501 = vpop.permute.xlu0 %2500
    %vm2502 = vcmask 64512
    %s2503 = scalar_lea.vmem %s1, 396
    %2504 = vst.msk [vmem:[%s2503] ss:$16 sm:$0x3] %vm2502, %v2501
    %s2505 = scalar_lea.vmem %s1, 396
    %2506 = vst.msk [vmem:[%s2505] ss:$16 sm:$0xc] %vm2502, %v2501
    %s2507 = scalar_lea.vmem %s1, 396
    %2508 = vst.msk [vmem:[%s2507] ss:$16 sm:$0x30] %vm2502, %v2501
    %s2509 = scalar_lea.vmem %s1, 396
    %2510 = vst.msk [vmem:[%s2509] ss:$16 sm:$0xc0] %vm2502, %v2501
    %s2511 = scalar_lea.vmem [#allocation0], 32
    %v2512 = vld [vmem:[%s2511] sm:$0xff]
    %2513 = vrot.lane.b32.xlu0 %v2512, 32
    %v2514 = vpop.permute.xlu0 %2513
    %vm2515 = vcmask 64512
    %s2516 = scalar_lea.vmem %s1, 524
    %2517 = vst.msk [vmem:[%s2516] ss:$16 sm:$0x3] %vm2515, %v2514
    %s2518 = scalar_lea.vmem %s1, 524
    %2519 = vst.msk [vmem:[%s2518] ss:$16 sm:$0xc] %vm2515, %v2514
    %s2520 = scalar_lea.vmem %s1, 524
    %2521 = vst.msk [vmem:[%s2520] ss:$16 sm:$0x30] %vm2515, %v2514
    %s2522 = scalar_lea.vmem %s1, 524
    %2523 = vst.msk [vmem:[%s2522] ss:$16 sm:$0xc0] %vm2515, %v2514
    %s2524 = scalar_lea.vmem [#allocation0], 40
    %v2525 = vld [vmem:[%s2524] sm:$0xff]
    %2526 = vrot.lane.b32.xlu0 %v2525, 32
    %v2527 = vpop.permute.xlu0 %2526
    %vm2528 = vcmask 64512
    %s2529 = scalar_lea.vmem %s1, 652
    %2530 = vst.msk [vmem:[%s2529] ss:$16 sm:$0x3] %vm2528, %v2527
    %s2531 = scalar_lea.vmem %s1, 652
    %2532 = vst.msk [vmem:[%s2531] ss:$16 sm:$0xc] %vm2528, %v2527
    %s2533 = scalar_lea.vmem %s1, 652
    %2534 = vst.msk [vmem:[%s2533] ss:$16 sm:$0x30] %vm2528, %v2527
    %s2535 = scalar_lea.vmem %s1, 652
    %2536 = vst.msk [vmem:[%s2535] ss:$16 sm:$0xc0] %vm2528, %v2527
    %s2537 = scalar_lea.vmem [#allocation0], 48
    %v2538 = vld [vmem:[%s2537] sm:$0xff]
    %2539 = vrot.lane.b32.xlu0 %v2538, 32
    %v2540 = vpop.permute.xlu0 %2539
    %vm2541 = vcmask 64512
    %s2542 = scalar_lea.vmem %s1, 780
    %2543 = vst.msk [vmem:[%s2542] ss:$16 sm:$0x3] %vm2541, %v2540
    %s2544 = scalar_lea.vmem %s1, 780
    %2545 = vst.msk [vmem:[%s2544] ss:$16 sm:$0xc] %vm2541, %v2540
    %s2546 = scalar_lea.vmem %s1, 780
    %2547 = vst.msk [vmem:[%s2546] ss:$16 sm:$0x30] %vm2541, %v2540
    %s2548 = scalar_lea.vmem %s1, 780
    %2549 = vst.msk [vmem:[%s2548] ss:$16 sm:$0xc0] %vm2541, %v2540
    %s2550 = scalar_lea.vmem [#allocation0], 56
    %v2551 = vld [vmem:[%s2550] sm:$0xff]
    %2552 = vrot.lane.b32.xlu0 %v2551, 32
    %v2553 = vpop.permute.xlu0 %2552
    %vm2554 = vcmask 64512
    %s2555 = scalar_lea.vmem %s1, 908
    %2556 = vst.msk [vmem:[%s2555] ss:$16 sm:$0x3] %vm2554, %v2553
    %s2557 = scalar_lea.vmem %s1, 908
    %2558 = vst.msk [vmem:[%s2557] ss:$16 sm:$0xc] %vm2554, %v2553
    %s2559 = scalar_lea.vmem %s1, 908
    %2560 = vst.msk [vmem:[%s2559] ss:$16 sm:$0x30] %vm2554, %v2553
    %s2561 = scalar_lea.vmem %s1, 908
    %2562 = vst.msk [vmem:[%s2561] ss:$16 sm:$0xc0] %vm2554, %v2553
    %s2563 = scalar_lea.vmem [#allocation0], 64
    %v2564 = vld [vmem:[%s2563] sm:$0xff]
    %2565 = vrot.lane.b32.xlu0 %v2564, 32
    %v2566 = vpop.permute.xlu0 %2565
    %vm2567 = vcmask 64512
    %s2568 = scalar_lea.vmem %s1, 1036
    %2569 = vst.msk [vmem:[%s2568] ss:$16 sm:$0x3] %vm2567, %v2566
    %s2570 = scalar_lea.vmem %s1, 1036
    %2571 = vst.msk [vmem:[%s2570] ss:$16 sm:$0xc] %vm2567, %v2566
    %s2572 = scalar_lea.vmem %s1, 1036
    %2573 = vst.msk [vmem:[%s2572] ss:$16 sm:$0x30] %vm2567, %v2566
    %s2574 = scalar_lea.vmem %s1, 1036
    %2575 = vst.msk [vmem:[%s2574] ss:$16 sm:$0xc0] %vm2567, %v2566
    %s2576 = scalar_lea.vmem [#allocation0], 72
    %v2577 = vld [vmem:[%s2576] sm:$0xff]
    %2578 = vrot.lane.b32.xlu0 %v2577, 32
    %v2579 = vpop.permute.xlu0 %2578
    %vm2580 = vcmask 64512
    %s2581 = scalar_lea.vmem %s1, 1164
    %2582 = vst.msk [vmem:[%s2581] ss:$16 sm:$0x3] %vm2580, %v2579
    %s2583 = scalar_lea.vmem %s1, 1164
    %2584 = vst.msk [vmem:[%s2583] ss:$16 sm:$0xc] %vm2580, %v2579
    %s2585 = scalar_lea.vmem %s1, 1164
    %2586 = vst.msk [vmem:[%s2585] ss:$16 sm:$0x30] %vm2580, %v2579
    %s2587 = scalar_lea.vmem %s1, 1164
    %2588 = vst.msk [vmem:[%s2587] ss:$16 sm:$0xc0] %vm2580, %v2579
    %s2589 = scalar_lea.vmem [#allocation0], 80
    %v2590 = vld [vmem:[%s2589] sm:$0xff]
    %2591 = vrot.lane.b32.xlu0 %v2590, 32
    %v2592 = vpop.permute.xlu0 %2591
    %vm2593 = vcmask 64512
    %s2594 = scalar_lea.vmem %s1, 1292
    %2595 = vst.msk [vmem:[%s2594] ss:$16 sm:$0x3] %vm2593, %v2592
    %s2596 = scalar_lea.vmem %s1, 1292
    %2597 = vst.msk [vmem:[%s2596] ss:$16 sm:$0xc] %vm2593, %v2592
    %s2598 = scalar_lea.vmem %s1, 1292
    %2599 = vst.msk [vmem:[%s2598] ss:$16 sm:$0x30] %vm2593, %v2592
    %s2600 = scalar_lea.vmem %s1, 1292
    %2601 = vst.msk [vmem:[%s2600] ss:$16 sm:$0xc0] %vm2593, %v2592
    %s2602 = scalar_lea.vmem [#allocation0], 88
    %v2603 = vld [vmem:[%s2602] sm:$0xff]
    %2604 = vrot.lane.b32.xlu0 %v2603, 32
    %v2605 = vpop.permute.xlu0 %2604
    %vm2606 = vcmask 64512
    %s2607 = scalar_lea.vmem %s1, 1420
    %2608 = vst.msk [vmem:[%s2607] ss:$16 sm:$0x3] %vm2606, %v2605
    %s2609 = scalar_lea.vmem %s1, 1420
    %2610 = vst.msk [vmem:[%s2609] ss:$16 sm:$0xc] %vm2606, %v2605
    %s2611 = scalar_lea.vmem %s1, 1420
    %2612 = vst.msk [vmem:[%s2611] ss:$16 sm:$0x30] %vm2606, %v2605
    %s2613 = scalar_lea.vmem %s1, 1420
    %2614 = vst.msk [vmem:[%s2613] ss:$16 sm:$0xc0] %vm2606, %v2605
    %s2615 = scalar_lea.vmem [#allocation0], 96
    %v2616 = vld [vmem:[%s2615] sm:$0xff]
    %2617 = vrot.lane.b32.xlu0 %v2616, 32
    %v2618 = vpop.permute.xlu0 %2617
    %vm2619 = vcmask 64512
    %s2620 = scalar_lea.vmem %s1, 1548
    %2621 = vst.msk [vmem:[%s2620] ss:$16 sm:$0x3] %vm2619, %v2618
    %s2622 = scalar_lea.vmem %s1, 1548
    %2623 = vst.msk [vmem:[%s2622] ss:$16 sm:$0xc] %vm2619, %v2618
    %s2624 = scalar_lea.vmem %s1, 1548
    %2625 = vst.msk [vmem:[%s2624] ss:$16 sm:$0x30] %vm2619, %v2618
    %s2626 = scalar_lea.vmem %s1, 1548
    %2627 = vst.msk [vmem:[%s2626] ss:$16 sm:$0xc0] %vm2619, %v2618
    %s2628 = scalar_lea.vmem [#allocation0], 104
    %v2629 = vld [vmem:[%s2628] sm:$0xff]
    %2630 = vrot.lane.b32.xlu0 %v2629, 32
    %v2631 = vpop.permute.xlu0 %2630
    %vm2632 = vcmask 64512
    %s2633 = scalar_lea.vmem %s1, 1676
    %2634 = vst.msk [vmem:[%s2633] ss:$16 sm:$0x3] %vm2632, %v2631
    %s2635 = scalar_lea.vmem %s1, 1676
    %2636 = vst.msk [vmem:[%s2635] ss:$16 sm:$0xc] %vm2632, %v2631
    %s2637 = scalar_lea.vmem %s1, 1676
    %2638 = vst.msk [vmem:[%s2637] ss:$16 sm:$0x30] %vm2632, %v2631
    %s2639 = scalar_lea.vmem %s1, 1676
    %2640 = vst.msk [vmem:[%s2639] ss:$16 sm:$0xc0] %vm2632, %v2631
    %s2641 = scalar_lea.vmem [#allocation0], 112
    %v2642 = vld [vmem:[%s2641] sm:$0xff]
    %2643 = vrot.lane.b32.xlu0 %v2642, 32
    %v2644 = vpop.permute.xlu0 %2643
    %vm2645 = vcmask 64512
    %s2646 = scalar_lea.vmem %s1, 1804
    %2647 = vst.msk [vmem:[%s2646] ss:$16 sm:$0x3] %vm2645, %v2644
    %s2648 = scalar_lea.vmem %s1, 1804
    %2649 = vst.msk [vmem:[%s2648] ss:$16 sm:$0xc] %vm2645, %v2644
    %s2650 = scalar_lea.vmem %s1, 1804
    %2651 = vst.msk [vmem:[%s2650] ss:$16 sm:$0x30] %vm2645, %v2644
    %s2652 = scalar_lea.vmem %s1, 1804
    %2653 = vst.msk [vmem:[%s2652] ss:$16 sm:$0xc0] %vm2645, %v2644
    %s2654 = scalar_lea.vmem [#allocation0], 120
    %v2655 = vld [vmem:[%s2654] sm:$0xff]
    %2656 = vrot.lane.b32.xlu0 %v2655, 32
    %v2657 = vpop.permute.xlu0 %2656
    %vm2658 = vcmask 64512
    %s2659 = scalar_lea.vmem %s1, 1932
    %2660 = vst.msk [vmem:[%s2659] ss:$16 sm:$0x3] %vm2658, %v2657
    %s2661 = scalar_lea.vmem %s1, 1932
    %2662 = vst.msk [vmem:[%s2661] ss:$16 sm:$0xc] %vm2658, %v2657
    %s2663 = scalar_lea.vmem %s1, 1932
    %2664 = vst.msk [vmem:[%s2663] ss:$16 sm:$0x30] %vm2658, %v2657
    %s2665 = scalar_lea.vmem %s1, 1932
    %2666 = vst.msk [vmem:[%s2665] ss:$16 sm:$0xc0] %vm2658, %v2657
    %v2667 = vld [vmem:[#allocation0] sm:$0xff]
    %2668 = vrot.lane.b32.xlu0 %v2667, 24
    %v2669 = vpop.permute.xlu0 %2668
    %vm2670 = vcmask 64512
    %s2671 = scalar_lea.vmem %s1, 13
    %2672 = vst.msk [vmem:[%s2671] ss:$16 sm:$0x3] %vm2670, %v2669
    %s2673 = scalar_lea.vmem %s1, 13
    %2674 = vst.msk [vmem:[%s2673] ss:$16 sm:$0xc] %vm2670, %v2669
    %s2675 = scalar_lea.vmem %s1, 13
    %2676 = vst.msk [vmem:[%s2675] ss:$16 sm:$0x30] %vm2670, %v2669
    %s2677 = scalar_lea.vmem %s1, 13
    %2678 = vst.msk [vmem:[%s2677] ss:$16 sm:$0xc0] %vm2670, %v2669
    %s2679 = scalar_lea.vmem [#allocation0], 8
    %v2680 = vld [vmem:[%s2679] sm:$0xff]
    %2681 = vrot.lane.b32.xlu0 %v2680, 24
    %v2682 = vpop.permute.xlu0 %2681
    %vm2683 = vcmask 64512
    %s2684 = scalar_lea.vmem %s1, 141
    %2685 = vst.msk [vmem:[%s2684] ss:$16 sm:$0x3] %vm2683, %v2682
    %s2686 = scalar_lea.vmem %s1, 141
    %2687 = vst.msk [vmem:[%s2686] ss:$16 sm:$0xc] %vm2683, %v2682
    %s2688 = scalar_lea.vmem %s1, 141
    %2689 = vst.msk [vmem:[%s2688] ss:$16 sm:$0x30] %vm2683, %v2682
    %s2690 = scalar_lea.vmem %s1, 141
    %2691 = vst.msk [vmem:[%s2690] ss:$16 sm:$0xc0] %vm2683, %v2682
    %s2692 = scalar_lea.vmem [#allocation0], 16
    %v2693 = vld [vmem:[%s2692] sm:$0xff]
    %2694 = vrot.lane.b32.xlu0 %v2693, 24
    %v2695 = vpop.permute.xlu0 %2694
    %vm2696 = vcmask 64512
    %s2697 = scalar_lea.vmem %s1, 269
    %2698 = vst.msk [vmem:[%s2697] ss:$16 sm:$0x3] %vm2696, %v2695
    %s2699 = scalar_lea.vmem %s1, 269
    %2700 = vst.msk [vmem:[%s2699] ss:$16 sm:$0xc] %vm2696, %v2695
    %s2701 = scalar_lea.vmem %s1, 269
    %2702 = vst.msk [vmem:[%s2701] ss:$16 sm:$0x30] %vm2696, %v2695
    %s2703 = scalar_lea.vmem %s1, 269
    %2704 = vst.msk [vmem:[%s2703] ss:$16 sm:$0xc0] %vm2696, %v2695
    %s2705 = scalar_lea.vmem [#allocation0], 24
    %v2706 = vld [vmem:[%s2705] sm:$0xff]
    %2707 = vrot.lane.b32.xlu0 %v2706, 24
    %v2708 = vpop.permute.xlu0 %2707
    %vm2709 = vcmask 64512
    %s2710 = scalar_lea.vmem %s1, 397
    %2711 = vst.msk [vmem:[%s2710] ss:$16 sm:$0x3] %vm2709, %v2708
    %s2712 = scalar_lea.vmem %s1, 397
    %2713 = vst.msk [vmem:[%s2712] ss:$16 sm:$0xc] %vm2709, %v2708
    %s2714 = scalar_lea.vmem %s1, 397
    %2715 = vst.msk [vmem:[%s2714] ss:$16 sm:$0x30] %vm2709, %v2708
    %s2716 = scalar_lea.vmem %s1, 397
    %2717 = vst.msk [vmem:[%s2716] ss:$16 sm:$0xc0] %vm2709, %v2708
    %s2718 = scalar_lea.vmem [#allocation0], 32
    %v2719 = vld [vmem:[%s2718] sm:$0xff]
    %2720 = vrot.lane.b32.xlu0 %v2719, 24
    %v2721 = vpop.permute.xlu0 %2720
    %vm2722 = vcmask 64512
    %s2723 = scalar_lea.vmem %s1, 525
    %2724 = vst.msk [vmem:[%s2723] ss:$16 sm:$0x3] %vm2722, %v2721
    %s2725 = scalar_lea.vmem %s1, 525
    %2726 = vst.msk [vmem:[%s2725] ss:$16 sm:$0xc] %vm2722, %v2721
    %s2727 = scalar_lea.vmem %s1, 525
    %2728 = vst.msk [vmem:[%s2727] ss:$16 sm:$0x30] %vm2722, %v2721
    %s2729 = scalar_lea.vmem %s1, 525
    %2730 = vst.msk [vmem:[%s2729] ss:$16 sm:$0xc0] %vm2722, %v2721
    %s2731 = scalar_lea.vmem [#allocation0], 40
    %v2732 = vld [vmem:[%s2731] sm:$0xff]
    %2733 = vrot.lane.b32.xlu0 %v2732, 24
    %v2734 = vpop.permute.xlu0 %2733
    %vm2735 = vcmask 64512
    %s2736 = scalar_lea.vmem %s1, 653
    %2737 = vst.msk [vmem:[%s2736] ss:$16 sm:$0x3] %vm2735, %v2734
    %s2738 = scalar_lea.vmem %s1, 653
    %2739 = vst.msk [vmem:[%s2738] ss:$16 sm:$0xc] %vm2735, %v2734
    %s2740 = scalar_lea.vmem %s1, 653
    %2741 = vst.msk [vmem:[%s2740] ss:$16 sm:$0x30] %vm2735, %v2734
    %s2742 = scalar_lea.vmem %s1, 653
    %2743 = vst.msk [vmem:[%s2742] ss:$16 sm:$0xc0] %vm2735, %v2734
    %s2744 = scalar_lea.vmem [#allocation0], 48
    %v2745 = vld [vmem:[%s2744] sm:$0xff]
    %2746 = vrot.lane.b32.xlu0 %v2745, 24
    %v2747 = vpop.permute.xlu0 %2746
    %vm2748 = vcmask 64512
    %s2749 = scalar_lea.vmem %s1, 781
    %2750 = vst.msk [vmem:[%s2749] ss:$16 sm:$0x3] %vm2748, %v2747
    %s2751 = scalar_lea.vmem %s1, 781
    %2752 = vst.msk [vmem:[%s2751] ss:$16 sm:$0xc] %vm2748, %v2747
    %s2753 = scalar_lea.vmem %s1, 781
    %2754 = vst.msk [vmem:[%s2753] ss:$16 sm:$0x30] %vm2748, %v2747
    %s2755 = scalar_lea.vmem %s1, 781
    %2756 = vst.msk [vmem:[%s2755] ss:$16 sm:$0xc0] %vm2748, %v2747
    %s2757 = scalar_lea.vmem [#allocation0], 56
    %v2758 = vld [vmem:[%s2757] sm:$0xff]
    %2759 = vrot.lane.b32.xlu0 %v2758, 24
    %v2760 = vpop.permute.xlu0 %2759
    %vm2761 = vcmask 64512
    %s2762 = scalar_lea.vmem %s1, 909
    %2763 = vst.msk [vmem:[%s2762] ss:$16 sm:$0x3] %vm2761, %v2760
    %s2764 = scalar_lea.vmem %s1, 909
    %2765 = vst.msk [vmem:[%s2764] ss:$16 sm:$0xc] %vm2761, %v2760
    %s2766 = scalar_lea.vmem %s1, 909
    %2767 = vst.msk [vmem:[%s2766] ss:$16 sm:$0x30] %vm2761, %v2760
    %s2768 = scalar_lea.vmem %s1, 909
    %2769 = vst.msk [vmem:[%s2768] ss:$16 sm:$0xc0] %vm2761, %v2760
    %s2770 = scalar_lea.vmem [#allocation0], 64
    %v2771 = vld [vmem:[%s2770] sm:$0xff]
    %2772 = vrot.lane.b32.xlu0 %v2771, 24
    %v2773 = vpop.permute.xlu0 %2772
    %vm2774 = vcmask 64512
    %s2775 = scalar_lea.vmem %s1, 1037
    %2776 = vst.msk [vmem:[%s2775] ss:$16 sm:$0x3] %vm2774, %v2773
    %s2777 = scalar_lea.vmem %s1, 1037
    %2778 = vst.msk [vmem:[%s2777] ss:$16 sm:$0xc] %vm2774, %v2773
    %s2779 = scalar_lea.vmem %s1, 1037
    %2780 = vst.msk [vmem:[%s2779] ss:$16 sm:$0x30] %vm2774, %v2773
    %s2781 = scalar_lea.vmem %s1, 1037
    %2782 = vst.msk [vmem:[%s2781] ss:$16 sm:$0xc0] %vm2774, %v2773
    %s2783 = scalar_lea.vmem [#allocation0], 72
    %v2784 = vld [vmem:[%s2783] sm:$0xff]
    %2785 = vrot.lane.b32.xlu0 %v2784, 24
    %v2786 = vpop.permute.xlu0 %2785
    %vm2787 = vcmask 64512
    %s2788 = scalar_lea.vmem %s1, 1165
    %2789 = vst.msk [vmem:[%s2788] ss:$16 sm:$0x3] %vm2787, %v2786
    %s2790 = scalar_lea.vmem %s1, 1165
    %2791 = vst.msk [vmem:[%s2790] ss:$16 sm:$0xc] %vm2787, %v2786
    %s2792 = scalar_lea.vmem %s1, 1165
    %2793 = vst.msk [vmem:[%s2792] ss:$16 sm:$0x30] %vm2787, %v2786
    %s2794 = scalar_lea.vmem %s1, 1165
    %2795 = vst.msk [vmem:[%s2794] ss:$16 sm:$0xc0] %vm2787, %v2786
    %s2796 = scalar_lea.vmem [#allocation0], 80
    %v2797 = vld [vmem:[%s2796] sm:$0xff]
    %2798 = vrot.lane.b32.xlu0 %v2797, 24
    %v2799 = vpop.permute.xlu0 %2798
    %vm2800 = vcmask 64512
    %s2801 = scalar_lea.vmem %s1, 1293
    %2802 = vst.msk [vmem:[%s2801] ss:$16 sm:$0x3] %vm2800, %v2799
    %s2803 = scalar_lea.vmem %s1, 1293
    %2804 = vst.msk [vmem:[%s2803] ss:$16 sm:$0xc] %vm2800, %v2799
    %s2805 = scalar_lea.vmem %s1, 1293
    %2806 = vst.msk [vmem:[%s2805] ss:$16 sm:$0x30] %vm2800, %v2799
    %s2807 = scalar_lea.vmem %s1, 1293
    %2808 = vst.msk [vmem:[%s2807] ss:$16 sm:$0xc0] %vm2800, %v2799
    %s2809 = scalar_lea.vmem [#allocation0], 88
    %v2810 = vld [vmem:[%s2809] sm:$0xff]
    %2811 = vrot.lane.b32.xlu0 %v2810, 24
    %v2812 = vpop.permute.xlu0 %2811
    %vm2813 = vcmask 64512
    %s2814 = scalar_lea.vmem %s1, 1421
    %2815 = vst.msk [vmem:[%s2814] ss:$16 sm:$0x3] %vm2813, %v2812
    %s2816 = scalar_lea.vmem %s1, 1421
    %2817 = vst.msk [vmem:[%s2816] ss:$16 sm:$0xc] %vm2813, %v2812
    %s2818 = scalar_lea.vmem %s1, 1421
    %2819 = vst.msk [vmem:[%s2818] ss:$16 sm:$0x30] %vm2813, %v2812
    %s2820 = scalar_lea.vmem %s1, 1421
    %2821 = vst.msk [vmem:[%s2820] ss:$16 sm:$0xc0] %vm2813, %v2812
    %s2822 = scalar_lea.vmem [#allocation0], 96
    %v2823 = vld [vmem:[%s2822] sm:$0xff]
    %2824 = vrot.lane.b32.xlu0 %v2823, 24
    %v2825 = vpop.permute.xlu0 %2824
    %vm2826 = vcmask 64512
    %s2827 = scalar_lea.vmem %s1, 1549
    %2828 = vst.msk [vmem:[%s2827] ss:$16 sm:$0x3] %vm2826, %v2825
    %s2829 = scalar_lea.vmem %s1, 1549
    %2830 = vst.msk [vmem:[%s2829] ss:$16 sm:$0xc] %vm2826, %v2825
    %s2831 = scalar_lea.vmem %s1, 1549
    %2832 = vst.msk [vmem:[%s2831] ss:$16 sm:$0x30] %vm2826, %v2825
    %s2833 = scalar_lea.vmem %s1, 1549
    %2834 = vst.msk [vmem:[%s2833] ss:$16 sm:$0xc0] %vm2826, %v2825
    %s2835 = scalar_lea.vmem [#allocation0], 104
    %v2836 = vld [vmem:[%s2835] sm:$0xff]
    %2837 = vrot.lane.b32.xlu0 %v2836, 24
    %v2838 = vpop.permute.xlu0 %2837
    %vm2839 = vcmask 64512
    %s2840 = scalar_lea.vmem %s1, 1677
    %2841 = vst.msk [vmem:[%s2840] ss:$16 sm:$0x3] %vm2839, %v2838
    %s2842 = scalar_lea.vmem %s1, 1677
    %2843 = vst.msk [vmem:[%s2842] ss:$16 sm:$0xc] %vm2839, %v2838
    %s2844 = scalar_lea.vmem %s1, 1677
    %2845 = vst.msk [vmem:[%s2844] ss:$16 sm:$0x30] %vm2839, %v2838
    %s2846 = scalar_lea.vmem %s1, 1677
    %2847 = vst.msk [vmem:[%s2846] ss:$16 sm:$0xc0] %vm2839, %v2838
    %s2848 = scalar_lea.vmem [#allocation0], 112
    %v2849 = vld [vmem:[%s2848] sm:$0xff]
    %2850 = vrot.lane.b32.xlu0 %v2849, 24
    %v2851 = vpop.permute.xlu0 %2850
    %vm2852 = vcmask 64512
    %s2853 = scalar_lea.vmem %s1, 1805
    %2854 = vst.msk [vmem:[%s2853] ss:$16 sm:$0x3] %vm2852, %v2851
    %s2855 = scalar_lea.vmem %s1, 1805
    %2856 = vst.msk [vmem:[%s2855] ss:$16 sm:$0xc] %vm2852, %v2851
    %s2857 = scalar_lea.vmem %s1, 1805
    %2858 = vst.msk [vmem:[%s2857] ss:$16 sm:$0x30] %vm2852, %v2851
    %s2859 = scalar_lea.vmem %s1, 1805
    %2860 = vst.msk [vmem:[%s2859] ss:$16 sm:$0xc0] %vm2852, %v2851
    %s2861 = scalar_lea.vmem [#allocation0], 120
    %v2862 = vld [vmem:[%s2861] sm:$0xff]
    %2863 = vrot.lane.b32.xlu0 %v2862, 24
    %v2864 = vpop.permute.xlu0 %2863
    %vm2865 = vcmask 64512
    %s2866 = scalar_lea.vmem %s1, 1933
    %2867 = vst.msk [vmem:[%s2866] ss:$16 sm:$0x3] %vm2865, %v2864
    %s2868 = scalar_lea.vmem %s1, 1933
    %2869 = vst.msk [vmem:[%s2868] ss:$16 sm:$0xc] %vm2865, %v2864
    %s2870 = scalar_lea.vmem %s1, 1933
    %2871 = vst.msk [vmem:[%s2870] ss:$16 sm:$0x30] %vm2865, %v2864
    %s2872 = scalar_lea.vmem %s1, 1933
    %2873 = vst.msk [vmem:[%s2872] ss:$16 sm:$0xc0] %vm2865, %v2864
    %v2874 = vld [vmem:[#allocation0] sm:$0xff]
    %2875 = vrot.lane.b32.xlu0 %v2874, 16
    %v2876 = vpop.permute.xlu0 %2875
    %vm2877 = vcmask 64512
    %s2878 = scalar_lea.vmem %s1, 14
    %2879 = vst.msk [vmem:[%s2878] ss:$16 sm:$0x3] %vm2877, %v2876
    %s2880 = scalar_lea.vmem %s1, 14
    %2881 = vst.msk [vmem:[%s2880] ss:$16 sm:$0xc] %vm2877, %v2876
    %s2882 = scalar_lea.vmem %s1, 14
    %2883 = vst.msk [vmem:[%s2882] ss:$16 sm:$0x30] %vm2877, %v2876
    %s2884 = scalar_lea.vmem %s1, 14
    %2885 = vst.msk [vmem:[%s2884] ss:$16 sm:$0xc0] %vm2877, %v2876
    %s2886 = scalar_lea.vmem [#allocation0], 8
    %v2887 = vld [vmem:[%s2886] sm:$0xff]
    %2888 = vrot.lane.b32.xlu0 %v2887, 16
    %v2889 = vpop.permute.xlu0 %2888
    %vm2890 = vcmask 64512
    %s2891 = scalar_lea.vmem %s1, 142
    %2892 = vst.msk [vmem:[%s2891] ss:$16 sm:$0x3] %vm2890, %v2889
    %s2893 = scalar_lea.vmem %s1, 142
    %2894 = vst.msk [vmem:[%s2893] ss:$16 sm:$0xc] %vm2890, %v2889
    %s2895 = scalar_lea.vmem %s1, 142
    %2896 = vst.msk [vmem:[%s2895] ss:$16 sm:$0x30] %vm2890, %v2889
    %s2897 = scalar_lea.vmem %s1, 142
    %2898 = vst.msk [vmem:[%s2897] ss:$16 sm:$0xc0] %vm2890, %v2889
    %s2899 = scalar_lea.vmem [#allocation0], 16
    %v2900 = vld [vmem:[%s2899] sm:$0xff]
    %2901 = vrot.lane.b32.xlu0 %v2900, 16
    %v2902 = vpop.permute.xlu0 %2901
    %vm2903 = vcmask 64512
    %s2904 = scalar_lea.vmem %s1, 270
    %2905 = vst.msk [vmem:[%s2904] ss:$16 sm:$0x3] %vm2903, %v2902
    %s2906 = scalar_lea.vmem %s1, 270
    %2907 = vst.msk [vmem:[%s2906] ss:$16 sm:$0xc] %vm2903, %v2902
    %s2908 = scalar_lea.vmem %s1, 270
    %2909 = vst.msk [vmem:[%s2908] ss:$16 sm:$0x30] %vm2903, %v2902
    %s2910 = scalar_lea.vmem %s1, 270
    %2911 = vst.msk [vmem:[%s2910] ss:$16 sm:$0xc0] %vm2903, %v2902
    %s2912 = scalar_lea.vmem [#allocation0], 24
    %v2913 = vld [vmem:[%s2912] sm:$0xff]
    %2914 = vrot.lane.b32.xlu0 %v2913, 16
    %v2915 = vpop.permute.xlu0 %2914
    %vm2916 = vcmask 64512
    %s2917 = scalar_lea.vmem %s1, 398
    %2918 = vst.msk [vmem:[%s2917] ss:$16 sm:$0x3] %vm2916, %v2915
    %s2919 = scalar_lea.vmem %s1, 398
    %2920 = vst.msk [vmem:[%s2919] ss:$16 sm:$0xc] %vm2916, %v2915
    %s2921 = scalar_lea.vmem %s1, 398
    %2922 = vst.msk [vmem:[%s2921] ss:$16 sm:$0x30] %vm2916, %v2915
    %s2923 = scalar_lea.vmem %s1, 398
    %2924 = vst.msk [vmem:[%s2923] ss:$16 sm:$0xc0] %vm2916, %v2915
    %s2925 = scalar_lea.vmem [#allocation0], 32
    %v2926 = vld [vmem:[%s2925] sm:$0xff]
    %2927 = vrot.lane.b32.xlu0 %v2926, 16
    %v2928 = vpop.permute.xlu0 %2927
    %vm2929 = vcmask 64512
    %s2930 = scalar_lea.vmem %s1, 526
    %2931 = vst.msk [vmem:[%s2930] ss:$16 sm:$0x3] %vm2929, %v2928
    %s2932 = scalar_lea.vmem %s1, 526
    %2933 = vst.msk [vmem:[%s2932] ss:$16 sm:$0xc] %vm2929, %v2928
    %s2934 = scalar_lea.vmem %s1, 526
    %2935 = vst.msk [vmem:[%s2934] ss:$16 sm:$0x30] %vm2929, %v2928
    %s2936 = scalar_lea.vmem %s1, 526
    %2937 = vst.msk [vmem:[%s2936] ss:$16 sm:$0xc0] %vm2929, %v2928
    %s2938 = scalar_lea.vmem [#allocation0], 40
    %v2939 = vld [vmem:[%s2938] sm:$0xff]
    %2940 = vrot.lane.b32.xlu0 %v2939, 16
    %v2941 = vpop.permute.xlu0 %2940
    %vm2942 = vcmask 64512
    %s2943 = scalar_lea.vmem %s1, 654
    %2944 = vst.msk [vmem:[%s2943] ss:$16 sm:$0x3] %vm2942, %v2941
    %s2945 = scalar_lea.vmem %s1, 654
    %2946 = vst.msk [vmem:[%s2945] ss:$16 sm:$0xc] %vm2942, %v2941
    %s2947 = scalar_lea.vmem %s1, 654
    %2948 = vst.msk [vmem:[%s2947] ss:$16 sm:$0x30] %vm2942, %v2941
    %s2949 = scalar_lea.vmem %s1, 654
    %2950 = vst.msk [vmem:[%s2949] ss:$16 sm:$0xc0] %vm2942, %v2941
    %s2951 = scalar_lea.vmem [#allocation0], 48
    %v2952 = vld [vmem:[%s2951] sm:$0xff]
    %2953 = vrot.lane.b32.xlu0 %v2952, 16
    %v2954 = vpop.permute.xlu0 %2953
    %vm2955 = vcmask 64512
    %s2956 = scalar_lea.vmem %s1, 782
    %2957 = vst.msk [vmem:[%s2956] ss:$16 sm:$0x3] %vm2955, %v2954
    %s2958 = scalar_lea.vmem %s1, 782
    %2959 = vst.msk [vmem:[%s2958] ss:$16 sm:$0xc] %vm2955, %v2954
    %s2960 = scalar_lea.vmem %s1, 782
    %2961 = vst.msk [vmem:[%s2960] ss:$16 sm:$0x30] %vm2955, %v2954
    %s2962 = scalar_lea.vmem %s1, 782
    %2963 = vst.msk [vmem:[%s2962] ss:$16 sm:$0xc0] %vm2955, %v2954
    %s2964 = scalar_lea.vmem [#allocation0], 56
    %v2965 = vld [vmem:[%s2964] sm:$0xff]
    %2966 = vrot.lane.b32.xlu0 %v2965, 16
    %v2967 = vpop.permute.xlu0 %2966
    %vm2968 = vcmask 64512
    %s2969 = scalar_lea.vmem %s1, 910
    %2970 = vst.msk [vmem:[%s2969] ss:$16 sm:$0x3] %vm2968, %v2967
    %s2971 = scalar_lea.vmem %s1, 910
    %2972 = vst.msk [vmem:[%s2971] ss:$16 sm:$0xc] %vm2968, %v2967
    %s2973 = scalar_lea.vmem %s1, 910
    %2974 = vst.msk [vmem:[%s2973] ss:$16 sm:$0x30] %vm2968, %v2967
    %s2975 = scalar_lea.vmem %s1, 910
    %2976 = vst.msk [vmem:[%s2975] ss:$16 sm:$0xc0] %vm2968, %v2967
    %s2977 = scalar_lea.vmem [#allocation0], 64
    %v2978 = vld [vmem:[%s2977] sm:$0xff]
    %2979 = vrot.lane.b32.xlu0 %v2978, 16
    %v2980 = vpop.permute.xlu0 %2979
    %vm2981 = vcmask 64512
    %s2982 = scalar_lea.vmem %s1, 1038
    %2983 = vst.msk [vmem:[%s2982] ss:$16 sm:$0x3] %vm2981, %v2980
    %s2984 = scalar_lea.vmem %s1, 1038
    %2985 = vst.msk [vmem:[%s2984] ss:$16 sm:$0xc] %vm2981, %v2980
    %s2986 = scalar_lea.vmem %s1, 1038
    %2987 = vst.msk [vmem:[%s2986] ss:$16 sm:$0x30] %vm2981, %v2980
    %s2988 = scalar_lea.vmem %s1, 1038
    %2989 = vst.msk [vmem:[%s2988] ss:$16 sm:$0xc0] %vm2981, %v2980
    %s2990 = scalar_lea.vmem [#allocation0], 72
    %v2991 = vld [vmem:[%s2990] sm:$0xff]
    %2992 = vrot.lane.b32.xlu0 %v2991, 16
    %v2993 = vpop.permute.xlu0 %2992
    %vm2994 = vcmask 64512
    %s2995 = scalar_lea.vmem %s1, 1166
    %2996 = vst.msk [vmem:[%s2995] ss:$16 sm:$0x3] %vm2994, %v2993
    %s2997 = scalar_lea.vmem %s1, 1166
    %2998 = vst.msk [vmem:[%s2997] ss:$16 sm:$0xc] %vm2994, %v2993
    %s2999 = scalar_lea.vmem %s1, 1166
    %3000 = vst.msk [vmem:[%s2999] ss:$16 sm:$0x30] %vm2994, %v2993
    %s3001 = scalar_lea.vmem %s1, 1166
    %3002 = vst.msk [vmem:[%s3001] ss:$16 sm:$0xc0] %vm2994, %v2993
    %s3003 = scalar_lea.vmem [#allocation0], 80
    %v3004 = vld [vmem:[%s3003] sm:$0xff]
    %3005 = vrot.lane.b32.xlu0 %v3004, 16
    %v3006 = vpop.permute.xlu0 %3005
    %vm3007 = vcmask 64512
    %s3008 = scalar_lea.vmem %s1, 1294
    %3009 = vst.msk [vmem:[%s3008] ss:$16 sm:$0x3] %vm3007, %v3006
    %s3010 = scalar_lea.vmem %s1, 1294
    %3011 = vst.msk [vmem:[%s3010] ss:$16 sm:$0xc] %vm3007, %v3006
    %s3012 = scalar_lea.vmem %s1, 1294
    %3013 = vst.msk [vmem:[%s3012] ss:$16 sm:$0x30] %vm3007, %v3006
    %s3014 = scalar_lea.vmem %s1, 1294
    %3015 = vst.msk [vmem:[%s3014] ss:$16 sm:$0xc0] %vm3007, %v3006
    %s3016 = scalar_lea.vmem [#allocation0], 88
    %v3017 = vld [vmem:[%s3016] sm:$0xff]
    %3018 = vrot.lane.b32.xlu0 %v3017, 16
    %v3019 = vpop.permute.xlu0 %3018
    %vm3020 = vcmask 64512
    %s3021 = scalar_lea.vmem %s1, 1422
    %3022 = vst.msk [vmem:[%s3021] ss:$16 sm:$0x3] %vm3020, %v3019
    %s3023 = scalar_lea.vmem %s1, 1422
    %3024 = vst.msk [vmem:[%s3023] ss:$16 sm:$0xc] %vm3020, %v3019
    %s3025 = scalar_lea.vmem %s1, 1422
    %3026 = vst.msk [vmem:[%s3025] ss:$16 sm:$0x30] %vm3020, %v3019
    %s3027 = scalar_lea.vmem %s1, 1422
    %3028 = vst.msk [vmem:[%s3027] ss:$16 sm:$0xc0] %vm3020, %v3019
    %s3029 = scalar_lea.vmem [#allocation0], 96
    %v3030 = vld [vmem:[%s3029] sm:$0xff]
    %3031 = vrot.lane.b32.xlu0 %v3030, 16
    %v3032 = vpop.permute.xlu0 %3031
    %vm3033 = vcmask 64512
    %s3034 = scalar_lea.vmem %s1, 1550
    %3035 = vst.msk [vmem:[%s3034] ss:$16 sm:$0x3] %vm3033, %v3032
    %s3036 = scalar_lea.vmem %s1, 1550
    %3037 = vst.msk [vmem:[%s3036] ss:$16 sm:$0xc] %vm3033, %v3032
    %s3038 = scalar_lea.vmem %s1, 1550
    %3039 = vst.msk [vmem:[%s3038] ss:$16 sm:$0x30] %vm3033, %v3032
    %s3040 = scalar_lea.vmem %s1, 1550
    %3041 = vst.msk [vmem:[%s3040] ss:$16 sm:$0xc0] %vm3033, %v3032
    %s3042 = scalar_lea.vmem [#allocation0], 104
    %v3043 = vld [vmem:[%s3042] sm:$0xff]
    %3044 = vrot.lane.b32.xlu0 %v3043, 16
    %v3045 = vpop.permute.xlu0 %3044
    %vm3046 = vcmask 64512
    %s3047 = scalar_lea.vmem %s1, 1678
    %3048 = vst.msk [vmem:[%s3047] ss:$16 sm:$0x3] %vm3046, %v3045
    %s3049 = scalar_lea.vmem %s1, 1678
    %3050 = vst.msk [vmem:[%s3049] ss:$16 sm:$0xc] %vm3046, %v3045
    %s3051 = scalar_lea.vmem %s1, 1678
    %3052 = vst.msk [vmem:[%s3051] ss:$16 sm:$0x30] %vm3046, %v3045
    %s3053 = scalar_lea.vmem %s1, 1678
    %3054 = vst.msk [vmem:[%s3053] ss:$16 sm:$0xc0] %vm3046, %v3045
    %s3055 = scalar_lea.vmem [#allocation0], 112
    %v3056 = vld [vmem:[%s3055] sm:$0xff]
    %3057 = vrot.lane.b32.xlu0 %v3056, 16
    %v3058 = vpop.permute.xlu0 %3057
    %vm3059 = vcmask 64512
    %s3060 = scalar_lea.vmem %s1, 1806
    %3061 = vst.msk [vmem:[%s3060] ss:$16 sm:$0x3] %vm3059, %v3058
    %s3062 = scalar_lea.vmem %s1, 1806
    %3063 = vst.msk [vmem:[%s3062] ss:$16 sm:$0xc] %vm3059, %v3058
    %s3064 = scalar_lea.vmem %s1, 1806
    %3065 = vst.msk [vmem:[%s3064] ss:$16 sm:$0x30] %vm3059, %v3058
    %s3066 = scalar_lea.vmem %s1, 1806
    %3067 = vst.msk [vmem:[%s3066] ss:$16 sm:$0xc0] %vm3059, %v3058
    %s3068 = scalar_lea.vmem [#allocation0], 120
    %v3069 = vld [vmem:[%s3068] sm:$0xff]
    %3070 = vrot.lane.b32.xlu0 %v3069, 16
    %v3071 = vpop.permute.xlu0 %3070
    %vm3072 = vcmask 64512
    %s3073 = scalar_lea.vmem %s1, 1934
    %3074 = vst.msk [vmem:[%s3073] ss:$16 sm:$0x3] %vm3072, %v3071
    %s3075 = scalar_lea.vmem %s1, 1934
    %3076 = vst.msk [vmem:[%s3075] ss:$16 sm:$0xc] %vm3072, %v3071
    %s3077 = scalar_lea.vmem %s1, 1934
    %3078 = vst.msk [vmem:[%s3077] ss:$16 sm:$0x30] %vm3072, %v3071
    %s3079 = scalar_lea.vmem %s1, 1934
    %3080 = vst.msk [vmem:[%s3079] ss:$16 sm:$0xc0] %vm3072, %v3071
    %v3081 = vld [vmem:[#allocation0] sm:$0xff]
    %3082 = vrot.lane.b32.xlu0 %v3081, 8
    %v3083 = vpop.permute.xlu0 %3082
    %vm3084 = vcmask 64512
    %s3085 = scalar_lea.vmem %s1, 15
    %3086 = vst.msk [vmem:[%s3085] ss:$16 sm:$0x3] %vm3084, %v3083
    %s3087 = scalar_lea.vmem %s1, 15
    %3088 = vst.msk [vmem:[%s3087] ss:$16 sm:$0xc] %vm3084, %v3083
    %s3089 = scalar_lea.vmem %s1, 15
    %3090 = vst.msk [vmem:[%s3089] ss:$16 sm:$0x30] %vm3084, %v3083
    %s3091 = scalar_lea.vmem %s1, 15
    %3092 = vst.msk [vmem:[%s3091] ss:$16 sm:$0xc0] %vm3084, %v3083
    %s3093 = scalar_lea.vmem [#allocation0], 8
    %v3094 = vld [vmem:[%s3093] sm:$0xff]
    %3095 = vrot.lane.b32.xlu0 %v3094, 8
    %v3096 = vpop.permute.xlu0 %3095
    %vm3097 = vcmask 64512
    %s3098 = scalar_lea.vmem %s1, 143
    %3099 = vst.msk [vmem:[%s3098] ss:$16 sm:$0x3] %vm3097, %v3096
    %s3100 = scalar_lea.vmem %s1, 143
    %3101 = vst.msk [vmem:[%s3100] ss:$16 sm:$0xc] %vm3097, %v3096
    %s3102 = scalar_lea.vmem %s1, 143
    %3103 = vst.msk [vmem:[%s3102] ss:$16 sm:$0x30] %vm3097, %v3096
    %s3104 = scalar_lea.vmem %s1, 143
    %3105 = vst.msk [vmem:[%s3104] ss:$16 sm:$0xc0] %vm3097, %v3096
    %s3106 = scalar_lea.vmem [#allocation0], 16
    %v3107 = vld [vmem:[%s3106] sm:$0xff]
    %3108 = vrot.lane.b32.xlu0 %v3107, 8
    %v3109 = vpop.permute.xlu0 %3108
    %vm3110 = vcmask 64512
    %s3111 = scalar_lea.vmem %s1, 271
    %3112 = vst.msk [vmem:[%s3111] ss:$16 sm:$0x3] %vm3110, %v3109
    %s3113 = scalar_lea.vmem %s1, 271
    %3114 = vst.msk [vmem:[%s3113] ss:$16 sm:$0xc] %vm3110, %v3109
    %s3115 = scalar_lea.vmem %s1, 271
    %3116 = vst.msk [vmem:[%s3115] ss:$16 sm:$0x30] %vm3110, %v3109
    %s3117 = scalar_lea.vmem %s1, 271
    %3118 = vst.msk [vmem:[%s3117] ss:$16 sm:$0xc0] %vm3110, %v3109
    %s3119 = scalar_lea.vmem [#allocation0], 24
    %v3120 = vld [vmem:[%s3119] sm:$0xff]
    %3121 = vrot.lane.b32.xlu0 %v3120, 8
    %v3122 = vpop.permute.xlu0 %3121
    %vm3123 = vcmask 64512
    %s3124 = scalar_lea.vmem %s1, 399
    %3125 = vst.msk [vmem:[%s3124] ss:$16 sm:$0x3] %vm3123, %v3122
    %s3126 = scalar_lea.vmem %s1, 399
    %3127 = vst.msk [vmem:[%s3126] ss:$16 sm:$0xc] %vm3123, %v3122
    %s3128 = scalar_lea.vmem %s1, 399
    %3129 = vst.msk [vmem:[%s3128] ss:$16 sm:$0x30] %vm3123, %v3122
    %s3130 = scalar_lea.vmem %s1, 399
    %3131 = vst.msk [vmem:[%s3130] ss:$16 sm:$0xc0] %vm3123, %v3122
    %s3132 = scalar_lea.vmem [#allocation0], 32
    %v3133 = vld [vmem:[%s3132] sm:$0xff]
    %3134 = vrot.lane.b32.xlu0 %v3133, 8
    %v3135 = vpop.permute.xlu0 %3134
    %vm3136 = vcmask 64512
    %s3137 = scalar_lea.vmem %s1, 527
    %3138 = vst.msk [vmem:[%s3137] ss:$16 sm:$0x3] %vm3136, %v3135
    %s3139 = scalar_lea.vmem %s1, 527
    %3140 = vst.msk [vmem:[%s3139] ss:$16 sm:$0xc] %vm3136, %v3135
    %s3141 = scalar_lea.vmem %s1, 527
    %3142 = vst.msk [vmem:[%s3141] ss:$16 sm:$0x30] %vm3136, %v3135
    %s3143 = scalar_lea.vmem %s1, 527
    %3144 = vst.msk [vmem:[%s3143] ss:$16 sm:$0xc0] %vm3136, %v3135
    %s3145 = scalar_lea.vmem [#allocation0], 40
    %v3146 = vld [vmem:[%s3145] sm:$0xff]
    %3147 = vrot.lane.b32.xlu0 %v3146, 8
    %v3148 = vpop.permute.xlu0 %3147
    %vm3149 = vcmask 64512
    %s3150 = scalar_lea.vmem %s1, 655
    %3151 = vst.msk [vmem:[%s3150] ss:$16 sm:$0x3] %vm3149, %v3148
    %s3152 = scalar_lea.vmem %s1, 655
    %3153 = vst.msk [vmem:[%s3152] ss:$16 sm:$0xc] %vm3149, %v3148
    %s3154 = scalar_lea.vmem %s1, 655
    %3155 = vst.msk [vmem:[%s3154] ss:$16 sm:$0x30] %vm3149, %v3148
    %s3156 = scalar_lea.vmem %s1, 655
    %3157 = vst.msk [vmem:[%s3156] ss:$16 sm:$0xc0] %vm3149, %v3148
    %s3158 = scalar_lea.vmem [#allocation0], 48
    %v3159 = vld [vmem:[%s3158] sm:$0xff]
    %3160 = vrot.lane.b32.xlu0 %v3159, 8
    %v3161 = vpop.permute.xlu0 %3160
    %vm3162 = vcmask 64512
    %s3163 = scalar_lea.vmem %s1, 783
    %3164 = vst.msk [vmem:[%s3163] ss:$16 sm:$0x3] %vm3162, %v3161
    %s3165 = scalar_lea.vmem %s1, 783
    %3166 = vst.msk [vmem:[%s3165] ss:$16 sm:$0xc] %vm3162, %v3161
    %s3167 = scalar_lea.vmem %s1, 783
    %3168 = vst.msk [vmem:[%s3167] ss:$16 sm:$0x30] %vm3162, %v3161
    %s3169 = scalar_lea.vmem %s1, 783
    %3170 = vst.msk [vmem:[%s3169] ss:$16 sm:$0xc0] %vm3162, %v3161
    %s3171 = scalar_lea.vmem [#allocation0], 56
    %v3172 = vld [vmem:[%s3171] sm:$0xff]
    %3173 = vrot.lane.b32.xlu0 %v3172, 8
    %v3174 = vpop.permute.xlu0 %3173
    %vm3175 = vcmask 64512
    %s3176 = scalar_lea.vmem %s1, 911
    %3177 = vst.msk [vmem:[%s3176] ss:$16 sm:$0x3] %vm3175, %v3174
    %s3178 = scalar_lea.vmem %s1, 911
    %3179 = vst.msk [vmem:[%s3178] ss:$16 sm:$0xc] %vm3175, %v3174
    %s3180 = scalar_lea.vmem %s1, 911
    %3181 = vst.msk [vmem:[%s3180] ss:$16 sm:$0x30] %vm3175, %v3174
    %s3182 = scalar_lea.vmem %s1, 911
    %3183 = vst.msk [vmem:[%s3182] ss:$16 sm:$0xc0] %vm3175, %v3174
    %s3184 = scalar_lea.vmem [#allocation0], 64
    %v3185 = vld [vmem:[%s3184] sm:$0xff]
    %3186 = vrot.lane.b32.xlu0 %v3185, 8
    %v3187 = vpop.permute.xlu0 %3186
    %vm3188 = vcmask 64512
    %s3189 = scalar_lea.vmem %s1, 1039
    %3190 = vst.msk [vmem:[%s3189] ss:$16 sm:$0x3] %vm3188, %v3187
    %s3191 = scalar_lea.vmem %s1, 1039
    %3192 = vst.msk [vmem:[%s3191] ss:$16 sm:$0xc] %vm3188, %v3187
    %s3193 = scalar_lea.vmem %s1, 1039
    %3194 = vst.msk [vmem:[%s3193] ss:$16 sm:$0x30] %vm3188, %v3187
    %s3195 = scalar_lea.vmem %s1, 1039
    %3196 = vst.msk [vmem:[%s3195] ss:$16 sm:$0xc0] %vm3188, %v3187
    %s3197 = scalar_lea.vmem [#allocation0], 72
    %v3198 = vld [vmem:[%s3197] sm:$0xff]
    %3199 = vrot.lane.b32.xlu0 %v3198, 8
    %v3200 = vpop.permute.xlu0 %3199
    %vm3201 = vcmask 64512
    %s3202 = scalar_lea.vmem %s1, 1167
    %3203 = vst.msk [vmem:[%s3202] ss:$16 sm:$0x3] %vm3201, %v3200
    %s3204 = scalar_lea.vmem %s1, 1167
    %3205 = vst.msk [vmem:[%s3204] ss:$16 sm:$0xc] %vm3201, %v3200
    %s3206 = scalar_lea.vmem %s1, 1167
    %3207 = vst.msk [vmem:[%s3206] ss:$16 sm:$0x30] %vm3201, %v3200
    %s3208 = scalar_lea.vmem %s1, 1167
    %3209 = vst.msk [vmem:[%s3208] ss:$16 sm:$0xc0] %vm3201, %v3200
    %s3210 = scalar_lea.vmem [#allocation0], 80
    %v3211 = vld [vmem:[%s3210] sm:$0xff]
    %3212 = vrot.lane.b32.xlu0 %v3211, 8
    %v3213 = vpop.permute.xlu0 %3212
    %vm3214 = vcmask 64512
    %s3215 = scalar_lea.vmem %s1, 1295
    %3216 = vst.msk [vmem:[%s3215] ss:$16 sm:$0x3] %vm3214, %v3213
    %s3217 = scalar_lea.vmem %s1, 1295
    %3218 = vst.msk [vmem:[%s3217] ss:$16 sm:$0xc] %vm3214, %v3213
    %s3219 = scalar_lea.vmem %s1, 1295
    %3220 = vst.msk [vmem:[%s3219] ss:$16 sm:$0x30] %vm3214, %v3213
    %s3221 = scalar_lea.vmem %s1, 1295
    %3222 = vst.msk [vmem:[%s3221] ss:$16 sm:$0xc0] %vm3214, %v3213
    %s3223 = scalar_lea.vmem [#allocation0], 88
    %v3224 = vld [vmem:[%s3223] sm:$0xff]
    %3225 = vrot.lane.b32.xlu0 %v3224, 8
    %v3226 = vpop.permute.xlu0 %3225
    %vm3227 = vcmask 64512
    %s3228 = scalar_lea.vmem %s1, 1423
    %3229 = vst.msk [vmem:[%s3228] ss:$16 sm:$0x3] %vm3227, %v3226
    %s3230 = scalar_lea.vmem %s1, 1423
    %3231 = vst.msk [vmem:[%s3230] ss:$16 sm:$0xc] %vm3227, %v3226
    %s3232 = scalar_lea.vmem %s1, 1423
    %3233 = vst.msk [vmem:[%s3232] ss:$16 sm:$0x30] %vm3227, %v3226
    %s3234 = scalar_lea.vmem %s1, 1423
    %3235 = vst.msk [vmem:[%s3234] ss:$16 sm:$0xc0] %vm3227, %v3226
    %s3236 = scalar_lea.vmem [#allocation0], 96
    %v3237 = vld [vmem:[%s3236] sm:$0xff]
    %3238 = vrot.lane.b32.xlu0 %v3237, 8
    %v3239 = vpop.permute.xlu0 %3238
    %vm3240 = vcmask 64512
    %s3241 = scalar_lea.vmem %s1, 1551
    %3242 = vst.msk [vmem:[%s3241] ss:$16 sm:$0x3] %vm3240, %v3239
    %s3243 = scalar_lea.vmem %s1, 1551
    %3244 = vst.msk [vmem:[%s3243] ss:$16 sm:$0xc] %vm3240, %v3239
    %s3245 = scalar_lea.vmem %s1, 1551
    %3246 = vst.msk [vmem:[%s3245] ss:$16 sm:$0x30] %vm3240, %v3239
    %s3247 = scalar_lea.vmem %s1, 1551
    %3248 = vst.msk [vmem:[%s3247] ss:$16 sm:$0xc0] %vm3240, %v3239
    %s3249 = scalar_lea.vmem [#allocation0], 104
    %v3250 = vld [vmem:[%s3249] sm:$0xff]
    %3251 = vrot.lane.b32.xlu0 %v3250, 8
    %v3252 = vpop.permute.xlu0 %3251
    %vm3253 = vcmask 64512
    %s3254 = scalar_lea.vmem %s1, 1679
    %3255 = vst.msk [vmem:[%s3254] ss:$16 sm:$0x3] %vm3253, %v3252
    %s3256 = scalar_lea.vmem %s1, 1679
    %3257 = vst.msk [vmem:[%s3256] ss:$16 sm:$0xc] %vm3253, %v3252
    %s3258 = scalar_lea.vmem %s1, 1679
    %3259 = vst.msk [vmem:[%s3258] ss:$16 sm:$0x30] %vm3253, %v3252
    %s3260 = scalar_lea.vmem %s1, 1679
    %3261 = vst.msk [vmem:[%s3260] ss:$16 sm:$0xc0] %vm3253, %v3252
    %s3262 = scalar_lea.vmem [#allocation0], 112
    %v3263 = vld [vmem:[%s3262] sm:$0xff]
    %3264 = vrot.lane.b32.xlu0 %v3263, 8
    %v3265 = vpop.permute.xlu0 %3264
    %vm3266 = vcmask 64512
    %s3267 = scalar_lea.vmem %s1, 1807
    %3268 = vst.msk [vmem:[%s3267] ss:$16 sm:$0x3] %vm3266, %v3265
    %s3269 = scalar_lea.vmem %s1, 1807
    %3270 = vst.msk [vmem:[%s3269] ss:$16 sm:$0xc] %vm3266, %v3265
    %s3271 = scalar_lea.vmem %s1, 1807
    %3272 = vst.msk [vmem:[%s3271] ss:$16 sm:$0x30] %vm3266, %v3265
    %s3273 = scalar_lea.vmem %s1, 1807
    %3274 = vst.msk [vmem:[%s3273] ss:$16 sm:$0xc0] %vm3266, %v3265
    %s3275 = scalar_lea.vmem [#allocation0], 120
    %v3276 = vld [vmem:[%s3275] sm:$0xff]
    %3277 = vrot.lane.b32.xlu0 %v3276, 8
    %v3278 = vpop.permute.xlu0 %3277
    %vm3279 = vcmask 64512
    %s3280 = scalar_lea.vmem %s1, 1935
    %3281 = vst.msk [vmem:[%s3280] ss:$16 sm:$0x3] %vm3279, %v3278
    %s3282 = scalar_lea.vmem %s1, 1935
    %3283 = vst.msk [vmem:[%s3282] ss:$16 sm:$0xc] %vm3279, %v3278
    %s3284 = scalar_lea.vmem %s1, 1935
    %3285 = vst.msk [vmem:[%s3284] ss:$16 sm:$0x30] %vm3279, %v3278
    %s3286 = scalar_lea.vmem %s1, 1935
    %3287 = vst.msk [vmem:[%s3286] ss:$16 sm:$0xc0] %vm3279, %v3278
    %3288 = vsyncpa [#allocation1], 1

// kernel: squeeze.2
$region0: #{squeeze.2}
  %s0 = inlined_call_operand.vmem [shape: f32[2,1,64,128], index: 0, kind: input, shape index: {}]
  %s1 = inlined_call_operand.vmem [shape: f32[2,8,8,16,8], index: 1, kind: output, shape index: {}]
  %v2 = vld [vmem:[%s0] sm:$0xff]
  %vm3 = vcmask 64512
  %4 = vst.msk [vmem:[%s1] ss:$16 sm:$0x3] %vm3, %v2
  %5 = vst.msk [vmem:[%s1] ss:$16 sm:$0xc] %vm3, %v2
  %6 = vst.msk [vmem:[%s1] ss:$16 sm:$0x30] %vm3, %v2
  %7 = vst.msk [vmem:[%s1] ss:$16 sm:$0xc0] %vm3, %v2
  %s8 = scalar_lea.vmem %s0, 8
  %v9 = vld [vmem:[%s8] sm:$0xff]
  %vm10 = vcmask 64512
  %s11 = scalar_lea.vmem %s1, 128
  %12 = vst.msk [vmem:[%s11] ss:$16 sm:$0x3] %vm10, %v9
  %s13 = scalar_lea.vmem %s1, 128
  %14 = vst.msk [vmem:[%s13] ss:$16 sm:$0xc] %vm10, %v9
  %s15 = scalar_lea.vmem %s1, 128
  %16 = vst.msk [vmem:[%s15] ss:$16 sm:$0x30] %vm10, %v9
  %s17 = scalar_lea.vmem %s1, 128
  %18 = vst.msk [vmem:[%s17] ss:$16 sm:$0xc0] %vm10, %v9
  %s19 = scalar_lea.vmem %s0, 16
  %v20 = vld [vmem:[%s19] sm:$0xff]
  %vm21 = vcmask 64512
  %s22 = scalar_lea.vmem %s1, 256
  %23 = vst.msk [vmem:[%s22] ss:$16 sm:$0x3] %vm21, %v20
  %s24 = scalar_lea.vmem %s1, 256
  %25 = vst.msk [vmem:[%s24] ss:$16 sm:$0xc] %vm21, %v20
  %s26 = scalar_lea.vmem %s1, 256
  %27 = vst.msk [vmem:[%s26] ss:$16 sm:$0x30] %vm21, %v20
  %s28 = scalar_lea.vmem %s1, 256
  %29 = vst.msk [vmem:[%s28] ss:$16 sm:$0xc0] %vm21, %v20
  %s30 = scalar_lea.vmem %s0, 24
  %v31 = vld [vmem:[%s30] sm:$0xff]
  %vm32 = vcmask 64512
  %s33 = scalar_lea.vmem %s1, 384
  %34 = vst.msk [vmem:[%s33] ss:$16 sm:$0x3] %vm32, %v31
  %s35 = scalar_lea.vmem %s1, 384
  %36 = vst.msk [vmem:[%s35] ss:$16 sm:$0xc] %vm32, %v31
  %s37 = scalar_lea.vmem %s1, 384
  %38 = vst.msk [vmem:[%s37] ss:$16 sm:$0x30] %vm32, %v31
  %s39 = scalar_lea.vmem %s1, 384
  %40 = vst.msk [vmem:[%s39] ss:$16 sm:$0xc0] %vm32, %v31
  %s41 = scalar_lea.vmem %s0, 32
  %v42 = vld [vmem:[%s41] sm:$0xff]
  %vm43 = vcmask 64512
  %s44 = scalar_lea.vmem %s1, 512
  %45 = vst.msk [vmem:[%s44] ss:$16 sm:$0x3] %vm43, %v42
  %s46 = scalar_lea.vmem %s1, 512
  %47 = vst.msk [vmem:[%s46] ss:$16 sm:$0xc] %vm43, %v42
  %s48 = scalar_lea.vmem %s1, 512
  %49 = vst.msk [vmem:[%s48] ss:$16 sm:$0x30] %vm43, %v42
  %s50 = scalar_lea.vmem %s1, 512
  %51 = vst.msk [vmem:[%s50] ss:$16 sm:$0xc0] %vm43, %v42
  %s52 = scalar_lea.vmem %s0, 40
  %v53 = vld [vmem:[%s52] sm:$0xff]
  %vm54 = vcmask 64512
  %s55 = scalar_lea.vmem %s1, 640
  %56 = vst.msk [vmem:[%s55] ss:$16 sm:$0x3] %vm54, %v53
  %s57 = scalar_lea.vmem %s1, 640
  %58 = vst.msk [vmem:[%s57] ss:$16 sm:$0xc] %vm54, %v53
  %s59 = scalar_lea.vmem %s1, 640
  %60 = vst.msk [vmem:[%s59] ss:$16 sm:$0x30] %vm54, %v53
  %s61 = scalar_lea.vmem %s1, 640
  %62 = vst.msk [vmem:[%s61] ss:$16 sm:$0xc0] %vm54, %v53
  %s63 = scalar_lea.vmem %s0, 48
  %v64 = vld [vmem:[%s63] sm:$0xff]
  %vm65 = vcmask 64512
  %s66 = scalar_lea.vmem %s1, 768
  %67 = vst.msk [vmem:[%s66] ss:$16 sm:$0x3] %vm65, %v64
  %s68 = scalar_lea.vmem %s1, 768
  %69 = vst.msk [vmem:[%s68] ss:$16 sm:$0xc] %vm65, %v64
  %s70 = scalar_lea.vmem %s1, 768
  %71 = vst.msk [vmem:[%s70] ss:$16 sm:$0x30] %vm65, %v64
  %s72 = scalar_lea.vmem %s1, 768
  %73 = vst.msk [vmem:[%s72] ss:$16 sm:$0xc0] %vm65, %v64
  %s74 = scalar_lea.vmem %s0, 56
  %v75 = vld [vmem:[%s74] sm:$0xff]
  %vm76 = vcmask 64512
  %s77 = scalar_lea.vmem %s1, 896
  %78 = vst.msk [vmem:[%s77] ss:$16 sm:$0x3] %vm76, %v75
  %s79 = scalar_lea.vmem %s1, 896
  %80 = vst.msk [vmem:[%s79] ss:$16 sm:$0xc] %vm76, %v75
  %s81 = scalar_lea.vmem %s1, 896
  %82 = vst.msk [vmem:[%s81] ss:$16 sm:$0x30] %vm76, %v75
  %s83 = scalar_lea.vmem %s1, 896
  %84 = vst.msk [vmem:[%s83] ss:$16 sm:$0xc0] %vm76, %v75
  %s85 = scalar_lea.vmem %s0, 64
  %v86 = vld [vmem:[%s85] sm:$0xff]
  %vm87 = vcmask 64512
  %s88 = scalar_lea.vmem %s1, 1024
  %89 = vst.msk [vmem:[%s88] ss:$16 sm:$0x3] %vm87, %v86
  %s90 = scalar_lea.vmem %s1, 1024
  %91 = vst.msk [vmem:[%s90] ss:$16 sm:$0xc] %vm87, %v86
  %s92 = scalar_lea.vmem %s1, 1024
  %93 = vst.msk [vmem:[%s92] ss:$16 sm:$0x30] %vm87, %v86
  %s94 = scalar_lea.vmem %s1, 1024
  %95 = vst.msk [vmem:[%s94] ss:$16 sm:$0xc0] %vm87, %v86
  %s96 = scalar_lea.vmem %s0, 72
  %v97 = vld [vmem:[%s96] sm:$0xff]
  %vm98 = vcmask 64512
  %s99 = scalar_lea.vmem %s1, 1152
  %100 = vst.msk [vmem:[%s99] ss:$16 sm:$0x3] %vm98, %v97
  %s101 = scalar_lea.vmem %s1, 1152
  %102 = vst.msk [vmem:[%s101] ss:$16 sm:$0xc] %vm98, %v97
  %s103 = scalar_lea.vmem %s1, 1152
  %104 = vst.msk [vmem:[%s103] ss:$16 sm:$0x30] %vm98, %v97
  %s105 = scalar_lea.vmem %s1, 1152
  %106 = vst.msk [vmem:[%s105] ss:$16 sm:$0xc0] %vm98, %v97
  %s107 = scalar_lea.vmem %s0, 80
  %v108 = vld [vmem:[%s107] sm:$0xff]
  %vm109 = vcmask 64512
  %s110 = scalar_lea.vmem %s1, 1280
  %111 = vst.msk [vmem:[%s110] ss:$16 sm:$0x3] %vm109, %v108
  %s112 = scalar_lea.vmem %s1, 1280
  %113 = vst.msk [vmem:[%s112] ss:$16 sm:$0xc] %vm109, %v108
  %s114 = scalar_lea.vmem %s1, 1280
  %115 = vst.msk [vmem:[%s114] ss:$16 sm:$0x30] %vm109, %v108
  %s116 = scalar_lea.vmem %s1, 1280
  %117 = vst.msk [vmem:[%s116] ss:$16 sm:$0xc0] %vm109, %v108
  %s118 = scalar_lea.vmem %s0, 88
  %v119 = vld [vmem:[%s118] sm:$0xff]
  %vm120 = vcmask 64512
  %s121 = scalar_lea.vmem %s1, 1408
  %122 = vst.msk [vmem:[%s121] ss:$16 sm:$0x3] %vm120, %v119
  %s123 = scalar_lea.vmem %s1, 1408
  %124 = vst.msk [vmem:[%s123] ss:$16 sm:$0xc] %vm120, %v119
  %s125 = scalar_lea.vmem %s1, 1408
  %126 = vst.msk [vmem:[%s125] ss:$16 sm:$0x30] %vm120, %v119
  %s127 = scalar_lea.vmem %s1, 1408
  %128 = vst.msk [vmem:[%s127] ss:$16 sm:$0xc0] %vm120, %v119
  %s129 = scalar_lea.vmem %s0, 96
  %v130 = vld [vmem:[%s129] sm:$0xff]
  %vm131 = vcmask 64512
  %s132 = scalar_lea.vmem %s1, 1536
  %133 = vst.msk [vmem:[%s132] ss:$16 sm:$0x3] %vm131, %v130
  %s134 = scalar_lea.vmem %s1, 1536
  %135 = vst.msk [vmem:[%s134] ss:$16 sm:$0xc] %vm131, %v130
  %s136 = scalar_lea.vmem %s1, 1536
  %137 = vst.msk [vmem:[%s136] ss:$16 sm:$0x30] %vm131, %v130
  %s138 = scalar_lea.vmem %s1, 1536
  %139 = vst.msk [vmem:[%s138] ss:$16 sm:$0xc0] %vm131, %v130
  %s140 = scalar_lea.vmem %s0, 104
  %v141 = vld [vmem:[%s140] sm:$0xff]
  %vm142 = vcmask 64512
  %s143 = scalar_lea.vmem %s1, 1664
  %144 = vst.msk [vmem:[%s143] ss:$16 sm:$0x3] %vm142, %v141
  %s145 = scalar_lea.vmem %s1, 1664
  %146 = vst.msk [vmem:[%s145] ss:$16 sm:$0xc] %vm142, %v141
  %s147 = scalar_lea.vmem %s1, 1664
  %148 = vst.msk [vmem:[%s147] ss:$16 sm:$0x30] %vm142, %v141
  %s149 = scalar_lea.vmem %s1, 1664
  %150 = vst.msk [vmem:[%s149] ss:$16 sm:$0xc0] %vm142, %v141
  %s151 = scalar_lea.vmem %s0, 112
  %v152 = vld [vmem:[%s151] sm:$0xff]
  %vm153 = vcmask 64512
  %s154 = scalar_lea.vmem %s1, 1792
  %155 = vst.msk [vmem:[%s154] ss:$16 sm:$0x3] %vm153, %v152
  %s156 = scalar_lea.vmem %s1, 1792
  %157 = vst.msk [vmem:[%s156] ss:$16 sm:$0xc] %vm153, %v152
  %s158 = scalar_lea.vmem %s1, 1792
  %159 = vst.msk [vmem:[%s158] ss:$16 sm:$0x30] %vm153, %v152
  %s160 = scalar_lea.vmem %s1, 1792
  %161 = vst.msk [vmem:[%s160] ss:$16 sm:$0xc0] %vm153, %v152
  %s162 = scalar_lea.vmem %s0, 120
  %v163 = vld [vmem:[%s162] sm:$0xff]
  %vm164 = vcmask 64512
  %s165 = scalar_lea.vmem %s1, 1920
  %166 = vst.msk [vmem:[%s165] ss:$16 sm:$0x3] %vm164, %v163
  %s167 = scalar_lea.vmem %s1, 1920
  %168 = vst.msk [vmem:[%s167] ss:$16 sm:$0xc] %vm164, %v163
  %s169 = scalar_lea.vmem %s1, 1920
  %170 = vst.msk [vmem:[%s169] ss:$16 sm:$0x30] %vm164, %v163
  %s171 = scalar_lea.vmem %s1, 1920
  %172 = vst.msk [vmem:[%s171] ss:$16 sm:$0xc0] %vm164, %v163
  %v173 = vld [vmem:[%s0] sm:$0xff]
  %174 = vrot.lane.b32.xlu0 %v173, 120
  %v175 = vpop.permute.xlu0 %174
  %vm176 = vcmask 64512
  %s177 = scalar_lea.vmem %s1, 1
  %178 = vst.msk [vmem:[%s177] ss:$16 sm:$0x3] %vm176, %v175
  %s179 = scalar_lea.vmem %s1, 1
  %180 = vst.msk [vmem:[%s179] ss:$16 sm:$0xc] %vm176, %v175
  %s181 = scalar_lea.vmem %s1, 1
  %182 = vst.msk [vmem:[%s181] ss:$16 sm:$0x30] %vm176, %v175
  %s183 = scalar_lea.vmem %s1, 1
  %184 = vst.msk [vmem:[%s183] ss:$16 sm:$0xc0] %vm176, %v175
  %s185 = scalar_lea.vmem %s0, 8
  %v186 = vld [vmem:[%s185] sm:$0xff]
  %187 = vrot.lane.b32.xlu0 %v186, 120
  %v188 = vpop.permute.xlu0 %187
  %vm189 = vcmask 64512
  %s190 = scalar_lea.vmem %s1, 129
  %191 = vst.msk [vmem:[%s190] ss:$16 sm:$0x3] %vm189, %v188
  %s192 = scalar_lea.vmem %s1, 129
  %193 = vst.msk [vmem:[%s192] ss:$16 sm:$0xc] %vm189, %v188
  %s194 = scalar_lea.vmem %s1, 129
  %195 = vst.msk [vmem:[%s194] ss:$16 sm:$0x30] %vm189, %v188
  %s196 = scalar_lea.vmem %s1, 129
  %197 = vst.msk [vmem:[%s196] ss:$16 sm:$0xc0] %vm189, %v188
  %s198 = scalar_lea.vmem %s0, 16
  %v199 = vld [vmem:[%s198] sm:$0xff]
  %200 = vrot.lane.b32.xlu0 %v199, 120
  %v201 = vpop.permute.xlu0 %200
  %vm202 = vcmask 64512
  %s203 = scalar_lea.vmem %s1, 257
  %204 = vst.msk [vmem:[%s203] ss:$16 sm:$0x3] %vm202, %v201
  %s205 = scalar_lea.vmem %s1, 257
  %206 = vst.msk [vmem:[%s205] ss:$16 sm:$0xc] %vm202, %v201
  %s207 = scalar_lea.vmem %s1, 257
  %208 = vst.msk [vmem:[%s207] ss:$16 sm:$0x30] %vm202, %v201
  %s209 = scalar_lea.vmem %s1, 257
  %210 = vst.msk [vmem:[%s209] ss:$16 sm:$0xc0] %vm202, %v201
  %s211 = scalar_lea.vmem %s0, 24
  %v212 = vld [vmem:[%s211] sm:$0xff]
  %213 = vrot.lane.b32.xlu0 %v212, 120
  %v214 = vpop.permute.xlu0 %213
  %vm215 = vcmask 64512
  %s216 = scalar_lea.vmem %s1, 385
  %217 = vst.msk [vmem:[%s216] ss:$16 sm:$0x3] %vm215, %v214
  %s218 = scalar_lea.vmem %s1, 385
  %219 = vst.msk [vmem:[%s218] ss:$16 sm:$0xc] %vm215, %v214
  %s220 = scalar_lea.vmem %s1, 385
  %221 = vst.msk [vmem:[%s220] ss:$16 sm:$0x30] %vm215, %v214
  %s222 = scalar_lea.vmem %s1, 385
  %223 = vst.msk [vmem:[%s222] ss:$16 sm:$0xc0] %vm215, %v214
  %s224 = scalar_lea.vmem %s0, 32
  %v225 = vld [vmem:[%s224] sm:$0xff]
  %226 = vrot.lane.b32.xlu0 %v225, 120
  %v227 = vpop.permute.xlu0 %226
  %vm228 = vcmask 64512
  %s229 = scalar_lea.vmem %s1, 513
  %230 = vst.msk [vmem:[%s229] ss:$16 sm:$0x3] %vm228, %v227
  %s231 = scalar_lea.vmem %s1, 513
  %232 = vst.msk [vmem:[%s231] ss:$16 sm:$0xc] %vm228, %v227
  %s233 = scalar_lea.vmem %s1, 513
  %234 = vst.msk [vmem:[%s233] ss:$16 sm:$0x30] %vm228, %v227
  %s235 = scalar_lea.vmem %s1, 513
  %236 = vst.msk [vmem:[%s235] ss:$16 sm:$0xc0] %vm228, %v227
  %s237 = scalar_lea.vmem %s0, 40
  %v238 = vld [vmem:[%s237] sm:$0xff]
  %239 = vrot.lane.b32.xlu0 %v238, 120
  %v240 = vpop.permute.xlu0 %239
  %vm241 = vcmask 64512
  %s242 = scalar_lea.vmem %s1, 641
  %243 = vst.msk [vmem:[%s242] ss:$16 sm:$0x3] %vm241, %v240
  %s244 = scalar_lea.vmem %s1, 641
  %245 = vst.msk [vmem:[%s244] ss:$16 sm:$0xc] %vm241, %v240
  %s246 = scalar_lea.vmem %s1, 641
  %247 = vst.msk [vmem:[%s246] ss:$16 sm:$0x30] %vm241, %v240
  %s248 = scalar_lea.vmem %s1, 641
  %249 = vst.msk [vmem:[%s248] ss:$16 sm:$0xc0] %vm241, %v240
  %s250 = scalar_lea.vmem %s0, 48
  %v251 = vld [vmem:[%s250] sm:$0xff]
  %252 = vrot.lane.b32.xlu0 %v251, 120
  %v253 = vpop.permute.xlu0 %252
  %vm254 = vcmask 64512
  %s255 = scalar_lea.vmem %s1, 769
  %256 = vst.msk [vmem:[%s255] ss:$16 sm:$0x3] %vm254, %v253
  %s257 = scalar_lea.vmem %s1, 769
  %258 = vst.msk [vmem:[%s257] ss:$16 sm:$0xc] %vm254, %v253
  %s259 = scalar_lea.vmem %s1, 769
  %260 = vst.msk [vmem:[%s259] ss:$16 sm:$0x30] %vm254, %v253
  %s261 = scalar_lea.vmem %s1, 769
  %262 = vst.msk [vmem:[%s261] ss:$16 sm:$0xc0] %vm254, %v253
  %s263 = scalar_lea.vmem %s0, 56
  %v264 = vld [vmem:[%s263] sm:$0xff]
  %265 = vrot.lane.b32.xlu0 %v264, 120
  %v266 = vpop.permute.xlu0 %265
  %vm267 = vcmask 64512
  %s268 = scalar_lea.vmem %s1, 897
  %269 = vst.msk [vmem:[%s268] ss:$16 sm:$0x3] %vm267, %v266
  %s270 = scalar_lea.vmem %s1, 897
  %271 = vst.msk [vmem:[%s270] ss:$16 sm:$0xc] %vm267, %v266
  %s272 = scalar_lea.vmem %s1, 897
  %273 = vst.msk [vmem:[%s272] ss:$16 sm:$0x30] %vm267, %v266
  %s274 = scalar_lea.vmem %s1, 897
  %275 = vst.msk [vmem:[%s274] ss:$16 sm:$0xc0] %vm267, %v266
  %s276 = scalar_lea.vmem %s0, 64
  %v277 = vld [vmem:[%s276] sm:$0xff]
  %278 = vrot.lane.b32.xlu0 %v277, 120
  %v279 = vpop.permute.xlu0 %278
  %vm280 = vcmask 64512
  %s281 = scalar_lea.vmem %s1, 1025
  %282 = vst.msk [vmem:[%s281] ss:$16 sm:$0x3] %vm280, %v279
  %s283 = scalar_lea.vmem %s1, 1025
  %284 = vst.msk [vmem:[%s283] ss:$16 sm:$0xc] %vm280, %v279
  %s285 = scalar_lea.vmem %s1, 1025
  %286 = vst.msk [vmem:[%s285] ss:$16 sm:$0x30] %vm280, %v279
  %s287 = scalar_lea.vmem %s1, 1025
  %288 = vst.msk [vmem:[%s287] ss:$16 sm:$0xc0] %vm280, %v279
  %s289 = scalar_lea.vmem %s0, 72
  %v290 = vld [vmem:[%s289] sm:$0xff]
  %291 = vrot.lane.b32.xlu0 %v290, 120
  %v292 = vpop.permute.xlu0 %291
  %vm293 = vcmask 64512
  %s294 = scalar_lea.vmem %s1, 1153
  %295 = vst.msk [vmem:[%s294] ss:$16 sm:$0x3] %vm293, %v292
  %s296 = scalar_lea.vmem %s1, 1153
  %297 = vst.msk [vmem:[%s296] ss:$16 sm:$0xc] %vm293, %v292
  %s298 = scalar_lea.vmem %s1, 1153
  %299 = vst.msk [vmem:[%s298] ss:$16 sm:$0x30] %vm293, %v292
  %s300 = scalar_lea.vmem %s1, 1153
  %301 = vst.msk [vmem:[%s300] ss:$16 sm:$0xc0] %vm293, %v292
  %s302 = scalar_lea.vmem %s0, 80
  %v303 = vld [vmem:[%s302] sm:$0xff]
  %304 = vrot.lane.b32.xlu0 %v303, 120
  %v305 = vpop.permute.xlu0 %304
  %vm306 = vcmask 64512
  %s307 = scalar_lea.vmem %s1, 1281
  %308 = vst.msk [vmem:[%s307] ss:$16 sm:$0x3] %vm306, %v305
  %s309 = scalar_lea.vmem %s1, 1281
  %310 = vst.msk [vmem:[%s309] ss:$16 sm:$0xc] %vm306, %v305
  %s311 = scalar_lea.vmem %s1, 1281
  %312 = vst.msk [vmem:[%s311] ss:$16 sm:$0x30] %vm306, %v305
  %s313 = scalar_lea.vmem %s1, 1281
  %314 = vst.msk [vmem:[%s313] ss:$16 sm:$0xc0] %vm306, %v305
  %s315 = scalar_lea.vmem %s0, 88
  %v316 = vld [vmem:[%s315] sm:$0xff]
  %317 = vrot.lane.b32.xlu0 %v316, 120
  %v318 = vpop.permute.xlu0 %317
  %vm319 = vcmask 64512
  %s320 = scalar_lea.vmem %s1, 1409
  %321 = vst.msk [vmem:[%s320] ss:$16 sm:$0x3] %vm319, %v318
  %s322 = scalar_lea.vmem %s1, 1409
  %323 = vst.msk [vmem:[%s322] ss:$16 sm:$0xc] %vm319, %v318
  %s324 = scalar_lea.vmem %s1, 1409
  %325 = vst.msk [vmem:[%s324] ss:$16 sm:$0x30] %vm319, %v318
  %s326 = scalar_lea.vmem %s1, 1409
  %327 = vst.msk [vmem:[%s326] ss:$16 sm:$0xc0] %vm319, %v318
  %s328 = scalar_lea.vmem %s0, 96
  %v329 = vld [vmem:[%s328] sm:$0xff]
  %330 = vrot.lane.b32.xlu0 %v329, 120
  %v331 = vpop.permute.xlu0 %330
  %vm332 = vcmask 64512
  %s333 = scalar_lea.vmem %s1, 1537
  %334 = vst.msk [vmem:[%s333] ss:$16 sm:$0x3] %vm332, %v331
  %s335 = scalar_lea.vmem %s1, 1537
  %336 = vst.msk [vmem:[%s335] ss:$16 sm:$0xc] %vm332, %v331
  %s337 = scalar_lea.vmem %s1, 1537
  %338 = vst.msk [vmem:[%s337] ss:$16 sm:$0x30] %vm332, %v331
  %s339 = scalar_lea.vmem %s1, 1537
  %340 = vst.msk [vmem:[%s339] ss:$16 sm:$0xc0] %vm332, %v331
  %s341 = scalar_lea.vmem %s0, 104
  %v342 = vld [vmem:[%s341] sm:$0xff]
  %343 = vrot.lane.b32.xlu0 %v342, 120
  %v344 = vpop.permute.xlu0 %343
  %vm345 = vcmask 64512
  %s346 = scalar_lea.vmem %s1, 1665
  %347 = vst.msk [vmem:[%s346] ss:$16 sm:$0x3] %vm345, %v344
  %s348 = scalar_lea.vmem %s1, 1665
  %349 = vst.msk [vmem:[%s348] ss:$16 sm:$0xc] %vm345, %v344
  %s350 = scalar_lea.vmem %s1, 1665
  %351 = vst.msk [vmem:[%s350] ss:$16 sm:$0x30] %vm345, %v344
  %s352 = scalar_lea.vmem %s1, 1665
  %353 = vst.msk [vmem:[%s352] ss:$16 sm:$0xc0] %vm345, %v344
  %s354 = scalar_lea.vmem %s0, 112
  %v355 = vld [vmem:[%s354] sm:$0xff]
  %356 = vrot.lane.b32.xlu0 %v355, 120
  %v357 = vpop.permute.xlu0 %356
  %vm358 = vcmask 64512
  %s359 = scalar_lea.vmem %s1, 1793
  %360 = vst.msk [vmem:[%s359] ss:$16 sm:$0x3] %vm358, %v357
  %s361 = scalar_lea.vmem %s1, 1793
  %362 = vst.msk [vmem:[%s361] ss:$16 sm:$0xc] %vm358, %v357
  %s363 = scalar_lea.vmem %s1, 1793
  %364 = vst.msk [vmem:[%s363] ss:$16 sm:$0x30] %vm358, %v357
  %s365 = scalar_lea.vmem %s1, 1793
  %366 = vst.msk [vmem:[%s365] ss:$16 sm:$0xc0] %vm358, %v357
  %s367 = scalar_lea.vmem %s0, 120
  %v368 = vld [vmem:[%s367] sm:$0xff]
  %369 = vrot.lane.b32.xlu0 %v368, 120
  %v370 = vpop.permute.xlu0 %369
  %vm371 = vcmask 64512
  %s372 = scalar_lea.vmem %s1, 1921
  %373 = vst.msk [vmem:[%s372] ss:$16 sm:$0x3] %vm371, %v370
  %s374 = scalar_lea.vmem %s1, 1921
  %375 = vst.msk [vmem:[%s374] ss:$16 sm:$0xc] %vm371, %v370
  %s376 = scalar_lea.vmem %s1, 1921
  %377 = vst.msk [vmem:[%s376] ss:$16 sm:$0x30] %vm371, %v370
  %s378 = scalar_lea.vmem %s1, 1921
  %379 = vst.msk [vmem:[%s378] ss:$16 sm:$0xc0] %vm371, %v370
  %v380 = vld [vmem:[%s0] sm:$0xff]
  %381 = vrot.lane.b32.xlu0 %v380, 112
  %v382 = vpop.permute.xlu0 %381
  %vm383 = vcmask 64512
  %s384 = scalar_lea.vmem %s1, 2
  %385 = vst.msk [vmem:[%s384] ss:$16 sm:$0x3] %vm383, %v382
  %s386 = scalar_lea.vmem %s1, 2
  %387 = vst.msk [vmem:[%s386] ss:$16 sm:$0xc] %vm383, %v382
  %s388 = scalar_lea.vmem %s1, 2
  %389 = vst.msk [vmem:[%s388] ss:$16 sm:$0x30] %vm383, %v382
  %s390 = scalar_lea.vmem %s1, 2
  %391 = vst.msk [vmem:[%s390] ss:$16 sm:$0xc0] %vm383, %v382
  %s392 = scalar_lea.vmem %s0, 8
  %v393 = vld [vmem:[%s392] sm:$0xff]
  %394 = vrot.lane.b32.xlu0 %v393, 112
  %v395 = vpop.permute.xlu0 %394
  %vm396 = vcmask 64512
  %s397 = scalar_lea.vmem %s1, 130
  %398 = vst.msk [vmem:[%s397] ss:$16 sm:$0x3] %vm396, %v395
  %s399 = scalar_lea.vmem %s1, 130
  %400 = vst.msk [vmem:[%s399] ss:$16 sm:$0xc] %vm396, %v395
  %s401 = scalar_lea.vmem %s1, 130
  %402 = vst.msk [vmem:[%s401] ss:$16 sm:$0x30] %vm396, %v395
  %s403 = scalar_lea.vmem %s1, 130
  %404 = vst.msk [vmem:[%s403] ss:$16 sm:$0xc0] %vm396, %v395
  %s405 = scalar_lea.vmem %s0, 16
  %v406 = vld [vmem:[%s405] sm:$0xff]
  %407 = vrot.lane.b32.xlu0 %v406, 112
  %v408 = vpop.permute.xlu0 %407
  %vm409 = vcmask 64512
  %s410 = scalar_lea.vmem %s1, 258
  %411 = vst.msk [vmem:[%s410] ss:$16 sm:$0x3] %vm409, %v408
  %s412 = scalar_lea.vmem %s1, 258
  %413 = vst.msk [vmem:[%s412] ss:$16 sm:$0xc] %vm409, %v408
  %s414 = scalar_lea.vmem %s1, 258
  %415 = vst.msk [vmem:[%s414] ss:$16 sm:$0x30] %vm409, %v408
  %s416 = scalar_lea.vmem %s1, 258
  %417 = vst.msk [vmem:[%s416] ss:$16 sm:$0xc0] %vm409, %v408
  %s418 = scalar_lea.vmem %s0, 24
  %v419 = vld [vmem:[%s418] sm:$0xff]
  %420 = vrot.lane.b32.xlu0 %v419, 112
  %v421 = vpop.permute.xlu0 %420
  %vm422 = vcmask 64512
  %s423 = scalar_lea.vmem %s1, 386
  %424 = vst.msk [vmem:[%s423] ss:$16 sm:$0x3] %vm422, %v421
  %s425 = scalar_lea.vmem %s1, 386
  %426 = vst.msk [vmem:[%s425] ss:$16 sm:$0xc] %vm422, %v421
  %s427 = scalar_lea.vmem %s1, 386
  %428 = vst.msk [vmem:[%s427] ss:$16 sm:$0x30] %vm422, %v421
  %s429 = scalar_lea.vmem %s1, 386
  %430 = vst.msk [vmem:[%s429] ss:$16 sm:$0xc0] %vm422, %v421
  %s431 = scalar_lea.vmem %s0, 32
  %v432 = vld [vmem:[%s431] sm:$0xff]
  %433 = vrot.lane.b32.xlu0 %v432, 112
  %v434 = vpop.permute.xlu0 %433
  %vm435 = vcmask 64512
  %s436 = scalar_lea.vmem %s1, 514
  %437 = vst.msk [vmem:[%s436] ss:$16 sm:$0x3] %vm435, %v434
  %s438 = scalar_lea.vmem %s1, 514
  %439 = vst.msk [vmem:[%s438] ss:$16 sm:$0xc] %vm435, %v434
  %s440 = scalar_lea.vmem %s1, 514
  %441 = vst.msk [vmem:[%s440] ss:$16 sm:$0x30] %vm435, %v434
  %s442 = scalar_lea.vmem %s1, 514
  %443 = vst.msk [vmem:[%s442] ss:$16 sm:$0xc0] %vm435, %v434
  %s444 = scalar_lea.vmem %s0, 40
  %v445 = vld [vmem:[%s444] sm:$0xff]
  %446 = vrot.lane.b32.xlu0 %v445, 112
  %v447 = vpop.permute.xlu0 %446
  %vm448 = vcmask 64512
  %s449 = scalar_lea.vmem %s1, 642
  %450 = vst.msk [vmem:[%s449] ss:$16 sm:$0x3] %vm448, %v447
  %s451 = scalar_lea.vmem %s1, 642
  %452 = vst.msk [vmem:[%s451] ss:$16 sm:$0xc] %vm448, %v447
  %s453 = scalar_lea.vmem %s1, 642
  %454 = vst.msk [vmem:[%s453] ss:$16 sm:$0x30] %vm448, %v447
  %s455 = scalar_lea.vmem %s1, 642
  %456 = vst.msk [vmem:[%s455] ss:$16 sm:$0xc0] %vm448, %v447
  %s457 = scalar_lea.vmem %s0, 48
  %v458 = vld [vmem:[%s457] sm:$0xff]
  %459 = vrot.lane.b32.xlu0 %v458, 112
  %v460 = vpop.permute.xlu0 %459
  %vm461 = vcmask 64512
  %s462 = scalar_lea.vmem %s1, 770
  %463 = vst.msk [vmem:[%s462] ss:$16 sm:$0x3] %vm461, %v460
  %s464 = scalar_lea.vmem %s1, 770
  %465 = vst.msk [vmem:[%s464] ss:$16 sm:$0xc] %vm461, %v460
  %s466 = scalar_lea.vmem %s1, 770
  %467 = vst.msk [vmem:[%s466] ss:$16 sm:$0x30] %vm461, %v460
  %s468 = scalar_lea.vmem %s1, 770
  %469 = vst.msk [vmem:[%s468] ss:$16 sm:$0xc0] %vm461, %v460
  %s470 = scalar_lea.vmem %s0, 56
  %v471 = vld [vmem:[%s470] sm:$0xff]
  %472 = vrot.lane.b32.xlu0 %v471, 112
  %v473 = vpop.permute.xlu0 %472
  %vm474 = vcmask 64512
  %s475 = scalar_lea.vmem %s1, 898
  %476 = vst.msk [vmem:[%s475] ss:$16 sm:$0x3] %vm474, %v473
  %s477 = scalar_lea.vmem %s1, 898
  %478 = vst.msk [vmem:[%s477] ss:$16 sm:$0xc] %vm474, %v473
  %s479 = scalar_lea.vmem %s1, 898
  %480 = vst.msk [vmem:[%s479] ss:$16 sm:$0x30] %vm474, %v473
  %s481 = scalar_lea.vmem %s1, 898
  %482 = vst.msk [vmem:[%s481] ss:$16 sm:$0xc0] %vm474, %v473
  %s483 = scalar_lea.vmem %s0, 64
  %v484 = vld [vmem:[%s483] sm:$0xff]
  %485 = vrot.lane.b32.xlu0 %v484, 112
  %v486 = vpop.permute.xlu0 %485
  %vm487 = vcmask 64512
  %s488 = scalar_lea.vmem %s1, 1026
  %489 = vst.msk [vmem:[%s488] ss:$16 sm:$0x3] %vm487, %v486
  %s490 = scalar_lea.vmem %s1, 1026
  %491 = vst.msk [vmem:[%s490] ss:$16 sm:$0xc] %vm487, %v486
  %s492 = scalar_lea.vmem %s1, 1026
  %493 = vst.msk [vmem:[%s492] ss:$16 sm:$0x30] %vm487, %v486
  %s494 = scalar_lea.vmem %s1, 1026
  %495 = vst.msk [vmem:[%s494] ss:$16 sm:$0xc0] %vm487, %v486
  %s496 = scalar_lea.vmem %s0, 72
  %v497 = vld [vmem:[%s496] sm:$0xff]
  %498 = vrot.lane.b32.xlu0 %v497, 112
  %v499 = vpop.permute.xlu0 %498
  %vm500 = vcmask 64512
  %s501 = scalar_lea.vmem %s1, 1154
  %502 = vst.msk [vmem:[%s501] ss:$16 sm:$0x3] %vm500, %v499
  %s503 = scalar_lea.vmem %s1, 1154
  %504 = vst.msk [vmem:[%s503] ss:$16 sm:$0xc] %vm500, %v499
  %s505 = scalar_lea.vmem %s1, 1154
  %506 = vst.msk [vmem:[%s505] ss:$16 sm:$0x30] %vm500, %v499
  %s507 = scalar_lea.vmem %s1, 1154
  %508 = vst.msk [vmem:[%s507] ss:$16 sm:$0xc0] %vm500, %v499
  %s509 = scalar_lea.vmem %s0, 80
  %v510 = vld [vmem:[%s509] sm:$0xff]
  %511 = vrot.lane.b32.xlu0 %v510, 112
  %v512 = vpop.permute.xlu0 %511
  %vm513 = vcmask 64512
  %s514 = scalar_lea.vmem %s1, 1282
  %515 = vst.msk [vmem:[%s514] ss:$16 sm:$0x3] %vm513, %v512
  %s516 = scalar_lea.vmem %s1, 1282
  %517 = vst.msk [vmem:[%s516] ss:$16 sm:$0xc] %vm513, %v512
  %s518 = scalar_lea.vmem %s1, 1282
  %519 = vst.msk [vmem:[%s518] ss:$16 sm:$0x30] %vm513, %v512
  %s520 = scalar_lea.vmem %s1, 1282
  %521 = vst.msk [vmem:[%s520] ss:$16 sm:$0xc0] %vm513, %v512
  %s522 = scalar_lea.vmem %s0, 88
  %v523 = vld [vmem:[%s522] sm:$0xff]
  %524 = vrot.lane.b32.xlu0 %v523, 112
  %v525 = vpop.permute.xlu0 %524
  %vm526 = vcmask 64512
  %s527 = scalar_lea.vmem %s1, 1410
  %528 = vst.msk [vmem:[%s527] ss:$16 sm:$0x3] %vm526, %v525
  %s529 = scalar_lea.vmem %s1, 1410
  %530 = vst.msk [vmem:[%s529] ss:$16 sm:$0xc] %vm526, %v525
  %s531 = scalar_lea.vmem %s1, 1410
  %532 = vst.msk [vmem:[%s531] ss:$16 sm:$0x30] %vm526, %v525
  %s533 = scalar_lea.vmem %s1, 1410
  %534 = vst.msk [vmem:[%s533] ss:$16 sm:$0xc0] %vm526, %v525
  %s535 = scalar_lea.vmem %s0, 96
  %v536 = vld [vmem:[%s535] sm:$0xff]
  %537 = vrot.lane.b32.xlu0 %v536, 112
  %v538 = vpop.permute.xlu0 %537
  %vm539 = vcmask 64512
  %s540 = scalar_lea.vmem %s1, 1538
  %541 = vst.msk [vmem:[%s540] ss:$16 sm:$0x3] %vm539, %v538
  %s542 = scalar_lea.vmem %s1, 1538
  %543 = vst.msk [vmem:[%s542] ss:$16 sm:$0xc] %vm539, %v538
  %s544 = scalar_lea.vmem %s1, 1538
  %545 = vst.msk [vmem:[%s544] ss:$16 sm:$0x30] %vm539, %v538
  %s546 = scalar_lea.vmem %s1, 1538
  %547 = vst.msk [vmem:[%s546] ss:$16 sm:$0xc0] %vm539, %v538
  %s548 = scalar_lea.vmem %s0, 104
  %v549 = vld [vmem:[%s548] sm:$0xff]
  %550 = vrot.lane.b32.xlu0 %v549, 112
  %v551 = vpop.permute.xlu0 %550
  %vm552 = vcmask 64512
  %s553 = scalar_lea.vmem %s1, 1666
  %554 = vst.msk [vmem:[%s553] ss:$16 sm:$0x3] %vm552, %v551
  %s555 = scalar_lea.vmem %s1, 1666
  %556 = vst.msk [vmem:[%s555] ss:$16 sm:$0xc] %vm552, %v551
  %s557 = scalar_lea.vmem %s1, 1666
  %558 = vst.msk [vmem:[%s557] ss:$16 sm:$0x30] %vm552, %v551
  %s559 = scalar_lea.vmem %s1, 1666
  %560 = vst.msk [vmem:[%s559] ss:$16 sm:$0xc0] %vm552, %v551
  %s561 = scalar_lea.vmem %s0, 112
  %v562 = vld [vmem:[%s561] sm:$0xff]
  %563 = vrot.lane.b32.xlu0 %v562, 112
  %v564 = vpop.permute.xlu0 %563
  %vm565 = vcmask 64512
  %s566 = scalar_lea.vmem %s1, 1794
  %567 = vst.msk [vmem:[%s566] ss:$16 sm:$0x3] %vm565, %v564
  %s568 = scalar_lea.vmem %s1, 1794
  %569 = vst.msk [vmem:[%s568] ss:$16 sm:$0xc] %vm565, %v564
  %s570 = scalar_lea.vmem %s1, 1794
  %571 = vst.msk [vmem:[%s570] ss:$16 sm:$0x30] %vm565, %v564
  %s572 = scalar_lea.vmem %s1, 1794
  %573 = vst.msk [vmem:[%s572] ss:$16 sm:$0xc0] %vm565, %v564
  %s574 = scalar_lea.vmem %s0, 120
  %v575 = vld [vmem:[%s574] sm:$0xff]
  %576 = vrot.lane.b32.xlu0 %v575, 112
  %v577 = vpop.permute.xlu0 %576
  %vm578 = vcmask 64512
  %s579 = scalar_lea.vmem %s1, 1922
  %580 = vst.msk [vmem:[%s579] ss:$16 sm:$0x3] %vm578, %v577
  %s581 = scalar_lea.vmem %s1, 1922
  %582 = vst.msk [vmem:[%s581] ss:$16 sm:$0xc] %vm578, %v577
  %s583 = scalar_lea.vmem %s1, 1922
  %584 = vst.msk [vmem:[%s583] ss:$16 sm:$0x30] %vm578, %v577
  %s585 = scalar_lea.vmem %s1, 1922
  %586 = vst.msk [vmem:[%s585] ss:$16 sm:$0xc0] %vm578, %v577
  %v587 = vld [vmem:[%s0] sm:$0xff]
  %588 = vrot.lane.b32.xlu0 %v587, 104
  %v589 = vpop.permute.xlu0 %588
  %vm590 = vcmask 64512
  %s591 = scalar_lea.vmem %s1, 3
  %592 = vst.msk [vmem:[%s591] ss:$16 sm:$0x3] %vm590, %v589
  %s593 = scalar_lea.vmem %s1, 3
  %594 = vst.msk [vmem:[%s593] ss:$16 sm:$0xc] %vm590, %v589
  %s595 = scalar_lea.vmem %s1, 3
  %596 = vst.msk [vmem:[%s595] ss:$16 sm:$0x30] %vm590, %v589
  %s597 = scalar_lea.vmem %s1, 3
  %598 = vst.msk [vmem:[%s597] ss:$16 sm:$0xc0] %vm590, %v589
  %s599 = scalar_lea.vmem %s0, 8
  %v600 = vld [vmem:[%s599] sm:$0xff]
  %601 = vrot.lane.b32.xlu0 %v600, 104
  %v602 = vpop.permute.xlu0 %601
  %vm603 = vcmask 64512
  %s604 = scalar_lea.vmem %s1, 131
  %605 = vst.msk [vmem:[%s604] ss:$16 sm:$0x3] %vm603, %v602
  %s606 = scalar_lea.vmem %s1, 131
  %607 = vst.msk [vmem:[%s606] ss:$16 sm:$0xc] %vm603, %v602
  %s608 = scalar_lea.vmem %s1, 131
  %609 = vst.msk [vmem:[%s608] ss:$16 sm:$0x30] %vm603, %v602
  %s610 = scalar_lea.vmem %s1, 131
  %611 = vst.msk [vmem:[%s610] ss:$16 sm:$0xc0] %vm603, %v602
  %s612 = scalar_lea.vmem %s0, 16
  %v613 = vld [vmem:[%s612] sm:$0xff]
  %614 = vrot.lane.b32.xlu0 %v613, 104
  %v615 = vpop.permute.xlu0 %614
  %vm616 = vcmask 64512
  %s617 = scalar_lea.vmem %s1, 259
  %618 = vst.msk [vmem:[%s617] ss:$16 sm:$0x3] %vm616, %v615
  %s619 = scalar_lea.vmem %s1, 259
  %620 = vst.msk [vmem:[%s619] ss:$16 sm:$0xc] %vm616, %v615
  %s621 = scalar_lea.vmem %s1, 259
  %622 = vst.msk [vmem:[%s621] ss:$16 sm:$0x30] %vm616, %v615
  %s623 = scalar_lea.vmem %s1, 259
  %624 = vst.msk [vmem:[%s623] ss:$16 sm:$0xc0] %vm616, %v615
  %s625 = scalar_lea.vmem %s0, 24
  %v626 = vld [vmem:[%s625] sm:$0xff]
  %627 = vrot.lane.b32.xlu0 %v626, 104
  %v628 = vpop.permute.xlu0 %627
  %vm629 = vcmask 64512
  %s630 = scalar_lea.vmem %s1, 387
  %631 = vst.msk [vmem:[%s630] ss:$16 sm:$0x3] %vm629, %v628
  %s632 = scalar_lea.vmem %s1, 387
  %633 = vst.msk [vmem:[%s632] ss:$16 sm:$0xc] %vm629, %v628
  %s634 = scalar_lea.vmem %s1, 387
  %635 = vst.msk [vmem:[%s634] ss:$16 sm:$0x30] %vm629, %v628
  %s636 = scalar_lea.vmem %s1, 387
  %637 = vst.msk [vmem:[%s636] ss:$16 sm:$0xc0] %vm629, %v628
  %s638 = scalar_lea.vmem %s0, 32
  %v639 = vld [vmem:[%s638] sm:$0xff]
  %640 = vrot.lane.b32.xlu0 %v639, 104
  %v641 = vpop.permute.xlu0 %640
  %vm642 = vcmask 64512
  %s643 = scalar_lea.vmem %s1, 515
  %644 = vst.msk [vmem:[%s643] ss:$16 sm:$0x3] %vm642, %v641
  %s645 = scalar_lea.vmem %s1, 515
  %646 = vst.msk [vmem:[%s645] ss:$16 sm:$0xc] %vm642, %v641
  %s647 = scalar_lea.vmem %s1, 515
  %648 = vst.msk [vmem:[%s647] ss:$16 sm:$0x30] %vm642, %v641
  %s649 = scalar_lea.vmem %s1, 515
  %650 = vst.msk [vmem:[%s649] ss:$16 sm:$0xc0] %vm642, %v641
  %s651 = scalar_lea.vmem %s0, 40
  %v652 = vld [vmem:[%s651] sm:$0xff]
  %653 = vrot.lane.b32.xlu0 %v652, 104
  %v654 = vpop.permute.xlu0 %653
  %vm655 = vcmask 64512
  %s656 = scalar_lea.vmem %s1, 643
  %657 = vst.msk [vmem:[%s656] ss:$16 sm:$0x3] %vm655, %v654
  %s658 = scalar_lea.vmem %s1, 643
  %659 = vst.msk [vmem:[%s658] ss:$16 sm:$0xc] %vm655, %v654
  %s660 = scalar_lea.vmem %s1, 643
  %661 = vst.msk [vmem:[%s660] ss:$16 sm:$0x30] %vm655, %v654
  %s662 = scalar_lea.vmem %s1, 643
  %663 = vst.msk [vmem:[%s662] ss:$16 sm:$0xc0] %vm655, %v654
  %s664 = scalar_lea.vmem %s0, 48
  %v665 = vld [vmem:[%s664] sm:$0xff]
  %666 = vrot.lane.b32.xlu0 %v665, 104
  %v667 = vpop.permute.xlu0 %666
  %vm668 = vcmask 64512
  %s669 = scalar_lea.vmem %s1, 771
  %670 = vst.msk [vmem:[%s669] ss:$16 sm:$0x3] %vm668, %v667
  %s671 = scalar_lea.vmem %s1, 771
  %672 = vst.msk [vmem:[%s671] ss:$16 sm:$0xc] %vm668, %v667
  %s673 = scalar_lea.vmem %s1, 771
  %674 = vst.msk [vmem:[%s673] ss:$16 sm:$0x30] %vm668, %v667
  %s675 = scalar_lea.vmem %s1, 771
  %676 = vst.msk [vmem:[%s675] ss:$16 sm:$0xc0] %vm668, %v667
  %s677 = scalar_lea.vmem %s0, 56
  %v678 = vld [vmem:[%s677] sm:$0xff]
  %679 = vrot.lane.b32.xlu0 %v678, 104
  %v680 = vpop.permute.xlu0 %679
  %vm681 = vcmask 64512
  %s682 = scalar_lea.vmem %s1, 899
  %683 = vst.msk [vmem:[%s682] ss:$16 sm:$0x3] %vm681, %v680
  %s684 = scalar_lea.vmem %s1, 899
  %685 = vst.msk [vmem:[%s684] ss:$16 sm:$0xc] %vm681, %v680
  %s686 = scalar_lea.vmem %s1, 899
  %687 = vst.msk [vmem:[%s686] ss:$16 sm:$0x30] %vm681, %v680
  %s688 = scalar_lea.vmem %s1, 899
  %689 = vst.msk [vmem:[%s688] ss:$16 sm:$0xc0] %vm681, %v680
  %s690 = scalar_lea.vmem %s0, 64
  %v691 = vld [vmem:[%s690] sm:$0xff]
  %692 = vrot.lane.b32.xlu0 %v691, 104
  %v693 = vpop.permute.xlu0 %692
  %vm694 = vcmask 64512
  %s695 = scalar_lea.vmem %s1, 1027
  %696 = vst.msk [vmem:[%s695] ss:$16 sm:$0x3] %vm694, %v693
  %s697 = scalar_lea.vmem %s1, 1027
  %698 = vst.msk [vmem:[%s697] ss:$16 sm:$0xc] %vm694, %v693
  %s699 = scalar_lea.vmem %s1, 1027
  %700 = vst.msk [vmem:[%s699] ss:$16 sm:$0x30] %vm694, %v693
  %s701 = scalar_lea.vmem %s1, 1027
  %702 = vst.msk [vmem:[%s701] ss:$16 sm:$0xc0] %vm694, %v693
  %s703 = scalar_lea.vmem %s0, 72
  %v704 = vld [vmem:[%s703] sm:$0xff]
  %705 = vrot.lane.b32.xlu0 %v704, 104
  %v706 = vpop.permute.xlu0 %705
  %vm707 = vcmask 64512
  %s708 = scalar_lea.vmem %s1, 1155
  %709 = vst.msk [vmem:[%s708] ss:$16 sm:$0x3] %vm707, %v706
  %s710 = scalar_lea.vmem %s1, 1155
  %711 = vst.msk [vmem:[%s710] ss:$16 sm:$0xc] %vm707, %v706
  %s712 = scalar_lea.vmem %s1, 1155
  %713 = vst.msk [vmem:[%s712] ss:$16 sm:$0x30] %vm707, %v706
  %s714 = scalar_lea.vmem %s1, 1155
  %715 = vst.msk [vmem:[%s714] ss:$16 sm:$0xc0] %vm707, %v706
  %s716 = scalar_lea.vmem %s0, 80
  %v717 = vld [vmem:[%s716] sm:$0xff]
  %718 = vrot.lane.b32.xlu0 %v717, 104
  %v719 = vpop.permute.xlu0 %718
  %vm720 = vcmask 64512
  %s721 = scalar_lea.vmem %s1, 1283
  %722 = vst.msk [vmem:[%s721] ss:$16 sm:$0x3] %vm720, %v719
  %s723 = scalar_lea.vmem %s1, 1283
  %724 = vst.msk [vmem:[%s723] ss:$16 sm:$0xc] %vm720, %v719
  %s725 = scalar_lea.vmem %s1, 1283
  %726 = vst.msk [vmem:[%s725] ss:$16 sm:$0x30] %vm720, %v719
  %s727 = scalar_lea.vmem %s1, 1283
  %728 = vst.msk [vmem:[%s727] ss:$16 sm:$0xc0] %vm720, %v719
  %s729 = scalar_lea.vmem %s0, 88
  %v730 = vld [vmem:[%s729] sm:$0xff]
  %731 = vrot.lane.b32.xlu0 %v730, 104
  %v732 = vpop.permute.xlu0 %731
  %vm733 = vcmask 64512
  %s734 = scalar_lea.vmem %s1, 1411
  %735 = vst.msk [vmem:[%s734] ss:$16 sm:$0x3] %vm733, %v732
  %s736 = scalar_lea.vmem %s1, 1411
  %737 = vst.msk [vmem:[%s736] ss:$16 sm:$0xc] %vm733, %v732
  %s738 = scalar_lea.vmem %s1, 1411
  %739 = vst.msk [vmem:[%s738] ss:$16 sm:$0x30] %vm733, %v732
  %s740 = scalar_lea.vmem %s1, 1411
  %741 = vst.msk [vmem:[%s740] ss:$16 sm:$0xc0] %vm733, %v732
  %s742 = scalar_lea.vmem %s0, 96
  %v743 = vld [vmem:[%s742] sm:$0xff]
  %744 = vrot.lane.b32.xlu0 %v743, 104
  %v745 = vpop.permute.xlu0 %744
  %vm746 = vcmask 64512
  %s747 = scalar_lea.vmem %s1, 1539
  %748 = vst.msk [vmem:[%s747] ss:$16 sm:$0x3] %vm746, %v745
  %s749 = scalar_lea.vmem %s1, 1539
  %750 = vst.msk [vmem:[%s749] ss:$16 sm:$0xc] %vm746, %v745
  %s751 = scalar_lea.vmem %s1, 1539
  %752 = vst.msk [vmem:[%s751] ss:$16 sm:$0x30] %vm746, %v745
  %s753 = scalar_lea.vmem %s1, 1539
  %754 = vst.msk [vmem:[%s753] ss:$16 sm:$0xc0] %vm746, %v745
  %s755 = scalar_lea.vmem %s0, 104
  %v756 = vld [vmem:[%s755] sm:$0xff]
  %757 = vrot.lane.b32.xlu0 %v756, 104
  %v758 = vpop.permute.xlu0 %757
  %vm759 = vcmask 64512
  %s760 = scalar_lea.vmem %s1, 1667
  %761 = vst.msk [vmem:[%s760] ss:$16 sm:$0x3] %vm759, %v758
  %s762 = scalar_lea.vmem %s1, 1667
  %763 = vst.msk [vmem:[%s762] ss:$16 sm:$0xc] %vm759, %v758
  %s764 = scalar_lea.vmem %s1, 1667
  %765 = vst.msk [vmem:[%s764] ss:$16 sm:$0x30] %vm759, %v758
  %s766 = scalar_lea.vmem %s1, 1667
  %767 = vst.msk [vmem:[%s766] ss:$16 sm:$0xc0] %vm759, %v758
  %s768 = scalar_lea.vmem %s0, 112
  %v769 = vld [vmem:[%s768] sm:$0xff]
  %770 = vrot.lane.b32.xlu0 %v769, 104
  %v771 = vpop.permute.xlu0 %770
  %vm772 = vcmask 64512
  %s773 = scalar_lea.vmem %s1, 1795
  %774 = vst.msk [vmem:[%s773] ss:$16 sm:$0x3] %vm772, %v771
  %s775 = scalar_lea.vmem %s1, 1795
  %776 = vst.msk [vmem:[%s775] ss:$16 sm:$0xc] %vm772, %v771
  %s777 = scalar_lea.vmem %s1, 1795
  %778 = vst.msk [vmem:[%s777] ss:$16 sm:$0x30] %vm772, %v771
  %s779 = scalar_lea.vmem %s1, 1795
  %780 = vst.msk [vmem:[%s779] ss:$16 sm:$0xc0] %vm772, %v771
  %s781 = scalar_lea.vmem %s0, 120
  %v782 = vld [vmem:[%s781] sm:$0xff]
  %783 = vrot.lane.b32.xlu0 %v782, 104
  %v784 = vpop.permute.xlu0 %783
  %vm785 = vcmask 64512
  %s786 = scalar_lea.vmem %s1, 1923
  %787 = vst.msk [vmem:[%s786] ss:$16 sm:$0x3] %vm785, %v784
  %s788 = scalar_lea.vmem %s1, 1923
  %789 = vst.msk [vmem:[%s788] ss:$16 sm:$0xc] %vm785, %v784
  %s790 = scalar_lea.vmem %s1, 1923
  %791 = vst.msk [vmem:[%s790] ss:$16 sm:$0x30] %vm785, %v784
  %s792 = scalar_lea.vmem %s1, 1923
  %793 = vst.msk [vmem:[%s792] ss:$16 sm:$0xc0] %vm785, %v784
  %v794 = vld [vmem:[%s0] sm:$0xff]
  %795 = vrot.lane.b32.xlu0 %v794, 96
  %v796 = vpop.permute.xlu0 %795
  %vm797 = vcmask 64512
  %s798 = scalar_lea.vmem %s1, 4
  %799 = vst.msk [vmem:[%s798] ss:$16 sm:$0x3] %vm797, %v796
  %s800 = scalar_lea.vmem %s1, 4
  %801 = vst.msk [vmem:[%s800] ss:$16 sm:$0xc] %vm797, %v796
  %s802 = scalar_lea.vmem %s1, 4
  %803 = vst.msk [vmem:[%s802] ss:$16 sm:$0x30] %vm797, %v796
  %s804 = scalar_lea.vmem %s1, 4
  %805 = vst.msk [vmem:[%s804] ss:$16 sm:$0xc0] %vm797, %v796
  %s806 = scalar_lea.vmem %s0, 8
  %v807 = vld [vmem:[%s806] sm:$0xff]
  %808 = vrot.lane.b32.xlu0 %v807, 96
  %v809 = vpop.permute.xlu0 %808
  %vm810 = vcmask 64512
  %s811 = scalar_lea.vmem %s1, 132
  %812 = vst.msk [vmem:[%s811] ss:$16 sm:$0x3] %vm810, %v809
  %s813 = scalar_lea.vmem %s1, 132
  %814 = vst.msk [vmem:[%s813] ss:$16 sm:$0xc] %vm810, %v809
  %s815 = scalar_lea.vmem %s1, 132
  %816 = vst.msk [vmem:[%s815] ss:$16 sm:$0x30] %vm810, %v809
  %s817 = scalar_lea.vmem %s1, 132
  %818 = vst.msk [vmem:[%s817] ss:$16 sm:$0xc0] %vm810, %v809
  %s819 = scalar_lea.vmem %s0, 16
  %v820 = vld [vmem:[%s819] sm:$0xff]
  %821 = vrot.lane.b32.xlu0 %v820, 96
  %v822 = vpop.permute.xlu0 %821
  %vm823 = vcmask 64512
  %s824 = scalar_lea.vmem %s1, 260
  %825 = vst.msk [vmem:[%s824] ss:$16 sm:$0x3] %vm823, %v822
  %s826 = scalar_lea.vmem %s1, 260
  %827 = vst.msk [vmem:[%s826] ss:$16 sm:$0xc] %vm823, %v822
  %s828 = scalar_lea.vmem %s1, 260
  %829 = vst.msk [vmem:[%s828] ss:$16 sm:$0x30] %vm823, %v822
  %s830 = scalar_lea.vmem %s1, 260
  %831 = vst.msk [vmem:[%s830] ss:$16 sm:$0xc0] %vm823, %v822
  %s832 = scalar_lea.vmem %s0, 24
  %v833 = vld [vmem:[%s832] sm:$0xff]
  %834 = vrot.lane.b32.xlu0 %v833, 96
  %v835 = vpop.permute.xlu0 %834
  %vm836 = vcmask 64512
  %s837 = scalar_lea.vmem %s1, 388
  %838 = vst.msk [vmem:[%s837] ss:$16 sm:$0x3] %vm836, %v835
  %s839 = scalar_lea.vmem %s1, 388
  %840 = vst.msk [vmem:[%s839] ss:$16 sm:$0xc] %vm836, %v835
  %s841 = scalar_lea.vmem %s1, 388
  %842 = vst.msk [vmem:[%s841] ss:$16 sm:$0x30] %vm836, %v835
  %s843 = scalar_lea.vmem %s1, 388
  %844 = vst.msk [vmem:[%s843] ss:$16 sm:$0xc0] %vm836, %v835
  %s845 = scalar_lea.vmem %s0, 32
  %v846 = vld [vmem:[%s845] sm:$0xff]
  %847 = vrot.lane.b32.xlu0 %v846, 96
  %v848 = vpop.permute.xlu0 %847
  %vm849 = vcmask 64512
  %s850 = scalar_lea.vmem %s1, 516
  %851 = vst.msk [vmem:[%s850] ss:$16 sm:$0x3] %vm849, %v848
  %s852 = scalar_lea.vmem %s1, 516
  %853 = vst.msk [vmem:[%s852] ss:$16 sm:$0xc] %vm849, %v848
  %s854 = scalar_lea.vmem %s1, 516
  %855 = vst.msk [vmem:[%s854] ss:$16 sm:$0x30] %vm849, %v848
  %s856 = scalar_lea.vmem %s1, 516
  %857 = vst.msk [vmem:[%s856] ss:$16 sm:$0xc0] %vm849, %v848
  %s858 = scalar_lea.vmem %s0, 40
  %v859 = vld [vmem:[%s858] sm:$0xff]
  %860 = vrot.lane.b32.xlu0 %v859, 96
  %v861 = vpop.permute.xlu0 %860
  %vm862 = vcmask 64512
  %s863 = scalar_lea.vmem %s1, 644
  %864 = vst.msk [vmem:[%s863] ss:$16 sm:$0x3] %vm862, %v861
  %s865 = scalar_lea.vmem %s1, 644
  %866 = vst.msk [vmem:[%s865] ss:$16 sm:$0xc] %vm862, %v861
  %s867 = scalar_lea.vmem %s1, 644
  %868 = vst.msk [vmem:[%s867] ss:$16 sm:$0x30] %vm862, %v861
  %s869 = scalar_lea.vmem %s1, 644
  %870 = vst.msk [vmem:[%s869] ss:$16 sm:$0xc0] %vm862, %v861
  %s871 = scalar_lea.vmem %s0, 48
  %v872 = vld [vmem:[%s871] sm:$0xff]
  %873 = vrot.lane.b32.xlu0 %v872, 96
  %v874 = vpop.permute.xlu0 %873
  %vm875 = vcmask 64512
  %s876 = scalar_lea.vmem %s1, 772
  %877 = vst.msk [vmem:[%s876] ss:$16 sm:$0x3] %vm875, %v874
  %s878 = scalar_lea.vmem %s1, 772
  %879 = vst.msk [vmem:[%s878] ss:$16 sm:$0xc] %vm875, %v874
  %s880 = scalar_lea.vmem %s1, 772
  %881 = vst.msk [vmem:[%s880] ss:$16 sm:$0x30] %vm875, %v874
  %s882 = scalar_lea.vmem %s1, 772
  %883 = vst.msk [vmem:[%s882] ss:$16 sm:$0xc0] %vm875, %v874
  %s884 = scalar_lea.vmem %s0, 56
  %v885 = vld [vmem:[%s884] sm:$0xff]
  %886 = vrot.lane.b32.xlu0 %v885, 96
  %v887 = vpop.permute.xlu0 %886
  %vm888 = vcmask 64512
  %s889 = scalar_lea.vmem %s1, 900
  %890 = vst.msk [vmem:[%s889] ss:$16 sm:$0x3] %vm888, %v887
  %s891 = scalar_lea.vmem %s1, 900
  %892 = vst.msk [vmem:[%s891] ss:$16 sm:$0xc] %vm888, %v887
  %s893 = scalar_lea.vmem %s1, 900
  %894 = vst.msk [vmem:[%s893] ss:$16 sm:$0x30] %vm888, %v887
  %s895 = scalar_lea.vmem %s1, 900
  %896 = vst.msk [vmem:[%s895] ss:$16 sm:$0xc0] %vm888, %v887
  %s897 = scalar_lea.vmem %s0, 64
  %v898 = vld [vmem:[%s897] sm:$0xff]
  %899 = vrot.lane.b32.xlu0 %v898, 96
  %v900 = vpop.permute.xlu0 %899
  %vm901 = vcmask 64512
  %s902 = scalar_lea.vmem %s1, 1028
  %903 = vst.msk [vmem:[%s902] ss:$16 sm:$0x3] %vm901, %v900
  %s904 = scalar_lea.vmem %s1, 1028
  %905 = vst.msk [vmem:[%s904] ss:$16 sm:$0xc] %vm901, %v900
  %s906 = scalar_lea.vmem %s1, 1028
  %907 = vst.msk [vmem:[%s906] ss:$16 sm:$0x30] %vm901, %v900
  %s908 = scalar_lea.vmem %s1, 1028
  %909 = vst.msk [vmem:[%s908] ss:$16 sm:$0xc0] %vm901, %v900
  %s910 = scalar_lea.vmem %s0, 72
  %v911 = vld [vmem:[%s910] sm:$0xff]
  %912 = vrot.lane.b32.xlu0 %v911, 96
  %v913 = vpop.permute.xlu0 %912
  %vm914 = vcmask 64512
  %s915 = scalar_lea.vmem %s1, 1156
  %916 = vst.msk [vmem:[%s915] ss:$16 sm:$0x3] %vm914, %v913
  %s917 = scalar_lea.vmem %s1, 1156
  %918 = vst.msk [vmem:[%s917] ss:$16 sm:$0xc] %vm914, %v913
  %s919 = scalar_lea.vmem %s1, 1156
  %920 = vst.msk [vmem:[%s919] ss:$16 sm:$0x30] %vm914, %v913
  %s921 = scalar_lea.vmem %s1, 1156
  %922 = vst.msk [vmem:[%s921] ss:$16 sm:$0xc0] %vm914, %v913
  %s923 = scalar_lea.vmem %s0, 80
  %v924 = vld [vmem:[%s923] sm:$0xff]
  %925 = vrot.lane.b32.xlu0 %v924, 96
  %v926 = vpop.permute.xlu0 %925
  %vm927 = vcmask 64512
  %s928 = scalar_lea.vmem %s1, 1284
  %929 = vst.msk [vmem:[%s928] ss:$16 sm:$0x3] %vm927, %v926
  %s930 = scalar_lea.vmem %s1, 1284
  %931 = vst.msk [vmem:[%s930] ss:$16 sm:$0xc] %vm927, %v926
  %s932 = scalar_lea.vmem %s1, 1284
  %933 = vst.msk [vmem:[%s932] ss:$16 sm:$0x30] %vm927, %v926
  %s934 = scalar_lea.vmem %s1, 1284
  %935 = vst.msk [vmem:[%s934] ss:$16 sm:$0xc0] %vm927, %v926
  %s936 = scalar_lea.vmem %s0, 88
  %v937 = vld [vmem:[%s936] sm:$0xff]
  %938 = vrot.lane.b32.xlu0 %v937, 96
  %v939 = vpop.permute.xlu0 %938
  %vm940 = vcmask 64512
  %s941 = scalar_lea.vmem %s1, 1412
  %942 = vst.msk [vmem:[%s941] ss:$16 sm:$0x3] %vm940, %v939
  %s943 = scalar_lea.vmem %s1, 1412
  %944 = vst.msk [vmem:[%s943] ss:$16 sm:$0xc] %vm940, %v939
  %s945 = scalar_lea.vmem %s1, 1412
  %946 = vst.msk [vmem:[%s945] ss:$16 sm:$0x30] %vm940, %v939
  %s947 = scalar_lea.vmem %s1, 1412
  %948 = vst.msk [vmem:[%s947] ss:$16 sm:$0xc0] %vm940, %v939
  %s949 = scalar_lea.vmem %s0, 96
  %v950 = vld [vmem:[%s949] sm:$0xff]
  %951 = vrot.lane.b32.xlu0 %v950, 96
  %v952 = vpop.permute.xlu0 %951
  %vm953 = vcmask 64512
  %s954 = scalar_lea.vmem %s1, 1540
  %955 = vst.msk [vmem:[%s954] ss:$16 sm:$0x3] %vm953, %v952
  %s956 = scalar_lea.vmem %s1, 1540
  %957 = vst.msk [vmem:[%s956] ss:$16 sm:$0xc] %vm953, %v952
  %s958 = scalar_lea.vmem %s1, 1540
  %959 = vst.msk [vmem:[%s958] ss:$16 sm:$0x30] %vm953, %v952
  %s960 = scalar_lea.vmem %s1, 1540
  %961 = vst.msk [vmem:[%s960] ss:$16 sm:$0xc0] %vm953, %v952
  %s962 = scalar_lea.vmem %s0, 104
  %v963 = vld [vmem:[%s962] sm:$0xff]
  %964 = vrot.lane.b32.xlu0 %v963, 96
  %v965 = vpop.permute.xlu0 %964
  %vm966 = vcmask 64512
  %s967 = scalar_lea.vmem %s1, 1668
  %968 = vst.msk [vmem:[%s967] ss:$16 sm:$0x3] %vm966, %v965
  %s969 = scalar_lea.vmem %s1, 1668
  %970 = vst.msk [vmem:[%s969] ss:$16 sm:$0xc] %vm966, %v965
  %s971 = scalar_lea.vmem %s1, 1668
  %972 = vst.msk [vmem:[%s971] ss:$16 sm:$0x30] %vm966, %v965
  %s973 = scalar_lea.vmem %s1, 1668
  %974 = vst.msk [vmem:[%s973] ss:$16 sm:$0xc0] %vm966, %v965
  %s975 = scalar_lea.vmem %s0, 112
  %v976 = vld [vmem:[%s975] sm:$0xff]
  %977 = vrot.lane.b32.xlu0 %v976, 96
  %v978 = vpop.permute.xlu0 %977
  %vm979 = vcmask 64512
  %s980 = scalar_lea.vmem %s1, 1796
  %981 = vst.msk [vmem:[%s980] ss:$16 sm:$0x3] %vm979, %v978
  %s982 = scalar_lea.vmem %s1, 1796
  %983 = vst.msk [vmem:[%s982] ss:$16 sm:$0xc] %vm979, %v978
  %s984 = scalar_lea.vmem %s1, 1796
  %985 = vst.msk [vmem:[%s984] ss:$16 sm:$0x30] %vm979, %v978
  %s986 = scalar_lea.vmem %s1, 1796
  %987 = vst.msk [vmem:[%s986] ss:$16 sm:$0xc0] %vm979, %v978
  %s988 = scalar_lea.vmem %s0, 120
  %v989 = vld [vmem:[%s988] sm:$0xff]
  %990 = vrot.lane.b32.xlu0 %v989, 96
  %v991 = vpop.permute.xlu0 %990
  %vm992 = vcmask 64512
  %s993 = scalar_lea.vmem %s1, 1924
  %994 = vst.msk [vmem:[%s993] ss:$16 sm:$0x3] %vm992, %v991
  %s995 = scalar_lea.vmem %s1, 1924
  %996 = vst.msk [vmem:[%s995] ss:$16 sm:$0xc] %vm992, %v991
  %s997 = scalar_lea.vmem %s1, 1924
  %998 = vst.msk [vmem:[%s997] ss:$16 sm:$0x30] %vm992, %v991
  %s999 = scalar_lea.vmem %s1, 1924
  %1000 = vst.msk [vmem:[%s999] ss:$16 sm:$0xc0] %vm992, %v991
  %v1001 = vld [vmem:[%s0] sm:$0xff]
  %1002 = vrot.lane.b32.xlu0 %v1001, 88
  %v1003 = vpop.permute.xlu0 %1002
  %vm1004 = vcmask 64512
  %s1005 = scalar_lea.vmem %s1, 5
  %1006 = vst.msk [vmem:[%s1005] ss:$16 sm:$0x3] %vm1004, %v1003
  %s1007 = scalar_lea.vmem %s1, 5
  %1008 = vst.msk [vmem:[%s1007] ss:$16 sm:$0xc] %vm1004, %v1003
  %s1009 = scalar_lea.vmem %s1, 5
  %1010 = vst.msk [vmem:[%s1009] ss:$16 sm:$0x30] %vm1004, %v1003
  %s1011 = scalar_lea.vmem %s1, 5
  %1012 = vst.msk [vmem:[%s1011] ss:$16 sm:$0xc0] %vm1004, %v1003
  %s1013 = scalar_lea.vmem %s0, 8
  %v1014 = vld [vmem:[%s1013] sm:$0xff]
  %1015 = vrot.lane.b32.xlu0 %v1014, 88
  %v1016 = vpop.permute.xlu0 %1015
  %vm1017 = vcmask 64512
  %s1018 = scalar_lea.vmem %s1, 133
  %1019 = vst.msk [vmem:[%s1018] ss:$16 sm:$0x3] %vm1017, %v1016
  %s1020 = scalar_lea.vmem %s1, 133
  %1021 = vst.msk [vmem:[%s1020] ss:$16 sm:$0xc] %vm1017, %v1016
  %s1022 = scalar_lea.vmem %s1, 133
  %1023 = vst.msk [vmem:[%s1022] ss:$16 sm:$0x30] %vm1017, %v1016
  %s1024 = scalar_lea.vmem %s1, 133
  %1025 = vst.msk [vmem:[%s1024] ss:$16 sm:$0xc0] %vm1017, %v1016
  %s1026 = scalar_lea.vmem %s0, 16
  %v1027 = vld [vmem:[%s1026] sm:$0xff]
  %1028 = vrot.lane.b32.xlu0 %v1027, 88
  %v1029 = vpop.permute.xlu0 %1028
  %vm1030 = vcmask 64512
  %s1031 = scalar_lea.vmem %s1, 261
  %1032 = vst.msk [vmem:[%s1031] ss:$16 sm:$0x3] %vm1030, %v1029
  %s1033 = scalar_lea.vmem %s1, 261
  %1034 = vst.msk [vmem:[%s1033] ss:$16 sm:$0xc] %vm1030, %v1029
  %s1035 = scalar_lea.vmem %s1, 261
  %1036 = vst.msk [vmem:[%s1035] ss:$16 sm:$0x30] %vm1030, %v1029
  %s1037 = scalar_lea.vmem %s1, 261
  %1038 = vst.msk [vmem:[%s1037] ss:$16 sm:$0xc0] %vm1030, %v1029
  %s1039 = scalar_lea.vmem %s0, 24
  %v1040 = vld [vmem:[%s1039] sm:$0xff]
  %1041 = vrot.lane.b32.xlu0 %v1040, 88
  %v1042 = vpop.permute.xlu0 %1041
  %vm1043 = vcmask 64512
  %s1044 = scalar_lea.vmem %s1, 389
  %1045 = vst.msk [vmem:[%s1044] ss:$16 sm:$0x3] %vm1043, %v1042
  %s1046 = scalar_lea.vmem %s1, 389
  %1047 = vst.msk [vmem:[%s1046] ss:$16 sm:$0xc] %vm1043, %v1042
  %s1048 = scalar_lea.vmem %s1, 389
  %1049 = vst.msk [vmem:[%s1048] ss:$16 sm:$0x30] %vm1043, %v1042
  %s1050 = scalar_lea.vmem %s1, 389
  %1051 = vst.msk [vmem:[%s1050] ss:$16 sm:$0xc0] %vm1043, %v1042
  %s1052 = scalar_lea.vmem %s0, 32
  %v1053 = vld [vmem:[%s1052] sm:$0xff]
  %1054 = vrot.lane.b32.xlu0 %v1053, 88
  %v1055 = vpop.permute.xlu0 %1054
  %vm1056 = vcmask 64512
  %s1057 = scalar_lea.vmem %s1, 517
  %1058 = vst.msk [vmem:[%s1057] ss:$16 sm:$0x3] %vm1056, %v1055
  %s1059 = scalar_lea.vmem %s1, 517
  %1060 = vst.msk [vmem:[%s1059] ss:$16 sm:$0xc] %vm1056, %v1055
  %s1061 = scalar_lea.vmem %s1, 517
  %1062 = vst.msk [vmem:[%s1061] ss:$16 sm:$0x30] %vm1056, %v1055
  %s1063 = scalar_lea.vmem %s1, 517
  %1064 = vst.msk [vmem:[%s1063] ss:$16 sm:$0xc0] %vm1056, %v1055
  %s1065 = scalar_lea.vmem %s0, 40
  %v1066 = vld [vmem:[%s1065] sm:$0xff]
  %1067 = vrot.lane.b32.xlu0 %v1066, 88
  %v1068 = vpop.permute.xlu0 %1067
  %vm1069 = vcmask 64512
  %s1070 = scalar_lea.vmem %s1, 645
  %1071 = vst.msk [vmem:[%s1070] ss:$16 sm:$0x3] %vm1069, %v1068
  %s1072 = scalar_lea.vmem %s1, 645
  %1073 = vst.msk [vmem:[%s1072] ss:$16 sm:$0xc] %vm1069, %v1068
  %s1074 = scalar_lea.vmem %s1, 645
  %1075 = vst.msk [vmem:[%s1074] ss:$16 sm:$0x30] %vm1069, %v1068
  %s1076 = scalar_lea.vmem %s1, 645
  %1077 = vst.msk [vmem:[%s1076] ss:$16 sm:$0xc0] %vm1069, %v1068
  %s1078 = scalar_lea.vmem %s0, 48
  %v1079 = vld [vmem:[%s1078] sm:$0xff]
  %1080 = vrot.lane.b32.xlu0 %v1079, 88
  %v1081 = vpop.permute.xlu0 %1080
  %vm1082 = vcmask 64512
  %s1083 = scalar_lea.vmem %s1, 773
  %1084 = vst.msk [vmem:[%s1083] ss:$16 sm:$0x3] %vm1082, %v1081
  %s1085 = scalar_lea.vmem %s1, 773
  %1086 = vst.msk [vmem:[%s1085] ss:$16 sm:$0xc] %vm1082, %v1081
  %s1087 = scalar_lea.vmem %s1, 773
  %1088 = vst.msk [vmem:[%s1087] ss:$16 sm:$0x30] %vm1082, %v1081
  %s1089 = scalar_lea.vmem %s1, 773
  %1090 = vst.msk [vmem:[%s1089] ss:$16 sm:$0xc0] %vm1082, %v1081
  %s1091 = scalar_lea.vmem %s0, 56
  %v1092 = vld [vmem:[%s1091] sm:$0xff]
  %1093 = vrot.lane.b32.xlu0 %v1092, 88
  %v1094 = vpop.permute.xlu0 %1093
  %vm1095 = vcmask 64512
  %s1096 = scalar_lea.vmem %s1, 901
  %1097 = vst.msk [vmem:[%s1096] ss:$16 sm:$0x3] %vm1095, %v1094
  %s1098 = scalar_lea.vmem %s1, 901
  %1099 = vst.msk [vmem:[%s1098] ss:$16 sm:$0xc] %vm1095, %v1094
  %s1100 = scalar_lea.vmem %s1, 901
  %1101 = vst.msk [vmem:[%s1100] ss:$16 sm:$0x30] %vm1095, %v1094
  %s1102 = scalar_lea.vmem %s1, 901
  %1103 = vst.msk [vmem:[%s1102] ss:$16 sm:$0xc0] %vm1095, %v1094
  %s1104 = scalar_lea.vmem %s0, 64
  %v1105 = vld [vmem:[%s1104] sm:$0xff]
  %1106 = vrot.lane.b32.xlu0 %v1105, 88
  %v1107 = vpop.permute.xlu0 %1106
  %vm1108 = vcmask 64512
  %s1109 = scalar_lea.vmem %s1, 1029
  %1110 = vst.msk [vmem:[%s1109] ss:$16 sm:$0x3] %vm1108, %v1107
  %s1111 = scalar_lea.vmem %s1, 1029
  %1112 = vst.msk [vmem:[%s1111] ss:$16 sm:$0xc] %vm1108, %v1107
  %s1113 = scalar_lea.vmem %s1, 1029
  %1114 = vst.msk [vmem:[%s1113] ss:$16 sm:$0x30] %vm1108, %v1107
  %s1115 = scalar_lea.vmem %s1, 1029
  %1116 = vst.msk [vmem:[%s1115] ss:$16 sm:$0xc0] %vm1108, %v1107
  %s1117 = scalar_lea.vmem %s0, 72
  %v1118 = vld [vmem:[%s1117] sm:$0xff]
  %1119 = vrot.lane.b32.xlu0 %v1118, 88
  %v1120 = vpop.permute.xlu0 %1119
  %vm1121 = vcmask 64512
  %s1122 = scalar_lea.vmem %s1, 1157
  %1123 = vst.msk [vmem:[%s1122] ss:$16 sm:$0x3] %vm1121, %v1120
  %s1124 = scalar_lea.vmem %s1, 1157
  %1125 = vst.msk [vmem:[%s1124] ss:$16 sm:$0xc] %vm1121, %v1120
  %s1126 = scalar_lea.vmem %s1, 1157
  %1127 = vst.msk [vmem:[%s1126] ss:$16 sm:$0x30] %vm1121, %v1120
  %s1128 = scalar_lea.vmem %s1, 1157
  %1129 = vst.msk [vmem:[%s1128] ss:$16 sm:$0xc0] %vm1121, %v1120
  %s1130 = scalar_lea.vmem %s0, 80
  %v1131 = vld [vmem:[%s1130] sm:$0xff]
  %1132 = vrot.lane.b32.xlu0 %v1131, 88
  %v1133 = vpop.permute.xlu0 %1132
  %vm1134 = vcmask 64512
  %s1135 = scalar_lea.vmem %s1, 1285
  %1136 = vst.msk [vmem:[%s1135] ss:$16 sm:$0x3] %vm1134, %v1133
  %s1137 = scalar_lea.vmem %s1, 1285
  %1138 = vst.msk [vmem:[%s1137] ss:$16 sm:$0xc] %vm1134, %v1133
  %s1139 = scalar_lea.vmem %s1, 1285
  %1140 = vst.msk [vmem:[%s1139] ss:$16 sm:$0x30] %vm1134, %v1133
  %s1141 = scalar_lea.vmem %s1, 1285
  %1142 = vst.msk [vmem:[%s1141] ss:$16 sm:$0xc0] %vm1134, %v1133
  %s1143 = scalar_lea.vmem %s0, 88
  %v1144 = vld [vmem:[%s1143] sm:$0xff]
  %1145 = vrot.lane.b32.xlu0 %v1144, 88
  %v1146 = vpop.permute.xlu0 %1145
  %vm1147 = vcmask 64512
  %s1148 = scalar_lea.vmem %s1, 1413
  %1149 = vst.msk [vmem:[%s1148] ss:$16 sm:$0x3] %vm1147, %v1146
  %s1150 = scalar_lea.vmem %s1, 1413
  %1151 = vst.msk [vmem:[%s1150] ss:$16 sm:$0xc] %vm1147, %v1146
  %s1152 = scalar_lea.vmem %s1, 1413
  %1153 = vst.msk [vmem:[%s1152] ss:$16 sm:$0x30] %vm1147, %v1146
  %s1154 = scalar_lea.vmem %s1, 1413
  %1155 = vst.msk [vmem:[%s1154] ss:$16 sm:$0xc0] %vm1147, %v1146
  %s1156 = scalar_lea.vmem %s0, 96
  %v1157 = vld [vmem:[%s1156] sm:$0xff]
  %1158 = vrot.lane.b32.xlu0 %v1157, 88
  %v1159 = vpop.permute.xlu0 %1158
  %vm1160 = vcmask 64512
  %s1161 = scalar_lea.vmem %s1, 1541
  %1162 = vst.msk [vmem:[%s1161] ss:$16 sm:$0x3] %vm1160, %v1159
  %s1163 = scalar_lea.vmem %s1, 1541
  %1164 = vst.msk [vmem:[%s1163] ss:$16 sm:$0xc] %vm1160, %v1159
  %s1165 = scalar_lea.vmem %s1, 1541
  %1166 = vst.msk [vmem:[%s1165] ss:$16 sm:$0x30] %vm1160, %v1159
  %s1167 = scalar_lea.vmem %s1, 1541
  %1168 = vst.msk [vmem:[%s1167] ss:$16 sm:$0xc0] %vm1160, %v1159
  %s1169 = scalar_lea.vmem %s0, 104
  %v1170 = vld [vmem:[%s1169] sm:$0xff]
  %1171 = vrot.lane.b32.xlu0 %v1170, 88
  %v1172 = vpop.permute.xlu0 %1171
  %vm1173 = vcmask 64512
  %s1174 = scalar_lea.vmem %s1, 1669
  %1175 = vst.msk [vmem:[%s1174] ss:$16 sm:$0x3] %vm1173, %v1172
  %s1176 = scalar_lea.vmem %s1, 1669
  %1177 = vst.msk [vmem:[%s1176] ss:$16 sm:$0xc] %vm1173, %v1172
  %s1178 = scalar_lea.vmem %s1, 1669
  %1179 = vst.msk [vmem:[%s1178] ss:$16 sm:$0x30] %vm1173, %v1172
  %s1180 = scalar_lea.vmem %s1, 1669
  %1181 = vst.msk [vmem:[%s1180] ss:$16 sm:$0xc0] %vm1173, %v1172
  %s1182 = scalar_lea.vmem %s0, 112
  %v1183 = vld [vmem:[%s1182] sm:$0xff]
  %1184 = vrot.lane.b32.xlu0 %v1183, 88
  %v1185 = vpop.permute.xlu0 %1184
  %vm1186 = vcmask 64512
  %s1187 = scalar_lea.vmem %s1, 1797
  %1188 = vst.msk [vmem:[%s1187] ss:$16 sm:$0x3] %vm1186, %v1185
  %s1189 = scalar_lea.vmem %s1, 1797
  %1190 = vst.msk [vmem:[%s1189] ss:$16 sm:$0xc] %vm1186, %v1185
  %s1191 = scalar_lea.vmem %s1, 1797
  %1192 = vst.msk [vmem:[%s1191] ss:$16 sm:$0x30] %vm1186, %v1185
  %s1193 = scalar_lea.vmem %s1, 1797
  %1194 = vst.msk [vmem:[%s1193] ss:$16 sm:$0xc0] %vm1186, %v1185
  %s1195 = scalar_lea.vmem %s0, 120
  %v1196 = vld [vmem:[%s1195] sm:$0xff]
  %1197 = vrot.lane.b32.xlu0 %v1196, 88
  %v1198 = vpop.permute.xlu0 %1197
  %vm1199 = vcmask 64512
  %s1200 = scalar_lea.vmem %s1, 1925
  %1201 = vst.msk [vmem:[%s1200] ss:$16 sm:$0x3] %vm1199, %v1198
  %s1202 = scalar_lea.vmem %s1, 1925
  %1203 = vst.msk [vmem:[%s1202] ss:$16 sm:$0xc] %vm1199, %v1198
  %s1204 = scalar_lea.vmem %s1, 1925
  %1205 = vst.msk [vmem:[%s1204] ss:$16 sm:$0x30] %vm1199, %v1198
  %s1206 = scalar_lea.vmem %s1, 1925
  %1207 = vst.msk [vmem:[%s1206] ss:$16 sm:$0xc0] %vm1199, %v1198
  %v1208 = vld [vmem:[%s0] sm:$0xff]
  %1209 = vrot.lane.b32.xlu0 %v1208, 80
  %v1210 = vpop.permute.xlu0 %1209
  %vm1211 = vcmask 64512
  %s1212 = scalar_lea.vmem %s1, 6
  %1213 = vst.msk [vmem:[%s1212] ss:$16 sm:$0x3] %vm1211, %v1210
  %s1214 = scalar_lea.vmem %s1, 6
  %1215 = vst.msk [vmem:[%s1214] ss:$16 sm:$0xc] %vm1211, %v1210
  %s1216 = scalar_lea.vmem %s1, 6
  %1217 = vst.msk [vmem:[%s1216] ss:$16 sm:$0x30] %vm1211, %v1210
  %s1218 = scalar_lea.vmem %s1, 6
  %1219 = vst.msk [vmem:[%s1218] ss:$16 sm:$0xc0] %vm1211, %v1210
  %s1220 = scalar_lea.vmem %s0, 8
  %v1221 = vld [vmem:[%s1220] sm:$0xff]
  %1222 = vrot.lane.b32.xlu0 %v1221, 80
  %v1223 = vpop.permute.xlu0 %1222
  %vm1224 = vcmask 64512
  %s1225 = scalar_lea.vmem %s1, 134
  %1226 = vst.msk [vmem:[%s1225] ss:$16 sm:$0x3] %vm1224, %v1223
  %s1227 = scalar_lea.vmem %s1, 134
  %1228 = vst.msk [vmem:[%s1227] ss:$16 sm:$0xc] %vm1224, %v1223
  %s1229 = scalar_lea.vmem %s1, 134
  %1230 = vst.msk [vmem:[%s1229] ss:$16 sm:$0x30] %vm1224, %v1223
  %s1231 = scalar_lea.vmem %s1, 134
  %1232 = vst.msk [vmem:[%s1231] ss:$16 sm:$0xc0] %vm1224, %v1223
  %s1233 = scalar_lea.vmem %s0, 16
  %v1234 = vld [vmem:[%s1233] sm:$0xff]
  %1235 = vrot.lane.b32.xlu0 %v1234, 80
  %v1236 = vpop.permute.xlu0 %1235
  %vm1237 = vcmask 64512
  %s1238 = scalar_lea.vmem %s1, 262
  %1239 = vst.msk [vmem:[%s1238] ss:$16 sm:$0x3] %vm1237, %v1236
  %s1240 = scalar_lea.vmem %s1, 262
  %1241 = vst.msk [vmem:[%s1240] ss:$16 sm:$0xc] %vm1237, %v1236
  %s1242 = scalar_lea.vmem %s1, 262
  %1243 = vst.msk [vmem:[%s1242] ss:$16 sm:$0x30] %vm1237, %v1236
  %s1244 = scalar_lea.vmem %s1, 262
  %1245 = vst.msk [vmem:[%s1244] ss:$16 sm:$0xc0] %vm1237, %v1236
  %s1246 = scalar_lea.vmem %s0, 24
  %v1247 = vld [vmem:[%s1246] sm:$0xff]
  %1248 = vrot.lane.b32.xlu0 %v1247, 80
  %v1249 = vpop.permute.xlu0 %1248
  %vm1250 = vcmask 64512
  %s1251 = scalar_lea.vmem %s1, 390
  %1252 = vst.msk [vmem:[%s1251] ss:$16 sm:$0x3] %vm1250, %v1249
  %s1253 = scalar_lea.vmem %s1, 390
  %1254 = vst.msk [vmem:[%s1253] ss:$16 sm:$0xc] %vm1250, %v1249
  %s1255 = scalar_lea.vmem %s1, 390
  %1256 = vst.msk [vmem:[%s1255] ss:$16 sm:$0x30] %vm1250, %v1249
  %s1257 = scalar_lea.vmem %s1, 390
  %1258 = vst.msk [vmem:[%s1257] ss:$16 sm:$0xc0] %vm1250, %v1249
  %s1259 = scalar_lea.vmem %s0, 32
  %v1260 = vld [vmem:[%s1259] sm:$0xff]
  %1261 = vrot.lane.b32.xlu0 %v1260, 80
  %v1262 = vpop.permute.xlu0 %1261
  %vm1263 = vcmask 64512
  %s1264 = scalar_lea.vmem %s1, 518
  %1265 = vst.msk [vmem:[%s1264] ss:$16 sm:$0x3] %vm1263, %v1262
  %s1266 = scalar_lea.vmem %s1, 518
  %1267 = vst.msk [vmem:[%s1266] ss:$16 sm:$0xc] %vm1263, %v1262
  %s1268 = scalar_lea.vmem %s1, 518
  %1269 = vst.msk [vmem:[%s1268] ss:$16 sm:$0x30] %vm1263, %v1262
  %s1270 = scalar_lea.vmem %s1, 518
  %1271 = vst.msk [vmem:[%s1270] ss:$16 sm:$0xc0] %vm1263, %v1262
  %s1272 = scalar_lea.vmem %s0, 40
  %v1273 = vld [vmem:[%s1272] sm:$0xff]
  %1274 = vrot.lane.b32.xlu0 %v1273, 80
  %v1275 = vpop.permute.xlu0 %1274
  %vm1276 = vcmask 64512
  %s1277 = scalar_lea.vmem %s1, 646
  %1278 = vst.msk [vmem:[%s1277] ss:$16 sm:$0x3] %vm1276, %v1275
  %s1279 = scalar_lea.vmem %s1, 646
  %1280 = vst.msk [vmem:[%s1279] ss:$16 sm:$0xc] %vm1276, %v1275
  %s1281 = scalar_lea.vmem %s1, 646
  %1282 = vst.msk [vmem:[%s1281] ss:$16 sm:$0x30] %vm1276, %v1275
  %s1283 = scalar_lea.vmem %s1, 646
  %1284 = vst.msk [vmem:[%s1283] ss:$16 sm:$0xc0] %vm1276, %v1275
  %s1285 = scalar_lea.vmem %s0, 48
  %v1286 = vld [vmem:[%s1285] sm:$0xff]
  %1287 = vrot.lane.b32.xlu0 %v1286, 80
  %v1288 = vpop.permute.xlu0 %1287
  %vm1289 = vcmask 64512
  %s1290 = scalar_lea.vmem %s1, 774
  %1291 = vst.msk [vmem:[%s1290] ss:$16 sm:$0x3] %vm1289, %v1288
  %s1292 = scalar_lea.vmem %s1, 774
  %1293 = vst.msk [vmem:[%s1292] ss:$16 sm:$0xc] %vm1289, %v1288
  %s1294 = scalar_lea.vmem %s1, 774
  %1295 = vst.msk [vmem:[%s1294] ss:$16 sm:$0x30] %vm1289, %v1288
  %s1296 = scalar_lea.vmem %s1, 774
  %1297 = vst.msk [vmem:[%s1296] ss:$16 sm:$0xc0] %vm1289, %v1288
  %s1298 = scalar_lea.vmem %s0, 56
  %v1299 = vld [vmem:[%s1298] sm:$0xff]
  %1300 = vrot.lane.b32.xlu0 %v1299, 80
  %v1301 = vpop.permute.xlu0 %1300
  %vm1302 = vcmask 64512
  %s1303 = scalar_lea.vmem %s1, 902
  %1304 = vst.msk [vmem:[%s1303] ss:$16 sm:$0x3] %vm1302, %v1301
  %s1305 = scalar_lea.vmem %s1, 902
  %1306 = vst.msk [vmem:[%s1305] ss:$16 sm:$0xc] %vm1302, %v1301
  %s1307 = scalar_lea.vmem %s1, 902
  %1308 = vst.msk [vmem:[%s1307] ss:$16 sm:$0x30] %vm1302, %v1301
  %s1309 = scalar_lea.vmem %s1, 902
  %1310 = vst.msk [vmem:[%s1309] ss:$16 sm:$0xc0] %vm1302, %v1301
  %s1311 = scalar_lea.vmem %s0, 64
  %v1312 = vld [vmem:[%s1311] sm:$0xff]
  %1313 = vrot.lane.b32.xlu0 %v1312, 80
  %v1314 = vpop.permute.xlu0 %1313
  %vm1315 = vcmask 64512
  %s1316 = scalar_lea.vmem %s1, 1030
  %1317 = vst.msk [vmem:[%s1316] ss:$16 sm:$0x3] %vm1315, %v1314
  %s1318 = scalar_lea.vmem %s1, 1030
  %1319 = vst.msk [vmem:[%s1318] ss:$16 sm:$0xc] %vm1315, %v1314
  %s1320 = scalar_lea.vmem %s1, 1030
  %1321 = vst.msk [vmem:[%s1320] ss:$16 sm:$0x30] %vm1315, %v1314
  %s1322 = scalar_lea.vmem %s1, 1030
  %1323 = vst.msk [vmem:[%s1322] ss:$16 sm:$0xc0] %vm1315, %v1314
  %s1324 = scalar_lea.vmem %s0, 72
  %v1325 = vld [vmem:[%s1324] sm:$0xff]
  %1326 = vrot.lane.b32.xlu0 %v1325, 80
  %v1327 = vpop.permute.xlu0 %1326
  %vm1328 = vcmask 64512
  %s1329 = scalar_lea.vmem %s1, 1158
  %1330 = vst.msk [vmem:[%s1329] ss:$16 sm:$0x3] %vm1328, %v1327
  %s1331 = scalar_lea.vmem %s1, 1158
  %1332 = vst.msk [vmem:[%s1331] ss:$16 sm:$0xc] %vm1328, %v1327
  %s1333 = scalar_lea.vmem %s1, 1158
  %1334 = vst.msk [vmem:[%s1333] ss:$16 sm:$0x30] %vm1328, %v1327
  %s1335 = scalar_lea.vmem %s1, 1158
  %1336 = vst.msk [vmem:[%s1335] ss:$16 sm:$0xc0] %vm1328, %v1327
  %s1337 = scalar_lea.vmem %s0, 80
  %v1338 = vld [vmem:[%s1337] sm:$0xff]
  %1339 = vrot.lane.b32.xlu0 %v1338, 80
  %v1340 = vpop.permute.xlu0 %1339
  %vm1341 = vcmask 64512
  %s1342 = scalar_lea.vmem %s1, 1286
  %1343 = vst.msk [vmem:[%s1342] ss:$16 sm:$0x3] %vm1341, %v1340
  %s1344 = scalar_lea.vmem %s1, 1286
  %1345 = vst.msk [vmem:[%s1344] ss:$16 sm:$0xc] %vm1341, %v1340
  %s1346 = scalar_lea.vmem %s1, 1286
  %1347 = vst.msk [vmem:[%s1346] ss:$16 sm:$0x30] %vm1341, %v1340
  %s1348 = scalar_lea.vmem %s1, 1286
  %1349 = vst.msk [vmem:[%s1348] ss:$16 sm:$0xc0] %vm1341, %v1340
  %s1350 = scalar_lea.vmem %s0, 88
  %v1351 = vld [vmem:[%s1350] sm:$0xff]
  %1352 = vrot.lane.b32.xlu0 %v1351, 80
  %v1353 = vpop.permute.xlu0 %1352
  %vm1354 = vcmask 64512
  %s1355 = scalar_lea.vmem %s1, 1414
  %1356 = vst.msk [vmem:[%s1355] ss:$16 sm:$0x3] %vm1354, %v1353
  %s1357 = scalar_lea.vmem %s1, 1414
  %1358 = vst.msk [vmem:[%s1357] ss:$16 sm:$0xc] %vm1354, %v1353
  %s1359 = scalar_lea.vmem %s1, 1414
  %1360 = vst.msk [vmem:[%s1359] ss:$16 sm:$0x30] %vm1354, %v1353
  %s1361 = scalar_lea.vmem %s1, 1414
  %1362 = vst.msk [vmem:[%s1361] ss:$16 sm:$0xc0] %vm1354, %v1353
  %s1363 = scalar_lea.vmem %s0, 96
  %v1364 = vld [vmem:[%s1363] sm:$0xff]
  %1365 = vrot.lane.b32.xlu0 %v1364, 80
  %v1366 = vpop.permute.xlu0 %1365
  %vm1367 = vcmask 64512
  %s1368 = scalar_lea.vmem %s1, 1542
  %1369 = vst.msk [vmem:[%s1368] ss:$16 sm:$0x3] %vm1367, %v1366
  %s1370 = scalar_lea.vmem %s1, 1542
  %1371 = vst.msk [vmem:[%s1370] ss:$16 sm:$0xc] %vm1367, %v1366
  %s1372 = scalar_lea.vmem %s1, 1542
  %1373 = vst.msk [vmem:[%s1372] ss:$16 sm:$0x30] %vm1367, %v1366
  %s1374 = scalar_lea.vmem %s1, 1542
  %1375 = vst.msk [vmem:[%s1374] ss:$16 sm:$0xc0] %vm1367, %v1366
  %s1376 = scalar_lea.vmem %s0, 104
  %v1377 = vld [vmem:[%s1376] sm:$0xff]
  %1378 = vrot.lane.b32.xlu0 %v1377, 80
  %v1379 = vpop.permute.xlu0 %1378
  %vm1380 = vcmask 64512
  %s1381 = scalar_lea.vmem %s1, 1670
  %1382 = vst.msk [vmem:[%s1381] ss:$16 sm:$0x3] %vm1380, %v1379
  %s1383 = scalar_lea.vmem %s1, 1670
  %1384 = vst.msk [vmem:[%s1383] ss:$16 sm:$0xc] %vm1380, %v1379
  %s1385 = scalar_lea.vmem %s1, 1670
  %1386 = vst.msk [vmem:[%s1385] ss:$16 sm:$0x30] %vm1380, %v1379
  %s1387 = scalar_lea.vmem %s1, 1670
  %1388 = vst.msk [vmem:[%s1387] ss:$16 sm:$0xc0] %vm1380, %v1379
  %s1389 = scalar_lea.vmem %s0, 112
  %v1390 = vld [vmem:[%s1389] sm:$0xff]
  %1391 = vrot.lane.b32.xlu0 %v1390, 80
  %v1392 = vpop.permute.xlu0 %1391
  %vm1393 = vcmask 64512
  %s1394 = scalar_lea.vmem %s1, 1798
  %1395 = vst.msk [vmem:[%s1394] ss:$16 sm:$0x3] %vm1393, %v1392
  %s1396 = scalar_lea.vmem %s1, 1798
  %1397 = vst.msk [vmem:[%s1396] ss:$16 sm:$0xc] %vm1393, %v1392
  %s1398 = scalar_lea.vmem %s1, 1798
  %1399 = vst.msk [vmem:[%s1398] ss:$16 sm:$0x30] %vm1393, %v1392
  %s1400 = scalar_lea.vmem %s1, 1798
  %1401 = vst.msk [vmem:[%s1400] ss:$16 sm:$0xc0] %vm1393, %v1392
  %s1402 = scalar_lea.vmem %s0, 120
  %v1403 = vld [vmem:[%s1402] sm:$0xff]
  %1404 = vrot.lane.b32.xlu0 %v1403, 80
  %v1405 = vpop.permute.xlu0 %1404
  %vm1406 = vcmask 64512
  %s1407 = scalar_lea.vmem %s1, 1926
  %1408 = vst.msk [vmem:[%s1407] ss:$16 sm:$0x3] %vm1406, %v1405
  %s1409 = scalar_lea.vmem %s1, 1926
  %1410 = vst.msk [vmem:[%s1409] ss:$16 sm:$0xc] %vm1406, %v1405
  %s1411 = scalar_lea.vmem %s1, 1926
  %1412 = vst.msk [vmem:[%s1411] ss:$16 sm:$0x30] %vm1406, %v1405
  %s1413 = scalar_lea.vmem %s1, 1926
  %1414 = vst.msk [vmem:[%s1413] ss:$16 sm:$0xc0] %vm1406, %v1405
  %v1415 = vld [vmem:[%s0] sm:$0xff]
  %1416 = vrot.lane.b32.xlu0 %v1415, 72
  %v1417 = vpop.permute.xlu0 %1416
  %vm1418 = vcmask 64512
  %s1419 = scalar_lea.vmem %s1, 7
  %1420 = vst.msk [vmem:[%s1419] ss:$16 sm:$0x3] %vm1418, %v1417
  %s1421 = scalar_lea.vmem %s1, 7
  %1422 = vst.msk [vmem:[%s1421] ss:$16 sm:$0xc] %vm1418, %v1417
  %s1423 = scalar_lea.vmem %s1, 7
  %1424 = vst.msk [vmem:[%s1423] ss:$16 sm:$0x30] %vm1418, %v1417
  %s1425 = scalar_lea.vmem %s1, 7
  %1426 = vst.msk [vmem:[%s1425] ss:$16 sm:$0xc0] %vm1418, %v1417
  %s1427 = scalar_lea.vmem %s0, 8
  %v1428 = vld [vmem:[%s1427] sm:$0xff]
  %1429 = vrot.lane.b32.xlu0 %v1428, 72
  %v1430 = vpop.permute.xlu0 %1429
  %vm1431 = vcmask 64512
  %s1432 = scalar_lea.vmem %s1, 135
  %1433 = vst.msk [vmem:[%s1432] ss:$16 sm:$0x3] %vm1431, %v1430
  %s1434 = scalar_lea.vmem %s1, 135
  %1435 = vst.msk [vmem:[%s1434] ss:$16 sm:$0xc] %vm1431, %v1430
  %s1436 = scalar_lea.vmem %s1, 135
  %1437 = vst.msk [vmem:[%s1436] ss:$16 sm:$0x30] %vm1431, %v1430
  %s1438 = scalar_lea.vmem %s1, 135
  %1439 = vst.msk [vmem:[%s1438] ss:$16 sm:$0xc0] %vm1431, %v1430
  %s1440 = scalar_lea.vmem %s0, 16
  %v1441 = vld [vmem:[%s1440] sm:$0xff]
  %1442 = vrot.lane.b32.xlu0 %v1441, 72
  %v1443 = vpop.permute.xlu0 %1442
  %vm1444 = vcmask 64512
  %s1445 = scalar_lea.vmem %s1, 263
  %1446 = vst.msk [vmem:[%s1445] ss:$16 sm:$0x3] %vm1444, %v1443
  %s1447 = scalar_lea.vmem %s1, 263
  %1448 = vst.msk [vmem:[%s1447] ss:$16 sm:$0xc] %vm1444, %v1443
  %s1449 = scalar_lea.vmem %s1, 263
  %1450 = vst.msk [vmem:[%s1449] ss:$16 sm:$0x30] %vm1444, %v1443
  %s1451 = scalar_lea.vmem %s1, 263
  %1452 = vst.msk [vmem:[%s1451] ss:$16 sm:$0xc0] %vm1444, %v1443
  %s1453 = scalar_lea.vmem %s0, 24
  %v1454 = vld [vmem:[%s1453] sm:$0xff]
  %1455 = vrot.lane.b32.xlu0 %v1454, 72
  %v1456 = vpop.permute.xlu0 %1455
  %vm1457 = vcmask 64512
  %s1458 = scalar_lea.vmem %s1, 391
  %1459 = vst.msk [vmem:[%s1458] ss:$16 sm:$0x3] %vm1457, %v1456
  %s1460 = scalar_lea.vmem %s1, 391
  %1461 = vst.msk [vmem:[%s1460] ss:$16 sm:$0xc] %vm1457, %v1456
  %s1462 = scalar_lea.vmem %s1, 391
  %1463 = vst.msk [vmem:[%s1462] ss:$16 sm:$0x30] %vm1457, %v1456
  %s1464 = scalar_lea.vmem %s1, 391
  %1465 = vst.msk [vmem:[%s1464] ss:$16 sm:$0xc0] %vm1457, %v1456
  %s1466 = scalar_lea.vmem %s0, 32
  %v1467 = vld [vmem:[%s1466] sm:$0xff]
  %1468 = vrot.lane.b32.xlu0 %v1467, 72
  %v1469 = vpop.permute.xlu0 %1468
  %vm1470 = vcmask 64512
  %s1471 = scalar_lea.vmem %s1, 519
  %1472 = vst.msk [vmem:[%s1471] ss:$16 sm:$0x3] %vm1470, %v1469
  %s1473 = scalar_lea.vmem %s1, 519
  %1474 = vst.msk [vmem:[%s1473] ss:$16 sm:$0xc] %vm1470, %v1469
  %s1475 = scalar_lea.vmem %s1, 519
  %1476 = vst.msk [vmem:[%s1475] ss:$16 sm:$0x30] %vm1470, %v1469
  %s1477 = scalar_lea.vmem %s1, 519
  %1478 = vst.msk [vmem:[%s1477] ss:$16 sm:$0xc0] %vm1470, %v1469
  %s1479 = scalar_lea.vmem %s0, 40
  %v1480 = vld [vmem:[%s1479] sm:$0xff]
  %1481 = vrot.lane.b32.xlu0 %v1480, 72
  %v1482 = vpop.permute.xlu0 %1481
  %vm1483 = vcmask 64512
  %s1484 = scalar_lea.vmem %s1, 647
  %1485 = vst.msk [vmem:[%s1484] ss:$16 sm:$0x3] %vm1483, %v1482
  %s1486 = scalar_lea.vmem %s1, 647
  %1487 = vst.msk [vmem:[%s1486] ss:$16 sm:$0xc] %vm1483, %v1482
  %s1488 = scalar_lea.vmem %s1, 647
  %1489 = vst.msk [vmem:[%s1488] ss:$16 sm:$0x30] %vm1483, %v1482
  %s1490 = scalar_lea.vmem %s1, 647
  %1491 = vst.msk [vmem:[%s1490] ss:$16 sm:$0xc0] %vm1483, %v1482
  %s1492 = scalar_lea.vmem %s0, 48
  %v1493 = vld [vmem:[%s1492] sm:$0xff]
  %1494 = vrot.lane.b32.xlu0 %v1493, 72
  %v1495 = vpop.permute.xlu0 %1494
  %vm1496 = vcmask 64512
  %s1497 = scalar_lea.vmem %s1, 775
  %1498 = vst.msk [vmem:[%s1497] ss:$16 sm:$0x3] %vm1496, %v1495
  %s1499 = scalar_lea.vmem %s1, 775
  %1500 = vst.msk [vmem:[%s1499] ss:$16 sm:$0xc] %vm1496, %v1495
  %s1501 = scalar_lea.vmem %s1, 775
  %1502 = vst.msk [vmem:[%s1501] ss:$16 sm:$0x30] %vm1496, %v1495
  %s1503 = scalar_lea.vmem %s1, 775
  %1504 = vst.msk [vmem:[%s1503] ss:$16 sm:$0xc0] %vm1496, %v1495
  %s1505 = scalar_lea.vmem %s0, 56
  %v1506 = vld [vmem:[%s1505] sm:$0xff]
  %1507 = vrot.lane.b32.xlu0 %v1506, 72
  %v1508 = vpop.permute.xlu0 %1507
  %vm1509 = vcmask 64512
  %s1510 = scalar_lea.vmem %s1, 903
  %1511 = vst.msk [vmem:[%s1510] ss:$16 sm:$0x3] %vm1509, %v1508
  %s1512 = scalar_lea.vmem %s1, 903
  %1513 = vst.msk [vmem:[%s1512] ss:$16 sm:$0xc] %vm1509, %v1508
  %s1514 = scalar_lea.vmem %s1, 903
  %1515 = vst.msk [vmem:[%s1514] ss:$16 sm:$0x30] %vm1509, %v1508
  %s1516 = scalar_lea.vmem %s1, 903
  %1517 = vst.msk [vmem:[%s1516] ss:$16 sm:$0xc0] %vm1509, %v1508
  %s1518 = scalar_lea.vmem %s0, 64
  %v1519 = vld [vmem:[%s1518] sm:$0xff]
  %1520 = vrot.lane.b32.xlu0 %v1519, 72
  %v1521 = vpop.permute.xlu0 %1520
  %vm1522 = vcmask 64512
  %s1523 = scalar_lea.vmem %s1, 1031
  %1524 = vst.msk [vmem:[%s1523] ss:$16 sm:$0x3] %vm1522, %v1521
  %s1525 = scalar_lea.vmem %s1, 1031
  %1526 = vst.msk [vmem:[%s1525] ss:$16 sm:$0xc] %vm1522, %v1521
  %s1527 = scalar_lea.vmem %s1, 1031
  %1528 = vst.msk [vmem:[%s1527] ss:$16 sm:$0x30] %vm1522, %v1521
  %s1529 = scalar_lea.vmem %s1, 1031
  %1530 = vst.msk [vmem:[%s1529] ss:$16 sm:$0xc0] %vm1522, %v1521
  %s1531 = scalar_lea.vmem %s0, 72
  %v1532 = vld [vmem:[%s1531] sm:$0xff]
  %1533 = vrot.lane.b32.xlu0 %v1532, 72
  %v1534 = vpop.permute.xlu0 %1533
  %vm1535 = vcmask 64512
  %s1536 = scalar_lea.vmem %s1, 1159
  %1537 = vst.msk [vmem:[%s1536] ss:$16 sm:$0x3] %vm1535, %v1534
  %s1538 = scalar_lea.vmem %s1, 1159
  %1539 = vst.msk [vmem:[%s1538] ss:$16 sm:$0xc] %vm1535, %v1534
  %s1540 = scalar_lea.vmem %s1, 1159
  %1541 = vst.msk [vmem:[%s1540] ss:$16 sm:$0x30] %vm1535, %v1534
  %s1542 = scalar_lea.vmem %s1, 1159
  %1543 = vst.msk [vmem:[%s1542] ss:$16 sm:$0xc0] %vm1535, %v1534
  %s1544 = scalar_lea.vmem %s0, 80
  %v1545 = vld [vmem:[%s1544] sm:$0xff]
  %1546 = vrot.lane.b32.xlu0 %v1545, 72
  %v1547 = vpop.permute.xlu0 %1546
  %vm1548 = vcmask 64512
  %s1549 = scalar_lea.vmem %s1, 1287
  %1550 = vst.msk [vmem:[%s1549] ss:$16 sm:$0x3] %vm1548, %v1547
  %s1551 = scalar_lea.vmem %s1, 1287
  %1552 = vst.msk [vmem:[%s1551] ss:$16 sm:$0xc] %vm1548, %v1547
  %s1553 = scalar_lea.vmem %s1, 1287
  %1554 = vst.msk [vmem:[%s1553] ss:$16 sm:$0x30] %vm1548, %v1547
  %s1555 = scalar_lea.vmem %s1, 1287
  %1556 = vst.msk [vmem:[%s1555] ss:$16 sm:$0xc0] %vm1548, %v1547
  %s1557 = scalar_lea.vmem %s0, 88
  %v1558 = vld [vmem:[%s1557] sm:$0xff]
  %1559 = vrot.lane.b32.xlu0 %v1558, 72
  %v1560 = vpop.permute.xlu0 %1559
  %vm1561 = vcmask 64512
  %s1562 = scalar_lea.vmem %s1, 1415
  %1563 = vst.msk [vmem:[%s1562] ss:$16 sm:$0x3] %vm1561, %v1560
  %s1564 = scalar_lea.vmem %s1, 1415
  %1565 = vst.msk [vmem:[%s1564] ss:$16 sm:$0xc] %vm1561, %v1560
  %s1566 = scalar_lea.vmem %s1, 1415
  %1567 = vst.msk [vmem:[%s1566] ss:$16 sm:$0x30] %vm1561, %v1560
  %s1568 = scalar_lea.vmem %s1, 1415
  %1569 = vst.msk [vmem:[%s1568] ss:$16 sm:$0xc0] %vm1561, %v1560
  %s1570 = scalar_lea.vmem %s0, 96
  %v1571 = vld [vmem:[%s1570] sm:$0xff]
  %1572 = vrot.lane.b32.xlu0 %v1571, 72
  %v1573 = vpop.permute.xlu0 %1572
  %vm1574 = vcmask 64512
  %s1575 = scalar_lea.vmem %s1, 1543
  %1576 = vst.msk [vmem:[%s1575] ss:$16 sm:$0x3] %vm1574, %v1573
  %s1577 = scalar_lea.vmem %s1, 1543
  %1578 = vst.msk [vmem:[%s1577] ss:$16 sm:$0xc] %vm1574, %v1573
  %s1579 = scalar_lea.vmem %s1, 1543
  %1580 = vst.msk [vmem:[%s1579] ss:$16 sm:$0x30] %vm1574, %v1573
  %s1581 = scalar_lea.vmem %s1, 1543
  %1582 = vst.msk [vmem:[%s1581] ss:$16 sm:$0xc0] %vm1574, %v1573
  %s1583 = scalar_lea.vmem %s0, 104
  %v1584 = vld [vmem:[%s1583] sm:$0xff]
  %1585 = vrot.lane.b32.xlu0 %v1584, 72
  %v1586 = vpop.permute.xlu0 %1585
  %vm1587 = vcmask 64512
  %s1588 = scalar_lea.vmem %s1, 1671
  %1589 = vst.msk [vmem:[%s1588] ss:$16 sm:$0x3] %vm1587, %v1586
  %s1590 = scalar_lea.vmem %s1, 1671
  %1591 = vst.msk [vmem:[%s1590] ss:$16 sm:$0xc] %vm1587, %v1586
  %s1592 = scalar_lea.vmem %s1, 1671
  %1593 = vst.msk [vmem:[%s1592] ss:$16 sm:$0x30] %vm1587, %v1586
  %s1594 = scalar_lea.vmem %s1, 1671
  %1595 = vst.msk [vmem:[%s1594] ss:$16 sm:$0xc0] %vm1587, %v1586
  %s1596 = scalar_lea.vmem %s0, 112
  %v1597 = vld [vmem:[%s1596] sm:$0xff]
  %1598 = vrot.lane.b32.xlu0 %v1597, 72
  %v1599 = vpop.permute.xlu0 %1598
  %vm1600 = vcmask 64512
  %s1601 = scalar_lea.vmem %s1, 1799
  %1602 = vst.msk [vmem:[%s1601] ss:$16 sm:$0x3] %vm1600, %v1599
  %s1603 = scalar_lea.vmem %s1, 1799
  %1604 = vst.msk [vmem:[%s1603] ss:$16 sm:$0xc] %vm1600, %v1599
  %s1605 = scalar_lea.vmem %s1, 1799
  %1606 = vst.msk [vmem:[%s1605] ss:$16 sm:$0x30] %vm1600, %v1599
  %s1607 = scalar_lea.vmem %s1, 1799
  %1608 = vst.msk [vmem:[%s1607] ss:$16 sm:$0xc0] %vm1600, %v1599
  %s1609 = scalar_lea.vmem %s0, 120
  %v1610 = vld [vmem:[%s1609] sm:$0xff]
  %1611 = vrot.lane.b32.xlu0 %v1610, 72
  %v1612 = vpop.permute.xlu0 %1611
  %vm1613 = vcmask 64512
  %s1614 = scalar_lea.vmem %s1, 1927
  %1615 = vst.msk [vmem:[%s1614] ss:$16 sm:$0x3] %vm1613, %v1612
  %s1616 = scalar_lea.vmem %s1, 1927
  %1617 = vst.msk [vmem:[%s1616] ss:$16 sm:$0xc] %vm1613, %v1612
  %s1618 = scalar_lea.vmem %s1, 1927
  %1619 = vst.msk [vmem:[%s1618] ss:$16 sm:$0x30] %vm1613, %v1612
  %s1620 = scalar_lea.vmem %s1, 1927
  %1621 = vst.msk [vmem:[%s1620] ss:$16 sm:$0xc0] %vm1613, %v1612
  %v1622 = vld [vmem:[%s0] sm:$0xff]
  %1623 = vrot.lane.b32.xlu0 %v1622, 64
  %v1624 = vpop.permute.xlu0 %1623
  %vm1625 = vcmask 64512
  %s1626 = scalar_lea.vmem %s1, 8
  %1627 = vst.msk [vmem:[%s1626] ss:$16 sm:$0x3] %vm1625, %v1624
  %s1628 = scalar_lea.vmem %s1, 8
  %1629 = vst.msk [vmem:[%s1628] ss:$16 sm:$0xc] %vm1625, %v1624
  %s1630 = scalar_lea.vmem %s1, 8
  %1631 = vst.msk [vmem:[%s1630] ss:$16 sm:$0x30] %vm1625, %v1624
  %s1632 = scalar_lea.vmem %s1, 8
  %1633 = vst.msk [vmem:[%s1632] ss:$16 sm:$0xc0] %vm1625, %v1624
  %s1634 = scalar_lea.vmem %s0, 8
  %v1635 = vld [vmem:[%s1634] sm:$0xff]
  %1636 = vrot.lane.b32.xlu0 %v1635, 64
  %v1637 = vpop.permute.xlu0 %1636
  %vm1638 = vcmask 64512
  %s1639 = scalar_lea.vmem %s1, 136
  %1640 = vst.msk [vmem:[%s1639] ss:$16 sm:$0x3] %vm1638, %v1637
  %s1641 = scalar_lea.vmem %s1, 136
  %1642 = vst.msk [vmem:[%s1641] ss:$16 sm:$0xc] %vm1638, %v1637
  %s1643 = scalar_lea.vmem %s1, 136
  %1644 = vst.msk [vmem:[%s1643] ss:$16 sm:$0x30] %vm1638, %v1637
  %s1645 = scalar_lea.vmem %s1, 136
  %1646 = vst.msk [vmem:[%s1645] ss:$16 sm:$0xc0] %vm1638, %v1637
  %s1647 = scalar_lea.vmem %s0, 16
  %v1648 = vld [vmem:[%s1647] sm:$0xff]
  %1649 = vrot.lane.b32.xlu0 %v1648, 64
  %v1650 = vpop.permute.xlu0 %1649
  %vm1651 = vcmask 64512
  %s1652 = scalar_lea.vmem %s1, 264
  %1653 = vst.msk [vmem:[%s1652] ss:$16 sm:$0x3] %vm1651, %v1650
  %s1654 = scalar_lea.vmem %s1, 264
  %1655 = vst.msk [vmem:[%s1654] ss:$16 sm:$0xc] %vm1651, %v1650
  %s1656 = scalar_lea.vmem %s1, 264
  %1657 = vst.msk [vmem:[%s1656] ss:$16 sm:$0x30] %vm1651, %v1650
  %s1658 = scalar_lea.vmem %s1, 264
  %1659 = vst.msk [vmem:[%s1658] ss:$16 sm:$0xc0] %vm1651, %v1650
  %s1660 = scalar_lea.vmem %s0, 24
  %v1661 = vld [vmem:[%s1660] sm:$0xff]
  %1662 = vrot.lane.b32.xlu0 %v1661, 64
  %v1663 = vpop.permute.xlu0 %1662
  %vm1664 = vcmask 64512
  %s1665 = scalar_lea.vmem %s1, 392
  %1666 = vst.msk [vmem:[%s1665] ss:$16 sm:$0x3] %vm1664, %v1663
  %s1667 = scalar_lea.vmem %s1, 392
  %1668 = vst.msk [vmem:[%s1667] ss:$16 sm:$0xc] %vm1664, %v1663
  %s1669 = scalar_lea.vmem %s1, 392
  %1670 = vst.msk [vmem:[%s1669] ss:$16 sm:$0x30] %vm1664, %v1663
  %s1671 = scalar_lea.vmem %s1, 392
  %1672 = vst.msk [vmem:[%s1671] ss:$16 sm:$0xc0] %vm1664, %v1663
  %s1673 = scalar_lea.vmem %s0, 32
  %v1674 = vld [vmem:[%s1673] sm:$0xff]
  %1675 = vrot.lane.b32.xlu0 %v1674, 64
  %v1676 = vpop.permute.xlu0 %1675
  %vm1677 = vcmask 64512
  %s1678 = scalar_lea.vmem %s1, 520
  %1679 = vst.msk [vmem:[%s1678] ss:$16 sm:$0x3] %vm1677, %v1676
  %s1680 = scalar_lea.vmem %s1, 520
  %1681 = vst.msk [vmem:[%s1680] ss:$16 sm:$0xc] %vm1677, %v1676
  %s1682 = scalar_lea.vmem %s1, 520
  %1683 = vst.msk [vmem:[%s1682] ss:$16 sm:$0x30] %vm1677, %v1676
  %s1684 = scalar_lea.vmem %s1, 520
  %1685 = vst.msk [vmem:[%s1684] ss:$16 sm:$0xc0] %vm1677, %v1676
  %s1686 = scalar_lea.vmem %s0, 40
  %v1687 = vld [vmem:[%s1686] sm:$0xff]
  %1688 = vrot.lane.b32.xlu0 %v1687, 64
  %v1689 = vpop.permute.xlu0 %1688
  %vm1690 = vcmask 64512
  %s1691 = scalar_lea.vmem %s1, 648
  %1692 = vst.msk [vmem:[%s1691] ss:$16 sm:$0x3] %vm1690, %v1689
  %s1693 = scalar_lea.vmem %s1, 648
  %1694 = vst.msk [vmem:[%s1693] ss:$16 sm:$0xc] %vm1690, %v1689
  %s1695 = scalar_lea.vmem %s1, 648
  %1696 = vst.msk [vmem:[%s1695] ss:$16 sm:$0x30] %vm1690, %v1689
  %s1697 = scalar_lea.vmem %s1, 648
  %1698 = vst.msk [vmem:[%s1697] ss:$16 sm:$0xc0] %vm1690, %v1689
  %s1699 = scalar_lea.vmem %s0, 48
  %v1700 = vld [vmem:[%s1699] sm:$0xff]
  %1701 = vrot.lane.b32.xlu0 %v1700, 64
  %v1702 = vpop.permute.xlu0 %1701
  %vm1703 = vcmask 64512
  %s1704 = scalar_lea.vmem %s1, 776
  %1705 = vst.msk [vmem:[%s1704] ss:$16 sm:$0x3] %vm1703, %v1702
  %s1706 = scalar_lea.vmem %s1, 776
  %1707 = vst.msk [vmem:[%s1706] ss:$16 sm:$0xc] %vm1703, %v1702
  %s1708 = scalar_lea.vmem %s1, 776
  %1709 = vst.msk [vmem:[%s1708] ss:$16 sm:$0x30] %vm1703, %v1702
  %s1710 = scalar_lea.vmem %s1, 776
  %1711 = vst.msk [vmem:[%s1710] ss:$16 sm:$0xc0] %vm1703, %v1702
  %s1712 = scalar_lea.vmem %s0, 56
  %v1713 = vld [vmem:[%s1712] sm:$0xff]
  %1714 = vrot.lane.b32.xlu0 %v1713, 64
  %v1715 = vpop.permute.xlu0 %1714
  %vm1716 = vcmask 64512
  %s1717 = scalar_lea.vmem %s1, 904
  %1718 = vst.msk [vmem:[%s1717] ss:$16 sm:$0x3] %vm1716, %v1715
  %s1719 = scalar_lea.vmem %s1, 904
  %1720 = vst.msk [vmem:[%s1719] ss:$16 sm:$0xc] %vm1716, %v1715
  %s1721 = scalar_lea.vmem %s1, 904
  %1722 = vst.msk [vmem:[%s1721] ss:$16 sm:$0x30] %vm1716, %v1715
  %s1723 = scalar_lea.vmem %s1, 904
  %1724 = vst.msk [vmem:[%s1723] ss:$16 sm:$0xc0] %vm1716, %v1715
  %s1725 = scalar_lea.vmem %s0, 64
  %v1726 = vld [vmem:[%s1725] sm:$0xff]
  %1727 = vrot.lane.b32.xlu0 %v1726, 64
  %v1728 = vpop.permute.xlu0 %1727
  %vm1729 = vcmask 64512
  %s1730 = scalar_lea.vmem %s1, 1032
  %1731 = vst.msk [vmem:[%s1730] ss:$16 sm:$0x3] %vm1729, %v1728
  %s1732 = scalar_lea.vmem %s1, 1032
  %1733 = vst.msk [vmem:[%s1732] ss:$16 sm:$0xc] %vm1729, %v1728
  %s1734 = scalar_lea.vmem %s1, 1032
  %1735 = vst.msk [vmem:[%s1734] ss:$16 sm:$0x30] %vm1729, %v1728
  %s1736 = scalar_lea.vmem %s1, 1032
  %1737 = vst.msk [vmem:[%s1736] ss:$16 sm:$0xc0] %vm1729, %v1728
  %s1738 = scalar_lea.vmem %s0, 72
  %v1739 = vld [vmem:[%s1738] sm:$0xff]
  %1740 = vrot.lane.b32.xlu0 %v1739, 64
  %v1741 = vpop.permute.xlu0 %1740
  %vm1742 = vcmask 64512
  %s1743 = scalar_lea.vmem %s1, 1160
  %1744 = vst.msk [vmem:[%s1743] ss:$16 sm:$0x3] %vm1742, %v1741
  %s1745 = scalar_lea.vmem %s1, 1160
  %1746 = vst.msk [vmem:[%s1745] ss:$16 sm:$0xc] %vm1742, %v1741
  %s1747 = scalar_lea.vmem %s1, 1160
  %1748 = vst.msk [vmem:[%s1747] ss:$16 sm:$0x30] %vm1742, %v1741
  %s1749 = scalar_lea.vmem %s1, 1160
  %1750 = vst.msk [vmem:[%s1749] ss:$16 sm:$0xc0] %vm1742, %v1741
  %s1751 = scalar_lea.vmem %s0, 80
  %v1752 = vld [vmem:[%s1751] sm:$0xff]
  %1753 = vrot.lane.b32.xlu0 %v1752, 64
  %v1754 = vpop.permute.xlu0 %1753
  %vm1755 = vcmask 64512
  %s1756 = scalar_lea.vmem %s1, 1288
  %1757 = vst.msk [vmem:[%s1756] ss:$16 sm:$0x3] %vm1755, %v1754
  %s1758 = scalar_lea.vmem %s1, 1288
  %1759 = vst.msk [vmem:[%s1758] ss:$16 sm:$0xc] %vm1755, %v1754
  %s1760 = scalar_lea.vmem %s1, 1288
  %1761 = vst.msk [vmem:[%s1760] ss:$16 sm:$0x30] %vm1755, %v1754
  %s1762 = scalar_lea.vmem %s1, 1288
  %1763 = vst.msk [vmem:[%s1762] ss:$16 sm:$0xc0] %vm1755, %v1754
  %s1764 = scalar_lea.vmem %s0, 88
  %v1765 = vld [vmem:[%s1764] sm:$0xff]
  %1766 = vrot.lane.b32.xlu0 %v1765, 64
  %v1767 = vpop.permute.xlu0 %1766
  %vm1768 = vcmask 64512
  %s1769 = scalar_lea.vmem %s1, 1416
  %1770 = vst.msk [vmem:[%s1769] ss:$16 sm:$0x3] %vm1768, %v1767
  %s1771 = scalar_lea.vmem %s1, 1416
  %1772 = vst.msk [vmem:[%s1771] ss:$16 sm:$0xc] %vm1768, %v1767
  %s1773 = scalar_lea.vmem %s1, 1416
  %1774 = vst.msk [vmem:[%s1773] ss:$16 sm:$0x30] %vm1768, %v1767
  %s1775 = scalar_lea.vmem %s1, 1416
  %1776 = vst.msk [vmem:[%s1775] ss:$16 sm:$0xc0] %vm1768, %v1767
  %s1777 = scalar_lea.vmem %s0, 96
  %v1778 = vld [vmem:[%s1777] sm:$0xff]
  %1779 = vrot.lane.b32.xlu0 %v1778, 64
  %v1780 = vpop.permute.xlu0 %1779
  %vm1781 = vcmask 64512
  %s1782 = scalar_lea.vmem %s1, 1544
  %1783 = vst.msk [vmem:[%s1782] ss:$16 sm:$0x3] %vm1781, %v1780
  %s1784 = scalar_lea.vmem %s1, 1544
  %1785 = vst.msk [vmem:[%s1784] ss:$16 sm:$0xc] %vm1781, %v1780
  %s1786 = scalar_lea.vmem %s1, 1544
  %1787 = vst.msk [vmem:[%s1786] ss:$16 sm:$0x30] %vm1781, %v1780
  %s1788 = scalar_lea.vmem %s1, 1544
  %1789 = vst.msk [vmem:[%s1788] ss:$16 sm:$0xc0] %vm1781, %v1780
  %s1790 = scalar_lea.vmem %s0, 104
  %v1791 = vld [vmem:[%s1790] sm:$0xff]
  %1792 = vrot.lane.b32.xlu0 %v1791, 64
  %v1793 = vpop.permute.xlu0 %1792
  %vm1794 = vcmask 64512
  %s1795 = scalar_lea.vmem %s1, 1672
  %1796 = vst.msk [vmem:[%s1795] ss:$16 sm:$0x3] %vm1794, %v1793
  %s1797 = scalar_lea.vmem %s1, 1672
  %1798 = vst.msk [vmem:[%s1797] ss:$16 sm:$0xc] %vm1794, %v1793
  %s1799 = scalar_lea.vmem %s1, 1672
  %1800 = vst.msk [vmem:[%s1799] ss:$16 sm:$0x30] %vm1794, %v1793
  %s1801 = scalar_lea.vmem %s1, 1672
  %1802 = vst.msk [vmem:[%s1801] ss:$16 sm:$0xc0] %vm1794, %v1793
  %s1803 = scalar_lea.vmem %s0, 112
  %v1804 = vld [vmem:[%s1803] sm:$0xff]
  %1805 = vrot.lane.b32.xlu0 %v1804, 64
  %v1806 = vpop.permute.xlu0 %1805
  %vm1807 = vcmask 64512
  %s1808 = scalar_lea.vmem %s1, 1800
  %1809 = vst.msk [vmem:[%s1808] ss:$16 sm:$0x3] %vm1807, %v1806
  %s1810 = scalar_lea.vmem %s1, 1800
  %1811 = vst.msk [vmem:[%s1810] ss:$16 sm:$0xc] %vm1807, %v1806
  %s1812 = scalar_lea.vmem %s1, 1800
  %1813 = vst.msk [vmem:[%s1812] ss:$16 sm:$0x30] %vm1807, %v1806
  %s1814 = scalar_lea.vmem %s1, 1800
  %1815 = vst.msk [vmem:[%s1814] ss:$16 sm:$0xc0] %vm1807, %v1806
  %s1816 = scalar_lea.vmem %s0, 120
  %v1817 = vld [vmem:[%s1816] sm:$0xff]
  %1818 = vrot.lane.b32.xlu0 %v1817, 64
  %v1819 = vpop.permute.xlu0 %1818
  %vm1820 = vcmask 64512
  %s1821 = scalar_lea.vmem %s1, 1928
  %1822 = vst.msk [vmem:[%s1821] ss:$16 sm:$0x3] %vm1820, %v1819
  %s1823 = scalar_lea.vmem %s1, 1928
  %1824 = vst.msk [vmem:[%s1823] ss:$16 sm:$0xc] %vm1820, %v1819
  %s1825 = scalar_lea.vmem %s1, 1928
  %1826 = vst.msk [vmem:[%s1825] ss:$16 sm:$0x30] %vm1820, %v1819
  %s1827 = scalar_lea.vmem %s1, 1928
  %1828 = vst.msk [vmem:[%s1827] ss:$16 sm:$0xc0] %vm1820, %v1819
  %v1829 = vld [vmem:[%s0] sm:$0xff]
  %1830 = vrot.lane.b32.xlu0 %v1829, 56
  %v1831 = vpop.permute.xlu0 %1830
  %vm1832 = vcmask 64512
  %s1833 = scalar_lea.vmem %s1, 9
  %1834 = vst.msk [vmem:[%s1833] ss:$16 sm:$0x3] %vm1832, %v1831
  %s1835 = scalar_lea.vmem %s1, 9
  %1836 = vst.msk [vmem:[%s1835] ss:$16 sm:$0xc] %vm1832, %v1831
  %s1837 = scalar_lea.vmem %s1, 9
  %1838 = vst.msk [vmem:[%s1837] ss:$16 sm:$0x30] %vm1832, %v1831
  %s1839 = scalar_lea.vmem %s1, 9
  %1840 = vst.msk [vmem:[%s1839] ss:$16 sm:$0xc0] %vm1832, %v1831
  %s1841 = scalar_lea.vmem %s0, 8
  %v1842 = vld [vmem:[%s1841] sm:$0xff]
  %1843 = vrot.lane.b32.xlu0 %v1842, 56
  %v1844 = vpop.permute.xlu0 %1843
  %vm1845 = vcmask 64512
  %s1846 = scalar_lea.vmem %s1, 137
  %1847 = vst.msk [vmem:[%s1846] ss:$16 sm:$0x3] %vm1845, %v1844
  %s1848 = scalar_lea.vmem %s1, 137
  %1849 = vst.msk [vmem:[%s1848] ss:$16 sm:$0xc] %vm1845, %v1844
  %s1850 = scalar_lea.vmem %s1, 137
  %1851 = vst.msk [vmem:[%s1850] ss:$16 sm:$0x30] %vm1845, %v1844
  %s1852 = scalar_lea.vmem %s1, 137
  %1853 = vst.msk [vmem:[%s1852] ss:$16 sm:$0xc0] %vm1845, %v1844
  %s1854 = scalar_lea.vmem %s0, 16
  %v1855 = vld [vmem:[%s1854] sm:$0xff]
  %1856 = vrot.lane.b32.xlu0 %v1855, 56
  %v1857 = vpop.permute.xlu0 %1856
  %vm1858 = vcmask 64512
  %s1859 = scalar_lea.vmem %s1, 265
  %1860 = vst.msk [vmem:[%s1859] ss:$16 sm:$0x3] %vm1858, %v1857
  %s1861 = scalar_lea.vmem %s1, 265
  %1862 = vst.msk [vmem:[%s1861] ss:$16 sm:$0xc] %vm1858, %v1857
  %s1863 = scalar_lea.vmem %s1, 265
  %1864 = vst.msk [vmem:[%s1863] ss:$16 sm:$0x30] %vm1858, %v1857
  %s1865 = scalar_lea.vmem %s1, 265
  %1866 = vst.msk [vmem:[%s1865] ss:$16 sm:$0xc0] %vm1858, %v1857
  %s1867 = scalar_lea.vmem %s0, 24
  %v1868 = vld [vmem:[%s1867] sm:$0xff]
  %1869 = vrot.lane.b32.xlu0 %v1868, 56
  %v1870 = vpop.permute.xlu0 %1869
  %vm1871 = vcmask 64512
  %s1872 = scalar_lea.vmem %s1, 393
  %1873 = vst.msk [vmem:[%s1872] ss:$16 sm:$0x3] %vm1871, %v1870
  %s1874 = scalar_lea.vmem %s1, 393
  %1875 = vst.msk [vmem:[%s1874] ss:$16 sm:$0xc] %vm1871, %v1870
  %s1876 = scalar_lea.vmem %s1, 393
  %1877 = vst.msk [vmem:[%s1876] ss:$16 sm:$0x30] %vm1871, %v1870
  %s1878 = scalar_lea.vmem %s1, 393
  %1879 = vst.msk [vmem:[%s1878] ss:$16 sm:$0xc0] %vm1871, %v1870
  %s1880 = scalar_lea.vmem %s0, 32
  %v1881 = vld [vmem:[%s1880] sm:$0xff]
  %1882 = vrot.lane.b32.xlu0 %v1881, 56
  %v1883 = vpop.permute.xlu0 %1882
  %vm1884 = vcmask 64512
  %s1885 = scalar_lea.vmem %s1, 521
  %1886 = vst.msk [vmem:[%s1885] ss:$16 sm:$0x3] %vm1884, %v1883
  %s1887 = scalar_lea.vmem %s1, 521
  %1888 = vst.msk [vmem:[%s1887] ss:$16 sm:$0xc] %vm1884, %v1883
  %s1889 = scalar_lea.vmem %s1, 521
  %1890 = vst.msk [vmem:[%s1889] ss:$16 sm:$0x30] %vm1884, %v1883
  %s1891 = scalar_lea.vmem %s1, 521
  %1892 = vst.msk [vmem:[%s1891] ss:$16 sm:$0xc0] %vm1884, %v1883
  %s1893 = scalar_lea.vmem %s0, 40
  %v1894 = vld [vmem:[%s1893] sm:$0xff]
  %1895 = vrot.lane.b32.xlu0 %v1894, 56
  %v1896 = vpop.permute.xlu0 %1895
  %vm1897 = vcmask 64512
  %s1898 = scalar_lea.vmem %s1, 649
  %1899 = vst.msk [vmem:[%s1898] ss:$16 sm:$0x3] %vm1897, %v1896
  %s1900 = scalar_lea.vmem %s1, 649
  %1901 = vst.msk [vmem:[%s1900] ss:$16 sm:$0xc] %vm1897, %v1896
  %s1902 = scalar_lea.vmem %s1, 649
  %1903 = vst.msk [vmem:[%s1902] ss:$16 sm:$0x30] %vm1897, %v1896
  %s1904 = scalar_lea.vmem %s1, 649
  %1905 = vst.msk [vmem:[%s1904] ss:$16 sm:$0xc0] %vm1897, %v1896
  %s1906 = scalar_lea.vmem %s0, 48
  %v1907 = vld [vmem:[%s1906] sm:$0xff]
  %1908 = vrot.lane.b32.xlu0 %v1907, 56
  %v1909 = vpop.permute.xlu0 %1908
  %vm1910 = vcmask 64512
  %s1911 = scalar_lea.vmem %s1, 777
  %1912 = vst.msk [vmem:[%s1911] ss:$16 sm:$0x3] %vm1910, %v1909
  %s1913 = scalar_lea.vmem %s1, 777
  %1914 = vst.msk [vmem:[%s1913] ss:$16 sm:$0xc] %vm1910, %v1909
  %s1915 = scalar_lea.vmem %s1, 777
  %1916 = vst.msk [vmem:[%s1915] ss:$16 sm:$0x30] %vm1910, %v1909
  %s1917 = scalar_lea.vmem %s1, 777
  %1918 = vst.msk [vmem:[%s1917] ss:$16 sm:$0xc0] %vm1910, %v1909
  %s1919 = scalar_lea.vmem %s0, 56
  %v1920 = vld [vmem:[%s1919] sm:$0xff]
  %1921 = vrot.lane.b32.xlu0 %v1920, 56
  %v1922 = vpop.permute.xlu0 %1921
  %vm1923 = vcmask 64512
  %s1924 = scalar_lea.vmem %s1, 905
  %1925 = vst.msk [vmem:[%s1924] ss:$16 sm:$0x3] %vm1923, %v1922
  %s1926 = scalar_lea.vmem %s1, 905
  %1927 = vst.msk [vmem:[%s1926] ss:$16 sm:$0xc] %vm1923, %v1922
  %s1928 = scalar_lea.vmem %s1, 905
  %1929 = vst.msk [vmem:[%s1928] ss:$16 sm:$0x30] %vm1923, %v1922
  %s1930 = scalar_lea.vmem %s1, 905
  %1931 = vst.msk [vmem:[%s1930] ss:$16 sm:$0xc0] %vm1923, %v1922
  %s1932 = scalar_lea.vmem %s0, 64
  %v1933 = vld [vmem:[%s1932] sm:$0xff]
  %1934 = vrot.lane.b32.xlu0 %v1933, 56
  %v1935 = vpop.permute.xlu0 %1934
  %vm1936 = vcmask 64512
  %s1937 = scalar_lea.vmem %s1, 1033
  %1938 = vst.msk [vmem:[%s1937] ss:$16 sm:$0x3] %vm1936, %v1935
  %s1939 = scalar_lea.vmem %s1, 1033
  %1940 = vst.msk [vmem:[%s1939] ss:$16 sm:$0xc] %vm1936, %v1935
  %s1941 = scalar_lea.vmem %s1, 1033
  %1942 = vst.msk [vmem:[%s1941] ss:$16 sm:$0x30] %vm1936, %v1935
  %s1943 = scalar_lea.vmem %s1, 1033
  %1944 = vst.msk [vmem:[%s1943] ss:$16 sm:$0xc0] %vm1936, %v1935
  %s1945 = scalar_lea.vmem %s0, 72
  %v1946 = vld [vmem:[%s1945] sm:$0xff]
  %1947 = vrot.lane.b32.xlu0 %v1946, 56
  %v1948 = vpop.permute.xlu0 %1947
  %vm1949 = vcmask 64512
  %s1950 = scalar_lea.vmem %s1, 1161
  %1951 = vst.msk [vmem:[%s1950] ss:$16 sm:$0x3] %vm1949, %v1948
  %s1952 = scalar_lea.vmem %s1, 1161
  %1953 = vst.msk [vmem:[%s1952] ss:$16 sm:$0xc] %vm1949, %v1948
  %s1954 = scalar_lea.vmem %s1, 1161
  %1955 = vst.msk [vmem:[%s1954] ss:$16 sm:$0x30] %vm1949, %v1948
  %s1956 = scalar_lea.vmem %s1, 1161
  %1957 = vst.msk [vmem:[%s1956] ss:$16 sm:$0xc0] %vm1949, %v1948
  %s1958 = scalar_lea.vmem %s0, 80
  %v1959 = vld [vmem:[%s1958] sm:$0xff]
  %1960 = vrot.lane.b32.xlu0 %v1959, 56
  %v1961 = vpop.permute.xlu0 %1960
  %vm1962 = vcmask 64512
  %s1963 = scalar_lea.vmem %s1, 1289
  %1964 = vst.msk [vmem:[%s1963] ss:$16 sm:$0x3] %vm1962, %v1961
  %s1965 = scalar_lea.vmem %s1, 1289
  %1966 = vst.msk [vmem:[%s1965] ss:$16 sm:$0xc] %vm1962, %v1961
  %s1967 = scalar_lea.vmem %s1, 1289
  %1968 = vst.msk [vmem:[%s1967] ss:$16 sm:$0x30] %vm1962, %v1961
  %s1969 = scalar_lea.vmem %s1, 1289
  %1970 = vst.msk [vmem:[%s1969] ss:$16 sm:$0xc0] %vm1962, %v1961
  %s1971 = scalar_lea.vmem %s0, 88
  %v1972 = vld [vmem:[%s1971] sm:$0xff]
  %1973 = vrot.lane.b32.xlu0 %v1972, 56
  %v1974 = vpop.permute.xlu0 %1973
  %vm1975 = vcmask 64512
  %s1976 = scalar_lea.vmem %s1, 1417
  %1977 = vst.msk [vmem:[%s1976] ss:$16 sm:$0x3] %vm1975, %v1974
  %s1978 = scalar_lea.vmem %s1, 1417
  %1979 = vst.msk [vmem:[%s1978] ss:$16 sm:$0xc] %vm1975, %v1974
  %s1980 = scalar_lea.vmem %s1, 1417
  %1981 = vst.msk [vmem:[%s1980] ss:$16 sm:$0x30] %vm1975, %v1974
  %s1982 = scalar_lea.vmem %s1, 1417
  %1983 = vst.msk [vmem:[%s1982] ss:$16 sm:$0xc0] %vm1975, %v1974
  %s1984 = scalar_lea.vmem %s0, 96
  %v1985 = vld [vmem:[%s1984] sm:$0xff]
  %1986 = vrot.lane.b32.xlu0 %v1985, 56
  %v1987 = vpop.permute.xlu0 %1986
  %vm1988 = vcmask 64512
  %s1989 = scalar_lea.vmem %s1, 1545
  %1990 = vst.msk [vmem:[%s1989] ss:$16 sm:$0x3] %vm1988, %v1987
  %s1991 = scalar_lea.vmem %s1, 1545
  %1992 = vst.msk [vmem:[%s1991] ss:$16 sm:$0xc] %vm1988, %v1987
  %s1993 = scalar_lea.vmem %s1, 1545
  %1994 = vst.msk [vmem:[%s1993] ss:$16 sm:$0x30] %vm1988, %v1987
  %s1995 = scalar_lea.vmem %s1, 1545
  %1996 = vst.msk [vmem:[%s1995] ss:$16 sm:$0xc0] %vm1988, %v1987
  %s1997 = scalar_lea.vmem %s0, 104
  %v1998 = vld [vmem:[%s1997] sm:$0xff]
  %1999 = vrot.lane.b32.xlu0 %v1998, 56
  %v2000 = vpop.permute.xlu0 %1999
  %vm2001 = vcmask 64512
  %s2002 = scalar_lea.vmem %s1, 1673
  %2003 = vst.msk [vmem:[%s2002] ss:$16 sm:$0x3] %vm2001, %v2000
  %s2004 = scalar_lea.vmem %s1, 1673
  %2005 = vst.msk [vmem:[%s2004] ss:$16 sm:$0xc] %vm2001, %v2000
  %s2006 = scalar_lea.vmem %s1, 1673
  %2007 = vst.msk [vmem:[%s2006] ss:$16 sm:$0x30] %vm2001, %v2000
  %s2008 = scalar_lea.vmem %s1, 1673
  %2009 = vst.msk [vmem:[%s2008] ss:$16 sm:$0xc0] %vm2001, %v2000
  %s2010 = scalar_lea.vmem %s0, 112
  %v2011 = vld [vmem:[%s2010] sm:$0xff]
  %2012 = vrot.lane.b32.xlu0 %v2011, 56
  %v2013 = vpop.permute.xlu0 %2012
  %vm2014 = vcmask 64512
  %s2015 = scalar_lea.vmem %s1, 1801
  %2016 = vst.msk [vmem:[%s2015] ss:$16 sm:$0x3] %vm2014, %v2013
  %s2017 = scalar_lea.vmem %s1, 1801
  %2018 = vst.msk [vmem:[%s2017] ss:$16 sm:$0xc] %vm2014, %v2013
  %s2019 = scalar_lea.vmem %s1, 1801
  %2020 = vst.msk [vmem:[%s2019] ss:$16 sm:$0x30] %vm2014, %v2013
  %s2021 = scalar_lea.vmem %s1, 1801
  %2022 = vst.msk [vmem:[%s2021] ss:$16 sm:$0xc0] %vm2014, %v2013
  %s2023 = scalar_lea.vmem %s0, 120
  %v2024 = vld [vmem:[%s2023] sm:$0xff]
  %2025 = vrot.lane.b32.xlu0 %v2024, 56
  %v2026 = vpop.permute.xlu0 %2025
  %vm2027 = vcmask 64512
  %s2028 = scalar_lea.vmem %s1, 1929
  %2029 = vst.msk [vmem:[%s2028] ss:$16 sm:$0x3] %vm2027, %v2026
  %s2030 = scalar_lea.vmem %s1, 1929
  %2031 = vst.msk [vmem:[%s2030] ss:$16 sm:$0xc] %vm2027, %v2026
  %s2032 = scalar_lea.vmem %s1, 1929
  %2033 = vst.msk [vmem:[%s2032] ss:$16 sm:$0x30] %vm2027, %v2026
  %s2034 = scalar_lea.vmem %s1, 1929
  %2035 = vst.msk [vmem:[%s2034] ss:$16 sm:$0xc0] %vm2027, %v2026
  %v2036 = vld [vmem:[%s0] sm:$0xff]
  %2037 = vrot.lane.b32.xlu0 %v2036, 48
  %v2038 = vpop.permute.xlu0 %2037
  %vm2039 = vcmask 64512
  %s2040 = scalar_lea.vmem %s1, 10
  %2041 = vst.msk [vmem:[%s2040] ss:$16 sm:$0x3] %vm2039, %v2038
  %s2042 = scalar_lea.vmem %s1, 10
  %2043 = vst.msk [vmem:[%s2042] ss:$16 sm:$0xc] %vm2039, %v2038
  %s2044 = scalar_lea.vmem %s1, 10
  %2045 = vst.msk [vmem:[%s2044] ss:$16 sm:$0x30] %vm2039, %v2038
  %s2046 = scalar_lea.vmem %s1, 10
  %2047 = vst.msk [vmem:[%s2046] ss:$16 sm:$0xc0] %vm2039, %v2038
  %s2048 = scalar_lea.vmem %s0, 8
  %v2049 = vld [vmem:[%s2048] sm:$0xff]
  %2050 = vrot.lane.b32.xlu0 %v2049, 48
  %v2051 = vpop.permute.xlu0 %2050
  %vm2052 = vcmask 64512
  %s2053 = scalar_lea.vmem %s1, 138
  %2054 = vst.msk [vmem:[%s2053] ss:$16 sm:$0x3] %vm2052, %v2051
  %s2055 = scalar_lea.vmem %s1, 138
  %2056 = vst.msk [vmem:[%s2055] ss:$16 sm:$0xc] %vm2052, %v2051
  %s2057 = scalar_lea.vmem %s1, 138
  %2058 = vst.msk [vmem:[%s2057] ss:$16 sm:$0x30] %vm2052, %v2051
  %s2059 = scalar_lea.vmem %s1, 138
  %2060 = vst.msk [vmem:[%s2059] ss:$16 sm:$0xc0] %vm2052, %v2051
  %s2061 = scalar_lea.vmem %s0, 16
  %v2062 = vld [vmem:[%s2061] sm:$0xff]
  %2063 = vrot.lane.b32.xlu0 %v2062, 48
  %v2064 = vpop.permute.xlu0 %2063
  %vm2065 = vcmask 64512
  %s2066 = scalar_lea.vmem %s1, 266
  %2067 = vst.msk [vmem:[%s2066] ss:$16 sm:$0x3] %vm2065, %v2064
  %s2068 = scalar_lea.vmem %s1, 266
  %2069 = vst.msk [vmem:[%s2068] ss:$16 sm:$0xc] %vm2065, %v2064
  %s2070 = scalar_lea.vmem %s1, 266
  %2071 = vst.msk [vmem:[%s2070] ss:$16 sm:$0x30] %vm2065, %v2064
  %s2072 = scalar_lea.vmem %s1, 266
  %2073 = vst.msk [vmem:[%s2072] ss:$16 sm:$0xc0] %vm2065, %v2064
  %s2074 = scalar_lea.vmem %s0, 24
  %v2075 = vld [vmem:[%s2074] sm:$0xff]
  %2076 = vrot.lane.b32.xlu0 %v2075, 48
  %v2077 = vpop.permute.xlu0 %2076
  %vm2078 = vcmask 64512
  %s2079 = scalar_lea.vmem %s1, 394
  %2080 = vst.msk [vmem:[%s2079] ss:$16 sm:$0x3] %vm2078, %v2077
  %s2081 = scalar_lea.vmem %s1, 394
  %2082 = vst.msk [vmem:[%s2081] ss:$16 sm:$0xc] %vm2078, %v2077
  %s2083 = scalar_lea.vmem %s1, 394
  %2084 = vst.msk [vmem:[%s2083] ss:$16 sm:$0x30] %vm2078, %v2077
  %s2085 = scalar_lea.vmem %s1, 394
  %2086 = vst.msk [vmem:[%s2085] ss:$16 sm:$0xc0] %vm2078, %v2077
  %s2087 = scalar_lea.vmem %s0, 32
  %v2088 = vld [vmem:[%s2087] sm:$0xff]
  %2089 = vrot.lane.b32.xlu0 %v2088, 48
  %v2090 = vpop.permute.xlu0 %2089
  %vm2091 = vcmask 64512
  %s2092 = scalar_lea.vmem %s1, 522
  %2093 = vst.msk [vmem:[%s2092] ss:$16 sm:$0x3] %vm2091, %v2090
  %s2094 = scalar_lea.vmem %s1, 522
  %2095 = vst.msk [vmem:[%s2094] ss:$16 sm:$0xc] %vm2091, %v2090
  %s2096 = scalar_lea.vmem %s1, 522
  %2097 = vst.msk [vmem:[%s2096] ss:$16 sm:$0x30] %vm2091, %v2090
  %s2098 = scalar_lea.vmem %s1, 522
  %2099 = vst.msk [vmem:[%s2098] ss:$16 sm:$0xc0] %vm2091, %v2090
  %s2100 = scalar_lea.vmem %s0, 40
  %v2101 = vld [vmem:[%s2100] sm:$0xff]
  %2102 = vrot.lane.b32.xlu0 %v2101, 48
  %v2103 = vpop.permute.xlu0 %2102
  %vm2104 = vcmask 64512
  %s2105 = scalar_lea.vmem %s1, 650
  %2106 = vst.msk [vmem:[%s2105] ss:$16 sm:$0x3] %vm2104, %v2103
  %s2107 = scalar_lea.vmem %s1, 650
  %2108 = vst.msk [vmem:[%s2107] ss:$16 sm:$0xc] %vm2104, %v2103
  %s2109 = scalar_lea.vmem %s1, 650
  %2110 = vst.msk [vmem:[%s2109] ss:$16 sm:$0x30] %vm2104, %v2103
  %s2111 = scalar_lea.vmem %s1, 650
  %2112 = vst.msk [vmem:[%s2111] ss:$16 sm:$0xc0] %vm2104, %v2103
  %s2113 = scalar_lea.vmem %s0, 48
  %v2114 = vld [vmem:[%s2113] sm:$0xff]
  %2115 = vrot.lane.b32.xlu0 %v2114, 48
  %v2116 = vpop.permute.xlu0 %2115
  %vm2117 = vcmask 64512
  %s2118 = scalar_lea.vmem %s1, 778
  %2119 = vst.msk [vmem:[%s2118] ss:$16 sm:$0x3] %vm2117, %v2116
  %s2120 = scalar_lea.vmem %s1, 778
  %2121 = vst.msk [vmem:[%s2120] ss:$16 sm:$0xc] %vm2117, %v2116
  %s2122 = scalar_lea.vmem %s1, 778
  %2123 = vst.msk [vmem:[%s2122] ss:$16 sm:$0x30] %vm2117, %v2116
  %s2124 = scalar_lea.vmem %s1, 778
  %2125 = vst.msk [vmem:[%s2124] ss:$16 sm:$0xc0] %vm2117, %v2116
  %s2126 = scalar_lea.vmem %s0, 56
  %v2127 = vld [vmem:[%s2126] sm:$0xff]
  %2128 = vrot.lane.b32.xlu0 %v2127, 48
  %v2129 = vpop.permute.xlu0 %2128
  %vm2130 = vcmask 64512
  %s2131 = scalar_lea.vmem %s1, 906
  %2132 = vst.msk [vmem:[%s2131] ss:$16 sm:$0x3] %vm2130, %v2129
  %s2133 = scalar_lea.vmem %s1, 906
  %2134 = vst.msk [vmem:[%s2133] ss:$16 sm:$0xc] %vm2130, %v2129
  %s2135 = scalar_lea.vmem %s1, 906
  %2136 = vst.msk [vmem:[%s2135] ss:$16 sm:$0x30] %vm2130, %v2129
  %s2137 = scalar_lea.vmem %s1, 906
  %2138 = vst.msk [vmem:[%s2137] ss:$16 sm:$0xc0] %vm2130, %v2129
  %s2139 = scalar_lea.vmem %s0, 64
  %v2140 = vld [vmem:[%s2139] sm:$0xff]
  %2141 = vrot.lane.b32.xlu0 %v2140, 48
  %v2142 = vpop.permute.xlu0 %2141
  %vm2143 = vcmask 64512
  %s2144 = scalar_lea.vmem %s1, 1034
  %2145 = vst.msk [vmem:[%s2144] ss:$16 sm:$0x3] %vm2143, %v2142
  %s2146 = scalar_lea.vmem %s1, 1034
  %2147 = vst.msk [vmem:[%s2146] ss:$16 sm:$0xc] %vm2143, %v2142
  %s2148 = scalar_lea.vmem %s1, 1034
  %2149 = vst.msk [vmem:[%s2148] ss:$16 sm:$0x30] %vm2143, %v2142
  %s2150 = scalar_lea.vmem %s1, 1034
  %2151 = vst.msk [vmem:[%s2150] ss:$16 sm:$0xc0] %vm2143, %v2142
  %s2152 = scalar_lea.vmem %s0, 72
  %v2153 = vld [vmem:[%s2152] sm:$0xff]
  %2154 = vrot.lane.b32.xlu0 %v2153, 48
  %v2155 = vpop.permute.xlu0 %2154
  %vm2156 = vcmask 64512
  %s2157 = scalar_lea.vmem %s1, 1162
  %2158 = vst.msk [vmem:[%s2157] ss:$16 sm:$0x3] %vm2156, %v2155
  %s2159 = scalar_lea.vmem %s1, 1162
  %2160 = vst.msk [vmem:[%s2159] ss:$16 sm:$0xc] %vm2156, %v2155
  %s2161 = scalar_lea.vmem %s1, 1162
  %2162 = vst.msk [vmem:[%s2161] ss:$16 sm:$0x30] %vm2156, %v2155
  %s2163 = scalar_lea.vmem %s1, 1162
  %2164 = vst.msk [vmem:[%s2163] ss:$16 sm:$0xc0] %vm2156, %v2155
  %s2165 = scalar_lea.vmem %s0, 80
  %v2166 = vld [vmem:[%s2165] sm:$0xff]
  %2167 = vrot.lane.b32.xlu0 %v2166, 48
  %v2168 = vpop.permute.xlu0 %2167
  %vm2169 = vcmask 64512
  %s2170 = scalar_lea.vmem %s1, 1290
  %2171 = vst.msk [vmem:[%s2170] ss:$16 sm:$0x3] %vm2169, %v2168
  %s2172 = scalar_lea.vmem %s1, 1290
  %2173 = vst.msk [vmem:[%s2172] ss:$16 sm:$0xc] %vm2169, %v2168
  %s2174 = scalar_lea.vmem %s1, 1290
  %2175 = vst.msk [vmem:[%s2174] ss:$16 sm:$0x30] %vm2169, %v2168
  %s2176 = scalar_lea.vmem %s1, 1290
  %2177 = vst.msk [vmem:[%s2176] ss:$16 sm:$0xc0] %vm2169, %v2168
  %s2178 = scalar_lea.vmem %s0, 88
  %v2179 = vld [vmem:[%s2178] sm:$0xff]
  %2180 = vrot.lane.b32.xlu0 %v2179, 48
  %v2181 = vpop.permute.xlu0 %2180
  %vm2182 = vcmask 64512
  %s2183 = scalar_lea.vmem %s1, 1418
  %2184 = vst.msk [vmem:[%s2183] ss:$16 sm:$0x3] %vm2182, %v2181
  %s2185 = scalar_lea.vmem %s1, 1418
  %2186 = vst.msk [vmem:[%s2185] ss:$16 sm:$0xc] %vm2182, %v2181
  %s2187 = scalar_lea.vmem %s1, 1418
  %2188 = vst.msk [vmem:[%s2187] ss:$16 sm:$0x30] %vm2182, %v2181
  %s2189 = scalar_lea.vmem %s1, 1418
  %2190 = vst.msk [vmem:[%s2189] ss:$16 sm:$0xc0] %vm2182, %v2181
  %s2191 = scalar_lea.vmem %s0, 96
  %v2192 = vld [vmem:[%s2191] sm:$0xff]
  %2193 = vrot.lane.b32.xlu0 %v2192, 48
  %v2194 = vpop.permute.xlu0 %2193
  %vm2195 = vcmask 64512
  %s2196 = scalar_lea.vmem %s1, 1546
  %2197 = vst.msk [vmem:[%s2196] ss:$16 sm:$0x3] %vm2195, %v2194
  %s2198 = scalar_lea.vmem %s1, 1546
  %2199 = vst.msk [vmem:[%s2198] ss:$16 sm:$0xc] %vm2195, %v2194
  %s2200 = scalar_lea.vmem %s1, 1546
  %2201 = vst.msk [vmem:[%s2200] ss:$16 sm:$0x30] %vm2195, %v2194
  %s2202 = scalar_lea.vmem %s1, 1546
  %2203 = vst.msk [vmem:[%s2202] ss:$16 sm:$0xc0] %vm2195, %v2194
  %s2204 = scalar_lea.vmem %s0, 104
  %v2205 = vld [vmem:[%s2204] sm:$0xff]
  %2206 = vrot.lane.b32.xlu0 %v2205, 48
  %v2207 = vpop.permute.xlu0 %2206
  %vm2208 = vcmask 64512
  %s2209 = scalar_lea.vmem %s1, 1674
  %2210 = vst.msk [vmem:[%s2209] ss:$16 sm:$0x3] %vm2208, %v2207
  %s2211 = scalar_lea.vmem %s1, 1674
  %2212 = vst.msk [vmem:[%s2211] ss:$16 sm:$0xc] %vm2208, %v2207
  %s2213 = scalar_lea.vmem %s1, 1674
  %2214 = vst.msk [vmem:[%s2213] ss:$16 sm:$0x30] %vm2208, %v2207
  %s2215 = scalar_lea.vmem %s1, 1674
  %2216 = vst.msk [vmem:[%s2215] ss:$16 sm:$0xc0] %vm2208, %v2207
  %s2217 = scalar_lea.vmem %s0, 112
  %v2218 = vld [vmem:[%s2217] sm:$0xff]
  %2219 = vrot.lane.b32.xlu0 %v2218, 48
  %v2220 = vpop.permute.xlu0 %2219
  %vm2221 = vcmask 64512
  %s2222 = scalar_lea.vmem %s1, 1802
  %2223 = vst.msk [vmem:[%s2222] ss:$16 sm:$0x3] %vm2221, %v2220
  %s2224 = scalar_lea.vmem %s1, 1802
  %2225 = vst.msk [vmem:[%s2224] ss:$16 sm:$0xc] %vm2221, %v2220
  %s2226 = scalar_lea.vmem %s1, 1802
  %2227 = vst.msk [vmem:[%s2226] ss:$16 sm:$0x30] %vm2221, %v2220
  %s2228 = scalar_lea.vmem %s1, 1802
  %2229 = vst.msk [vmem:[%s2228] ss:$16 sm:$0xc0] %vm2221, %v2220
  %s2230 = scalar_lea.vmem %s0, 120
  %v2231 = vld [vmem:[%s2230] sm:$0xff]
  %2232 = vrot.lane.b32.xlu0 %v2231, 48
  %v2233 = vpop.permute.xlu0 %2232
  %vm2234 = vcmask 64512
  %s2235 = scalar_lea.vmem %s1, 1930
  %2236 = vst.msk [vmem:[%s2235] ss:$16 sm:$0x3] %vm2234, %v2233
  %s2237 = scalar_lea.vmem %s1, 1930
  %2238 = vst.msk [vmem:[%s2237] ss:$16 sm:$0xc] %vm2234, %v2233
  %s2239 = scalar_lea.vmem %s1, 1930
  %2240 = vst.msk [vmem:[%s2239] ss:$16 sm:$0x30] %vm2234, %v2233
  %s2241 = scalar_lea.vmem %s1, 1930
  %2242 = vst.msk [vmem:[%s2241] ss:$16 sm:$0xc0] %vm2234, %v2233
  %v2243 = vld [vmem:[%s0] sm:$0xff]
  %2244 = vrot.lane.b32.xlu0 %v2243, 40
  %v2245 = vpop.permute.xlu0 %2244
  %vm2246 = vcmask 64512
  %s2247 = scalar_lea.vmem %s1, 11
  %2248 = vst.msk [vmem:[%s2247] ss:$16 sm:$0x3] %vm2246, %v2245
  %s2249 = scalar_lea.vmem %s1, 11
  %2250 = vst.msk [vmem:[%s2249] ss:$16 sm:$0xc] %vm2246, %v2245
  %s2251 = scalar_lea.vmem %s1, 11
  %2252 = vst.msk [vmem:[%s2251] ss:$16 sm:$0x30] %vm2246, %v2245
  %s2253 = scalar_lea.vmem %s1, 11
  %2254 = vst.msk [vmem:[%s2253] ss:$16 sm:$0xc0] %vm2246, %v2245
  %s2255 = scalar_lea.vmem %s0, 8
  %v2256 = vld [vmem:[%s2255] sm:$0xff]
  %2257 = vrot.lane.b32.xlu0 %v2256, 40
  %v2258 = vpop.permute.xlu0 %2257
  %vm2259 = vcmask 64512
  %s2260 = scalar_lea.vmem %s1, 139
  %2261 = vst.msk [vmem:[%s2260] ss:$16 sm:$0x3] %vm2259, %v2258
  %s2262 = scalar_lea.vmem %s1, 139
  %2263 = vst.msk [vmem:[%s2262] ss:$16 sm:$0xc] %vm2259, %v2258
  %s2264 = scalar_lea.vmem %s1, 139
  %2265 = vst.msk [vmem:[%s2264] ss:$16 sm:$0x30] %vm2259, %v2258
  %s2266 = scalar_lea.vmem %s1, 139
  %2267 = vst.msk [vmem:[%s2266] ss:$16 sm:$0xc0] %vm2259, %v2258
  %s2268 = scalar_lea.vmem %s0, 16
  %v2269 = vld [vmem:[%s2268] sm:$0xff]
  %2270 = vrot.lane.b32.xlu0 %v2269, 40
  %v2271 = vpop.permute.xlu0 %2270
  %vm2272 = vcmask 64512
  %s2273 = scalar_lea.vmem %s1, 267
  %2274 = vst.msk [vmem:[%s2273] ss:$16 sm:$0x3] %vm2272, %v2271
  %s2275 = scalar_lea.vmem %s1, 267
  %2276 = vst.msk [vmem:[%s2275] ss:$16 sm:$0xc] %vm2272, %v2271
  %s2277 = scalar_lea.vmem %s1, 267
  %2278 = vst.msk [vmem:[%s2277] ss:$16 sm:$0x30] %vm2272, %v2271
  %s2279 = scalar_lea.vmem %s1, 267
  %2280 = vst.msk [vmem:[%s2279] ss:$16 sm:$0xc0] %vm2272, %v2271
  %s2281 = scalar_lea.vmem %s0, 24
  %v2282 = vld [vmem:[%s2281] sm:$0xff]
  %2283 = vrot.lane.b32.xlu0 %v2282, 40
  %v2284 = vpop.permute.xlu0 %2283
  %vm2285 = vcmask 64512
  %s2286 = scalar_lea.vmem %s1, 395
  %2287 = vst.msk [vmem:[%s2286] ss:$16 sm:$0x3] %vm2285, %v2284
  %s2288 = scalar_lea.vmem %s1, 395
  %2289 = vst.msk [vmem:[%s2288] ss:$16 sm:$0xc] %vm2285, %v2284
  %s2290 = scalar_lea.vmem %s1, 395
  %2291 = vst.msk [vmem:[%s2290] ss:$16 sm:$0x30] %vm2285, %v2284
  %s2292 = scalar_lea.vmem %s1, 395
  %2293 = vst.msk [vmem:[%s2292] ss:$16 sm:$0xc0] %vm2285, %v2284
  %s2294 = scalar_lea.vmem %s0, 32
  %v2295 = vld [vmem:[%s2294] sm:$0xff]
  %2296 = vrot.lane.b32.xlu0 %v2295, 40
  %v2297 = vpop.permute.xlu0 %2296
  %vm2298 = vcmask 64512
  %s2299 = scalar_lea.vmem %s1, 523
  %2300 = vst.msk [vmem:[%s2299] ss:$16 sm:$0x3] %vm2298, %v2297
  %s2301 = scalar_lea.vmem %s1, 523
  %2302 = vst.msk [vmem:[%s2301] ss:$16 sm:$0xc] %vm2298, %v2297
  %s2303 = scalar_lea.vmem %s1, 523
  %2304 = vst.msk [vmem:[%s2303] ss:$16 sm:$0x30] %vm2298, %v2297
  %s2305 = scalar_lea.vmem %s1, 523
  %2306 = vst.msk [vmem:[%s2305] ss:$16 sm:$0xc0] %vm2298, %v2297
  %s2307 = scalar_lea.vmem %s0, 40
  %v2308 = vld [vmem:[%s2307] sm:$0xff]
  %2309 = vrot.lane.b32.xlu0 %v2308, 40
  %v2310 = vpop.permute.xlu0 %2309
  %vm2311 = vcmask 64512
  %s2312 = scalar_lea.vmem %s1, 651
  %2313 = vst.msk [vmem:[%s2312] ss:$16 sm:$0x3] %vm2311, %v2310
  %s2314 = scalar_lea.vmem %s1, 651
  %2315 = vst.msk [vmem:[%s2314] ss:$16 sm:$0xc] %vm2311, %v2310
  %s2316 = scalar_lea.vmem %s1, 651
  %2317 = vst.msk [vmem:[%s2316] ss:$16 sm:$0x30] %vm2311, %v2310
  %s2318 = scalar_lea.vmem %s1, 651
  %2319 = vst.msk [vmem:[%s2318] ss:$16 sm:$0xc0] %vm2311, %v2310
  %s2320 = scalar_lea.vmem %s0, 48
  %v2321 = vld [vmem:[%s2320] sm:$0xff]
  %2322 = vrot.lane.b32.xlu0 %v2321, 40
  %v2323 = vpop.permute.xlu0 %2322
  %vm2324 = vcmask 64512
  %s2325 = scalar_lea.vmem %s1, 779
  %2326 = vst.msk [vmem:[%s2325] ss:$16 sm:$0x3] %vm2324, %v2323
  %s2327 = scalar_lea.vmem %s1, 779
  %2328 = vst.msk [vmem:[%s2327] ss:$16 sm:$0xc] %vm2324, %v2323
  %s2329 = scalar_lea.vmem %s1, 779
  %2330 = vst.msk [vmem:[%s2329] ss:$16 sm:$0x30] %vm2324, %v2323
  %s2331 = scalar_lea.vmem %s1, 779
  %2332 = vst.msk [vmem:[%s2331] ss:$16 sm:$0xc0] %vm2324, %v2323
  %s2333 = scalar_lea.vmem %s0, 56
  %v2334 = vld [vmem:[%s2333] sm:$0xff]
  %2335 = vrot.lane.b32.xlu0 %v2334, 40
  %v2336 = vpop.permute.xlu0 %2335
  %vm2337 = vcmask 64512
  %s2338 = scalar_lea.vmem %s1, 907
  %2339 = vst.msk [vmem:[%s2338] ss:$16 sm:$0x3] %vm2337, %v2336
  %s2340 = scalar_lea.vmem %s1, 907
  %2341 = vst.msk [vmem:[%s2340] ss:$16 sm:$0xc] %vm2337, %v2336
  %s2342 = scalar_lea.vmem %s1, 907
  %2343 = vst.msk [vmem:[%s2342] ss:$16 sm:$0x30] %vm2337, %v2336
  %s2344 = scalar_lea.vmem %s1, 907
  %2345 = vst.msk [vmem:[%s2344] ss:$16 sm:$0xc0] %vm2337, %v2336
  %s2346 = scalar_lea.vmem %s0, 64
  %v2347 = vld [vmem:[%s2346] sm:$0xff]
  %2348 = vrot.lane.b32.xlu0 %v2347, 40
  %v2349 = vpop.permute.xlu0 %2348
  %vm2350 = vcmask 64512
  %s2351 = scalar_lea.vmem %s1, 1035
  %2352 = vst.msk [vmem:[%s2351] ss:$16 sm:$0x3] %vm2350, %v2349
  %s2353 = scalar_lea.vmem %s1, 1035
  %2354 = vst.msk [vmem:[%s2353] ss:$16 sm:$0xc] %vm2350, %v2349
  %s2355 = scalar_lea.vmem %s1, 1035
  %2356 = vst.msk [vmem:[%s2355] ss:$16 sm:$0x30] %vm2350, %v2349
  %s2357 = scalar_lea.vmem %s1, 1035
  %2358 = vst.msk [vmem:[%s2357] ss:$16 sm:$0xc0] %vm2350, %v2349
  %s2359 = scalar_lea.vmem %s0, 72
  %v2360 = vld [vmem:[%s2359] sm:$0xff]
  %2361 = vrot.lane.b32.xlu0 %v2360, 40
  %v2362 = vpop.permute.xlu0 %2361
  %vm2363 = vcmask 64512
  %s2364 = scalar_lea.vmem %s1, 1163
  %2365 = vst.msk [vmem:[%s2364] ss:$16 sm:$0x3] %vm2363, %v2362
  %s2366 = scalar_lea.vmem %s1, 1163
  %2367 = vst.msk [vmem:[%s2366] ss:$16 sm:$0xc] %vm2363, %v2362
  %s2368 = scalar_lea.vmem %s1, 1163
  %2369 = vst.msk [vmem:[%s2368] ss:$16 sm:$0x30] %vm2363, %v2362
  %s2370 = scalar_lea.vmem %s1, 1163
  %2371 = vst.msk [vmem:[%s2370] ss:$16 sm:$0xc0] %vm2363, %v2362
  %s2372 = scalar_lea.vmem %s0, 80
  %v2373 = vld [vmem:[%s2372] sm:$0xff]
  %2374 = vrot.lane.b32.xlu0 %v2373, 40
  %v2375 = vpop.permute.xlu0 %2374
  %vm2376 = vcmask 64512
  %s2377 = scalar_lea.vmem %s1, 1291
  %2378 = vst.msk [vmem:[%s2377] ss:$16 sm:$0x3] %vm2376, %v2375
  %s2379 = scalar_lea.vmem %s1, 1291
  %2380 = vst.msk [vmem:[%s2379] ss:$16 sm:$0xc] %vm2376, %v2375
  %s2381 = scalar_lea.vmem %s1, 1291
  %2382 = vst.msk [vmem:[%s2381] ss:$16 sm:$0x30] %vm2376, %v2375
  %s2383 = scalar_lea.vmem %s1, 1291
  %2384 = vst.msk [vmem:[%s2383] ss:$16 sm:$0xc0] %vm2376, %v2375
  %s2385 = scalar_lea.vmem %s0, 88
  %v2386 = vld [vmem:[%s2385] sm:$0xff]
  %2387 = vrot.lane.b32.xlu0 %v2386, 40
  %v2388 = vpop.permute.xlu0 %2387
  %vm2389 = vcmask 64512
  %s2390 = scalar_lea.vmem %s1, 1419
  %2391 = vst.msk [vmem:[%s2390] ss:$16 sm:$0x3] %vm2389, %v2388
  %s2392 = scalar_lea.vmem %s1, 1419
  %2393 = vst.msk [vmem:[%s2392] ss:$16 sm:$0xc] %vm2389, %v2388
  %s2394 = scalar_lea.vmem %s1, 1419
  %2395 = vst.msk [vmem:[%s2394] ss:$16 sm:$0x30] %vm2389, %v2388
  %s2396 = scalar_lea.vmem %s1, 1419
  %2397 = vst.msk [vmem:[%s2396] ss:$16 sm:$0xc0] %vm2389, %v2388
  %s2398 = scalar_lea.vmem %s0, 96
  %v2399 = vld [vmem:[%s2398] sm:$0xff]
  %2400 = vrot.lane.b32.xlu0 %v2399, 40
  %v2401 = vpop.permute.xlu0 %2400
  %vm2402 = vcmask 64512
  %s2403 = scalar_lea.vmem %s1, 1547
  %2404 = vst.msk [vmem:[%s2403] ss:$16 sm:$0x3] %vm2402, %v2401
  %s2405 = scalar_lea.vmem %s1, 1547
  %2406 = vst.msk [vmem:[%s2405] ss:$16 sm:$0xc] %vm2402, %v2401
  %s2407 = scalar_lea.vmem %s1, 1547
  %2408 = vst.msk [vmem:[%s2407] ss:$16 sm:$0x30] %vm2402, %v2401
  %s2409 = scalar_lea.vmem %s1, 1547
  %2410 = vst.msk [vmem:[%s2409] ss:$16 sm:$0xc0] %vm2402, %v2401
  %s2411 = scalar_lea.vmem %s0, 104
  %v2412 = vld [vmem:[%s2411] sm:$0xff]
  %2413 = vrot.lane.b32.xlu0 %v2412, 40
  %v2414 = vpop.permute.xlu0 %2413
  %vm2415 = vcmask 64512
  %s2416 = scalar_lea.vmem %s1, 1675
  %2417 = vst.msk [vmem:[%s2416] ss:$16 sm:$0x3] %vm2415, %v2414
  %s2418 = scalar_lea.vmem %s1, 1675
  %2419 = vst.msk [vmem:[%s2418] ss:$16 sm:$0xc] %vm2415, %v2414
  %s2420 = scalar_lea.vmem %s1, 1675
  %2421 = vst.msk [vmem:[%s2420] ss:$16 sm:$0x30] %vm2415, %v2414
  %s2422 = scalar_lea.vmem %s1, 1675
  %2423 = vst.msk [vmem:[%s2422] ss:$16 sm:$0xc0] %vm2415, %v2414
  %s2424 = scalar_lea.vmem %s0, 112
  %v2425 = vld [vmem:[%s2424] sm:$0xff]
  %2426 = vrot.lane.b32.xlu0 %v2425, 40
  %v2427 = vpop.permute.xlu0 %2426
  %vm2428 = vcmask 64512
  %s2429 = scalar_lea.vmem %s1, 1803
  %2430 = vst.msk [vmem:[%s2429] ss:$16 sm:$0x3] %vm2428, %v2427
  %s2431 = scalar_lea.vmem %s1, 1803
  %2432 = vst.msk [vmem:[%s2431] ss:$16 sm:$0xc] %vm2428, %v2427
  %s2433 = scalar_lea.vmem %s1, 1803
  %2434 = vst.msk [vmem:[%s2433] ss:$16 sm:$0x30] %vm2428, %v2427
  %s2435 = scalar_lea.vmem %s1, 1803
  %2436 = vst.msk [vmem:[%s2435] ss:$16 sm:$0xc0] %vm2428, %v2427
  %s2437 = scalar_lea.vmem %s0, 120
  %v2438 = vld [vmem:[%s2437] sm:$0xff]
  %2439 = vrot.lane.b32.xlu0 %v2438, 40
  %v2440 = vpop.permute.xlu0 %2439
  %vm2441 = vcmask 64512
  %s2442 = scalar_lea.vmem %s1, 1931
  %2443 = vst.msk [vmem:[%s2442] ss:$16 sm:$0x3] %vm2441, %v2440
  %s2444 = scalar_lea.vmem %s1, 1931
  %2445 = vst.msk [vmem:[%s2444] ss:$16 sm:$0xc] %vm2441, %v2440
  %s2446 = scalar_lea.vmem %s1, 1931
  %2447 = vst.msk [vmem:[%s2446] ss:$16 sm:$0x30] %vm2441, %v2440
  %s2448 = scalar_lea.vmem %s1, 1931
  %2449 = vst.msk [vmem:[%s2448] ss:$16 sm:$0xc0] %vm2441, %v2440
  %v2450 = vld [vmem:[%s0] sm:$0xff]
  %2451 = vrot.lane.b32.xlu0 %v2450, 32
  %v2452 = vpop.permute.xlu0 %2451
  %vm2453 = vcmask 64512
  %s2454 = scalar_lea.vmem %s1, 12
  %2455 = vst.msk [vmem:[%s2454] ss:$16 sm:$0x3] %vm2453, %v2452
  %s2456 = scalar_lea.vmem %s1, 12
  %2457 = vst.msk [vmem:[%s2456] ss:$16 sm:$0xc] %vm2453, %v2452
  %s2458 = scalar_lea.vmem %s1, 12
  %2459 = vst.msk [vmem:[%s2458] ss:$16 sm:$0x30] %vm2453, %v2452
  %s2460 = scalar_lea.vmem %s1, 12
  %2461 = vst.msk [vmem:[%s2460] ss:$16 sm:$0xc0] %vm2453, %v2452
  %s2462 = scalar_lea.vmem %s0, 8
  %v2463 = vld [vmem:[%s2462] sm:$0xff]
  %2464 = vrot.lane.b32.xlu0 %v2463, 32
  %v2465 = vpop.permute.xlu0 %2464
  %vm2466 = vcmask 64512
  %s2467 = scalar_lea.vmem %s1, 140
  %2468 = vst.msk [vmem:[%s2467] ss:$16 sm:$0x3] %vm2466, %v2465
  %s2469 = scalar_lea.vmem %s1, 140
  %2470 = vst.msk [vmem:[%s2469] ss:$16 sm:$0xc] %vm2466, %v2465
  %s2471 = scalar_lea.vmem %s1, 140
  %2472 = vst.msk [vmem:[%s2471] ss:$16 sm:$0x30] %vm2466, %v2465
  %s2473 = scalar_lea.vmem %s1, 140
  %2474 = vst.msk [vmem:[%s2473] ss:$16 sm:$0xc0] %vm2466, %v2465
  %s2475 = scalar_lea.vmem %s0, 16
  %v2476 = vld [vmem:[%s2475] sm:$0xff]
  %2477 = vrot.lane.b32.xlu0 %v2476, 32
  %v2478 = vpop.permute.xlu0 %2477
  %vm2479 = vcmask 64512
  %s2480 = scalar_lea.vmem %s1, 268
  %2481 = vst.msk [vmem:[%s2480] ss:$16 sm:$0x3] %vm2479, %v2478
  %s2482 = scalar_lea.vmem %s1, 268
  %2483 = vst.msk [vmem:[%s2482] ss:$16 sm:$0xc] %vm2479, %v2478
  %s2484 = scalar_lea.vmem %s1, 268
  %2485 = vst.msk [vmem:[%s2484] ss:$16 sm:$0x30] %vm2479, %v2478
  %s2486 = scalar_lea.vmem %s1, 268
  %2487 = vst.msk [vmem:[%s2486] ss:$16 sm:$0xc0] %vm2479, %v2478
  %s2488 = scalar_lea.vmem %s0, 24
  %v2489 = vld [vmem:[%s2488] sm:$0xff]
  %2490 = vrot.lane.b32.xlu0 %v2489, 32
  %v2491 = vpop.permute.xlu0 %2490
  %vm2492 = vcmask 64512
  %s2493 = scalar_lea.vmem %s1, 396
  %2494 = vst.msk [vmem:[%s2493] ss:$16 sm:$0x3] %vm2492, %v2491
  %s2495 = scalar_lea.vmem %s1, 396
  %2496 = vst.msk [vmem:[%s2495] ss:$16 sm:$0xc] %vm2492, %v2491
  %s2497 = scalar_lea.vmem %s1, 396
  %2498 = vst.msk [vmem:[%s2497] ss:$16 sm:$0x30] %vm2492, %v2491
  %s2499 = scalar_lea.vmem %s1, 396
  %2500 = vst.msk [vmem:[%s2499] ss:$16 sm:$0xc0] %vm2492, %v2491
  %s2501 = scalar_lea.vmem %s0, 32
  %v2502 = vld [vmem:[%s2501] sm:$0xff]
  %2503 = vrot.lane.b32.xlu0 %v2502, 32
  %v2504 = vpop.permute.xlu0 %2503
  %vm2505 = vcmask 64512
  %s2506 = scalar_lea.vmem %s1, 524
  %2507 = vst.msk [vmem:[%s2506] ss:$16 sm:$0x3] %vm2505, %v2504
  %s2508 = scalar_lea.vmem %s1, 524
  %2509 = vst.msk [vmem:[%s2508] ss:$16 sm:$0xc] %vm2505, %v2504
  %s2510 = scalar_lea.vmem %s1, 524
  %2511 = vst.msk [vmem:[%s2510] ss:$16 sm:$0x30] %vm2505, %v2504
  %s2512 = scalar_lea.vmem %s1, 524
  %2513 = vst.msk [vmem:[%s2512] ss:$16 sm:$0xc0] %vm2505, %v2504
  %s2514 = scalar_lea.vmem %s0, 40
  %v2515 = vld [vmem:[%s2514] sm:$0xff]
  %2516 = vrot.lane.b32.xlu0 %v2515, 32
  %v2517 = vpop.permute.xlu0 %2516
  %vm2518 = vcmask 64512
  %s2519 = scalar_lea.vmem %s1, 652
  %2520 = vst.msk [vmem:[%s2519] ss:$16 sm:$0x3] %vm2518, %v2517
  %s2521 = scalar_lea.vmem %s1, 652
  %2522 = vst.msk [vmem:[%s2521] ss:$16 sm:$0xc] %vm2518, %v2517
  %s2523 = scalar_lea.vmem %s1, 652
  %2524 = vst.msk [vmem:[%s2523] ss:$16 sm:$0x30] %vm2518, %v2517
  %s2525 = scalar_lea.vmem %s1, 652
  %2526 = vst.msk [vmem:[%s2525] ss:$16 sm:$0xc0] %vm2518, %v2517
  %s2527 = scalar_lea.vmem %s0, 48
  %v2528 = vld [vmem:[%s2527] sm:$0xff]
  %2529 = vrot.lane.b32.xlu0 %v2528, 32
  %v2530 = vpop.permute.xlu0 %2529
  %vm2531 = vcmask 64512
  %s2532 = scalar_lea.vmem %s1, 780
  %2533 = vst.msk [vmem:[%s2532] ss:$16 sm:$0x3] %vm2531, %v2530
  %s2534 = scalar_lea.vmem %s1, 780
  %2535 = vst.msk [vmem:[%s2534] ss:$16 sm:$0xc] %vm2531, %v2530
  %s2536 = scalar_lea.vmem %s1, 780
  %2537 = vst.msk [vmem:[%s2536] ss:$16 sm:$0x30] %vm2531, %v2530
  %s2538 = scalar_lea.vmem %s1, 780
  %2539 = vst.msk [vmem:[%s2538] ss:$16 sm:$0xc0] %vm2531, %v2530
  %s2540 = scalar_lea.vmem %s0, 56
  %v2541 = vld [vmem:[%s2540] sm:$0xff]
  %2542 = vrot.lane.b32.xlu0 %v2541, 32
  %v2543 = vpop.permute.xlu0 %2542
  %vm2544 = vcmask 64512
  %s2545 = scalar_lea.vmem %s1, 908
  %2546 = vst.msk [vmem:[%s2545] ss:$16 sm:$0x3] %vm2544, %v2543
  %s2547 = scalar_lea.vmem %s1, 908
  %2548 = vst.msk [vmem:[%s2547] ss:$16 sm:$0xc] %vm2544, %v2543
  %s2549 = scalar_lea.vmem %s1, 908
  %2550 = vst.msk [vmem:[%s2549] ss:$16 sm:$0x30] %vm2544, %v2543
  %s2551 = scalar_lea.vmem %s1, 908
  %2552 = vst.msk [vmem:[%s2551] ss:$16 sm:$0xc0] %vm2544, %v2543
  %s2553 = scalar_lea.vmem %s0, 64
  %v2554 = vld [vmem:[%s2553] sm:$0xff]
  %2555 = vrot.lane.b32.xlu0 %v2554, 32
  %v2556 = vpop.permute.xlu0 %2555
  %vm2557 = vcmask 64512
  %s2558 = scalar_lea.vmem %s1, 1036
  %2559 = vst.msk [vmem:[%s2558] ss:$16 sm:$0x3] %vm2557, %v2556
  %s2560 = scalar_lea.vmem %s1, 1036
  %2561 = vst.msk [vmem:[%s2560] ss:$16 sm:$0xc] %vm2557, %v2556
  %s2562 = scalar_lea.vmem %s1, 1036
  %2563 = vst.msk [vmem:[%s2562] ss:$16 sm:$0x30] %vm2557, %v2556
  %s2564 = scalar_lea.vmem %s1, 1036
  %2565 = vst.msk [vmem:[%s2564] ss:$16 sm:$0xc0] %vm2557, %v2556
  %s2566 = scalar_lea.vmem %s0, 72
  %v2567 = vld [vmem:[%s2566] sm:$0xff]
  %2568 = vrot.lane.b32.xlu0 %v2567, 32
  %v2569 = vpop.permute.xlu0 %2568
  %vm2570 = vcmask 64512
  %s2571 = scalar_lea.vmem %s1, 1164
  %2572 = vst.msk [vmem:[%s2571] ss:$16 sm:$0x3] %vm2570, %v2569
  %s2573 = scalar_lea.vmem %s1, 1164
  %2574 = vst.msk [vmem:[%s2573] ss:$16 sm:$0xc] %vm2570, %v2569
  %s2575 = scalar_lea.vmem %s1, 1164
  %2576 = vst.msk [vmem:[%s2575] ss:$16 sm:$0x30] %vm2570, %v2569
  %s2577 = scalar_lea.vmem %s1, 1164
  %2578 = vst.msk [vmem:[%s2577] ss:$16 sm:$0xc0] %vm2570, %v2569
  %s2579 = scalar_lea.vmem %s0, 80
  %v2580 = vld [vmem:[%s2579] sm:$0xff]
  %2581 = vrot.lane.b32.xlu0 %v2580, 32
  %v2582 = vpop.permute.xlu0 %2581
  %vm2583 = vcmask 64512
  %s2584 = scalar_lea.vmem %s1, 1292
  %2585 = vst.msk [vmem:[%s2584] ss:$16 sm:$0x3] %vm2583, %v2582
  %s2586 = scalar_lea.vmem %s1, 1292
  %2587 = vst.msk [vmem:[%s2586] ss:$16 sm:$0xc] %vm2583, %v2582
  %s2588 = scalar_lea.vmem %s1, 1292
  %2589 = vst.msk [vmem:[%s2588] ss:$16 sm:$0x30] %vm2583, %v2582
  %s2590 = scalar_lea.vmem %s1, 1292
  %2591 = vst.msk [vmem:[%s2590] ss:$16 sm:$0xc0] %vm2583, %v2582
  %s2592 = scalar_lea.vmem %s0, 88
  %v2593 = vld [vmem:[%s2592] sm:$0xff]
  %2594 = vrot.lane.b32.xlu0 %v2593, 32
  %v2595 = vpop.permute.xlu0 %2594
  %vm2596 = vcmask 64512
  %s2597 = scalar_lea.vmem %s1, 1420
  %2598 = vst.msk [vmem:[%s2597] ss:$16 sm:$0x3] %vm2596, %v2595
  %s2599 = scalar_lea.vmem %s1, 1420
  %2600 = vst.msk [vmem:[%s2599] ss:$16 sm:$0xc] %vm2596, %v2595
  %s2601 = scalar_lea.vmem %s1, 1420
  %2602 = vst.msk [vmem:[%s2601] ss:$16 sm:$0x30] %vm2596, %v2595
  %s2603 = scalar_lea.vmem %s1, 1420
  %2604 = vst.msk [vmem:[%s2603] ss:$16 sm:$0xc0] %vm2596, %v2595
  %s2605 = scalar_lea.vmem %s0, 96
  %v2606 = vld [vmem:[%s2605] sm:$0xff]
  %2607 = vrot.lane.b32.xlu0 %v2606, 32
  %v2608 = vpop.permute.xlu0 %2607
  %vm2609 = vcmask 64512
  %s2610 = scalar_lea.vmem %s1, 1548
  %2611 = vst.msk [vmem:[%s2610] ss:$16 sm:$0x3] %vm2609, %v2608
  %s2612 = scalar_lea.vmem %s1, 1548
  %2613 = vst.msk [vmem:[%s2612] ss:$16 sm:$0xc] %vm2609, %v2608
  %s2614 = scalar_lea.vmem %s1, 1548
  %2615 = vst.msk [vmem:[%s2614] ss:$16 sm:$0x30] %vm2609, %v2608
  %s2616 = scalar_lea.vmem %s1, 1548
  %2617 = vst.msk [vmem:[%s2616] ss:$16 sm:$0xc0] %vm2609, %v2608
  %s2618 = scalar_lea.vmem %s0, 104
  %v2619 = vld [vmem:[%s2618] sm:$0xff]
  %2620 = vrot.lane.b32.xlu0 %v2619, 32
  %v2621 = vpop.permute.xlu0 %2620
  %vm2622 = vcmask 64512
  %s2623 = scalar_lea.vmem %s1, 1676
  %2624 = vst.msk [vmem:[%s2623] ss:$16 sm:$0x3] %vm2622, %v2621
  %s2625 = scalar_lea.vmem %s1, 1676
  %2626 = vst.msk [vmem:[%s2625] ss:$16 sm:$0xc] %vm2622, %v2621
  %s2627 = scalar_lea.vmem %s1, 1676
  %2628 = vst.msk [vmem:[%s2627] ss:$16 sm:$0x30] %vm2622, %v2621
  %s2629 = scalar_lea.vmem %s1, 1676
  %2630 = vst.msk [vmem:[%s2629] ss:$16 sm:$0xc0] %vm2622, %v2621
  %s2631 = scalar_lea.vmem %s0, 112
  %v2632 = vld [vmem:[%s2631] sm:$0xff]
  %2633 = vrot.lane.b32.xlu0 %v2632, 32
  %v2634 = vpop.permute.xlu0 %2633
  %vm2635 = vcmask 64512
  %s2636 = scalar_lea.vmem %s1, 1804
  %2637 = vst.msk [vmem:[%s2636] ss:$16 sm:$0x3] %vm2635, %v2634
  %s2638 = scalar_lea.vmem %s1, 1804
  %2639 = vst.msk [vmem:[%s2638] ss:$16 sm:$0xc] %vm2635, %v2634
  %s2640 = scalar_lea.vmem %s1, 1804
  %2641 = vst.msk [vmem:[%s2640] ss:$16 sm:$0x30] %vm2635, %v2634
  %s2642 = scalar_lea.vmem %s1, 1804
  %2643 = vst.msk [vmem:[%s2642] ss:$16 sm:$0xc0] %vm2635, %v2634
  %s2644 = scalar_lea.vmem %s0, 120
  %v2645 = vld [vmem:[%s2644] sm:$0xff]
  %2646 = vrot.lane.b32.xlu0 %v2645, 32
  %v2647 = vpop.permute.xlu0 %2646
  %vm2648 = vcmask 64512
  %s2649 = scalar_lea.vmem %s1, 1932
  %2650 = vst.msk [vmem:[%s2649] ss:$16 sm:$0x3] %vm2648, %v2647
  %s2651 = scalar_lea.vmem %s1, 1932
  %2652 = vst.msk [vmem:[%s2651] ss:$16 sm:$0xc] %vm2648, %v2647
  %s2653 = scalar_lea.vmem %s1, 1932
  %2654 = vst.msk [vmem:[%s2653] ss:$16 sm:$0x30] %vm2648, %v2647
  %s2655 = scalar_lea.vmem %s1, 1932
  %2656 = vst.msk [vmem:[%s2655] ss:$16 sm:$0xc0] %vm2648, %v2647
  %v2657 = vld [vmem:[%s0] sm:$0xff]
  %2658 = vrot.lane.b32.xlu0 %v2657, 24
  %v2659 = vpop.permute.xlu0 %2658
  %vm2660 = vcmask 64512
  %s2661 = scalar_lea.vmem %s1, 13
  %2662 = vst.msk [vmem:[%s2661] ss:$16 sm:$0x3] %vm2660, %v2659
  %s2663 = scalar_lea.vmem %s1, 13
  %2664 = vst.msk [vmem:[%s2663] ss:$16 sm:$0xc] %vm2660, %v2659
  %s2665 = scalar_lea.vmem %s1, 13
  %2666 = vst.msk [vmem:[%s2665] ss:$16 sm:$0x30] %vm2660, %v2659
  %s2667 = scalar_lea.vmem %s1, 13
  %2668 = vst.msk [vmem:[%s2667] ss:$16 sm:$0xc0] %vm2660, %v2659
  %s2669 = scalar_lea.vmem %s0, 8
  %v2670 = vld [vmem:[%s2669] sm:$0xff]
  %2671 = vrot.lane.b32.xlu0 %v2670, 24
  %v2672 = vpop.permute.xlu0 %2671
  %vm2673 = vcmask 64512
  %s2674 = scalar_lea.vmem %s1, 141
  %2675 = vst.msk [vmem:[%s2674] ss:$16 sm:$0x3] %vm2673, %v2672
  %s2676 = scalar_lea.vmem %s1, 141
  %2677 = vst.msk [vmem:[%s2676] ss:$16 sm:$0xc] %vm2673, %v2672
  %s2678 = scalar_lea.vmem %s1, 141
  %2679 = vst.msk [vmem:[%s2678] ss:$16 sm:$0x30] %vm2673, %v2672
  %s2680 = scalar_lea.vmem %s1, 141
  %2681 = vst.msk [vmem:[%s2680] ss:$16 sm:$0xc0] %vm2673, %v2672
  %s2682 = scalar_lea.vmem %s0, 16
  %v2683 = vld [vmem:[%s2682] sm:$0xff]
  %2684 = vrot.lane.b32.xlu0 %v2683, 24
  %v2685 = vpop.permute.xlu0 %2684
  %vm2686 = vcmask 64512
  %s2687 = scalar_lea.vmem %s1, 269
  %2688 = vst.msk [vmem:[%s2687] ss:$16 sm:$0x3] %vm2686, %v2685
  %s2689 = scalar_lea.vmem %s1, 269
  %2690 = vst.msk [vmem:[%s2689] ss:$16 sm:$0xc] %vm2686, %v2685
  %s2691 = scalar_lea.vmem %s1, 269
  %2692 = vst.msk [vmem:[%s2691] ss:$16 sm:$0x30] %vm2686, %v2685
  %s2693 = scalar_lea.vmem %s1, 269
  %2694 = vst.msk [vmem:[%s2693] ss:$16 sm:$0xc0] %vm2686, %v2685
  %s2695 = scalar_lea.vmem %s0, 24
  %v2696 = vld [vmem:[%s2695] sm:$0xff]
  %2697 = vrot.lane.b32.xlu0 %v2696, 24
  %v2698 = vpop.permute.xlu0 %2697
  %vm2699 = vcmask 64512
  %s2700 = scalar_lea.vmem %s1, 397
  %2701 = vst.msk [vmem:[%s2700] ss:$16 sm:$0x3] %vm2699, %v2698
  %s2702 = scalar_lea.vmem %s1, 397
  %2703 = vst.msk [vmem:[%s2702] ss:$16 sm:$0xc] %vm2699, %v2698
  %s2704 = scalar_lea.vmem %s1, 397
  %2705 = vst.msk [vmem:[%s2704] ss:$16 sm:$0x30] %vm2699, %v2698
  %s2706 = scalar_lea.vmem %s1, 397
  %2707 = vst.msk [vmem:[%s2706] ss:$16 sm:$0xc0] %vm2699, %v2698
  %s2708 = scalar_lea.vmem %s0, 32
  %v2709 = vld [vmem:[%s2708] sm:$0xff]
  %2710 = vrot.lane.b32.xlu0 %v2709, 24
  %v2711 = vpop.permute.xlu0 %2710
  %vm2712 = vcmask 64512
  %s2713 = scalar_lea.vmem %s1, 525
  %2714 = vst.msk [vmem:[%s2713] ss:$16 sm:$0x3] %vm2712, %v2711
  %s2715 = scalar_lea.vmem %s1, 525
  %2716 = vst.msk [vmem:[%s2715] ss:$16 sm:$0xc] %vm2712, %v2711
  %s2717 = scalar_lea.vmem %s1, 525
  %2718 = vst.msk [vmem:[%s2717] ss:$16 sm:$0x30] %vm2712, %v2711
  %s2719 = scalar_lea.vmem %s1, 525
  %2720 = vst.msk [vmem:[%s2719] ss:$16 sm:$0xc0] %vm2712, %v2711
  %s2721 = scalar_lea.vmem %s0, 40
  %v2722 = vld [vmem:[%s2721] sm:$0xff]
  %2723 = vrot.lane.b32.xlu0 %v2722, 24
  %v2724 = vpop.permute.xlu0 %2723
  %vm2725 = vcmask 64512
  %s2726 = scalar_lea.vmem %s1, 653
  %2727 = vst.msk [vmem:[%s2726] ss:$16 sm:$0x3] %vm2725, %v2724
  %s2728 = scalar_lea.vmem %s1, 653
  %2729 = vst.msk [vmem:[%s2728] ss:$16 sm:$0xc] %vm2725, %v2724
  %s2730 = scalar_lea.vmem %s1, 653
  %2731 = vst.msk [vmem:[%s2730] ss:$16 sm:$0x30] %vm2725, %v2724
  %s2732 = scalar_lea.vmem %s1, 653
  %2733 = vst.msk [vmem:[%s2732] ss:$16 sm:$0xc0] %vm2725, %v2724
  %s2734 = scalar_lea.vmem %s0, 48
  %v2735 = vld [vmem:[%s2734] sm:$0xff]
  %2736 = vrot.lane.b32.xlu0 %v2735, 24
  %v2737 = vpop.permute.xlu0 %2736
  %vm2738 = vcmask 64512
  %s2739 = scalar_lea.vmem %s1, 781
  %2740 = vst.msk [vmem:[%s2739] ss:$16 sm:$0x3] %vm2738, %v2737
  %s2741 = scalar_lea.vmem %s1, 781
  %2742 = vst.msk [vmem:[%s2741] ss:$16 sm:$0xc] %vm2738, %v2737
  %s2743 = scalar_lea.vmem %s1, 781
  %2744 = vst.msk [vmem:[%s2743] ss:$16 sm:$0x30] %vm2738, %v2737
  %s2745 = scalar_lea.vmem %s1, 781
  %2746 = vst.msk [vmem:[%s2745] ss:$16 sm:$0xc0] %vm2738, %v2737
  %s2747 = scalar_lea.vmem %s0, 56
  %v2748 = vld [vmem:[%s2747] sm:$0xff]
  %2749 = vrot.lane.b32.xlu0 %v2748, 24
  %v2750 = vpop.permute.xlu0 %2749
  %vm2751 = vcmask 64512
  %s2752 = scalar_lea.vmem %s1, 909
  %2753 = vst.msk [vmem:[%s2752] ss:$16 sm:$0x3] %vm2751, %v2750
  %s2754 = scalar_lea.vmem %s1, 909
  %2755 = vst.msk [vmem:[%s2754] ss:$16 sm:$0xc] %vm2751, %v2750
  %s2756 = scalar_lea.vmem %s1, 909
  %2757 = vst.msk [vmem:[%s2756] ss:$16 sm:$0x30] %vm2751, %v2750
  %s2758 = scalar_lea.vmem %s1, 909
  %2759 = vst.msk [vmem:[%s2758] ss:$16 sm:$0xc0] %vm2751, %v2750
  %s2760 = scalar_lea.vmem %s0, 64
  %v2761 = vld [vmem:[%s2760] sm:$0xff]
  %2762 = vrot.lane.b32.xlu0 %v2761, 24
  %v2763 = vpop.permute.xlu0 %2762
  %vm2764 = vcmask 64512
  %s2765 = scalar_lea.vmem %s1, 1037
  %2766 = vst.msk [vmem:[%s2765] ss:$16 sm:$0x3] %vm2764, %v2763
  %s2767 = scalar_lea.vmem %s1, 1037
  %2768 = vst.msk [vmem:[%s2767] ss:$16 sm:$0xc] %vm2764, %v2763
  %s2769 = scalar_lea.vmem %s1, 1037
  %2770 = vst.msk [vmem:[%s2769] ss:$16 sm:$0x30] %vm2764, %v2763
  %s2771 = scalar_lea.vmem %s1, 1037
  %2772 = vst.msk [vmem:[%s2771] ss:$16 sm:$0xc0] %vm2764, %v2763
  %s2773 = scalar_lea.vmem %s0, 72
  %v2774 = vld [vmem:[%s2773] sm:$0xff]
  %2775 = vrot.lane.b32.xlu0 %v2774, 24
  %v2776 = vpop.permute.xlu0 %2775
  %vm2777 = vcmask 64512
  %s2778 = scalar_lea.vmem %s1, 1165
  %2779 = vst.msk [vmem:[%s2778] ss:$16 sm:$0x3] %vm2777, %v2776
  %s2780 = scalar_lea.vmem %s1, 1165
  %2781 = vst.msk [vmem:[%s2780] ss:$16 sm:$0xc] %vm2777, %v2776
  %s2782 = scalar_lea.vmem %s1, 1165
  %2783 = vst.msk [vmem:[%s2782] ss:$16 sm:$0x30] %vm2777, %v2776
  %s2784 = scalar_lea.vmem %s1, 1165
  %2785 = vst.msk [vmem:[%s2784] ss:$16 sm:$0xc0] %vm2777, %v2776
  %s2786 = scalar_lea.vmem %s0, 80
  %v2787 = vld [vmem:[%s2786] sm:$0xff]
  %2788 = vrot.lane.b32.xlu0 %v2787, 24
  %v2789 = vpop.permute.xlu0 %2788
  %vm2790 = vcmask 64512
  %s2791 = scalar_lea.vmem %s1, 1293
  %2792 = vst.msk [vmem:[%s2791] ss:$16 sm:$0x3] %vm2790, %v2789
  %s2793 = scalar_lea.vmem %s1, 1293
  %2794 = vst.msk [vmem:[%s2793] ss:$16 sm:$0xc] %vm2790, %v2789
  %s2795 = scalar_lea.vmem %s1, 1293
  %2796 = vst.msk [vmem:[%s2795] ss:$16 sm:$0x30] %vm2790, %v2789
  %s2797 = scalar_lea.vmem %s1, 1293
  %2798 = vst.msk [vmem:[%s2797] ss:$16 sm:$0xc0] %vm2790, %v2789
  %s2799 = scalar_lea.vmem %s0, 88
  %v2800 = vld [vmem:[%s2799] sm:$0xff]
  %2801 = vrot.lane.b32.xlu0 %v2800, 24
  %v2802 = vpop.permute.xlu0 %2801
  %vm2803 = vcmask 64512
  %s2804 = scalar_lea.vmem %s1, 1421
  %2805 = vst.msk [vmem:[%s2804] ss:$16 sm:$0x3] %vm2803, %v2802
  %s2806 = scalar_lea.vmem %s1, 1421
  %2807 = vst.msk [vmem:[%s2806] ss:$16 sm:$0xc] %vm2803, %v2802
  %s2808 = scalar_lea.vmem %s1, 1421
  %2809 = vst.msk [vmem:[%s2808] ss:$16 sm:$0x30] %vm2803, %v2802
  %s2810 = scalar_lea.vmem %s1, 1421
  %2811 = vst.msk [vmem:[%s2810] ss:$16 sm:$0xc0] %vm2803, %v2802
  %s2812 = scalar_lea.vmem %s0, 96
  %v2813 = vld [vmem:[%s2812] sm:$0xff]
  %2814 = vrot.lane.b32.xlu0 %v2813, 24
  %v2815 = vpop.permute.xlu0 %2814
  %vm2816 = vcmask 64512
  %s2817 = scalar_lea.vmem %s1, 1549
  %2818 = vst.msk [vmem:[%s2817] ss:$16 sm:$0x3] %vm2816, %v2815
  %s2819 = scalar_lea.vmem %s1, 1549
  %2820 = vst.msk [vmem:[%s2819] ss:$16 sm:$0xc] %vm2816, %v2815
  %s2821 = scalar_lea.vmem %s1, 1549
  %2822 = vst.msk [vmem:[%s2821] ss:$16 sm:$0x30] %vm2816, %v2815
  %s2823 = scalar_lea.vmem %s1, 1549
  %2824 = vst.msk [vmem:[%s2823] ss:$16 sm:$0xc0] %vm2816, %v2815
  %s2825 = scalar_lea.vmem %s0, 104
  %v2826 = vld [vmem:[%s2825] sm:$0xff]
  %2827 = vrot.lane.b32.xlu0 %v2826, 24
  %v2828 = vpop.permute.xlu0 %2827
  %vm2829 = vcmask 64512
  %s2830 = scalar_lea.vmem %s1, 1677
  %2831 = vst.msk [vmem:[%s2830] ss:$16 sm:$0x3] %vm2829, %v2828
  %s2832 = scalar_lea.vmem %s1, 1677
  %2833 = vst.msk [vmem:[%s2832] ss:$16 sm:$0xc] %vm2829, %v2828
  %s2834 = scalar_lea.vmem %s1, 1677
  %2835 = vst.msk [vmem:[%s2834] ss:$16 sm:$0x30] %vm2829, %v2828
  %s2836 = scalar_lea.vmem %s1, 1677
  %2837 = vst.msk [vmem:[%s2836] ss:$16 sm:$0xc0] %vm2829, %v2828
  %s2838 = scalar_lea.vmem %s0, 112
  %v2839 = vld [vmem:[%s2838] sm:$0xff]
  %2840 = vrot.lane.b32.xlu0 %v2839, 24
  %v2841 = vpop.permute.xlu0 %2840
  %vm2842 = vcmask 64512
  %s2843 = scalar_lea.vmem %s1, 1805
  %2844 = vst.msk [vmem:[%s2843] ss:$16 sm:$0x3] %vm2842, %v2841
  %s2845 = scalar_lea.vmem %s1, 1805
  %2846 = vst.msk [vmem:[%s2845] ss:$16 sm:$0xc] %vm2842, %v2841
  %s2847 = scalar_lea.vmem %s1, 1805
  %2848 = vst.msk [vmem:[%s2847] ss:$16 sm:$0x30] %vm2842, %v2841
  %s2849 = scalar_lea.vmem %s1, 1805
  %2850 = vst.msk [vmem:[%s2849] ss:$16 sm:$0xc0] %vm2842, %v2841
  %s2851 = scalar_lea.vmem %s0, 120
  %v2852 = vld [vmem:[%s2851] sm:$0xff]
  %2853 = vrot.lane.b32.xlu0 %v2852, 24
  %v2854 = vpop.permute.xlu0 %2853
  %vm2855 = vcmask 64512
  %s2856 = scalar_lea.vmem %s1, 1933
  %2857 = vst.msk [vmem:[%s2856] ss:$16 sm:$0x3] %vm2855, %v2854
  %s2858 = scalar_lea.vmem %s1, 1933
  %2859 = vst.msk [vmem:[%s2858] ss:$16 sm:$0xc] %vm2855, %v2854
  %s2860 = scalar_lea.vmem %s1, 1933
  %2861 = vst.msk [vmem:[%s2860] ss:$16 sm:$0x30] %vm2855, %v2854
  %s2862 = scalar_lea.vmem %s1, 1933
  %2863 = vst.msk [vmem:[%s2862] ss:$16 sm:$0xc0] %vm2855, %v2854
  %v2864 = vld [vmem:[%s0] sm:$0xff]
  %2865 = vrot.lane.b32.xlu0 %v2864, 16
  %v2866 = vpop.permute.xlu0 %2865
  %vm2867 = vcmask 64512
  %s2868 = scalar_lea.vmem %s1, 14
  %2869 = vst.msk [vmem:[%s2868] ss:$16 sm:$0x3] %vm2867, %v2866
  %s2870 = scalar_lea.vmem %s1, 14
  %2871 = vst.msk [vmem:[%s2870] ss:$16 sm:$0xc] %vm2867, %v2866
  %s2872 = scalar_lea.vmem %s1, 14
  %2873 = vst.msk [vmem:[%s2872] ss:$16 sm:$0x30] %vm2867, %v2866
  %s2874 = scalar_lea.vmem %s1, 14
  %2875 = vst.msk [vmem:[%s2874] ss:$16 sm:$0xc0] %vm2867, %v2866
  %s2876 = scalar_lea.vmem %s0, 8
  %v2877 = vld [vmem:[%s2876] sm:$0xff]
  %2878 = vrot.lane.b32.xlu0 %v2877, 16
  %v2879 = vpop.permute.xlu0 %2878
  %vm2880 = vcmask 64512
  %s2881 = scalar_lea.vmem %s1, 142
  %2882 = vst.msk [vmem:[%s2881] ss:$16 sm:$0x3] %vm2880, %v2879
  %s2883 = scalar_lea.vmem %s1, 142
  %2884 = vst.msk [vmem:[%s2883] ss:$16 sm:$0xc] %vm2880, %v2879
  %s2885 = scalar_lea.vmem %s1, 142
  %2886 = vst.msk [vmem:[%s2885] ss:$16 sm:$0x30] %vm2880, %v2879
  %s2887 = scalar_lea.vmem %s1, 142
  %2888 = vst.msk [vmem:[%s2887] ss:$16 sm:$0xc0] %vm2880, %v2879
  %s2889 = scalar_lea.vmem %s0, 16
  %v2890 = vld [vmem:[%s2889] sm:$0xff]
  %2891 = vrot.lane.b32.xlu0 %v2890, 16
  %v2892 = vpop.permute.xlu0 %2891
  %vm2893 = vcmask 64512
  %s2894 = scalar_lea.vmem %s1, 270
  %2895 = vst.msk [vmem:[%s2894] ss:$16 sm:$0x3] %vm2893, %v2892
  %s2896 = scalar_lea.vmem %s1, 270
  %2897 = vst.msk [vmem:[%s2896] ss:$16 sm:$0xc] %vm2893, %v2892
  %s2898 = scalar_lea.vmem %s1, 270
  %2899 = vst.msk [vmem:[%s2898] ss:$16 sm:$0x30] %vm2893, %v2892
  %s2900 = scalar_lea.vmem %s1, 270
  %2901 = vst.msk [vmem:[%s2900] ss:$16 sm:$0xc0] %vm2893, %v2892
  %s2902 = scalar_lea.vmem %s0, 24
  %v2903 = vld [vmem:[%s2902] sm:$0xff]
  %2904 = vrot.lane.b32.xlu0 %v2903, 16
  %v2905 = vpop.permute.xlu0 %2904
  %vm2906 = vcmask 64512
  %s2907 = scalar_lea.vmem %s1, 398
  %2908 = vst.msk [vmem:[%s2907] ss:$16 sm:$0x3] %vm2906, %v2905
  %s2909 = scalar_lea.vmem %s1, 398
  %2910 = vst.msk [vmem:[%s2909] ss:$16 sm:$0xc] %vm2906, %v2905
  %s2911 = scalar_lea.vmem %s1, 398
  %2912 = vst.msk [vmem:[%s2911] ss:$16 sm:$0x30] %vm2906, %v2905
  %s2913 = scalar_lea.vmem %s1, 398
  %2914 = vst.msk [vmem:[%s2913] ss:$16 sm:$0xc0] %vm2906, %v2905
  %s2915 = scalar_lea.vmem %s0, 32
  %v2916 = vld [vmem:[%s2915] sm:$0xff]
  %2917 = vrot.lane.b32.xlu0 %v2916, 16
  %v2918 = vpop.permute.xlu0 %2917
  %vm2919 = vcmask 64512
  %s2920 = scalar_lea.vmem %s1, 526
  %2921 = vst.msk [vmem:[%s2920] ss:$16 sm:$0x3] %vm2919, %v2918
  %s2922 = scalar_lea.vmem %s1, 526
  %2923 = vst.msk [vmem:[%s2922] ss:$16 sm:$0xc] %vm2919, %v2918
  %s2924 = scalar_lea.vmem %s1, 526
  %2925 = vst.msk [vmem:[%s2924] ss:$16 sm:$0x30] %vm2919, %v2918
  %s2926 = scalar_lea.vmem %s1, 526
  %2927 = vst.msk [vmem:[%s2926] ss:$16 sm:$0xc0] %vm2919, %v2918
  %s2928 = scalar_lea.vmem %s0, 40
  %v2929 = vld [vmem:[%s2928] sm:$0xff]
  %2930 = vrot.lane.b32.xlu0 %v2929, 16
  %v2931 = vpop.permute.xlu0 %2930
  %vm2932 = vcmask 64512
  %s2933 = scalar_lea.vmem %s1, 654
  %2934 = vst.msk [vmem:[%s2933] ss:$16 sm:$0x3] %vm2932, %v2931
  %s2935 = scalar_lea.vmem %s1, 654
  %2936 = vst.msk [vmem:[%s2935] ss:$16 sm:$0xc] %vm2932, %v2931
  %s2937 = scalar_lea.vmem %s1, 654
  %2938 = vst.msk [vmem:[%s2937] ss:$16 sm:$0x30] %vm2932, %v2931
  %s2939 = scalar_lea.vmem %s1, 654
  %2940 = vst.msk [vmem:[%s2939] ss:$16 sm:$0xc0] %vm2932, %v2931
  %s2941 = scalar_lea.vmem %s0, 48
  %v2942 = vld [vmem:[%s2941] sm:$0xff]
  %2943 = vrot.lane.b32.xlu0 %v2942, 16
  %v2944 = vpop.permute.xlu0 %2943
  %vm2945 = vcmask 64512
  %s2946 = scalar_lea.vmem %s1, 782
  %2947 = vst.msk [vmem:[%s2946] ss:$16 sm:$0x3] %vm2945, %v2944
  %s2948 = scalar_lea.vmem %s1, 782
  %2949 = vst.msk [vmem:[%s2948] ss:$16 sm:$0xc] %vm2945, %v2944
  %s2950 = scalar_lea.vmem %s1, 782
  %2951 = vst.msk [vmem:[%s2950] ss:$16 sm:$0x30] %vm2945, %v2944
  %s2952 = scalar_lea.vmem %s1, 782
  %2953 = vst.msk [vmem:[%s2952] ss:$16 sm:$0xc0] %vm2945, %v2944
  %s2954 = scalar_lea.vmem %s0, 56
  %v2955 = vld [vmem:[%s2954] sm:$0xff]
  %2956 = vrot.lane.b32.xlu0 %v2955, 16
  %v2957 = vpop.permute.xlu0 %2956
  %vm2958 = vcmask 64512
  %s2959 = scalar_lea.vmem %s1, 910
  %2960 = vst.msk [vmem:[%s2959] ss:$16 sm:$0x3] %vm2958, %v2957
  %s2961 = scalar_lea.vmem %s1, 910
  %2962 = vst.msk [vmem:[%s2961] ss:$16 sm:$0xc] %vm2958, %v2957
  %s2963 = scalar_lea.vmem %s1, 910
  %2964 = vst.msk [vmem:[%s2963] ss:$16 sm:$0x30] %vm2958, %v2957
  %s2965 = scalar_lea.vmem %s1, 910
  %2966 = vst.msk [vmem:[%s2965] ss:$16 sm:$0xc0] %vm2958, %v2957
  %s2967 = scalar_lea.vmem %s0, 64
  %v2968 = vld [vmem:[%s2967] sm:$0xff]
  %2969 = vrot.lane.b32.xlu0 %v2968, 16
  %v2970 = vpop.permute.xlu0 %2969
  %vm2971 = vcmask 64512
  %s2972 = scalar_lea.vmem %s1, 1038
  %2973 = vst.msk [vmem:[%s2972] ss:$16 sm:$0x3] %vm2971, %v2970
  %s2974 = scalar_lea.vmem %s1, 1038
  %2975 = vst.msk [vmem:[%s2974] ss:$16 sm:$0xc] %vm2971, %v2970
  %s2976 = scalar_lea.vmem %s1, 1038
  %2977 = vst.msk [vmem:[%s2976] ss:$16 sm:$0x30] %vm2971, %v2970
  %s2978 = scalar_lea.vmem %s1, 1038
  %2979 = vst.msk [vmem:[%s2978] ss:$16 sm:$0xc0] %vm2971, %v2970
  %s2980 = scalar_lea.vmem %s0, 72
  %v2981 = vld [vmem:[%s2980] sm:$0xff]
  %2982 = vrot.lane.b32.xlu0 %v2981, 16
  %v2983 = vpop.permute.xlu0 %2982
  %vm2984 = vcmask 64512
  %s2985 = scalar_lea.vmem %s1, 1166
  %2986 = vst.msk [vmem:[%s2985] ss:$16 sm:$0x3] %vm2984, %v2983
  %s2987 = scalar_lea.vmem %s1, 1166
  %2988 = vst.msk [vmem:[%s2987] ss:$16 sm:$0xc] %vm2984, %v2983
  %s2989 = scalar_lea.vmem %s1, 1166
  %2990 = vst.msk [vmem:[%s2989] ss:$16 sm:$0x30] %vm2984, %v2983
  %s2991 = scalar_lea.vmem %s1, 1166
  %2992 = vst.msk [vmem:[%s2991] ss:$16 sm:$0xc0] %vm2984, %v2983
  %s2993 = scalar_lea.vmem %s0, 80
  %v2994 = vld [vmem:[%s2993] sm:$0xff]
  %2995 = vrot.lane.b32.xlu0 %v2994, 16
  %v2996 = vpop.permute.xlu0 %2995
  %vm2997 = vcmask 64512
  %s2998 = scalar_lea.vmem %s1, 1294
  %2999 = vst.msk [vmem:[%s2998] ss:$16 sm:$0x3] %vm2997, %v2996
  %s3000 = scalar_lea.vmem %s1, 1294
  %3001 = vst.msk [vmem:[%s3000] ss:$16 sm:$0xc] %vm2997, %v2996
  %s3002 = scalar_lea.vmem %s1, 1294
  %3003 = vst.msk [vmem:[%s3002] ss:$16 sm:$0x30] %vm2997, %v2996
  %s3004 = scalar_lea.vmem %s1, 1294
  %3005 = vst.msk [vmem:[%s3004] ss:$16 sm:$0xc0] %vm2997, %v2996
  %s3006 = scalar_lea.vmem %s0, 88
  %v3007 = vld [vmem:[%s3006] sm:$0xff]
  %3008 = vrot.lane.b32.xlu0 %v3007, 16
  %v3009 = vpop.permute.xlu0 %3008
  %vm3010 = vcmask 64512
  %s3011 = scalar_lea.vmem %s1, 1422
  %3012 = vst.msk [vmem:[%s3011] ss:$16 sm:$0x3] %vm3010, %v3009
  %s3013 = scalar_lea.vmem %s1, 1422
  %3014 = vst.msk [vmem:[%s3013] ss:$16 sm:$0xc] %vm3010, %v3009
  %s3015 = scalar_lea.vmem %s1, 1422
  %3016 = vst.msk [vmem:[%s3015] ss:$16 sm:$0x30] %vm3010, %v3009
  %s3017 = scalar_lea.vmem %s1, 1422
  %3018 = vst.msk [vmem:[%s3017] ss:$16 sm:$0xc0] %vm3010, %v3009
  %s3019 = scalar_lea.vmem %s0, 96
  %v3020 = vld [vmem:[%s3019] sm:$0xff]
  %3021 = vrot.lane.b32.xlu0 %v3020, 16
  %v3022 = vpop.permute.xlu0 %3021
  %vm3023 = vcmask 64512
  %s3024 = scalar_lea.vmem %s1, 1550
  %3025 = vst.msk [vmem:[%s3024] ss:$16 sm:$0x3] %vm3023, %v3022
  %s3026 = scalar_lea.vmem %s1, 1550
  %3027 = vst.msk [vmem:[%s3026] ss:$16 sm:$0xc] %vm3023, %v3022
  %s3028 = scalar_lea.vmem %s1, 1550
  %3029 = vst.msk [vmem:[%s3028] ss:$16 sm:$0x30] %vm3023, %v3022
  %s3030 = scalar_lea.vmem %s1, 1550
  %3031 = vst.msk [vmem:[%s3030] ss:$16 sm:$0xc0] %vm3023, %v3022
  %s3032 = scalar_lea.vmem %s0, 104
  %v3033 = vld [vmem:[%s3032] sm:$0xff]
  %3034 = vrot.lane.b32.xlu0 %v3033, 16
  %v3035 = vpop.permute.xlu0 %3034
  %vm3036 = vcmask 64512
  %s3037 = scalar_lea.vmem %s1, 1678
  %3038 = vst.msk [vmem:[%s3037] ss:$16 sm:$0x3] %vm3036, %v3035
  %s3039 = scalar_lea.vmem %s1, 1678
  %3040 = vst.msk [vmem:[%s3039] ss:$16 sm:$0xc] %vm3036, %v3035
  %s3041 = scalar_lea.vmem %s1, 1678
  %3042 = vst.msk [vmem:[%s3041] ss:$16 sm:$0x30] %vm3036, %v3035
  %s3043 = scalar_lea.vmem %s1, 1678
  %3044 = vst.msk [vmem:[%s3043] ss:$16 sm:$0xc0] %vm3036, %v3035
  %s3045 = scalar_lea.vmem %s0, 112
  %v3046 = vld [vmem:[%s3045] sm:$0xff]
  %3047 = vrot.lane.b32.xlu0 %v3046, 16
  %v3048 = vpop.permute.xlu0 %3047
  %vm3049 = vcmask 64512
  %s3050 = scalar_lea.vmem %s1, 1806
  %3051 = vst.msk [vmem:[%s3050] ss:$16 sm:$0x3] %vm3049, %v3048
  %s3052 = scalar_lea.vmem %s1, 1806
  %3053 = vst.msk [vmem:[%s3052] ss:$16 sm:$0xc] %vm3049, %v3048
  %s3054 = scalar_lea.vmem %s1, 1806
  %3055 = vst.msk [vmem:[%s3054] ss:$16 sm:$0x30] %vm3049, %v3048
  %s3056 = scalar_lea.vmem %s1, 1806
  %3057 = vst.msk [vmem:[%s3056] ss:$16 sm:$0xc0] %vm3049, %v3048
  %s3058 = scalar_lea.vmem %s0, 120
  %v3059 = vld [vmem:[%s3058] sm:$0xff]
  %3060 = vrot.lane.b32.xlu0 %v3059, 16
  %v3061 = vpop.permute.xlu0 %3060
  %vm3062 = vcmask 64512
  %s3063 = scalar_lea.vmem %s1, 1934
  %3064 = vst.msk [vmem:[%s3063] ss:$16 sm:$0x3] %vm3062, %v3061
  %s3065 = scalar_lea.vmem %s1, 1934
  %3066 = vst.msk [vmem:[%s3065] ss:$16 sm:$0xc] %vm3062, %v3061
  %s3067 = scalar_lea.vmem %s1, 1934
  %3068 = vst.msk [vmem:[%s3067] ss:$16 sm:$0x30] %vm3062, %v3061
  %s3069 = scalar_lea.vmem %s1, 1934
  %3070 = vst.msk [vmem:[%s3069] ss:$16 sm:$0xc0] %vm3062, %v3061
  %v3071 = vld [vmem:[%s0] sm:$0xff]
  %3072 = vrot.lane.b32.xlu0 %v3071, 8
  %v3073 = vpop.permute.xlu0 %3072
  %vm3074 = vcmask 64512
  %s3075 = scalar_lea.vmem %s1, 15
  %3076 = vst.msk [vmem:[%s3075] ss:$16 sm:$0x3] %vm3074, %v3073
  %s3077 = scalar_lea.vmem %s1, 15
  %3078 = vst.msk [vmem:[%s3077] ss:$16 sm:$0xc] %vm3074, %v3073
  %s3079 = scalar_lea.vmem %s1, 15
  %3080 = vst.msk [vmem:[%s3079] ss:$16 sm:$0x30] %vm3074, %v3073
  %s3081 = scalar_lea.vmem %s1, 15
  %3082 = vst.msk [vmem:[%s3081] ss:$16 sm:$0xc0] %vm3074, %v3073
  %s3083 = scalar_lea.vmem %s0, 8
  %v3084 = vld [vmem:[%s3083] sm:$0xff]
  %3085 = vrot.lane.b32.xlu0 %v3084, 8
  %v3086 = vpop.permute.xlu0 %3085
  %vm3087 = vcmask 64512
  %s3088 = scalar_lea.vmem %s1, 143
  %3089 = vst.msk [vmem:[%s3088] ss:$16 sm:$0x3] %vm3087, %v3086
  %s3090 = scalar_lea.vmem %s1, 143
  %3091 = vst.msk [vmem:[%s3090] ss:$16 sm:$0xc] %vm3087, %v3086
  %s3092 = scalar_lea.vmem %s1, 143
  %3093 = vst.msk [vmem:[%s3092] ss:$16 sm:$0x30] %vm3087, %v3086
  %s3094 = scalar_lea.vmem %s1, 143
  %3095 = vst.msk [vmem:[%s3094] ss:$16 sm:$0xc0] %vm3087, %v3086
  %s3096 = scalar_lea.vmem %s0, 16
  %v3097 = vld [vmem:[%s3096] sm:$0xff]
  %3098 = vrot.lane.b32.xlu0 %v3097, 8
  %v3099 = vpop.permute.xlu0 %3098
  %vm3100 = vcmask 64512
  %s3101 = scalar_lea.vmem %s1, 271
  %3102 = vst.msk [vmem:[%s3101] ss:$16 sm:$0x3] %vm3100, %v3099
  %s3103 = scalar_lea.vmem %s1, 271
  %3104 = vst.msk [vmem:[%s3103] ss:$16 sm:$0xc] %vm3100, %v3099
  %s3105 = scalar_lea.vmem %s1, 271
  %3106 = vst.msk [vmem:[%s3105] ss:$16 sm:$0x30] %vm3100, %v3099
  %s3107 = scalar_lea.vmem %s1, 271
  %3108 = vst.msk [vmem:[%s3107] ss:$16 sm:$0xc0] %vm3100, %v3099
  %s3109 = scalar_lea.vmem %s0, 24
  %v3110 = vld [vmem:[%s3109] sm:$0xff]
  %3111 = vrot.lane.b32.xlu0 %v3110, 8
  %v3112 = vpop.permute.xlu0 %3111
  %vm3113 = vcmask 64512
  %s3114 = scalar_lea.vmem %s1, 399
  %3115 = vst.msk [vmem:[%s3114] ss:$16 sm:$0x3] %vm3113, %v3112
  %s3116 = scalar_lea.vmem %s1, 399
  %3117 = vst.msk [vmem:[%s3116] ss:$16 sm:$0xc] %vm3113, %v3112
  %s3118 = scalar_lea.vmem %s1, 399
  %3119 = vst.msk [vmem:[%s3118] ss:$16 sm:$0x30] %vm3113, %v3112
  %s3120 = scalar_lea.vmem %s1, 399
  %3121 = vst.msk [vmem:[%s3120] ss:$16 sm:$0xc0] %vm3113, %v3112
  %s3122 = scalar_lea.vmem %s0, 32
  %v3123 = vld [vmem:[%s3122] sm:$0xff]
  %3124 = vrot.lane.b32.xlu0 %v3123, 8
  %v3125 = vpop.permute.xlu0 %3124
  %vm3126 = vcmask 64512
  %s3127 = scalar_lea.vmem %s1, 527
  %3128 = vst.msk [vmem:[%s3127] ss:$16 sm:$0x3] %vm3126, %v3125
  %s3129 = scalar_lea.vmem %s1, 527
  %3130 = vst.msk [vmem:[%s3129] ss:$16 sm:$0xc] %vm3126, %v3125
  %s3131 = scalar_lea.vmem %s1, 527
  %3132 = vst.msk [vmem:[%s3131] ss:$16 sm:$0x30] %vm3126, %v3125
  %s3133 = scalar_lea.vmem %s1, 527
  %3134 = vst.msk [vmem:[%s3133] ss:$16 sm:$0xc0] %vm3126, %v3125
  %s3135 = scalar_lea.vmem %s0, 40
  %v3136 = vld [vmem:[%s3135] sm:$0xff]
  %3137 = vrot.lane.b32.xlu0 %v3136, 8
  %v3138 = vpop.permute.xlu0 %3137
  %vm3139 = vcmask 64512
  %s3140 = scalar_lea.vmem %s1, 655
  %3141 = vst.msk [vmem:[%s3140] ss:$16 sm:$0x3] %vm3139, %v3138
  %s3142 = scalar_lea.vmem %s1, 655
  %3143 = vst.msk [vmem:[%s3142] ss:$16 sm:$0xc] %vm3139, %v3138
  %s3144 = scalar_lea.vmem %s1, 655
  %3145 = vst.msk [vmem:[%s3144] ss:$16 sm:$0x30] %vm3139, %v3138
  %s3146 = scalar_lea.vmem %s1, 655
  %3147 = vst.msk [vmem:[%s3146] ss:$16 sm:$0xc0] %vm3139, %v3138
  %s3148 = scalar_lea.vmem %s0, 48
  %v3149 = vld [vmem:[%s3148] sm:$0xff]
  %3150 = vrot.lane.b32.xlu0 %v3149, 8
  %v3151 = vpop.permute.xlu0 %3150
  %vm3152 = vcmask 64512
  %s3153 = scalar_lea.vmem %s1, 783
  %3154 = vst.msk [vmem:[%s3153] ss:$16 sm:$0x3] %vm3152, %v3151
  %s3155 = scalar_lea.vmem %s1, 783
  %3156 = vst.msk [vmem:[%s3155] ss:$16 sm:$0xc] %vm3152, %v3151
  %s3157 = scalar_lea.vmem %s1, 783
  %3158 = vst.msk [vmem:[%s3157] ss:$16 sm:$0x30] %vm3152, %v3151
  %s3159 = scalar_lea.vmem %s1, 783
  %3160 = vst.msk [vmem:[%s3159] ss:$16 sm:$0xc0] %vm3152, %v3151
  %s3161 = scalar_lea.vmem %s0, 56
  %v3162 = vld [vmem:[%s3161] sm:$0xff]
  %3163 = vrot.lane.b32.xlu0 %v3162, 8
  %v3164 = vpop.permute.xlu0 %3163
  %vm3165 = vcmask 64512
  %s3166 = scalar_lea.vmem %s1, 911
  %3167 = vst.msk [vmem:[%s3166] ss:$16 sm:$0x3] %vm3165, %v3164
  %s3168 = scalar_lea.vmem %s1, 911
  %3169 = vst.msk [vmem:[%s3168] ss:$16 sm:$0xc] %vm3165, %v3164
  %s3170 = scalar_lea.vmem %s1, 911
  %3171 = vst.msk [vmem:[%s3170] ss:$16 sm:$0x30] %vm3165, %v3164
  %s3172 = scalar_lea.vmem %s1, 911
  %3173 = vst.msk [vmem:[%s3172] ss:$16 sm:$0xc0] %vm3165, %v3164
  %s3174 = scalar_lea.vmem %s0, 64
  %v3175 = vld [vmem:[%s3174] sm:$0xff]
  %3176 = vrot.lane.b32.xlu0 %v3175, 8
  %v3177 = vpop.permute.xlu0 %3176
  %vm3178 = vcmask 64512
  %s3179 = scalar_lea.vmem %s1, 1039
  %3180 = vst.msk [vmem:[%s3179] ss:$16 sm:$0x3] %vm3178, %v3177
  %s3181 = scalar_lea.vmem %s1, 1039
  %3182 = vst.msk [vmem:[%s3181] ss:$16 sm:$0xc] %vm3178, %v3177
  %s3183 = scalar_lea.vmem %s1, 1039
  %3184 = vst.msk [vmem:[%s3183] ss:$16 sm:$0x30] %vm3178, %v3177
  %s3185 = scalar_lea.vmem %s1, 1039
  %3186 = vst.msk [vmem:[%s3185] ss:$16 sm:$0xc0] %vm3178, %v3177
  %s3187 = scalar_lea.vmem %s0, 72
  %v3188 = vld [vmem:[%s3187] sm:$0xff]
  %3189 = vrot.lane.b32.xlu0 %v3188, 8
  %v3190 = vpop.permute.xlu0 %3189
  %vm3191 = vcmask 64512
  %s3192 = scalar_lea.vmem %s1, 1167
  %3193 = vst.msk [vmem:[%s3192] ss:$16 sm:$0x3] %vm3191, %v3190
  %s3194 = scalar_lea.vmem %s1, 1167
  %3195 = vst.msk [vmem:[%s3194] ss:$16 sm:$0xc] %vm3191, %v3190
  %s3196 = scalar_lea.vmem %s1, 1167
  %3197 = vst.msk [vmem:[%s3196] ss:$16 sm:$0x30] %vm3191, %v3190
  %s3198 = scalar_lea.vmem %s1, 1167
  %3199 = vst.msk [vmem:[%s3198] ss:$16 sm:$0xc0] %vm3191, %v3190
  %s3200 = scalar_lea.vmem %s0, 80
  %v3201 = vld [vmem:[%s3200] sm:$0xff]
  %3202 = vrot.lane.b32.xlu0 %v3201, 8
  %v3203 = vpop.permute.xlu0 %3202
  %vm3204 = vcmask 64512
  %s3205 = scalar_lea.vmem %s1, 1295
  %3206 = vst.msk [vmem:[%s3205] ss:$16 sm:$0x3] %vm3204, %v3203
  %s3207 = scalar_lea.vmem %s1, 1295
  %3208 = vst.msk [vmem:[%s3207] ss:$16 sm:$0xc] %vm3204, %v3203
  %s3209 = scalar_lea.vmem %s1, 1295
  %3210 = vst.msk [vmem:[%s3209] ss:$16 sm:$0x30] %vm3204, %v3203
  %s3211 = scalar_lea.vmem %s1, 1295
  %3212 = vst.msk [vmem:[%s3211] ss:$16 sm:$0xc0] %vm3204, %v3203
  %s3213 = scalar_lea.vmem %s0, 88
  %v3214 = vld [vmem:[%s3213] sm:$0xff]
  %3215 = vrot.lane.b32.xlu0 %v3214, 8
  %v3216 = vpop.permute.xlu0 %3215
  %vm3217 = vcmask 64512
  %s3218 = scalar_lea.vmem %s1, 1423
  %3219 = vst.msk [vmem:[%s3218] ss:$16 sm:$0x3] %vm3217, %v3216
  %s3220 = scalar_lea.vmem %s1, 1423
  %3221 = vst.msk [vmem:[%s3220] ss:$16 sm:$0xc] %vm3217, %v3216
  %s3222 = scalar_lea.vmem %s1, 1423
  %3223 = vst.msk [vmem:[%s3222] ss:$16 sm:$0x30] %vm3217, %v3216
  %s3224 = scalar_lea.vmem %s1, 1423
  %3225 = vst.msk [vmem:[%s3224] ss:$16 sm:$0xc0] %vm3217, %v3216
  %s3226 = scalar_lea.vmem %s0, 96
  %v3227 = vld [vmem:[%s3226] sm:$0xff]
  %3228 = vrot.lane.b32.xlu0 %v3227, 8
  %v3229 = vpop.permute.xlu0 %3228
  %vm3230 = vcmask 64512
  %s3231 = scalar_lea.vmem %s1, 1551
  %3232 = vst.msk [vmem:[%s3231] ss:$16 sm:$0x3] %vm3230, %v3229
  %s3233 = scalar_lea.vmem %s1, 1551
  %3234 = vst.msk [vmem:[%s3233] ss:$16 sm:$0xc] %vm3230, %v3229
  %s3235 = scalar_lea.vmem %s1, 1551
  %3236 = vst.msk [vmem:[%s3235] ss:$16 sm:$0x30] %vm3230, %v3229
  %s3237 = scalar_lea.vmem %s1, 1551
  %3238 = vst.msk [vmem:[%s3237] ss:$16 sm:$0xc0] %vm3230, %v3229
  %s3239 = scalar_lea.vmem %s0, 104
  %v3240 = vld [vmem:[%s3239] sm:$0xff]
  %3241 = vrot.lane.b32.xlu0 %v3240, 8
  %v3242 = vpop.permute.xlu0 %3241
  %vm3243 = vcmask 64512
  %s3244 = scalar_lea.vmem %s1, 1679
  %3245 = vst.msk [vmem:[%s3244] ss:$16 sm:$0x3] %vm3243, %v3242
  %s3246 = scalar_lea.vmem %s1, 1679
  %3247 = vst.msk [vmem:[%s3246] ss:$16 sm:$0xc] %vm3243, %v3242
  %s3248 = scalar_lea.vmem %s1, 1679
  %3249 = vst.msk [vmem:[%s3248] ss:$16 sm:$0x30] %vm3243, %v3242
  %s3250 = scalar_lea.vmem %s1, 1679
  %3251 = vst.msk [vmem:[%s3250] ss:$16 sm:$0xc0] %vm3243, %v3242
  %s3252 = scalar_lea.vmem %s0, 112
  %v3253 = vld [vmem:[%s3252] sm:$0xff]
  %3254 = vrot.lane.b32.xlu0 %v3253, 8
  %v3255 = vpop.permute.xlu0 %3254
  %vm3256 = vcmask 64512
  %s3257 = scalar_lea.vmem %s1, 1807
  %3258 = vst.msk [vmem:[%s3257] ss:$16 sm:$0x3] %vm3256, %v3255
  %s3259 = scalar_lea.vmem %s1, 1807
  %3260 = vst.msk [vmem:[%s3259] ss:$16 sm:$0xc] %vm3256, %v3255
  %s3261 = scalar_lea.vmem %s1, 1807
  %3262 = vst.msk [vmem:[%s3261] ss:$16 sm:$0x30] %vm3256, %v3255
  %s3263 = scalar_lea.vmem %s1, 1807
  %3264 = vst.msk [vmem:[%s3263] ss:$16 sm:$0xc0] %vm3256, %v3255
  %s3265 = scalar_lea.vmem %s0, 120
  %v3266 = vld [vmem:[%s3265] sm:$0xff]
  %3267 = vrot.lane.b32.xlu0 %v3266, 8
  %v3268 = vpop.permute.xlu0 %3267
  %vm3269 = vcmask 64512
  %s3270 = scalar_lea.vmem %s1, 1935
  %3271 = vst.msk [vmem:[%s3270] ss:$16 sm:$0x3] %vm3269, %v3268
  %s3272 = scalar_lea.vmem %s1, 1935
  %3273 = vst.msk [vmem:[%s3272] ss:$16 sm:$0xc] %vm3269, %v3268
  %s3274 = scalar_lea.vmem %s1, 1935
  %3275 = vst.msk [vmem:[%s3274] ss:$16 sm:$0x30] %vm3269, %v3268
  %s3276 = scalar_lea.vmem %s1, 1935
  %3277 = vst.msk [vmem:[%s3276] ss:$16 sm:$0xc0] %vm3269, %v3268

// kernel: watson_distance_fft.1
$region0: #{watson_distance_fft.1}
  #allocation0 [shape = 'u32[]', space=smem, size = 0x4, offset = 0x4, fixed_abs, tag = 'smem constant byte address 0x4 - core index']
  #allocation1 [shape = 'u32[144,128]{1,0:T(1,128)}', space=vmem, size = 0x12000, scoped, tag = 'internal scratch']
  #allocation2 [shape = 'f32[1,1]{1,0:T(1,128)S(1)}', space=vmem, size = 0x200, scoped, tag = 'scoped memory for watson_distance_fft.1']
  %s0 = inlined_call_operand.<no memory space> [shape: f32[1,1], index: 0, kind: input, shape index: {}]
  %s1 = inlined_call_operand.vmem [shape: f32[80,64], index: 1, kind: input, shape index: {}]
  %s2 = inlined_call_operand.vmem [shape: f32[2,64,128], index: 2, kind: input, shape index: {}]
  %s3 = inlined_call_operand.vmem [shape: f32[2,64,128], index: 3, kind: input, shape index: {}]
  %s4 = inlined_call_operand.vmem [shape: f32[2,1,1], index: 4, kind: output, shape index: {}]
  %s5 = sld [smem:[#allocation0]]
  $region53: #{watson_distance_fft.1} parent=0
    _
  %s7 = ssub.s32 1, %s5
  %s8 = scalar_select 0, %s7, %s5
  %v9 = vstv %s0
  %10 = vst [vmem:[#allocation2] sm:$0x1] %v9
  loop: start=0, step=1, limit=4
  $region2: #{watson_distance_fft.1} parent=0 // loop_pre_header
    _
  $region3: #{watson_distance_fft.1} parent=0 // loop_header
    %s12 = sphi 0, %s16
    %p13 = scmp.ge.s32.totalorder %s12, 4
    %s19 = sphi 0, %s31
    %s20 = sphi 0, %s27
    %s21 = sphi 0, %s19
    %s22 = sphi 0, %s20
    %s23 = sphi 0, %s21
    %s24 = sphi 0, %s22
    %s32 = sphi 0, %s32
    %s34 = sphi 0, %s32
    %s35 = sphi 0, %s34
    %s49 = sphi 0, %s35
    %s53 = sphi 0, %s53
    %s55 = sphi 0, %s53
    %s56 = sphi 0, %s55
    %s70 = sphi 0, %s56
    %s78 = sphi 0, %s80
    %s81 = sphi 0, %s78
    %s82 = sphi 0, %s81
    %s98 = sphi 0, %s82
    %s106 = sphi 0, %s108
    %s109 = sphi 0, %s106
    %s110 = sphi 0, %s109
    %s126 = sphi 0, %s110
    %s132 = sphi 0, %s134
    %s135 = sphi 0, %s132
    %s136 = sphi 0, %s135
    %s152 = sphi 0, %s136
  $region4: #{watson_distance_fft.1} parent=0 // loop_header_branch
    %15 = sbr.rel (%p13) target = $region8
  $region5: #{watson_distance_fft.1} parent=0 // loop_body
    %s17 = ssub.s32 %s12, 1
    %s18 = ssub.s32 %s12, 2
    %s25 = sadd.s32 1, %s20
    %p26 = scmp.ge.s32.totalorder %s25, 1
    %s27 = scalar_select %p26, 0, %s25
    %s28 = sadd.s32 1, %s19
    %s29 = scalar_select %p26, %s28, %s19
    %p30 = scmp.ge.s32.totalorder %s29, 2
    %s31 = scalar_select %p30, 0, %s29
    %s33 = sadd.s32 %s32, 1
    %p36 = scmp.eq.s32.totalorder %s12, 1
    %p37 = scmp.ne.s32.totalorder %s32, %s34
    %p38 = scmp.eq.s32.totalorder %s12, 0
    %p39 = por %p37, %p38
    %p40 = scmp.ne.s32.totalorder %s32, %s34
    %p41 = scmp.eq.s32.totalorder %s17, 1
    %p42 = por %p40, %p41
    %p43 = scmp.ne.s32.totalorder %s34, %s35
    %p44 = scmp.eq.s32.totalorder %s17, 0
    %p45 = por %p43, %p44
    %p46 = scmp.ne.s32.totalorder %s34, %s35
    %p47 = scmp.eq.s32.totalorder %s18, 1
    %p48 = por %p46, %p47
    %p50 = scmp.ne.s32.totalorder %s35, %s49
    %p51 = scmp.eq.s32.totalorder %s18, 0
    %p52 = por %p50, %p51
    %s54 = sadd.s32 %s53, 1
    %p57 = scmp.eq.s32.totalorder %s12, 1
    %p58 = scmp.ne.s32.totalorder %s53, %s55
    %p59 = scmp.eq.s32.totalorder %s12, 0
    %p60 = por %p58, %p59
    %p61 = scmp.ne.s32.totalorder %s53, %s55
    %p62 = scmp.eq.s32.totalorder %s17, 1
    %p63 = por %p61, %p62
    %p64 = scmp.ne.s32.totalorder %s55, %s56
    %p65 = scmp.eq.s32.totalorder %s17, 0
    %p66 = por %p64, %p65
    %p67 = scmp.ne.s32.totalorder %s55, %s56
    %p68 = scmp.eq.s32.totalorder %s18, 1
    %p69 = por %p67, %p68
    %p71 = scmp.ne.s32.totalorder %s56, %s70
    %p72 = scmp.eq.s32.totalorder %s18, 0
    %p73 = por %p71, %p72
    %s74 = ssub.s32 %s19, %s31
    %s75 = ssub.s32 %s20, %s27
    %s76 = sor.u32 %s74, %s75
    %p77 = scmp.eq.s32.totalorder %s76, 0
    %s79 = sadd.s32 %s78, 1
    %s80 = scalar_select %p77, %s78, %s79
    %p83 = pneg %p77
    %p84 = scmp.eq.s32.totalorder %s12, 1
    %p85 = por %p83, %p84
    %p86 = scmp.ne.s32.totalorder %s78, %s81
    %p87 = scmp.eq.s32.totalorder %s12, 0
    %p88 = por %p86, %p87
    %p89 = scmp.ne.s32.totalorder %s78, %s81
    %p90 = scmp.eq.s32.totalorder %s17, 1
    %p91 = por %p89, %p90
    %p92 = scmp.ne.s32.totalorder %s81, %s82
    %p93 = scmp.eq.s32.totalorder %s17, 0
    %p94 = por %p92, %p93
    %p95 = scmp.ne.s32.totalorder %s81, %s82
    %p96 = scmp.eq.s32.totalorder %s18, 1
    %p97 = por %p95, %p96
    %p99 = scmp.ne.s32.totalorder %s82, %s98
    %p100 = scmp.eq.s32.totalorder %s18, 0
    %p101 = por %p99, %p100
    %s102 = ssub.s32 %s19, %s31
    %s103 = ssub.s32 %s20, %s27
    %s104 = sor.u32 %s102, %s103
    %p105 = scmp.eq.s32.totalorder %s104, 0
    %s107 = sadd.s32 %s106, 1
    %s108 = scalar_select %p105, %s106, %s107
    %p111 = pneg %p105
    %p112 = scmp.eq.s32.totalorder %s12, 1
    %p113 = por %p111, %p112
    %p114 = scmp.ne.s32.totalorder %s106, %s109
    %p115 = scmp.eq.s32.totalorder %s12, 0
    %p116 = por %p114, %p115
    %p117 = scmp.ne.s32.totalorder %s106, %s109
    %p118 = scmp.eq.s32.totalorder %s17, 1
    %p119 = por %p117, %p118
    %p120 = scmp.ne.s32.totalorder %s109, %s110
    %p121 = scmp.eq.s32.totalorder %s17, 0
    %p122 = por %p120, %p121
    %p123 = scmp.ne.s32.totalorder %s109, %s110
    %p124 = scmp.eq.s32.totalorder %s18, 1
    %p125 = por %p123, %p124
    %p127 = scmp.ne.s32.totalorder %s110, %s126
    %p128 = scmp.eq.s32.totalorder %s18, 0
    %p129 = por %p127, %p128
    %s130 = ssub.s32 %s19, %s31
    %p131 = scmp.eq.s32.totalorder %s130, 0
    %s133 = sadd.s32 %s132, 1
    %s134 = scalar_select %p131, %s132, %s133
    %p137 = pneg %p131
    %p138 = scmp.eq.s32.totalorder %s12, 1
    %p139 = por %p137, %p138
    %p140 = scmp.ne.s32.totalorder %s132, %s135
    %p141 = scmp.eq.s32.totalorder %s12, 0
    %p142 = por %p140, %p141
    %p143 = scmp.ne.s32.totalorder %s132, %s135
    %p144 = scmp.eq.s32.totalorder %s17, 1
    %p145 = por %p143, %p144
    %p146 = scmp.ne.s32.totalorder %s135, %s136
    %p147 = scmp.eq.s32.totalorder %s17, 0
    %p148 = por %p146, %p147
    %p149 = scmp.ne.s32.totalorder %s135, %s136
    %p150 = scmp.eq.s32.totalorder %s18, 1
    %p151 = por %p149, %p150
    %p153 = scmp.ne.s32.totalorder %s136, %s152
    %p154 = scmp.eq.s32.totalorder %s18, 0
    %p155 = por %p153, %p154
    %p156 = scmp.le.s32.totalorder 1, %s12
    %p157 = scmp.lt.s32.totalorder %s12, 3
    %p158 = pnand %p156, %p157
    %p159 = pneg %p158
    // Predicated region
    $region9: #{watson_distance_fft.1} parent=5 // pred_check
      _
    $region10: #{watson_distance_fft.1} parent=5 // pred_check_branch
      %161 = sbr.rel (%p158) target = $region12
    $region11: #{watson_distance_fft.1} parent=5 // pred_region
      %s162 = ssub.s32 %s12, 1
      // Predicated region
      $region13: #{watson_distance_fft.1} parent=11 // pred_check
        %p163 = pneg %p45
      $region14: #{watson_distance_fft.1} parent=11 // pred_check_branch
        %165 = sbr.rel (%p163) target = $region16
      $region15: #{watson_distance_fft.1} parent=11 // pred_region
        _
      $region16: #{watson_distance_fft.1} parent=11 // pred_fallthru
        _
      // Predicated region
      $region17: #{watson_distance_fft.1} parent=11 // pred_check
        %p166 = pneg %p66
      $region18: #{watson_distance_fft.1} parent=11 // pred_check_branch
        %168 = sbr.rel (%p166) target = $region20
      $region19: #{watson_distance_fft.1} parent=11 // pred_region
        _
      $region20: #{watson_distance_fft.1} parent=11 // pred_fallthru
        _
    $region12: #{watson_distance_fft.1} parent=5 // pred_fallthru
      _
    %p169 = scmp.lt.s32.totalorder %s12, 2
    // Predicated region
    $region21: #{watson_distance_fft.1} parent=5 // pred_check
      %p170 = pneg %p169
    $region22: #{watson_distance_fft.1} parent=5 // pred_check_branch
      %172 = sbr.rel (%p170) target = $region24
    $region23: #{watson_distance_fft.1} parent=5 // pred_region
      // Predicated region
      $region25: #{watson_distance_fft.1} parent=23 // pred_check
        %p173 = pneg %p88
      $region26: #{watson_distance_fft.1} parent=23 // pred_check_branch
        %175 = sbr.rel (%p173) target = $region28
      $region27: #{watson_distance_fft.1} parent=23 // pred_region
        %p176 = scmp.lt.s32.totalorder %s19, 1
        %s177 = scalar_select %p176, %s19, 1
        %p178 = scmp.lt.s32.totalorder %s20, 0
        %s179 = scalar_select %p178, %s20, 0
        %s180 = smul.addr %s177, 8
        %s181 = sadd.s32 %s179, %s180
        %s182 = smul.addr %s181, 8
        %s183 = scalar_lea.vmem %s2, %s182
      $region28: #{watson_distance_fft.1} parent=23 // pred_fallthru
        _
      // Predicated region
      $region29: #{watson_distance_fft.1} parent=23 // pred_check
        %p184 = pneg %p116
      $region30: #{watson_distance_fft.1} parent=23 // pred_check_branch
        %186 = sbr.rel (%p184) target = $region32
      $region31: #{watson_distance_fft.1} parent=23 // pred_region
        %p187 = scmp.lt.s32.totalorder %s19, 1
        %s188 = scalar_select %p187, %s19, 1
        %p189 = scmp.lt.s32.totalorder %s20, 0
        %s190 = scalar_select %p189, %s20, 0
        %s191 = smul.addr %s188, 8
        %s192 = sadd.s32 %s190, %s191
        %s193 = smul.addr %s192, 8
        %s194 = scalar_lea.vmem %s3, %s193
      $region32: #{watson_distance_fft.1} parent=23 // pred_fallthru
        _
    $region24: #{watson_distance_fft.1} parent=5 // pred_fallthru
      _
    %p195 = scmp.le.s32.totalorder 1, %s12
    %p196 = scmp.lt.s32.totalorder %s12, 3
    %p197 = pnand %p195, %p196
    %p198 = pneg %p197
    // Predicated region
    $region33: #{watson_distance_fft.1} parent=5 // pred_check
      _
    $region34: #{watson_distance_fft.1} parent=5 // pred_check_branch
      %200 = sbr.rel (%p197) target = $region36
    $region35: #{watson_distance_fft.1} parent=5 // pred_region
      %s201 = ssub.s32 %s12, 1
      %p202 = pneg %p45
      %p203 = pneg %p42
      %p204 = pneg %p66
      %p205 = pneg %p63
      %p206 = scmp.lt.s32.totalorder %s21, 1
      %s207 = scalar_select %p206, %s21, 1
      %p208 = scmp.lt.s32.totalorder %s22, 0
      %s209 = scalar_select %p208, %s22, 0
      %s210 = smul.addr %s207, 8
      %s211 = sadd.s32 %s209, %s210
      %s212 = smul.addr %s211, 8
      %s213 = scalar_lea.vmem %s2, %s212
      %p214 = pneg %p94
      %p215 = pneg %p91
      %p216 = scmp.lt.s32.totalorder %s21, 1
      %s217 = scalar_select %p216, %s21, 1
      %p218 = scmp.lt.s32.totalorder %s22, 0
      %s219 = scalar_select %p218, %s22, 0
      %s220 = smul.addr %s217, 8
      %s221 = sadd.s32 %s219, %s220
      %s222 = smul.addr %s221, 8
      %s223 = scalar_lea.vmem %s3, %s222
      %p224 = pneg %p122
      %p225 = pneg %p119
      %p226 = pneg %p148
      %p227 = pneg %p145
      %p228 = scmp.lt.s32.totalorder %s21, 1
      %s229 = scalar_select %p228, %s21, 1
      %s230 = scalar_lea.vmem %s4, %s229
      %p231 = scmp.lt.s32.totalorder %s21, 1
      %s232 = scalar_select %p231, %s21, 1
      %p233 = scmp.lt.s32.totalorder %s22, 0
      %s234 = scalar_select %p233, %s22, 0
      %s235 = smul.addr %s232, 8
      %s236 = sadd.s32 %s234, %s235
      %s237 = smul.addr %s236, 8
      %s238 = scalar_lea.vmem %s2, %s237
      %p239 = scmp.lt.s32.totalorder %s21, 1
      %s240 = scalar_select %p239, %s21, 1
      %p241 = scmp.lt.s32.totalorder %s22, 0
      %s242 = scalar_select %p241, %s22, 0
      %s243 = smul.addr %s240, 8
      %s244 = sadd.s32 %s242, %s243
      %s245 = smul.addr %s244, 8
      %s246 = scalar_lea.vmem %s3, %s245
      %p247 = scmp.lt.s32.totalorder %s21, 1
      %s248 = scalar_select %p247, %s21, 1
      %s249 = scalar_lea.vmem %s4, %s248
      %p250 = scmp.eq.s32.totalorder %s22, 0
      // Predicated region
      $region37: #{watson_distance_fft.1} parent=35 // pred_check
        %p251 = pneg %p250
      $region38: #{watson_distance_fft.1} parent=35 // pred_check_branch
        %253 = sbr.rel (%p251) target = $region40
      $region39: #{watson_distance_fft.1} parent=35 // pred_region
        %vm254 = vcmask 0
        %255 = vst.msk [vmem:[%s249] sm:$0x1] %vm254, 0.0
      $region40: #{watson_distance_fft.1} parent=35 // pred_fallthru
        _
      %v256 = vld [vmem:[%s238] sm:$0xff]
      %v257 = vld [vmem:[%s238 + $0x8] sm:$0xff]
      %v258 = vld [vmem:[%s238 + $0x10] sm:$0xff]
      %v259 = vld [vmem:[%s238 + $0x18] sm:$0xff]
      %v260 = vld [vmem:[%s238 + $0x20] sm:$0xff]
      %v261 = vld [vmem:[%s238 + $0x28] sm:$0xff]
      %v262 = vld [vmem:[%s238 + $0x30] sm:$0xff]
      %v263 = vld [vmem:[%s238 + $0x38] sm:$0xff]
      %v264 = vld [vmem:[%s246] sm:$0xff]
      %v265 = vld [vmem:[%s246 + $0x8] sm:$0xff]
      %v266 = vld [vmem:[%s246 + $0x10] sm:$0xff]
      %v267 = vld [vmem:[%s246 + $0x18] sm:$0xff]
      %v268 = vld [vmem:[%s246 + $0x20] sm:$0xff]
      %v269 = vld [vmem:[%s246 + $0x28] sm:$0xff]
      %v270 = vld [vmem:[%s246 + $0x30] sm:$0xff]
      %v271 = vld [vmem:[%s246 + $0x38] sm:$0xff]
      %v272 = vld [vmem:[%s1] sm:$0xff]
      %v273 = vld [vmem:[%s1 + $0x8] sm:$0xff]
      %v274 = vld [vmem:[%s1 + $0x10] sm:$0xff]
      %v275 = vld [vmem:[%s1 + $0x18] sm:$0xff]
      %v276 = vld [vmem:[%s1 + $0x20] sm:$0xff]
      %v277 = vld [vmem:[%s1 + $0x28] sm:$0xff]
      %v278 = vld [vmem:[%s1 + $0x30] sm:$0xff]
      %v279 = vld [vmem:[%s1 + $0x38] sm:$0xff]
      %v280 = vld [vmem:[%s1 + $0x40] sm:$0xff]
      %v281 = vld [vmem:[%s1 + $0x48] sm:$0xff]
      %vm282 = vcmask 523264
      %v284 = vsel %vm282, %v272, 0
      %v287 = vsel %vm282, %v273, 0
      %v290 = vsel %vm282, %v274, 0
      %v293 = vsel %vm282, %v275, 0
      %v296 = vsel %vm282, %v276, 0
      %v299 = vsel %vm282, %v277, 0
      %v302 = vsel %vm282, %v278, 0
      %v305 = vsel %vm282, %v279, 0
      %v308 = vsel %vm282, %v280, 0
      %v311 = vsel %vm282, %v281, 0
      %313 = vmatprep.subr.mxu0 0.0
      %314 = vmatpush1.msra.mxu0 0.0
      %315 = vmatprep.subr.mxu0 0.0
      %316 = vmatpush1.msra.mxu0 0.0
      %317 = vmatprep.subr.mxu0 0.0
      %318 = vmatpush1.msra.mxu0 0.0
      %319 = vmatprep.subr.mxu0 0.0
      %320 = vmatpush1.msra.mxu0 0.0
      %321 = vmatprep.subr.mxu0 0.0
      %322 = vmatpush1.msra.mxu0 0.0
      %323 = vmatprep.subr.mxu0 0.0
      %324 = vmatpush1.msra.mxu0 0.0
      %325 = vmatprep.subr.mxu0 0.0
      %326 = vmatpush1.msra.mxu0 0.0
      %327 = vmatprep.subr.mxu0 0.0
      %328 = vmatpush1.msra.mxu0 0.0
      %329 = vmatprep.subr.mxu0 0.0
      %330 = vmatpush1.msra.mxu0 %v263
      %331 = vmatprep.subr.mxu0 0.0
      %332 = vmatpush1.msra.mxu0 %v262
      %333 = vmatprep.subr.mxu0 0.0
      %334 = vmatpush1.msra.mxu0 %v261
      %335 = vmatprep.subr.mxu0 0.0
      %336 = vmatpush1.msra.mxu0 %v260
      %337 = vmatprep.subr.mxu0 0.0
      %338 = vmatpush1.msra.mxu0 %v259
      %339 = vmatprep.subr.mxu0 0.0
      %340 = vmatpush1.msra.mxu0 %v258
      %341 = vmatprep.subr.mxu0 0.0
      %342 = vmatpush1.msra.mxu0 %v257
      %343 = vmatprep.subr.mxu0 0.0
      %344 = vmatpush1.msra.mxu0 %v256
      %345 = vmatprep.subr.mxu0 0.0
      %346 = vmatpush2.msra.mxu0 0.0
      %347 = vmatprep.subr.mxu0 0.0
      %348 = vmatpush2.msra.mxu0 0.0
      %349 = vmatprep.subr.mxu0 0.0
      %350 = vmatpush2.msra.mxu0 0.0
      %351 = vmatprep.subr.mxu0 0.0
      %352 = vmatpush2.msra.mxu0 0.0
      %353 = vmatprep.subr.mxu0 0.0
      %354 = vmatpush2.msra.mxu0 0.0
      %355 = vmatprep.subr.mxu0 0.0
      %356 = vmatpush2.msra.mxu0 0.0
      %357 = vmatprep.subr.mxu0 0.0
      %358 = vmatpush2.msra.mxu0 0.0
      %359 = vmatprep.subr.mxu0 0.0
      %360 = vmatpush2.msra.mxu0 0.0
      %361 = vmatprep.subr.mxu0 0.0
      %362 = vmatpush2.msra.mxu0 0.0
      %363 = vmatprep.subr.mxu0 0.0
      %364 = vmatpush2.msra.mxu0 0.0
      %365 = vmatprep.subr.mxu0 0.0
      %366 = vmatpush2.msra.mxu0 0.0
      %367 = vmatprep.subr.mxu0 0.0
      %368 = vmatpush2.msra.mxu0 0.0
      %369 = vmatprep.subr.mxu0 0.0
      %370 = vmatpush2.msra.mxu0 0.0
      %371 = vmatprep.subr.mxu0 0.0
      %372 = vmatpush2.msra.mxu0 0.0
      %373 = vmatprep.subr.mxu0 0.0
      %374 = vmatpush2.msra.mxu0 0.0
      %375 = vmatprep.subr.mxu0 0.0
      %376 = vmatpush2.msra.mxu0 0.0
      %377 = vmatprep.mubr.f32.mxu0 0.0
      %378 = vmatmul.mubr.f32.gmra.mxu0 %v284
      %v379 = vpop.f32.mrf.mxu0
      %v380 = vadd.f32 0.0, %v379
      %v381 = vpop.f32.mrf.mxu0
      %382 = vmatprep.mubr.f32.mxu0 0.0
      %383 = vmatmul.mubr.f32.gmra.mxu0 %v287
      %v384 = vpop.f32.mrf.mxu0
      %v385 = vadd.f32 0.0, %v384
      %v386 = vpop.f32.mrf.mxu0
      %387 = vmatprep.mubr.f32.mxu0 0.0
      %388 = vmatmul.mubr.f32.gmra.mxu0 %v290
      %v389 = vpop.f32.mrf.mxu0
      %v390 = vadd.f32 0.0, %v389
      %v391 = vpop.f32.mrf.mxu0
      %392 = vmatprep.mubr.f32.mxu0 0.0
      %393 = vmatmul.mubr.f32.gmra.mxu0 %v293
      %v394 = vpop.f32.mrf.mxu0
      %v395 = vadd.f32 0.0, %v394
      %v396 = vpop.f32.mrf.mxu0
      %397 = vmatprep.mubr.f32.mxu0 0.0
      %398 = vmatmul.mubr.f32.gmra.mxu0 %v296
      %v399 = vpop.f32.mrf.mxu0
      %v400 = vadd.f32 0.0, %v399
      %v401 = vpop.f32.mrf.mxu0
      %402 = vmatprep.mubr.f32.mxu0 0.0
      %403 = vmatmul.mubr.f32.gmra.mxu0 %v299
      %v404 = vpop.f32.mrf.mxu0
      %v405 = vadd.f32 0.0, %v404
      %v406 = vpop.f32.mrf.mxu0
      %407 = vmatprep.mubr.f32.mxu0 0.0
      %408 = vmatmul.mubr.f32.gmra.mxu0 %v302
      %v409 = vpop.f32.mrf.mxu0
      %v410 = vadd.f32 0.0, %v409
      %v411 = vpop.f32.mrf.mxu0
      %412 = vmatprep.mubr.f32.mxu0 0.0
      %413 = vmatmul.mubr.f32.gmra.mxu0 %v305
      %v414 = vpop.f32.mrf.mxu0
      %v415 = vadd.f32 0.0, %v414
      %v416 = vpop.f32.mrf.mxu0
      %417 = vmatprep.mubr.f32.mxu0 0.0
      %418 = vmatmul.mubr.f32.gmra.mxu0 %v308
      %v419 = vpop.f32.mrf.mxu0
      %v420 = vadd.f32 0.0, %v419
      %v421 = vpop.f32.mrf.mxu0
      %422 = vmatprep.mubr.f32.mxu0 0.0
      %423 = vmatmul.mubr.f32.gmra.mxu0 %v311
      %v424 = vpop.f32.mrf.mxu0
      %v425 = vadd.f32 0.0, %v424
      %v426 = vpop.f32.mrf.mxu0
      %427 = vdwg.mxu0
      %428 = vmatprep.subr.mxu0 0.0
      %429 = vmatpush1.msra.mxu0 0.0
      %430 = vmatprep.subr.mxu0 0.0
      %431 = vmatpush1.msra.mxu0 0.0
      %432 = vmatprep.subr.mxu0 0.0
      %433 = vmatpush1.msra.mxu0 0.0
      %434 = vmatprep.subr.mxu0 0.0
      %435 = vmatpush1.msra.mxu0 0.0
      %436 = vmatprep.subr.mxu0 0.0
      %437 = vmatpush1.msra.mxu0 0.0
      %438 = vmatprep.subr.mxu0 0.0
      %439 = vmatpush1.msra.mxu0 0.0
      %440 = vmatprep.subr.mxu0 0.0
      %441 = vmatpush1.msra.mxu0 0.0
      %442 = vmatprep.subr.mxu0 0.0
      %443 = vmatpush1.msra.mxu0 0.0
      %444 = vmatprep.subr.mxu0 0.0
      %445 = vmatpush1.msra.mxu0 %v271
      %446 = vmatprep.subr.mxu0 0.0
      %447 = vmatpush1.msra.mxu0 %v270
      %448 = vmatprep.subr.mxu0 0.0
      %449 = vmatpush1.msra.mxu0 %v269
      %450 = vmatprep.subr.mxu0 0.0
      %451 = vmatpush1.msra.mxu0 %v268
      %452 = vmatprep.subr.mxu0 0.0
      %453 = vmatpush1.msra.mxu0 %v267
      %454 = vmatprep.subr.mxu0 0.0
      %455 = vmatpush1.msra.mxu0 %v266
      %456 = vmatprep.subr.mxu0 0.0
      %457 = vmatpush1.msra.mxu0 %v265
      %458 = vmatprep.subr.mxu0 0.0
      %459 = vmatpush1.msra.mxu0 %v264
      %460 = vmatprep.subr.mxu0 0.0
      %461 = vmatpush2.msra.mxu0 0.0
      %462 = vmatprep.subr.mxu0 0.0
      %463 = vmatpush2.msra.mxu0 0.0
      %464 = vmatprep.subr.mxu0 0.0
      %465 = vmatpush2.msra.mxu0 0.0
      %466 = vmatprep.subr.mxu0 0.0
      %467 = vmatpush2.msra.mxu0 0.0
      %468 = vmatprep.subr.mxu0 0.0
      %469 = vmatpush2.msra.mxu0 0.0
      %470 = vmatprep.subr.mxu0 0.0
      %471 = vmatpush2.msra.mxu0 0.0
      %472 = vmatprep.subr.mxu0 0.0
      %473 = vmatpush2.msra.mxu0 0.0
      %474 = vmatprep.subr.mxu0 0.0
      %475 = vmatpush2.msra.mxu0 0.0
      %476 = vmatprep.subr.mxu0 0.0
      %477 = vmatpush2.msra.mxu0 0.0
      %478 = vmatprep.subr.mxu0 0.0
      %479 = vmatpush2.msra.mxu0 0.0
      %480 = vmatprep.subr.mxu0 0.0
      %481 = vmatpush2.msra.mxu0 0.0
      %482 = vmatprep.subr.mxu0 0.0
      %483 = vmatpush2.msra.mxu0 0.0
      %484 = vmatprep.subr.mxu0 0.0
      %485 = vmatpush2.msra.mxu0 0.0
      %486 = vmatprep.subr.mxu0 0.0
      %487 = vmatpush2.msra.mxu0 0.0
      %488 = vmatprep.subr.mxu0 0.0
      %489 = vmatpush2.msra.mxu0 0.0
      %490 = vmatprep.subr.mxu0 0.0
      %491 = vmatpush2.msra.mxu0 0.0
      %492 = vmatprep.mubr.f32.mxu0 0.0
      %493 = vmatmul.mubr.f32.gmra.mxu0 %v284
      %v494 = vpop.f32.mrf.mxu0
      %v495 = vadd.f32 0.0, %v494
      %v496 = vpop.f32.mrf.mxu0
      %497 = vmatprep.mubr.f32.mxu0 0.0
      %498 = vmatmul.mubr.f32.gmra.mxu0 %v287
      %v499 = vpop.f32.mrf.mxu0
      %v500 = vadd.f32 0.0, %v499
      %v501 = vpop.f32.mrf.mxu0
      %502 = vmatprep.mubr.f32.mxu0 0.0
      %503 = vmatmul.mubr.f32.gmra.mxu0 %v290
      %v504 = vpop.f32.mrf.mxu0
      %v505 = vadd.f32 0.0, %v504
      %v506 = vpop.f32.mrf.mxu0
      %507 = vmatprep.mubr.f32.mxu0 0.0
      %508 = vmatmul.mubr.f32.gmra.mxu0 %v293
      %v509 = vpop.f32.mrf.mxu0
      %v510 = vadd.f32 0.0, %v509
      %v511 = vpop.f32.mrf.mxu0
      %512 = vmatprep.mubr.f32.mxu0 0.0
      %513 = vmatmul.mubr.f32.gmra.mxu0 %v296
      %v514 = vpop.f32.mrf.mxu0
      %v515 = vadd.f32 0.0, %v514
      %v516 = vpop.f32.mrf.mxu0
      %517 = vmatprep.mubr.f32.mxu0 0.0
      %518 = vmatmul.mubr.f32.gmra.mxu0 %v299
      %v519 = vpop.f32.mrf.mxu0
      %v520 = vadd.f32 0.0, %v519
      %v521 = vpop.f32.mrf.mxu0
      %522 = vmatprep.mubr.f32.mxu0 0.0
      %523 = vmatmul.mubr.f32.gmra.mxu0 %v302
      %v524 = vpop.f32.mrf.mxu0
      %v525 = vadd.f32 0.0, %v524
      %v526 = vpop.f32.mrf.mxu0
      %527 = vmatprep.mubr.f32.mxu0 0.0
      %528 = vmatmul.mubr.f32.gmra.mxu0 %v305
      %v529 = vpop.f32.mrf.mxu0
      %v530 = vadd.f32 0.0, %v529
      %v531 = vpop.f32.mrf.mxu0
      %532 = vmatprep.mubr.f32.mxu0 0.0
      %533 = vmatmul.mubr.f32.gmra.mxu0 %v308
      %v534 = vpop.f32.mrf.mxu0
      %v535 = vadd.f32 0.0, %v534
      %v536 = vpop.f32.mrf.mxu0
      %537 = vmatprep.mubr.f32.mxu0 0.0
      %538 = vmatmul.mubr.f32.gmra.mxu0 %v311
      %v539 = vpop.f32.mrf.mxu0
      %v540 = vadd.f32 0.0, %v539
      %v541 = vpop.f32.mrf.mxu0
      %542 = vdwg.mxu0
      %v543 = vadd.f32 %v380, 1e-10
      %v544 = vadd.f32 %v385, 1e-10
      %v545 = vadd.f32 %v390, 1e-10
      %v546 = vadd.f32 %v395, 1e-10
      %v547 = vadd.f32 %v400, 1e-10
      %v548 = vadd.f32 %v495, 1e-10
      %v549 = vadd.f32 %v500, 1e-10
      %v550 = vadd.f32 %v505, 1e-10
      %v551 = vadd.f32 %v510, 1e-10
      %v552 = vadd.f32 %v515, 1e-10
      %v553 = vmul.f32 %v543, %v543
      %v554 = vmul.f32 %v544, %v544
      %v555 = vmul.f32 %v545, %v545
      %v556 = vmul.f32 %v546, %v546
      %v557 = vmul.f32 %v547, %v547
      %v558 = vadd.f32 %v405, 1e-10
      %v559 = vadd.f32 %v410, 1e-10
      %v560 = vadd.f32 %v415, 1e-10
      %v561 = vadd.f32 %v420, 1e-10
      %v562 = vadd.f32 %v425, 1e-10
      %v563 = vmul.f32 %v558, %v558
      %v564 = vmul.f32 %v559, %v559
      %v565 = vmul.f32 %v560, %v560
      %v566 = vmul.f32 %v561, %v561
      %v567 = vmul.f32 %v562, %v562
      %v568 = vadd.f32 %v553, %v563
      %v569 = vadd.f32 %v554, %v564
      %v570 = vadd.f32 %v555, %v565
      %v571 = vadd.f32 %v556, %v566
      %v572 = vadd.f32 %v557, %v567
      %v573 = vrsqrt.pop %v568
      %v574 = vmul.f32 %v568, %v573
      %vm575 = vcmp.eq.f32.partialorder %v568, inf
      %v576 = vsel %vm575, %v568, %v574
      %vm577 = vcmp.eq.f32.partialorder %v568, 0.0
      %v578 = vand.u32 %v568, 2147483648
      %v579 = vsel %vm577, %v578, %v576
      %v580 = vrsqrt.pop %v569
      %v581 = vmul.f32 %v569, %v580
      %vm582 = vcmp.eq.f32.partialorder %v569, inf
      %v583 = vsel %vm582, %v569, %v581
      %vm584 = vcmp.eq.f32.partialorder %v569, 0.0
      %v585 = vand.u32 %v569, 2147483648
      %v586 = vsel %vm584, %v585, %v583
      %v587 = vrsqrt.pop %v570
      %v588 = vmul.f32 %v570, %v587
      %vm589 = vcmp.eq.f32.partialorder %v570, inf
      %v590 = vsel %vm589, %v570, %v588
      %vm591 = vcmp.eq.f32.partialorder %v570, 0.0
      %v592 = vand.u32 %v570, 2147483648
      %v593 = vsel %vm591, %v592, %v590
      %v594 = vrsqrt.pop %v571
      %v595 = vmul.f32 %v571, %v594
      %vm596 = vcmp.eq.f32.partialorder %v571, inf
      %v597 = vsel %vm596, %v571, %v595
      %vm598 = vcmp.eq.f32.partialorder %v571, 0.0
      %v599 = vand.u32 %v571, 2147483648
      %v600 = vsel %vm598, %v599, %v597
      %v601 = vrsqrt.pop %v572
      %v602 = vmul.f32 %v572, %v601
      %vm603 = vcmp.eq.f32.partialorder %v572, inf
      %v604 = vsel %vm603, %v572, %v602
      %vm605 = vcmp.eq.f32.partialorder %v572, 0.0
      %v606 = vand.u32 %v572, 2147483648
      %v607 = vsel %vm605, %v606, %v604
      %v608 = vmul.f32 %v548, %v548
      %v609 = vmul.f32 %v549, %v549
      %v610 = vmul.f32 %v550, %v550
      %v611 = vmul.f32 %v551, %v551
      %v612 = vmul.f32 %v552, %v552
      %v613 = vadd.f32 %v520, 1e-10
      %v614 = vadd.f32 %v525, 1e-10
      %v615 = vadd.f32 %v530, 1e-10
      %v616 = vadd.f32 %v535, 1e-10
      %v617 = vadd.f32 %v540, 1e-10
      %v618 = vmul.f32 %v613, %v613
      %v619 = vmul.f32 %v614, %v614
      %v620 = vmul.f32 %v615, %v615
      %v621 = vmul.f32 %v616, %v616
      %v622 = vmul.f32 %v617, %v617
      %v623 = vadd.f32 %v608, %v618
      %v624 = vadd.f32 %v609, %v619
      %v625 = vadd.f32 %v610, %v620
      %v626 = vadd.f32 %v611, %v621
      %v627 = vadd.f32 %v612, %v622
      %v628 = vrsqrt.pop %v623
      %v629 = vmul.f32 %v623, %v628
      %vm630 = vcmp.eq.f32.partialorder %v623, inf
      %v631 = vsel %vm630, %v623, %v629
      %vm632 = vcmp.eq.f32.partialorder %v623, 0.0
      %v633 = vand.u32 %v623, 2147483648
      %v634 = vsel %vm632, %v633, %v631
      %v635 = vrsqrt.pop %v624
      %v636 = vmul.f32 %v624, %v635
      %vm637 = vcmp.eq.f32.partialorder %v624, inf
      %v638 = vsel %vm637, %v624, %v636
      %vm639 = vcmp.eq.f32.partialorder %v624, 0.0
      %v640 = vand.u32 %v624, 2147483648
      %v641 = vsel %vm639, %v640, %v638
      %v642 = vrsqrt.pop %v625
      %v643 = vmul.f32 %v625, %v642
      %vm644 = vcmp.eq.f32.partialorder %v625, inf
      %v645 = vsel %vm644, %v625, %v643
      %vm646 = vcmp.eq.f32.partialorder %v625, 0.0
      %v647 = vand.u32 %v625, 2147483648
      %v648 = vsel %vm646, %v647, %v645
      %v649 = vrsqrt.pop %v626
      %v650 = vmul.f32 %v626, %v649
      %vm651 = vcmp.eq.f32.partialorder %v626, inf
      %v652 = vsel %vm651, %v626, %v650
      %vm653 = vcmp.eq.f32.partialorder %v626, 0.0
      %v654 = vand.u32 %v626, 2147483648
      %v655 = vsel %vm653, %v654, %v652
      %v656 = vrsqrt.pop %v627
      %v657 = vmul.f32 %v627, %v656
      %vm658 = vcmp.eq.f32.partialorder %v627, inf
      %v659 = vsel %vm658, %v627, %v657
      %vm660 = vcmp.eq.f32.partialorder %v627, 0.0
      %v661 = vand.u32 %v627, 2147483648
      %v662 = vsel %vm660, %v661, %v659
      %v663 = vadd.f32 %v579, 1e-10
      %v664 = vlog2.pop %v663
      %v665 = vmul.f32 %v664, 0.6931472
      %v666 = vld [vmem:[#allocation2] sm:$0x1]
      %s667 = vtos %v666
      %v668 = vstv %s667
      %v669 = vsub.f32 %v665, %v668
      %v670 = vmul.f32 %v669, 0.1
      %v671 = vmul.f32 %v670, 1.442695
      %v672 = vpow.pop %v671
      %v673 = vadd.f32 %v586, 1e-10
      %v674 = vadd.f32 %v593, 1e-10
      %v675 = vadd.f32 %v600, 1e-10
      %v676 = vadd.f32 %v607, 1e-10
      %v677 = vlog2.pop %v673
      %v678 = vmul.f32 %v677, 0.6931472
      %v679 = vlog2.pop %v674
      %v680 = vmul.f32 %v679, 0.6931472
      %v681 = vlog2.pop %v675
      %v682 = vmul.f32 %v681, 0.6931472
      %v683 = vlog2.pop %v676
      %v684 = vmul.f32 %v683, 0.6931472
      %v685 = vmul.f32 %v665, 0.2
      %v686 = vmul.f32 %v678, 0.2
      %v687 = vmul.f32 %v680, 0.2
      %v688 = vmul.f32 %v682, 0.2
      %v689 = vmul.f32 %v684, 0.2
      %v690 = vmul.f32 %v670, 0.8
      %v691 = vlaneseq
      %v692 = vshrl.u32 %v691, 7
      %v693 = vsub.s32 0, %v692
      %v694 = vrot.slane %v690, %v693
      %v695 = vadd.f32 %v685, %v694
      %v696 = vadd.f32 %v686, %v694
      %v697 = vadd.f32 %v687, %v694
      %v698 = vadd.f32 %v688, %v694
      %v699 = vadd.f32 %v689, %v694
      %v700 = vmul.f32 %v695, 1.442695
      %v701 = vpow.pop %v700
      %v702 = vmul.f32 %v696, 1.442695
      %v703 = vpow.pop %v702
      %v704 = vmul.f32 %v697, 1.442695
      %v705 = vpow.pop %v704
      %v706 = vmul.f32 %v698, 1.442695
      %v707 = vpow.pop %v706
      %v708 = vmul.f32 %v699, 1.442695
      %v709 = vpow.pop %v708
      %v710 = vlaneseq
      %v711 = vshrl.u32 %v710, 7
      %v712 = vsub.s32 0, %v711
      %v713 = vrot.slane %v672, %v712
      %v714 = vsub.f32 %v701, %v713
      %v715 = vsub.f32 %v703, %v713
      %v716 = vsub.f32 %v705, %v713
      %v717 = vsub.f32 %v707, %v713
      %v718 = vsub.f32 %v709, %v713
      %v719 = vmul.f32 %v714, 0.5
      %v720 = vmul.f32 %v715, 0.5
      %v721 = vmul.f32 %v716, 0.5
      %v722 = vmul.f32 %v717, 0.5
      %v723 = vmul.f32 %v718, 0.5
      %v724 = vtanh.pop %v719
      %v725 = vtanh.pop %v720
      %v726 = vtanh.pop %v721
      %v727 = vtanh.pop %v722
      %v728 = vtanh.pop %v723
      %v729 = vadd.f32 %v724, 1.0
      %v730 = vadd.f32 %v725, 1.0
      %v731 = vadd.f32 %v726, 1.0
      %v732 = vadd.f32 %v727, 1.0
      %v733 = vadd.f32 %v728, 1.0
      %v734 = vmul.f32 %v729, 0.5
      %v735 = vmul.f32 %v730, 0.5
      %v736 = vmul.f32 %v731, 0.5
      %v737 = vmul.f32 %v732, 0.5
      %v738 = vmul.f32 %v733, 0.5
      %v739 = vmul.f32 %v714, %v734
      %v740 = vmul.f32 %v715, %v735
      %v741 = vmul.f32 %v716, %v736
      %v742 = vmul.f32 %v717, %v737
      %v743 = vmul.f32 %v718, %v738
      %v744 = vadd.f32 %v713, %v739
      %v745 = vadd.f32 %v713, %v740
      %v746 = vadd.f32 %v713, %v741
      %v747 = vadd.f32 %v713, %v742
      %v748 = vadd.f32 %v713, %v743
      %v749 = vsub.f32 %v579, %v634
      %v750 = vsub.f32 %v586, %v641
      %v751 = vsub.f32 %v593, %v648
      %v752 = vsub.f32 %v600, %v655
      %v753 = vsub.f32 %v607, %v662
      %v754 = vand.u32 2147483647, %v749
      %v755 = vand.u32 2147483647, %v750
      %v756 = vand.u32 2147483647, %v751
      %v757 = vand.u32 2147483647, %v752
      %v758 = vand.u32 2147483647, %v753
      %v759 = vrcp.pop %v744
      %v760 = vrcp.pop %v745
      %v761 = vrcp.pop %v746
      %v762 = vrcp.pop %v747
      %v763 = vrcp.pop %v748
      %v764 = vmul.f32 %v754, %v759
      %v765 = vmul.f32 %v755, %v760
      %v766 = vmul.f32 %v756, %v761
      %v767 = vmul.f32 %v757, %v762
      %v768 = vmul.f32 %v758, %v763
      %v769 = vadd.f32 %v764, 2e-10
      %v770 = vadd.f32 %v765, 2e-10
      %v771 = vadd.f32 %v766, 2e-10
      %v772 = vadd.f32 %v767, 2e-10
      %v773 = vadd.f32 %v768, 2e-10
      %v774 = vmul.f32 %v405, %v405
      %v775 = vmul.f32 %v410, %v410
      %v776 = vmul.f32 %v415, %v415
      %v777 = vmul.f32 %v420, %v420
      %v778 = vmul.f32 %v425, %v425
      %v779 = vadd.f32 %v553, %v774
      %v780 = vadd.f32 %v554, %v775
      %v781 = vadd.f32 %v555, %v776
      %v782 = vadd.f32 %v556, %v777
      %v783 = vadd.f32 %v557, %v778
      %v784 = vmul.f32 %v520, %v520
      %v785 = vmul.f32 %v525, %v525
      %v786 = vmul.f32 %v530, %v530
      %v787 = vmul.f32 %v535, %v535
      %v788 = vmul.f32 %v540, %v540
      %v789 = vadd.f32 %v608, %v784
      %v790 = vadd.f32 %v609, %v785
      %v791 = vadd.f32 %v610, %v786
      %v792 = vadd.f32 %v611, %v787
      %v793 = vadd.f32 %v612, %v788
      %v794 = vmul.f32 %v543, %v548
      %v795 = vmul.f32 %v544, %v549
      %v796 = vmul.f32 %v545, %v550
      %v797 = vmul.f32 %v546, %v551
      %v798 = vmul.f32 %v547, %v552
      %v799 = vmul.f32 %v405, %v520
      %v800 = vmul.f32 %v410, %v525
      %v801 = vmul.f32 %v415, %v530
      %v802 = vmul.f32 %v420, %v535
      %v803 = vmul.f32 %v425, %v540
      %v804 = vadd.f32 %v794, %v799
      %v805 = vadd.f32 %v795, %v800
      %v806 = vadd.f32 %v796, %v801
      %v807 = vadd.f32 %v797, %v802
      %v808 = vadd.f32 %v798, %v803
      %v809 = vmul.f32 %v779, %v789
      %v810 = vmul.f32 %v780, %v790
      %v811 = vmul.f32 %v781, %v791
      %v812 = vmul.f32 %v782, %v792
      %v813 = vmul.f32 %v783, %v793
      %v814 = vmax.f32 %v809, 1e-30
      %v815 = vmax.f32 %v810, 1e-30
      %v816 = vmax.f32 %v811, 1e-30
      %v817 = vmax.f32 %v812, 1e-30
      %v818 = vmax.f32 %v813, 1e-30
      %v819 = vrsqrt.pop %v814
      %v820 = vrsqrt.pop %v815
      %v821 = vrsqrt.pop %v816
      %v822 = vrsqrt.pop %v817
      %v823 = vrsqrt.pop %v818
      %v824 = vmul.f32 %v804, %v819
      %v825 = vmul.f32 %v805, %v820
      %v826 = vmul.f32 %v806, %v821
      %v827 = vmul.f32 %v807, %v822
      %v828 = vmul.f32 %v808, %v823
      %v829 = vmul.f32 %v824, 0.9999999
      %v830 = vmul.f32 %v825, 0.9999999
      %v831 = vmul.f32 %v826, 0.9999999
      %v832 = vmul.f32 %v827, 0.9999999
      %v833 = vmul.f32 %v828, 0.9999999
      %v834 = vand.u32 2147483647, %v829
      %v835 = vand.u32 2147483647, %v830
      %v836 = vand.u32 2147483647, %v831
      %v837 = vand.u32 2147483647, %v832
      %v838 = vand.u32 2147483647, %v833
      %v839 = vmul.f32 %v834, -0.0012624911
      %v840 = vmul.f32 %v835, -0.0012624911
      %v841 = vmul.f32 %v836, -0.0012624911
      %v842 = vmul.f32 %v837, -0.0012624911
      %v843 = vmul.f32 %v838, -0.0012624911
      %v844 = vadd.f32 %v839, 0.00667009
      %v845 = vadd.f32 %v840, 0.00667009
      %v846 = vadd.f32 %v841, 0.00667009
      %v847 = vadd.f32 %v842, 0.00667009
      %v848 = vadd.f32 %v843, 0.00667009
      %v849 = vmul.f32 %v844, %v834
      %v850 = vmul.f32 %v845, %v835
      %v851 = vmul.f32 %v846, %v836
      %v852 = vmul.f32 %v847, %v837
      %v853 = vmul.f32 %v848, %v838
      %v854 = vadd.f32 %v849, -0.017088126
      %v855 = vadd.f32 %v850, -0.017088126
      %v856 = vadd.f32 %v851, -0.017088126
      %v857 = vadd.f32 %v852, -0.017088126
      %v858 = vadd.f32 %v853, -0.017088126
      %v859 = vmul.f32 %v854, %v834
      %v860 = vmul.f32 %v855, %v835
      %v861 = vmul.f32 %v856, %v836
      %v862 = vmul.f32 %v857, %v837
      %v863 = vmul.f32 %v858, %v838
      %v864 = vadd.f32 %v859, 0.03089188
      %v865 = vadd.f32 %v860, 0.03089188
      %v866 = vadd.f32 %v861, 0.03089188
      %v867 = vadd.f32 %v862, 0.03089188
      %v868 = vadd.f32 %v863, 0.03089188
      %v869 = vmul.f32 %v864, %v834
      %v870 = vmul.f32 %v865, %v835
      %v871 = vmul.f32 %v866, %v836
      %v872 = vmul.f32 %v867, %v837
      %v873 = vmul.f32 %v868, %v838
      %v874 = vadd.f32 %v869, -0.050174303
      %v875 = vadd.f32 %v870, -0.050174303
      %v876 = vadd.f32 %v871, -0.050174303
      %v877 = vadd.f32 %v872, -0.050174303
      %v878 = vadd.f32 %v873, -0.050174303
      %v879 = vmul.f32 %v874, %v834
      %v880 = vmul.f32 %v875, %v835
      %v881 = vmul.f32 %v876, %v836
      %v882 = vmul.f32 %v877, %v837
      %v883 = vmul.f32 %v878, %v838
      %v884 = vadd.f32 %v879, 0.08897899
      %v885 = vadd.f32 %v880, 0.08897899
      %v886 = vadd.f32 %v881, 0.08897899
      %v887 = vadd.f32 %v882, 0.08897899
      %v888 = vadd.f32 %v883, 0.08897899
      %v889 = vmul.f32 %v884, %v834
      %v890 = vmul.f32 %v885, %v835
      %v891 = vmul.f32 %v886, %v836
      %v892 = vmul.f32 %v887, %v837
      %v893 = vmul.f32 %v888, %v838
      %v894 = vadd.f32 %v889, -0.2145988
      %v895 = vadd.f32 %v890, -0.2145988
      %v896 = vadd.f32 %v891, -0.2145988
      %v897 = vadd.f32 %v892, -0.2145988
      %v898 = vadd.f32 %v893, -0.2145988
      %v899 = vmul.f32 %v894, %v834
      %v900 = vmul.f32 %v895, %v835
      %v901 = vmul.f32 %v896, %v836
      %v902 = vmul.f32 %v897, %v837
      %v903 = vmul.f32 %v898, %v838
      %v904 = vadd.f32 %v899, 1.5707963
      %v905 = vadd.f32 %v900, 1.5707963
      %v906 = vadd.f32 %v901, 1.5707963
      %v907 = vadd.f32 %v902, 1.5707963
      %v908 = vadd.f32 %v903, 1.5707963
      %v909 = vsub.f32 1.0, %v834
      %v910 = vsub.f32 1.0, %v835
      %v911 = vsub.f32 1.0, %v836
      %v912 = vsub.f32 1.0, %v837
      %v913 = vsub.f32 1.0, %v838
      %v914 = vmax.f32 %v909, 0.0
      %v915 = vmax.f32 %v910, 0.0
      %v916 = vmax.f32 %v911, 0.0
      %v917 = vmax.f32 %v912, 0.0
      %v918 = vmax.f32 %v913, 0.0
      %v919 = vrsqrt.pop %v914
      %v920 = vmul.f32 %v914, %v919
      %vm921 = vcmp.eq.f32.partialorder %v914, inf
      %v922 = vsel %vm921, %v914, %v920
      %vm923 = vcmp.eq.f32.partialorder %v914, 0.0
      %v924 = vand.u32 %v914, 2147483648
      %v925 = vsel %vm923, %v924, %v922
      %v926 = vrsqrt.pop %v915
      %v927 = vmul.f32 %v915, %v926
      %vm928 = vcmp.eq.f32.partialorder %v915, inf
      %v929 = vsel %vm928, %v915, %v927
      %vm930 = vcmp.eq.f32.partialorder %v915, 0.0
      %v931 = vand.u32 %v915, 2147483648
      %v932 = vsel %vm930, %v931, %v929
      %v933 = vrsqrt.pop %v916
      %v934 = vmul.f32 %v916, %v933
      %vm935 = vcmp.eq.f32.partialorder %v916, inf
      %v936 = vsel %vm935, %v916, %v934
      %vm937 = vcmp.eq.f32.partialorder %v916, 0.0
      %v938 = vand.u32 %v916, 2147483648
      %v939 = vsel %vm937, %v938, %v936
      %v940 = vrsqrt.pop %v917
      %v941 = vmul.f32 %v917, %v940
      %vm942 = vcmp.eq.f32.partialorder %v917, inf
      %v943 = vsel %vm942, %v917, %v941
      %vm944 = vcmp.eq.f32.partialorder %v917, 0.0
      %v945 = vand.u32 %v917, 2147483648
      %v946 = vsel %vm944, %v945, %v943
      %v947 = vrsqrt.pop %v918
      %v948 = vmul.f32 %v918, %v947
      %vm949 = vcmp.eq.f32.partialorder %v918, inf
      %v950 = vsel %vm949, %v918, %v948
      %vm951 = vcmp.eq.f32.partialorder %v918, 0.0
      %v952 = vand.u32 %v918, 2147483648
      %v953 = vsel %vm951, %v952, %v950
      %v954 = vmul.f32 %v925, %v904
      %v955 = vmul.f32 %v932, %v905
      %v956 = vmul.f32 %v939, %v906
      %v957 = vmul.f32 %v946, %v907
      %v958 = vmul.f32 %v953, %v908
      %vm959 = vcmp.lt.f32.partialorder %v829, 0.0
      %vm960 = vcmp.lt.f32.partialorder %v830, 0.0
      %vm961 = vcmp.lt.f32.partialorder %v831, 0.0
      %vm962 = vcmp.lt.f32.partialorder %v832, 0.0
      %vm963 = vcmp.lt.f32.partialorder %v833, 0.0
      %v964 = vsub.f32 3.1415927, %v954
      %v965 = vsub.f32 3.1415927, %v955
      %v966 = vsub.f32 3.1415927, %v956
      %v967 = vsub.f32 3.1415927, %v957
      %v968 = vsub.f32 3.1415927, %v958
      %v969 = vsel %vm959, %v964, %v954
      %v970 = vsel %vm960, %v965, %v955
      %v971 = vsel %vm961, %v966, %v956
      %v972 = vsel %vm962, %v967, %v957
      %v973 = vsel %vm963, %v968, %v958
      %v974 = vlaneseq
      %v975 = vshrl.u32 %v974, 7
      %v976 = vadd.s32 %v975, 8
      %v977 = vadd.s32 %v975, 16
      %v978 = vadd.s32 %v975, 24
      %v979 = vadd.s32 %v975, 32
      %vm980 = vcmp.eq.s32.totalorder %v975, 0
      %vm981 = vcmp.eq.s32.totalorder %v976, 0
      %vm982 = vcmp.eq.s32.totalorder %v977, 0
      %vm983 = vcmp.eq.s32.totalorder %v978, 0
      %vm984 = vcmp.eq.s32.totalorder %v979, 0
      %vm985 = vcmp.eq.s32.totalorder %v975, 4
      %vm986 = vcmp.eq.s32.totalorder %v976, 4
      %vm987 = vcmp.eq.s32.totalorder %v977, 4
      %vm988 = vcmp.eq.s32.totalorder %v978, 4
      %vm989 = vcmp.eq.s32.totalorder %v979, 4
      %vm990 = vmor %vm980, %vm985
      %vm991 = vmor %vm981, %vm986
      %vm992 = vmor %vm982, %vm987
      %vm993 = vmor %vm983, %vm988
      %vm994 = vmor %vm984, %vm989
      %vm995 = vcmp.eq.s32.totalorder %v975, 20
      %vm996 = vcmp.eq.s32.totalorder %v976, 20
      %vm997 = vcmp.eq.s32.totalorder %v977, 20
      %vm998 = vcmp.eq.s32.totalorder %v978, 20
      %vm999 = vcmp.eq.s32.totalorder %v979, 20
      %vm1000 = vmor %vm990, %vm995
      %vm1001 = vmor %vm991, %vm996
      %vm1002 = vmor %vm992, %vm997
      %vm1003 = vmor %vm993, %vm998
      %vm1004 = vmor %vm994, %vm999
      %vm1005 = vcmp.eq.s32.totalorder %v975, 24
      %vm1006 = vcmp.eq.s32.totalorder %v976, 24
      %vm1007 = vcmp.eq.s32.totalorder %v977, 24
      %vm1008 = vcmp.eq.s32.totalorder %v978, 24
      %vm1009 = vcmp.eq.s32.totalorder %v979, 24
      %vm1010 = vmor %vm1000, %vm1005
      %vm1011 = vmor %vm1001, %vm1006
      %vm1012 = vmor %vm1002, %vm1007
      %vm1013 = vmor %vm1003, %vm1008
      %vm1014 = vmor %vm1004, %vm1009
      %v1015 = vsel %vm1010, 0.0, 0.13533528
      %v1016 = vsel %vm1011, 0.0, 0.13533528
      %v1017 = vsel %vm1012, 0.0, 0.13533528
      %v1018 = vsel %vm1013, 0.0, 0.13533528
      %v1019 = vsel %vm1014, 0.0, 0.13533528
      %v1020 = vmul.f32 %v1015, %v969
      %v1021 = vmul.f32 %v1016, %v970
      %v1022 = vmul.f32 %v1017, %v971
      %v1023 = vmul.f32 %v1018, %v972
      %v1024 = vmul.f32 %v1019, %v973
      %v1025 = vadd.f32 %v769, %v1020
      %v1026 = vadd.f32 %v770, %v1021
      %v1027 = vadd.f32 %v771, %v1022
      %v1028 = vadd.f32 %v772, %v1023
      %v1029 = vadd.f32 %v773, %v1024
      %v1030 = vadd.f32 %v1025, %v1026
      %v1031 = vadd.f32 %v1030, %v1027
      %v1032 = vadd.f32 %v1031, %v1028
      %v1033 = vadd.f32 %v1032, %v1029
      %v1034 = vrot.slane %v1033, 4
      %v1035 = vadd.f32 %v1033, %v1034
      %v1036 = vrot.slane %v1035, 2
      %v1037 = vadd.f32 %v1035, %v1036
      %v1038 = vrot.slane %v1037, 1
      %v1039 = vadd.f32 %v1037, %v1038
      %v1040 = vld [vmem:[%s249] sm:$0x1]
      %1041 = vadd.xlane.f32.xlu0 %v1039
      %v1042 = vpop.xlane.xlu0 %1041
      %v1043 = vadd.f32 %v1040, %v1042
      %vm1044 = vcmask 0
      %1045 = vst.msk [vmem:[%s249] sm:$0x1] %vm1044, %v1043
      %p1046 = scmp.lt.s32.totalorder %s21, 1
      %s1047 = scalar_select %p1046, %s21, 1
      %s1048 = scalar_lea.vmem %s4, %s1047
      // Predicated region
      $region41: #{watson_distance_fft.1} parent=35 // pred_check
        %p1049 = pneg %p145
      $region42: #{watson_distance_fft.1} parent=35 // pred_check_branch
        %1051 = sbr.rel (%p1049) target = $region44
      $region43: #{watson_distance_fft.1} parent=35 // pred_region
        _
      $region44: #{watson_distance_fft.1} parent=35 // pred_fallthru
        _
    $region36: #{watson_distance_fft.1} parent=5 // pred_fallthru
      _
    %p1052 = scmp.le.s32.totalorder 2, %s12
    // Predicated region
    $region45: #{watson_distance_fft.1} parent=5 // pred_check
      %p1053 = pneg %p1052
    $region46: #{watson_distance_fft.1} parent=5 // pred_check_branch
      %1055 = sbr.rel (%p1053) target = $region48
    $region47: #{watson_distance_fft.1} parent=5 // pred_region
      %s1056 = ssub.s32 %s12, 2
      // Predicated region
      $region49: #{watson_distance_fft.1} parent=47 // pred_check
        %p1057 = pneg %p151
      $region50: #{watson_distance_fft.1} parent=47 // pred_check_branch
        %1059 = sbr.rel (%p1057) target = $region52
      $region51: #{watson_distance_fft.1} parent=47 // pred_region
        %p1060 = scmp.lt.s32.totalorder %s23, 1
        %s1061 = scalar_select %p1060, %s23, 1
        %s1062 = scalar_lea.vmem %s4, %s1061
      $region52: #{watson_distance_fft.1} parent=47 // pred_fallthru
        _
    $region48: #{watson_distance_fft.1} parent=5 // pred_fallthru
      _
  $region6: #{watson_distance_fft.1} parent=0 // loop_footer
    %s16 = sadd.s32 1, %s12
  $region7: #{watson_distance_fft.1} parent=0 // loop_footer_branch
    %11 = sbr.rel target = $region3
  $region8: #{watson_distance_fft.1} parent=0 // loop_exit
    _

</llo_original>
